<compile_context>
chip_gen: v7x
topology: tpu7x:2x2x1
jax: 0.10.0
libtpu: 0.0.40
codegen_flags: <defaults>
</compile_context>

<pallas_src>
import functools

import jax
import jax.numpy as jnp
from jax.experimental import pallas as pl
from jax.experimental.pallas import tpu as pltpu

LANE = 128                 # TPU lane width; conv output channels padded to this
ACT_DTYPE = jnp.bfloat16   # activation / MXU-operand dtype (f32 accumulation)

_VMEM = pl.BlockSpec(memory_space=pltpu.MemorySpace.VMEM)


# ---------------------------------------------------------------------------
# small helpers
# ---------------------------------------------------------------------------

def _round_up(x, m):
    return (x + m - 1) // m * m


def _pick_tile(total, preferred, quantum):
    """Largest multiple of `quantum` that divides `total` and is <= `preferred`;
    otherwise the full dimension (always a legal single block)."""
    if total <= preferred:
        return total
    best = None
    t = quantum
    while t <= preferred:
        if total % t == 0:
            best = t
        t += quantum
    return best if best is not None else total


# ---------------------------------------------------------------------------
# Pallas kernels
# ---------------------------------------------------------------------------

def _conv_fused_kernel(*refs, relu, has_res, nk):
    """Tiled matmul (im2col patches @ weights) with fused epilogue:
       y = acc * bn_scale + bn_shift   [+ residual]   [ReLU]
    Grid = (M tiles, K tiles). K is the reduction axis, accumulated in a
    float32 VMEM scratch; the epilogue runs only on the last K step."""
    if has_res:
        a_ref, b_ref, scale_ref, shift_ref, res_ref, o_ref, acc_ref = refs
    else:
        a_ref, b_ref, scale_ref, shift_ref, o_ref, acc_ref = refs
        res_ref = None
    k = pl.program_id(1)

    @pl.when(k == 0)
    def _init():
        acc_ref[...] = jnp.zeros_like(acc_ref)

    acc_ref[...] += jnp.dot(a_ref[...], b_ref[...],
                            preferred_element_type=jnp.float32)

    @pl.when(k == nk - 1)
    def _finalize():
        y = acc_ref[...] * scale_ref[...] + shift_ref[...]
        if has_res:
            y = y + res_ref[...].astype(jnp.float32)
        if relu:
            y = jnp.maximum(y, 0.0)
        o_ref[...] = y.astype(o_ref.dtype)


def _maxpool_kernel(p00_ref, p01_ref, p10_ref, p11_ref, o_ref, *, oh, ow):
    """3x3 / stride-2 / pad-1 max pool. Inputs are the 4 stride-phase slabs of
    the (-pad) padded feature map; the 9-tap max is computed entirely in VMEM."""
    ph = ((p00_ref[0], p01_ref[0]), (p10_ref[0], p11_ref[0]))
    acc = None
    for kh in range(3):
        for kw in range(3):
            v = ph[kh % 2][kw % 2]
            tap = v[kh // 2:kh // 2 + oh, kw // 2:kw // 2 + ow, :]
            acc = tap if acc is None else jnp.maximum(acc, tap)
    o_ref[0] = acc


def _head_kernel(x_ref, w_ref, b_ref, feat_ref, logit_ref):
    """Fused global average pool + fc: pooled features and logits in one call."""
    xf = x_ref[...].astype(jnp.float32)           # (N, H*W, C)
    pooled = jnp.mean(xf, axis=1)                 # (N, C)
    feat_ref[...] = pooled
    logit_ref[...] = (jnp.dot(pooled.astype(ACT_DTYPE), w_ref[...],
                              preferred_element_type=jnp.float32)
                      + b_ref[...])


# ---------------------------------------------------------------------------
# pallas_call wrappers
# ---------------------------------------------------------------------------

def matmul_bn_act(patches, weights, scale, shift, residual=None, relu=True):
    """patches (M, K) bf16 @ weights (K, Cpad) bf16 with fused BN/residual/ReLU."""
    m, k = patches.shape
    cout = weights.shape[1]
    tm = _pick_tile(m, 256, 128)       # M tile (multiple of 128 or full dim)
    tk = _pick_tile(k, 512, 128)       # K tile (multiple of 128 or full dim)
    nk = k // tk
    grid = (m // tm, nk)

    in_specs = [
        pl.BlockSpec((tm, tk), lambda i, kk: (i, kk)),
        pl.BlockSpec((tk, cout), lambda i, kk: (kk, 0)),
        pl.BlockSpec((1, cout), lambda i, kk: (0, 0)),
        pl.BlockSpec((1, cout), lambda i, kk: (0, 0)),
    ]
    args = [patches, weights, scale, shift]
    if residual is not None:
        in_specs.append(pl.BlockSpec((tm, cout), lambda i, kk: (i, 0)))
        args.append(residual)

    return pl.pallas_call(
        functools.partial(_conv_fused_kernel, relu=relu,
                          has_res=residual is not None, nk=nk),
        out_shape=jax.ShapeDtypeStruct((m, cout), ACT_DTYPE),
        grid_spec=pltpu.PrefetchScalarGridSpec(
            num_scalar_prefetch=0,
            grid=grid,
            in_specs=in_specs,
            out_specs=pl.BlockSpec((tm, cout), lambda i, kk: (i, 0)),
            scratch_shapes=[pltpu.VMEM((tm, cout), jnp.float32)]),
        compiler_params=pltpu.CompilerParams(
            dimension_semantics=("parallel", "arbitrary")),
    )(*args)


def maxpool_3x3_s2_p1(x):
    n, h, w, c = x.shape
    oh = (h + 2 - 3) // 2 + 1
    ow = (w + 2 - 3) // 2 + 1
    pad_val = float(jnp.finfo(x.dtype).min)
    xp = jnp.pad(x, ((0, 0), (1, 1), (1, 1), (0, 0)), constant_values=pad_val)
    # stride-2 phase decomposition (XLA glue; total bytes == 1x the feature map)
    phases = [xp[:, p::2, q::2, :] for p in range(2) for q in range(2)]
    ph_h, ph_w = phases[0].shape[1], phases[0].shape[2]

    return pl.pallas_call(
        functools.partial(_maxpool_kernel, oh=oh, ow=ow),
        out_shape=jax.ShapeDtypeStruct((n, oh, ow, c), x.dtype),
        grid_spec=pltpu.PrefetchScalarGridSpec(
            num_scalar_prefetch=0,
            grid=(n,),
            in_specs=[pl.BlockSpec((1, ph_h, ph_w, c),
                                   lambda b: (b, 0, 0, 0))] * 4,
            out_specs=pl.BlockSpec((1, oh, ow, c), lambda b: (b, 0, 0, 0))),
        compiler_params=pltpu.CompilerParams(dimension_semantics=("parallel",)),
    )(*phases)


def head(x_nhwc, fc_w, fc_b, feat_dim):
    n, h, w, c = x_nhwc.shape
    x2 = x_nhwc.reshape(n, h * w, c)
    num_class = fc_w.shape[1]
    feat, logits = pl.pallas_call(
        _head_kernel,
        out_shape=(jax.ShapeDtypeStruct((n, c), jnp.float32),
                   jax.ShapeDtypeStruct((n, num_class), jnp.float32)),
        in_specs=[_VMEM, _VMEM, _VMEM],
        out_specs=(_VMEM, _VMEM),
    )(x2, fc_w, fc_b)
    return feat[:, :feat_dim], logits


# ---------------------------------------------------------------------------
# glue: im2col, conv+bn, residual blocks
# ---------------------------------------------------------------------------

def _im2col(x, cin, kh, kw, stride, pad):
    """x: (N, H, W, Cpad) bf16, uses only the first `cin` (real) channels.
    -> patches (N*OH*OW, KH*KW*cin) bf16, column order (kh, kw, cin)."""
    # TODO(synk): patch extraction remains XLA glue (strided slices + concat);
    # in-kernel shifted-window reads would need Element-offset BlockSpecs.
    n, h, w, _ = x.shape
    xs = x[..., :cin]
    xp = jnp.pad(xs, ((0, 0), (pad, pad), (pad, pad), (0, 0)))
    oh = (h + 2 * pad - kh) // stride + 1
    ow = (w + 2 * pad - kw) // stride + 1
    cols = []
    for i in range(kh):
        for j in range(kw):
            cols.append(xp[:, i:i + stride * oh:stride,
                           j:j + stride * ow:stride, :])
    patches = jnp.concatenate(cols, axis=-1)            # (N, OH, OW, KH*KW*cin)
    return patches.reshape(n * oh * ow, kh * kw * cin), n, oh, ow


def conv_bn(x, cin, w, scale, shift, kh, kw, stride, pad, relu, residual=None):
    """Conv (im2col matmul) + folded BN (+ residual) (+ ReLU) in ONE pallas_call."""
    patches, n, oh, ow = _im2col(x, cin, kh, kw, stride, pad)
    cout = w.shape[1]                                    # lane-padded (=128)
    res2d = None if residual is None else residual.reshape(n * oh * ow, cout)
    y = matmul_bn_act(patches, w, scale, shift, residual=res2d, relu=relu)
    return y.reshape(n, oh, ow, cout)


def basic_block(x, bp, bc):
    cin = bc['in_c']
    if bc['has_down']:
        identity = conv_bn(x, cin, bp['down_w'], bp['down_bn']['scale'],
                           bp['down_bn']['shift'], 1, 1, bc['stride'], 0,
                           relu=False)
    else:
        identity = x
    out = conv_bn(x, cin, bp['conv1_w'], bp['bn1']['scale'], bp['bn1']['shift'],
                  3, 3, bc['stride'], 1, relu=True)
    # conv2 + BN + residual add + ReLU all fused in one call
    out = conv_bn(out, bc['out_c'], bp['conv2_w'], bp['bn2']['scale'],
                  bp['bn2']['shift'], 3, 3, 1, 1, relu=True, residual=identity)
    return out


def priornet_re_forward(images_nchw, params, cfg):
    """Returns (features, logits) matching the PyTorch module."""
    x = jnp.transpose(images_nchw, (0, 2, 3, 1)).astype(ACT_DTYPE)  # NCHW->NHWC
    in_ch = x.shape[-1]
    # stem: conv7x7/2 + bn + relu, then maxpool3x3/2
    x = conv_bn(x, in_ch, params['conv1_w'], params['bn1']['scale'],
                params['bn1']['shift'], 7, 7, 2, 3, relu=True)
    x = maxpool_3x3_s2_p1(x)
    # residual stages
    for lp, lc in zip(params['layers'], cfg):
        for bp, bc in zip(lp, lc):
            x = basic_block(x, bp, bc)
    # fused adaptive avg-pool (1,1) + fc
    feat_dim = cfg[-1][-1]['out_c']
    pooled, logits = head(x, params['fc_w'], params['fc_b'], feat_dim)
    features = pooled.reshape(pooled.shape[0], feat_dim, 1, 1)
    return features, logits


# ---------------------------------------------------------------------------
# deterministic synthetic parameters (no checkpoint loading)
# ---------------------------------------------------------------------------

def make_resnet_config(base, blocks_per_stage):
    widths = [base, base * 2, base * 4, base * 8]
    cfg = []
    in_c = base
    for li, (w, nb) in enumerate(zip(widths, blocks_per_stage)):
        blocks = []
        for bi in range(nb):
            stride = 2 if (li > 0 and bi == 0) else 1
            blocks.append({'in_c': in_c, 'out_c': w, 'stride': stride,
                           'has_down': (stride != 1 or in_c != w)})
            in_c = w
        cfg.append(blocks)
    return cfg


def _conv_w(key, cout, cin, kh, kw, cout_pad):
    fan_in = cin * kh * kw
    w = jax.random.normal(key, (kh, kw, cin, cout), jnp.float32)
    w = w * (2.0 / fan_in) ** 0.5
    w = w.reshape(kh * kw * cin, cout)                   # matmul layout
    w = jnp.pad(w, ((0, 0), (0, cout_pad - cout)))       # lane-dense output
    return w.astype(ACT_DTYPE)


def _bn(key, c, c_pad):
    k1, k2 = jax.random.split(key)
    scale = 1.0 + 0.05 * jax.random.normal(k1, (1, c), jnp.float32)
    shift = 0.05 * jax.random.normal(k2, (1, c), jnp.float32)
    scale = jnp.pad(scale, ((0, 0), (0, c_pad - c)), constant_values=1.0)
    shift = jnp.pad(shift, ((0, 0), (0, c_pad - c)))     # padded chans stay 0
    return {'scale': scale, 'shift': shift}


def init_params(cfg, base, num_class, in_ch, seed):
    key = jax.random.PRNGKey(seed)

    def nxt():
        nonlocal key
        key, sub = jax.random.split(key)
        return sub

    base_pad = _round_up(base, LANE)
    params = {'conv1_w': _conv_w(nxt(), base, in_ch, 7, 7, base_pad),
              'bn1': _bn(nxt(), base, base_pad),
              'layers': []}
    for blocks in cfg:
        lp = []
        for b in blocks:
            cpad = _round_up(b['out_c'], LANE)
            bp = {'conv1_w': _conv_w(nxt(), b['out_c'], b['in_c'], 3, 3, cpad),
                  'bn1': _bn(nxt(), b['out_c'], cpad),
                  'conv2_w': _conv_w(nxt(), b['out_c'], b['out_c'], 3, 3, cpad),
                  'bn2': _bn(nxt(), b['out_c'], cpad)}
            if b['has_down']:
                bp['down_w'] = _conv_w(nxt(), b['out_c'], b['in_c'], 1, 1, cpad)
                bp['down_bn'] = _bn(nxt(), b['out_c'], cpad)
            lp.append(bp)
        params['layers'].append(lp)
    feat_dim = cfg[-1][-1]['out_c']
    feat_pad = _round_up(feat_dim, LANE)
    fc_w = jax.random.normal(nxt(), (feat_dim, num_class),
                             jnp.float32) / feat_dim ** 0.5
    fc_w = jnp.pad(fc_w, ((0, feat_pad - feat_dim), (0, 0)))
    params['fc_w'] = fc_w.astype(ACT_DTYPE)
    params['fc_b'] = 0.01 * jax.random.normal(nxt(), (1, num_class), jnp.float32)
    return params


# ---------------------------------------------------------------------------
# main
# ---------------------------------------------------------------------------

if __name__ == "__main__":
    MODEL = 'ResNet18'                      # ResNet18 -> [2,2,2,2] basic blocks
    BLOCKS = {'ResNet18': (2, 2, 2, 2), 'ResNet34': (3, 4, 6, 3)}[MODEL]
    BASE = 16                               # scaled-down width (real model: 64)
    NUM_CLASS = 10
    # TODO(synk): pretrained torchvision weights are replaced by deterministic
    # synthetic initialization (no .pt/.pth loading in this environment).

    cfg = make_resnet_config(BASE, BLOCKS)
    params = init_params(cfg, BASE, NUM_CLASS, in_ch=3, seed=1)

    key = jax.random.PRNGKey(0)
    images = jax.random.normal(key, (2, 3, 32, 32), jnp.float32)   # NCHW input

    fwd = jax.jit(lambda x: priornet_re_forward(x, params, cfg))
    features, out = fwd(images)
    jax.block_until_ready((features, out))

    assert features.shape == (2, BASE * 8, 1, 1), features.shape
    assert out.shape == (2, NUM_CLASS), out.shape
    assert features.dtype == jnp.float32 and out.dtype == jnp.float32
    print("KERNEL_OK")
</pallas_src>

<mosaic_0001>
module attributes {stable_mosaic.version = 11 : i64} {
  func.func @_conv_fused_kernel(%arg0: i32, %arg1: i32, %arg2: memref<256x147xbf16, #tpu.memory_space<vmem>>, %arg3: memref<147x128xbf16, #tpu.memory_space<vmem>>, %arg4: memref<1x128xf32, #tpu.memory_space<vmem>>, %arg5: memref<1x128xf32, #tpu.memory_space<vmem>>, %arg6: memref<256x128xbf16, #tpu.memory_space<vmem>>, %arg7: memref<256x128xf32, #tpu.memory_space<vmem>>) attributes {dimension_semantics = [#tpu.dimension_semantics<parallel>, #tpu.dimension_semantics<arbitrary>], iteration_bounds = array<i64: 2, 1>, scalar_prefetch = 0 : i64, scratch_operands = 1 : i64, tpu.core_type = #tpu.core_type<tc>, window_params = [{transform_indices = @transform_0, window_bounds = array<i64: 256, 147>}, {transform_indices = @transform_1, window_bounds = array<i64: 147, 128>}, {pipeline_mode = #tpu.pipeline_mode<synchronous>, transform_indices = @transform_2, window_bounds = array<i64: 1, 128>}, {pipeline_mode = #tpu.pipeline_mode<synchronous>, transform_indices = @transform_3, window_bounds = array<i64: 1, 128>}, {transform_indices = @transform_4, window_bounds = array<i64: 256, 128>}]} {
    %c0_i32 = arith.constant 0 : i32
    %0 = arith.cmpi eq, %arg1, %c0_i32 : i32
    %1 = arith.extui %0 : i1 to i32
    %c0_i32_0 = arith.constant 0 : i32
    %2 = arith.cmpi ne, %1, %c0_i32_0 : i32
    scf.if %2 {
      %cst_10 = arith.constant 0.000000e+00 : f32
      %12 = vector.broadcast %cst_10 : f32 to vector<256x128xf32>
      %c0_11 = arith.constant 0 : index
      %c0_12 = arith.constant 0 : index
      %13 = vector.load %arg7[%c0_11, %c0_12] : memref<256x128xf32, #tpu.memory_space<vmem>>, vector<256x128xf32>
      tpu.vector_store %arg7[%c0_11, %c0_12], %12 {strides = array<i32>} : memref<256x128xf32, #tpu.memory_space<vmem>>, vector<256x128xf32>,
    } else {
    }
    %c0 = arith.constant 0 : index
    %c0_1 = arith.constant 0 : index
    %3 = vector.load %arg7[%c0, %c0_1] : memref<256x128xf32, #tpu.memory_space<vmem>>, vector<256x128xf32>
    %c0_2 = arith.constant 0 : index
    %c0_3 = arith.constant 0 : index
    %4 = vector.load %arg2[%c0_2, %c0_3] : memref<256x147xbf16, #tpu.memory_space<vmem>>, vector<256x147xbf16>
    %c0_4 = arith.constant 0 : index
    %c0_5 = arith.constant 0 : index
    %5 = vector.load %arg3[%c0_4, %c0_5] : memref<147x128xbf16, #tpu.memory_space<vmem>>, vector<147x128xbf16>
    %cst = arith.constant dense<0.000000e+00> : vector<256x128xf32>
    %6 = tpu.matmul %4, %5, %cst {dimension_numbers = #tpu.dot_dimension_numbers<[1], [0], [0], [1], [0, 0, 1, 1], [], []>} : vector<256x147xbf16>, vector<147x128xbf16>, vector<256x128xf32> -> vector<256x128xf32>
    %7 = arith.addf %3, %6 : vector<256x128xf32>
    %c0_6 = arith.constant 0 : index
    %c0_7 = arith.constant 0 : index
    %8 = vector.load %arg7[%c0_6, %c0_7] : memref<256x128xf32, #tpu.memory_space<vmem>>, vector<256x128xf32>
    tpu.vector_store %arg7[%c0_6, %c0_7], %7 {strides = array<i32>} : memref<256x128xf32, #tpu.memory_space<vmem>>, vector<256x128xf32>,
    %c0_i32_8 = arith.constant 0 : i32
    %9 = arith.cmpi eq, %arg1, %c0_i32_8 : i32
    %10 = arith.extui %9 : i1 to i32
    %c0_i32_9 = arith.constant 0 : i32
    %11 = arith.cmpi ne, %10, %c0_i32_9 : i32
    scf.if %11 {
      %c0_10 = arith.constant 0 : index
      %c0_11 = arith.constant 0 : index
      %12 = vector.load %arg7[%c0_10, %c0_11] : memref<256x128xf32, #tpu.memory_space<vmem>>, vector<256x128xf32>
      %c0_12 = arith.constant 0 : index
      %c0_13 = arith.constant 0 : index
      %13 = vector.load %arg4[%c0_12, %c0_13] : memref<1x128xf32, #tpu.memory_space<vmem>>, vector<1x128xf32>
      %14 = vector.broadcast %13 : vector<1x128xf32> to vector<256x128xf32>
      %15 = arith.mulf %12, %14 : vector<256x128xf32>
      %c0_14 = arith.constant 0 : index
      %c0_15 = arith.constant 0 : index
      %16 = vector.load %arg5[%c0_14, %c0_15] : memref<1x128xf32, #tpu.memory_space<vmem>>, vector<1x128xf32>
      %17 = vector.broadcast %16 : vector<1x128xf32> to vector<256x128xf32>
      %18 = arith.addf %15, %17 : vector<256x128xf32>
      %cst_16 = arith.constant 0.000000e+00 : f32
      %19 = vector.broadcast %cst_16 : f32 to vector<256x128xf32>
      %20 = arith.maximumf %18, %19 : vector<256x128xf32>
      %21 = arith.truncf %20 : vector<256x128xf32> to vector<256x128xbf16>
      %c0_17 = arith.constant 0 : index
      %c0_18 = arith.constant 0 : index
      %22 = vector.load %arg6[%c0_17, %c0_18] : memref<256x128xbf16, #tpu.memory_space<vmem>>, vector<256x128xbf16>
      tpu.vector_store %arg6[%c0_17, %c0_18], %21 {strides = array<i32>} : memref<256x128xbf16, #tpu.memory_space<vmem>>, vector<256x128xbf16>,
    } else {
    }
    return
  }
  func.func @transform_0(%arg0: i32, %arg1: i32) -> (i32, i32) {
    %c0_i32 = arith.constant 0 : i32
    return %arg0, %arg1 : i32, i32
  }
  func.func @transform_1(%arg0: i32, %arg1: i32) -> (i32, i32) {
    %c0_i32 = arith.constant 0 : i32
    %c0_i32_0 = arith.constant 0 : i32
    return %arg1, %c0_i32 : i32, i32
  }
  func.func @transform_2(%arg0: i32, %arg1: i32) -> (i32, i32) {
    %c0_i32 = arith.constant 0 : i32
    %c0_i32_0 = arith.constant 0 : i32
    %c0_i32_1 = arith.constant 0 : i32
    return %c0_i32, %c0_i32_0 : i32, i32
  }
  func.func @transform_3(%arg0: i32, %arg1: i32) -> (i32, i32) {
    %c0_i32 = arith.constant 0 : i32
    %c0_i32_0 = arith.constant 0 : i32
    %c0_i32_1 = arith.constant 0 : i32
    return %c0_i32, %c0_i32_0 : i32, i32
  }
  func.func @transform_4(%arg0: i32, %arg1: i32) -> (i32, i32) {
    %c0_i32 = arith.constant 0 : i32
    %c0_i32_0 = arith.constant 0 : i32
    return %arg0, %c0_i32 : i32, i32
  }
}

module attributes {stable_mosaic.version = 11 : i64} {
  func.func @_maxpool_kernel(%arg0: i32, %arg1: memref<1x9x9x128xbf16, #tpu.memory_space<vmem>>, %arg2: memref<1x9x9x128xbf16, #tpu.memory_space<vmem>>, %arg3: memref<1x9x9x128xbf16, #tpu.memory_space<vmem>>, %arg4: memref<1x9x9x128xbf16, #tpu.memory_space<vmem>>, %arg5: memref<1x8x8x128xbf16, #tpu.memory_space<vmem>>) attributes {dimension_semantics = [#tpu.dimension_semantics<parallel>], iteration_bounds = array<i64: 2>, scalar_prefetch = 0 : i64, scratch_operands = 0 : i64, tpu.core_type = #tpu.core_type<tc>, window_params = [{transform_indices = @transform_0, window_bounds = array<i64: 1, 9, 9, 128>}, {transform_indices = @transform_1, window_bounds = array<i64: 1, 9, 9, 128>}, {transform_indices = @transform_2, window_bounds = array<i64: 1, 9, 9, 128>}, {transform_indices = @transform_3, window_bounds = array<i64: 1, 9, 9, 128>}, {transform_indices = @transform_4, window_bounds = array<i64: 1, 8, 8, 128>}]} {
    %c0 = arith.constant 0 : index
    %c0_0 = arith.constant 0 : index
    %c0_1 = arith.constant 0 : index
    %c0_2 = arith.constant 0 : index
    %0 = vector.load %arg1[%c0, %c0_0, %c0_1, %c0_2] : memref<1x9x9x128xbf16, #tpu.memory_space<vmem>>, vector<1x9x9x128xbf16>
    %1 = vector.shape_cast %0 : vector<1x9x9x128xbf16> to vector<9x9x128xbf16>
    %c0_3 = arith.constant 0 : index
    %c0_4 = arith.constant 0 : index
    %c0_5 = arith.constant 0 : index
    %c0_6 = arith.constant 0 : index
    %2 = vector.load %arg2[%c0_3, %c0_4, %c0_5, %c0_6] : memref<1x9x9x128xbf16, #tpu.memory_space<vmem>>, vector<1x9x9x128xbf16>
    %3 = vector.shape_cast %2 : vector<1x9x9x128xbf16> to vector<9x9x128xbf16>
    %c0_7 = arith.constant 0 : index
    %c0_8 = arith.constant 0 : index
    %c0_9 = arith.constant 0 : index
    %c0_10 = arith.constant 0 : index
    %4 = vector.load %arg3[%c0_7, %c0_8, %c0_9, %c0_10] : memref<1x9x9x128xbf16, #tpu.memory_space<vmem>>, vector<1x9x9x128xbf16>
    %5 = vector.shape_cast %4 : vector<1x9x9x128xbf16> to vector<9x9x128xbf16>
    %c0_11 = arith.constant 0 : index
    %c0_12 = arith.constant 0 : index
    %c0_13 = arith.constant 0 : index
    %c0_14 = arith.constant 0 : index
    %6 = vector.load %arg4[%c0_11, %c0_12, %c0_13, %c0_14] : memref<1x9x9x128xbf16, #tpu.memory_space<vmem>>, vector<1x9x9x128xbf16>
    %7 = vector.shape_cast %6 : vector<1x9x9x128xbf16> to vector<9x9x128xbf16>
    %8 = vector.extract_strided_slice %1 {offsets = [0, 0, 0], sizes = [8, 8, 128], strides = [1, 1, 1]} : vector<9x9x128xbf16> to vector<8x8x128xbf16>
    %9 = vector.extract_strided_slice %3 {offsets = [0, 0, 0], sizes = [8, 8, 128], strides = [1, 1, 1]} : vector<9x9x128xbf16> to vector<8x8x128xbf16>
    %10 = arith.maximumf %8, %9 : vector<8x8x128xbf16>
    %11 = vector.extract_strided_slice %1 {offsets = [0, 1, 0], sizes = [8, 8, 128], strides = [1, 1, 1]} : vector<9x9x128xbf16> to vector<8x8x128xbf16>
    %12 = arith.maximumf %10, %11 : vector<8x8x128xbf16>
    %13 = vector.extract_strided_slice %5 {offsets = [0, 0, 0], sizes = [8, 8, 128], strides = [1, 1, 1]} : vector<9x9x128xbf16> to vector<8x8x128xbf16>
    %14 = arith.maximumf %12, %13 : vector<8x8x128xbf16>
    %15 = vector.extract_strided_slice %7 {offsets = [0, 0, 0], sizes = [8, 8, 128], strides = [1, 1, 1]} : vector<9x9x128xbf16> to vector<8x8x128xbf16>
    %16 = arith.maximumf %14, %15 : vector<8x8x128xbf16>
    %17 = vector.extract_strided_slice %5 {offsets = [0, 1, 0], sizes = [8, 8, 128], strides = [1, 1, 1]} : vector<9x9x128xbf16> to vector<8x8x128xbf16>
    %18 = arith.maximumf %16, %17 : vector<8x8x128xbf16>
    %19 = vector.extract_strided_slice %1 {offsets = [1, 0, 0], sizes = [8, 8, 128], strides = [1, 1, 1]} : vector<9x9x128xbf16> to vector<8x8x128xbf16>
    %20 = arith.maximumf %18, %19 : vector<8x8x128xbf16>
    %21 = vector.extract_strided_slice %3 {offsets = [1, 0, 0], sizes = [8, 8, 128], strides = [1, 1, 1]} : vector<9x9x128xbf16> to vector<8x8x128xbf16>
    %22 = arith.maximumf %20, %21 : vector<8x8x128xbf16>
    %23 = vector.extract_strided_slice %1 {offsets = [1, 1, 0], sizes = [8, 8, 128], strides = [1, 1, 1]} : vector<9x9x128xbf16> to vector<8x8x128xbf16>
    %24 = arith.maximumf %22, %23 : vector<8x8x128xbf16>
    %c0_15 = arith.constant 0 : index
    %c0_16 = arith.constant 0 : index
    %c0_17 = arith.constant 0 : index
    %c0_18 = arith.constant 0 : index
    %25 = vector.load %arg5[%c0_15, %c0_16, %c0_17, %c0_18] : memref<1x8x8x128xbf16, #tpu.memory_space<vmem>>, vector<1x8x8x128xbf16>
    %26 = vector.shape_cast %25 : vector<1x8x8x128xbf16> to vector<8x8x128xbf16>
    %27 = vector.shape_cast %24 : vector<8x8x128xbf16> to vector<1x8x8x128xbf16>
    tpu.vector_store %arg5[%c0_15, %c0_16, %c0_17, %c0_18], %27 {strides = array<i32>} : memref<1x8x8x128xbf16, #tpu.memory_space<vmem>>, vector<1x8x8x128xbf16>,
    return
  }
  func.func @transform_0(%arg0: i32) -> (i32, i32, i32, i32) {
    %c0_i32 = arith.constant 0 : i32
    %c0_i32_0 = arith.constant 0 : i32
    %c0_i32_1 = arith.constant 0 : i32
    %c0_i32_2 = arith.constant 0 : i32
    return %arg0, %c0_i32, %c0_i32_0, %c0_i32_1 : i32, i32, i32, i32
  }
  func.func @transform_1(%arg0: i32) -> (i32, i32, i32, i32) {
    %c0_i32 = arith.constant 0 : i32
    %c0_i32_0 = arith.constant 0 : i32
    %c0_i32_1 = arith.constant 0 : i32
    %c0_i32_2 = arith.constant 0 : i32
    return %arg0, %c0_i32, %c0_i32_0, %c0_i32_1 : i32, i32, i32, i32
  }
  func.func @transform_2(%arg0: i32) -> (i32, i32, i32, i32) {
    %c0_i32 = arith.constant 0 : i32
    %c0_i32_0 = arith.constant 0 : i32
    %c0_i32_1 = arith.constant 0 : i32
    %c0_i32_2 = arith.constant 0 : i32
    return %arg0, %c0_i32, %c0_i32_0, %c0_i32_1 : i32, i32, i32, i32
  }
  func.func @transform_3(%arg0: i32) -> (i32, i32, i32, i32) {
    %c0_i32 = arith.constant 0 : i32
    %c0_i32_0 = arith.constant 0 : i32
    %c0_i32_1 = arith.constant 0 : i32
    %c0_i32_2 = arith.constant 0 : i32
    return %arg0, %c0_i32, %c0_i32_0, %c0_i32_1 : i32, i32, i32, i32
  }
  func.func @transform_4(%arg0: i32) -> (i32, i32, i32, i32) {
    %c0_i32 = arith.constant 0 : i32
    %c0_i32_0 = arith.constant 0 : i32
    %c0_i32_1 = arith.constant 0 : i32
    %c0_i32_2 = arith.constant 0 : i32
    return %arg0, %c0_i32, %c0_i32_0, %c0_i32_1 : i32, i32, i32, i32
  }
}

module attributes {stable_mosaic.version = 11 : i64} {
  func.func @_conv_fused_kernel(%arg0: i32, %arg1: i32, %arg2: memref<128x144xbf16, #tpu.memory_space<vmem>>, %arg3: memref<144x128xbf16, #tpu.memory_space<vmem>>, %arg4: memref<1x128xf32, #tpu.memory_space<vmem>>, %arg5: memref<1x128xf32, #tpu.memory_space<vmem>>, %arg6: memref<128x128xbf16, #tpu.memory_space<vmem>>, %arg7: memref<128x128xf32, #tpu.memory_space<vmem>>) attributes {dimension_semantics = [#tpu.dimension_semantics<parallel>, #tpu.dimension_semantics<arbitrary>], iteration_bounds = array<i64: 1, 1>, scalar_prefetch = 0 : i64, scratch_operands = 1 : i64, tpu.core_type = #tpu.core_type<tc>, window_params = [{transform_indices = @transform_0, window_bounds = array<i64: 128, 144>}, {transform_indices = @transform_1, window_bounds = array<i64: 144, 128>}, {pipeline_mode = #tpu.pipeline_mode<synchronous>, transform_indices = @transform_2, window_bounds = array<i64: 1, 128>}, {pipeline_mode = #tpu.pipeline_mode<synchronous>, transform_indices = @transform_3, window_bounds = array<i64: 1, 128>}, {transform_indices = @transform_4, window_bounds = array<i64: 128, 128>}]} {
    %c0_i32 = arith.constant 0 : i32
    %0 = arith.cmpi eq, %arg1, %c0_i32 : i32
    %1 = arith.extui %0 : i1 to i32
    %c0_i32_0 = arith.constant 0 : i32
    %2 = arith.cmpi ne, %1, %c0_i32_0 : i32
    scf.if %2 {
      %cst_10 = arith.constant 0.000000e+00 : f32
      %12 = vector.broadcast %cst_10 : f32 to vector<128x128xf32>
      %c0_11 = arith.constant 0 : index
      %c0_12 = arith.constant 0 : index
      %13 = vector.load %arg7[%c0_11, %c0_12] : memref<128x128xf32, #tpu.memory_space<vmem>>, vector<128x128xf32>
      tpu.vector_store %arg7[%c0_11, %c0_12], %12 {strides = array<i32>} : memref<128x128xf32, #tpu.memory_space<vmem>>, vector<128x128xf32>,
    } else {
    }
    %c0 = arith.constant 0 : index
    %c0_1 = arith.constant 0 : index
    %3 = vector.load %arg7[%c0, %c0_1] : memref<128x128xf32, #tpu.memory_space<vmem>>, vector<128x128xf32>
    %c0_2 = arith.constant 0 : index
    %c0_3 = arith.constant 0 : index
    %4 = vector.load %arg2[%c0_2, %c0_3] : memref<128x144xbf16, #tpu.memory_space<vmem>>, vector<128x144xbf16>
    %c0_4 = arith.constant 0 : index
    %c0_5 = arith.constant 0 : index
    %5 = vector.load %arg3[%c0_4, %c0_5] : memref<144x128xbf16, #tpu.memory_space<vmem>>, vector<144x128xbf16>
    %cst = arith.constant dense<0.000000e+00> : vector<128x128xf32>
    %6 = tpu.matmul %4, %5, %cst {dimension_numbers = #tpu.dot_dimension_numbers<[1], [0], [0], [1], [0, 0, 1, 1], [], []>} : vector<128x144xbf16>, vector<144x128xbf16>, vector<128x128xf32> -> vector<128x128xf32>
    %7 = arith.addf %3, %6 : vector<128x128xf32>
    %c0_6 = arith.constant 0 : index
    %c0_7 = arith.constant 0 : index
    %8 = vector.load %arg7[%c0_6, %c0_7] : memref<128x128xf32, #tpu.memory_space<vmem>>, vector<128x128xf32>
    tpu.vector_store %arg7[%c0_6, %c0_7], %7 {strides = array<i32>} : memref<128x128xf32, #tpu.memory_space<vmem>>, vector<128x128xf32>,
    %c0_i32_8 = arith.constant 0 : i32
    %9 = arith.cmpi eq, %arg1, %c0_i32_8 : i32
    %10 = arith.extui %9 : i1 to i32
    %c0_i32_9 = arith.constant 0 : i32
    %11 = arith.cmpi ne, %10, %c0_i32_9 : i32
    scf.if %11 {
      %c0_10 = arith.constant 0 : index
      %c0_11 = arith.constant 0 : index
      %12 = vector.load %arg7[%c0_10, %c0_11] : memref<128x128xf32, #tpu.memory_space<vmem>>, vector<128x128xf32>
      %c0_12 = arith.constant 0 : index
      %c0_13 = arith.constant 0 : index
      %13 = vector.load %arg4[%c0_12, %c0_13] : memref<1x128xf32, #tpu.memory_space<vmem>>, vector<1x128xf32>
      %14 = vector.broadcast %13 : vector<1x128xf32> to vector<128x128xf32>
      %15 = arith.mulf %12, %14 : vector<128x128xf32>
      %c0_14 = arith.constant 0 : index
      %c0_15 = arith.constant 0 : index
      %16 = vector.load %arg5[%c0_14, %c0_15] : memref<1x128xf32, #tpu.memory_space<vmem>>, vector<1x128xf32>
      %17 = vector.broadcast %16 : vector<1x128xf32> to vector<128x128xf32>
      %18 = arith.addf %15, %17 : vector<128x128xf32>
      %cst_16 = arith.constant 0.000000e+00 : f32
      %19 = vector.broadcast %cst_16 : f32 to vector<128x128xf32>
      %20 = arith.maximumf %18, %19 : vector<128x128xf32>
      %21 = arith.truncf %20 : vector<128x128xf32> to vector<128x128xbf16>
      %c0_17 = arith.constant 0 : index
      %c0_18 = arith.constant 0 : index
      %22 = vector.load %arg6[%c0_17, %c0_18] : memref<128x128xbf16, #tpu.memory_space<vmem>>, vector<128x128xbf16>
      tpu.vector_store %arg6[%c0_17, %c0_18], %21 {strides = array<i32>} : memref<128x128xbf16, #tpu.memory_space<vmem>>, vector<128x128xbf16>,
    } else {
    }
    return
  }
  func.func @transform_0(%arg0: i32, %arg1: i32) -> (i32, i32) {
    %c0_i32 = arith.constant 0 : i32
    return %arg0, %arg1 : i32, i32
  }
  func.func @transform_1(%arg0: i32, %arg1: i32) -> (i32, i32) {
    %c0_i32 = arith.constant 0 : i32
    %c0_i32_0 = arith.constant 0 : i32
    return %arg1, %c0_i32 : i32, i32
  }
  func.func @transform_2(%arg0: i32, %arg1: i32) -> (i32, i32) {
    %c0_i32 = arith.constant 0 : i32
    %c0_i32_0 = arith.constant 0 : i32
    %c0_i32_1 = arith.constant 0 : i32
    return %c0_i32, %c0_i32_0 : i32, i32
  }
  func.func @transform_3(%arg0: i32, %arg1: i32) -> (i32, i32) {
    %c0_i32 = arith.constant 0 : i32
    %c0_i32_0 = arith.constant 0 : i32
    %c0_i32_1 = arith.constant 0 : i32
    return %c0_i32, %c0_i32_0 : i32, i32
  }
  func.func @transform_4(%arg0: i32, %arg1: i32) -> (i32, i32) {
    %c0_i32 = arith.constant 0 : i32
    %c0_i32_0 = arith.constant 0 : i32
    return %arg0, %c0_i32 : i32, i32
  }
}

module attributes {stable_mosaic.version = 11 : i64} {
  func.func @_conv_fused_kernel(%arg0: i32, %arg1: i32, %arg2: memref<128x144xbf16, #tpu.memory_space<vmem>>, %arg3: memref<144x128xbf16, #tpu.memory_space<vmem>>, %arg4: memref<1x128xf32, #tpu.memory_space<vmem>>, %arg5: memref<1x128xf32, #tpu.memory_space<vmem>>, %arg6: memref<128x128xbf16, #tpu.memory_space<vmem>>, %arg7: memref<128x128xbf16, #tpu.memory_space<vmem>>, %arg8: memref<128x128xf32, #tpu.memory_space<vmem>>) attributes {dimension_semantics = [#tpu.dimension_semantics<parallel>, #tpu.dimension_semantics<arbitrary>], iteration_bounds = array<i64: 1, 1>, scalar_prefetch = 0 : i64, scratch_operands = 1 : i64, tpu.core_type = #tpu.core_type<tc>, window_params = [{transform_indices = @transform_0, window_bounds = array<i64: 128, 144>}, {transform_indices = @transform_1, window_bounds = array<i64: 144, 128>}, {pipeline_mode = #tpu.pipeline_mode<synchronous>, transform_indices = @transform_2, window_bounds = array<i64: 1, 128>}, {pipeline_mode = #tpu.pipeline_mode<synchronous>, transform_indices = @transform_3, window_bounds = array<i64: 1, 128>}, {transform_indices = @transform_4, window_bounds = array<i64: 128, 128>}, {transform_indices = @transform_5, window_bounds = array<i64: 128, 128>}]} {
    %c0_i32 = arith.constant 0 : i32
    %0 = arith.cmpi eq, %arg1, %c0_i32 : i32
    %1 = arith.extui %0 : i1 to i32
    %c0_i32_0 = arith.constant 0 : i32
    %2 = arith.cmpi ne, %1, %c0_i32_0 : i32
    scf.if %2 {
      %cst_10 = arith.constant 0.000000e+00 : f32
      %12 = vector.broadcast %cst_10 : f32 to vector<128x128xf32>
      %c0_11 = arith.constant 0 : index
      %c0_12 = arith.constant 0 : index
      %13 = vector.load %arg8[%c0_11, %c0_12] : memref<128x128xf32, #tpu.memory_space<vmem>>, vector<128x128xf32>
      tpu.vector_store %arg8[%c0_11, %c0_12], %12 {strides = array<i32>} : memref<128x128xf32, #tpu.memory_space<vmem>>, vector<128x128xf32>,
    } else {
    }
    %c0 = arith.constant 0 : index
    %c0_1 = arith.constant 0 : index
    %3 = vector.load %arg8[%c0, %c0_1] : memref<128x128xf32, #tpu.memory_space<vmem>>, vector<128x128xf32>
    %c0_2 = arith.constant 0 : index
    %c0_3 = arith.constant 0 : index
    %4 = vector.load %arg2[%c0_2, %c0_3] : memref<128x144xbf16, #tpu.memory_space<vmem>>, vector<128x144xbf16>
    %c0_4 = arith.constant 0 : index
    %c0_5 = arith.constant 0 : index
    %5 = vector.load %arg3[%c0_4, %c0_5] : memref<144x128xbf16, #tpu.memory_space<vmem>>, vector<144x128xbf16>
    %cst = arith.constant dense<0.000000e+00> : vector<128x128xf32>
    %6 = tpu.matmul %4, %5, %cst {dimension_numbers = #tpu.dot_dimension_numbers<[1], [0], [0], [1], [0, 0, 1, 1], [], []>} : vector<128x144xbf16>, vector<144x128xbf16>, vector<128x128xf32> -> vector<128x128xf32>
    %7 = arith.addf %3, %6 : vector<128x128xf32>
    %c0_6 = arith.constant 0 : index
    %c0_7 = arith.constant 0 : index
    %8 = vector.load %arg8[%c0_6, %c0_7] : memref<128x128xf32, #tpu.memory_space<vmem>>, vector<128x128xf32>
    tpu.vector_store %arg8[%c0_6, %c0_7], %7 {strides = array<i32>} : memref<128x128xf32, #tpu.memory_space<vmem>>, vector<128x128xf32>,
    %c0_i32_8 = arith.constant 0 : i32
    %9 = arith.cmpi eq, %arg1, %c0_i32_8 : i32
    %10 = arith.extui %9 : i1 to i32
    %c0_i32_9 = arith.constant 0 : i32
    %11 = arith.cmpi ne, %10, %c0_i32_9 : i32
    scf.if %11 {
      %c0_10 = arith.constant 0 : index
      %c0_11 = arith.constant 0 : index
      %12 = vector.load %arg8[%c0_10, %c0_11] : memref<128x128xf32, #tpu.memory_space<vmem>>, vector<128x128xf32>
      %c0_12 = arith.constant 0 : index
      %c0_13 = arith.constant 0 : index
      %13 = vector.load %arg4[%c0_12, %c0_13] : memref<1x128xf32, #tpu.memory_space<vmem>>, vector<1x128xf32>
      %14 = vector.broadcast %13 : vector<1x128xf32> to vector<128x128xf32>
      %15 = arith.mulf %12, %14 : vector<128x128xf32>
      %c0_14 = arith.constant 0 : index
      %c0_15 = arith.constant 0 : index
      %16 = vector.load %arg5[%c0_14, %c0_15] : memref<1x128xf32, #tpu.memory_space<vmem>>, vector<1x128xf32>
      %17 = vector.broadcast %16 : vector<1x128xf32> to vector<128x128xf32>
      %18 = arith.addf %15, %17 : vector<128x128xf32>
      %c0_16 = arith.constant 0 : index
      %c0_17 = arith.constant 0 : index
      %19 = vector.load %arg6[%c0_16, %c0_17] : memref<128x128xbf16, #tpu.memory_space<vmem>>, vector<128x128xbf16>
      %20 = arith.extf %19 : vector<128x128xbf16> to vector<128x128xf32>
      %21 = arith.addf %18, %20 : vector<128x128xf32>
      %cst_18 = arith.constant 0.000000e+00 : f32
      %22 = vector.broadcast %cst_18 : f32 to vector<128x128xf32>
      %23 = arith.maximumf %21, %22 : vector<128x128xf32>
      %24 = arith.truncf %23 : vector<128x128xf32> to vector<128x128xbf16>
      %c0_19 = arith.constant 0 : index
      %c0_20 = arith.constant 0 : index
      %25 = vector.load %arg7[%c0_19, %c0_20] : memref<128x128xbf16, #tpu.memory_space<vmem>>, vector<128x128xbf16>
      tpu.vector_store %arg7[%c0_19, %c0_20], %24 {strides = array<i32>} : memref<128x128xbf16, #tpu.memory_space<vmem>>, vector<128x128xbf16>,
    } else {
    }
    return
  }
  func.func @transform_0(%arg0: i32, %arg1: i32) -> (i32, i32) {
    %c0_i32 = arith.constant 0 : i32
    return %arg0, %arg1 : i32, i32
  }
  func.func @transform_1(%arg0: i32, %arg1: i32) -> (i32, i32) {
    %c0_i32 = arith.constant 0 : i32
    %c0_i32_0 = arith.constant 0 : i32
    return %arg1, %c0_i32 : i32, i32
  }
  func.func @transform_2(%arg0: i32, %arg1: i32) -> (i32, i32) {
    %c0_i32 = arith.constant 0 : i32
    %c0_i32_0 = arith.constant 0 : i32
    %c0_i32_1 = arith.constant 0 : i32
    return %c0_i32, %c0_i32_0 : i32, i32
  }
  func.func @transform_3(%arg0: i32, %arg1: i32) -> (i32, i32) {
    %c0_i32 = arith.constant 0 : i32
    %c0_i32_0 = arith.constant 0 : i32
    %c0_i32_1 = arith.constant 0 : i32
    return %c0_i32, %c0_i32_0 : i32, i32
  }
  func.func @transform_4(%arg0: i32, %arg1: i32) -> (i32, i32) {
    %c0_i32 = arith.constant 0 : i32
    %c0_i32_0 = arith.constant 0 : i32
    return %arg0, %c0_i32 : i32, i32
  }
  func.func @transform_5(%arg0: i32, %arg1: i32) -> (i32, i32) {
    %c0_i32 = arith.constant 0 : i32
    %c0_i32_0 = arith.constant 0 : i32
    return %arg0, %c0_i32 : i32, i32
  }
}

module attributes {stable_mosaic.version = 11 : i64} {
  func.func @_conv_fused_kernel(%arg0: i32, %arg1: i32, %arg2: memref<32x144xbf16, #tpu.memory_space<vmem>>, %arg3: memref<144x128xbf16, #tpu.memory_space<vmem>>, %arg4: memref<1x128xf32, #tpu.memory_space<vmem>>, %arg5: memref<1x128xf32, #tpu.memory_space<vmem>>, %arg6: memref<32x128xbf16, #tpu.memory_space<vmem>>, %arg7: memref<32x128xf32, #tpu.memory_space<vmem>>) attributes {dimension_semantics = [#tpu.dimension_semantics<parallel>, #tpu.dimension_semantics<arbitrary>], iteration_bounds = array<i64: 1, 1>, scalar_prefetch = 0 : i64, scratch_operands = 1 : i64, tpu.core_type = #tpu.core_type<tc>, window_params = [{transform_indices = @transform_0, window_bounds = array<i64: 32, 144>}, {transform_indices = @transform_1, window_bounds = array<i64: 144, 128>}, {pipeline_mode = #tpu.pipeline_mode<synchronous>, transform_indices = @transform_2, window_bounds = array<i64: 1, 128>}, {pipeline_mode = #tpu.pipeline_mode<synchronous>, transform_indices = @transform_3, window_bounds = array<i64: 1, 128>}, {transform_indices = @transform_4, window_bounds = array<i64: 32, 128>}]} {
    %c0_i32 = arith.constant 0 : i32
    %0 = arith.cmpi eq, %arg1, %c0_i32 : i32
    %1 = arith.extui %0 : i1 to i32
    %c0_i32_0 = arith.constant 0 : i32
    %2 = arith.cmpi ne, %1, %c0_i32_0 : i32
    scf.if %2 {
      %cst_10 = arith.constant 0.000000e+00 : f32
      %12 = vector.broadcast %cst_10 : f32 to vector<32x128xf32>
      %c0_11 = arith.constant 0 : index
      %c0_12 = arith.constant 0 : index
      %13 = vector.load %arg7[%c0_11, %c0_12] : memref<32x128xf32, #tpu.memory_space<vmem>>, vector<32x128xf32>
      tpu.vector_store %arg7[%c0_11, %c0_12], %12 {strides = array<i32>} : memref<32x128xf32, #tpu.memory_space<vmem>>, vector<32x128xf32>,
    } else {
    }
    %c0 = arith.constant 0 : index
    %c0_1 = arith.constant 0 : index
    %3 = vector.load %arg7[%c0, %c0_1] : memref<32x128xf32, #tpu.memory_space<vmem>>, vector<32x128xf32>
    %c0_2 = arith.constant 0 : index
    %c0_3 = arith.constant 0 : index
    %4 = vector.load %arg2[%c0_2, %c0_3] : memref<32x144xbf16, #tpu.memory_space<vmem>>, vector<32x144xbf16>
    %c0_4 = arith.constant 0 : index
    %c0_5 = arith.constant 0 : index
    %5 = vector.load %arg3[%c0_4, %c0_5] : memref<144x128xbf16, #tpu.memory_space<vmem>>, vector<144x128xbf16>
    %cst = arith.constant dense<0.000000e+00> : vector<32x128xf32>
    %6 = tpu.matmul %4, %5, %cst {dimension_numbers = #tpu.dot_dimension_numbers<[1], [0], [0], [1], [0, 0, 1, 1], [], []>} : vector<32x144xbf16>, vector<144x128xbf16>, vector<32x128xf32> -> vector<32x128xf32>
    %7 = arith.addf %3, %6 : vector<32x128xf32>
    %c0_6 = arith.constant 0 : index
    %c0_7 = arith.constant 0 : index
    %8 = vector.load %arg7[%c0_6, %c0_7] : memref<32x128xf32, #tpu.memory_space<vmem>>, vector<32x128xf32>
    tpu.vector_store %arg7[%c0_6, %c0_7], %7 {strides = array<i32>} : memref<32x128xf32, #tpu.memory_space<vmem>>, vector<32x128xf32>,
    %c0_i32_8 = arith.constant 0 : i32
    %9 = arith.cmpi eq, %arg1, %c0_i32_8 : i32
    %10 = arith.extui %9 : i1 to i32
    %c0_i32_9 = arith.constant 0 : i32
    %11 = arith.cmpi ne, %10, %c0_i32_9 : i32
    scf.if %11 {
      %c0_10 = arith.constant 0 : index
      %c0_11 = arith.constant 0 : index
      %12 = vector.load %arg7[%c0_10, %c0_11] : memref<32x128xf32, #tpu.memory_space<vmem>>, vector<32x128xf32>
      %c0_12 = arith.constant 0 : index
      %c0_13 = arith.constant 0 : index
      %13 = vector.load %arg4[%c0_12, %c0_13] : memref<1x128xf32, #tpu.memory_space<vmem>>, vector<1x128xf32>
      %14 = vector.broadcast %13 : vector<1x128xf32> to vector<32x128xf32>
      %15 = arith.mulf %12, %14 : vector<32x128xf32>
      %c0_14 = arith.constant 0 : index
      %c0_15 = arith.constant 0 : index
      %16 = vector.load %arg5[%c0_14, %c0_15] : memref<1x128xf32, #tpu.memory_space<vmem>>, vector<1x128xf32>
      %17 = vector.broadcast %16 : vector<1x128xf32> to vector<32x128xf32>
      %18 = arith.addf %15, %17 : vector<32x128xf32>
      %cst_16 = arith.constant 0.000000e+00 : f32
      %19 = vector.broadcast %cst_16 : f32 to vector<32x128xf32>
      %20 = arith.maximumf %18, %19 : vector<32x128xf32>
      %21 = arith.truncf %20 : vector<32x128xf32> to vector<32x128xbf16>
      %c0_17 = arith.constant 0 : index
      %c0_18 = arith.constant 0 : index
      %22 = vector.load %arg6[%c0_17, %c0_18] : memref<32x128xbf16, #tpu.memory_space<vmem>>, vector<32x128xbf16>
      tpu.vector_store %arg6[%c0_17, %c0_18], %21 {strides = array<i32>} : memref<32x128xbf16, #tpu.memory_space<vmem>>, vector<32x128xbf16>,
    } else {
    }
    return
  }
  func.func @transform_0(%arg0: i32, %arg1: i32) -> (i32, i32) {
    %c0_i32 = arith.constant 0 : i32
    return %arg0, %arg1 : i32, i32
  }
  func.func @transform_1(%arg0: i32, %arg1: i32) -> (i32, i32) {
    %c0_i32 = arith.constant 0 : i32
    %c0_i32_0 = arith.constant 0 : i32
    return %arg1, %c0_i32 : i32, i32
  }
  func.func @transform_2(%arg0: i32, %arg1: i32) -> (i32, i32) {
    %c0_i32 = arith.constant 0 : i32
    %c0_i32_0 = arith.constant 0 : i32
    %c0_i32_1 = arith.constant 0 : i32
    return %c0_i32, %c0_i32_0 : i32, i32
  }
  func.func @transform_3(%arg0: i32, %arg1: i32) -> (i32, i32) {
    %c0_i32 = arith.constant 0 : i32
    %c0_i32_0 = arith.constant 0 : i32
    %c0_i32_1 = arith.constant 0 : i32
    return %c0_i32, %c0_i32_0 : i32, i32
  }
  func.func @transform_4(%arg0: i32, %arg1: i32) -> (i32, i32) {
    %c0_i32 = arith.constant 0 : i32
    %c0_i32_0 = arith.constant 0 : i32
    return %arg0, %c0_i32 : i32, i32
  }
}

module attributes {stable_mosaic.version = 11 : i64} {
  func.func @_conv_fused_kernel(%arg0: i32, %arg1: i32, %arg2: memref<32x288xbf16, #tpu.memory_space<vmem>>, %arg3: memref<288x128xbf16, #tpu.memory_space<vmem>>, %arg4: memref<1x128xf32, #tpu.memory_space<vmem>>, %arg5: memref<1x128xf32, #tpu.memory_space<vmem>>, %arg6: memref<32x128xbf16, #tpu.memory_space<vmem>>, %arg7: memref<32x128xbf16, #tpu.memory_space<vmem>>, %arg8: memref<32x128xf32, #tpu.memory_space<vmem>>) attributes {dimension_semantics = [#tpu.dimension_semantics<parallel>, #tpu.dimension_semantics<arbitrary>], iteration_bounds = array<i64: 1, 1>, scalar_prefetch = 0 : i64, scratch_operands = 1 : i64, tpu.core_type = #tpu.core_type<tc>, window_params = [{transform_indices = @transform_0, window_bounds = array<i64: 32, 288>}, {transform_indices = @transform_1, window_bounds = array<i64: 288, 128>}, {pipeline_mode = #tpu.pipeline_mode<synchronous>, transform_indices = @transform_2, window_bounds = array<i64: 1, 128>}, {pipeline_mode = #tpu.pipeline_mode<synchronous>, transform_indices = @transform_3, window_bounds = array<i64: 1, 128>}, {transform_indices = @transform_4, window_bounds = array<i64: 32, 128>}, {transform_indices = @transform_5, window_bounds = array<i64: 32, 128>}]} {
    %c0_i32 = arith.constant 0 : i32
    %0 = arith.cmpi eq, %arg1, %c0_i32 : i32
    %1 = arith.extui %0 : i1 to i32
    %c0_i32_0 = arith.constant 0 : i32
    %2 = arith.cmpi ne, %1, %c0_i32_0 : i32
    scf.if %2 {
      %cst_10 = arith.constant 0.000000e+00 : f32
      %12 = vector.broadcast %cst_10 : f32 to vector<32x128xf32>
      %c0_11 = arith.constant 0 : index
      %c0_12 = arith.constant 0 : index
      %13 = vector.load %arg8[%c0_11, %c0_12] : memref<32x128xf32, #tpu.memory_space<vmem>>, vector<32x128xf32>
      tpu.vector_store %arg8[%c0_11, %c0_12], %12 {strides = array<i32>} : memref<32x128xf32, #tpu.memory_space<vmem>>, vector<32x128xf32>,
    } else {
    }
    %c0 = arith.constant 0 : index
    %c0_1 = arith.constant 0 : index
    %3 = vector.load %arg8[%c0, %c0_1] : memref<32x128xf32, #tpu.memory_space<vmem>>, vector<32x128xf32>
    %c0_2 = arith.constant 0 : index
    %c0_3 = arith.constant 0 : index
    %4 = vector.load %arg2[%c0_2, %c0_3] : memref<32x288xbf16, #tpu.memory_space<vmem>>, vector<32x288xbf16>
    %c0_4 = arith.constant 0 : index
    %c0_5 = arith.constant 0 : index
    %5 = vector.load %arg3[%c0_4, %c0_5] : memref<288x128xbf16, #tpu.memory_space<vmem>>, vector<288x128xbf16>
    %cst = arith.constant dense<0.000000e+00> : vector<32x128xf32>
    %6 = tpu.matmul %4, %5, %cst {dimension_numbers = #tpu.dot_dimension_numbers<[1], [0], [0], [1], [0, 0, 1, 1], [], []>} : vector<32x288xbf16>, vector<288x128xbf16>, vector<32x128xf32> -> vector<32x128xf32>
    %7 = arith.addf %3, %6 : vector<32x128xf32>
    %c0_6 = arith.constant 0 : index
    %c0_7 = arith.constant 0 : index
    %8 = vector.load %arg8[%c0_6, %c0_7] : memref<32x128xf32, #tpu.memory_space<vmem>>, vector<32x128xf32>
    tpu.vector_store %arg8[%c0_6, %c0_7], %7 {strides = array<i32>} : memref<32x128xf32, #tpu.memory_space<vmem>>, vector<32x128xf32>,
    %c0_i32_8 = arith.constant 0 : i32
    %9 = arith.cmpi eq, %arg1, %c0_i32_8 : i32
    %10 = arith.extui %9 : i1 to i32
    %c0_i32_9 = arith.constant 0 : i32
    %11 = arith.cmpi ne, %10, %c0_i32_9 : i32
    scf.if %11 {
      %c0_10 = arith.constant 0 : index
      %c0_11 = arith.constant 0 : index
      %12 = vector.load %arg8[%c0_10, %c0_11] : memref<32x128xf32, #tpu.memory_space<vmem>>, vector<32x128xf32>
      %c0_12 = arith.constant 0 : index
      %c0_13 = arith.constant 0 : index
      %13 = vector.load %arg4[%c0_12, %c0_13] : memref<1x128xf32, #tpu.memory_space<vmem>>, vector<1x128xf32>
      %14 = vector.broadcast %13 : vector<1x128xf32> to vector<32x128xf32>
      %15 = arith.mulf %12, %14 : vector<32x128xf32>
      %c0_14 = arith.constant 0 : index
      %c0_15 = arith.constant 0 : index
      %16 = vector.load %arg5[%c0_14, %c0_15] : memref<1x128xf32, #tpu.memory_space<vmem>>, vector<1x128xf32>
      %17 = vector.broadcast %16 : vector<1x128xf32> to vector<32x128xf32>
      %18 = arith.addf %15, %17 : vector<32x128xf32>
      %c0_16 = arith.constant 0 : index
      %c0_17 = arith.constant 0 : index
      %19 = vector.load %arg6[%c0_16, %c0_17] : memref<32x128xbf16, #tpu.memory_space<vmem>>, vector<32x128xbf16>
      %20 = arith.extf %19 : vector<32x128xbf16> to vector<32x128xf32>
      %21 = arith.addf %18, %20 : vector<32x128xf32>
      %cst_18 = arith.constant 0.000000e+00 : f32
      %22 = vector.broadcast %cst_18 : f32 to vector<32x128xf32>
      %23 = arith.maximumf %21, %22 : vector<32x128xf32>
      %24 = arith.truncf %23 : vector<32x128xf32> to vector<32x128xbf16>
      %c0_19 = arith.constant 0 : index
      %c0_20 = arith.constant 0 : index
      %25 = vector.load %arg7[%c0_19, %c0_20] : memref<32x128xbf16, #tpu.memory_space<vmem>>, vector<32x128xbf16>
      tpu.vector_store %arg7[%c0_19, %c0_20], %24 {strides = array<i32>} : memref<32x128xbf16, #tpu.memory_space<vmem>>, vector<32x128xbf16>,
    } else {
    }
    return
  }
  func.func @transform_0(%arg0: i32, %arg1: i32) -> (i32, i32) {
    %c0_i32 = arith.constant 0 : i32
    return %arg0, %arg1 : i32, i32
  }
  func.func @transform_1(%arg0: i32, %arg1: i32) -> (i32, i32) {
    %c0_i32 = arith.constant 0 : i32
    %c0_i32_0 = arith.constant 0 : i32
    return %arg1, %c0_i32 : i32, i32
  }
  func.func @transform_2(%arg0: i32, %arg1: i32) -> (i32, i32) {
    %c0_i32 = arith.constant 0 : i32
    %c0_i32_0 = arith.constant 0 : i32
    %c0_i32_1 = arith.constant 0 : i32
    return %c0_i32, %c0_i32_0 : i32, i32
  }
  func.func @transform_3(%arg0: i32, %arg1: i32) -> (i32, i32) {
    %c0_i32 = arith.constant 0 : i32
    %c0_i32_0 = arith.constant 0 : i32
    %c0_i32_1 = arith.constant 0 : i32
    return %c0_i32, %c0_i32_0 : i32, i32
  }
  func.func @transform_4(%arg0: i32, %arg1: i32) -> (i32, i32) {
    %c0_i32 = arith.constant 0 : i32
    %c0_i32_0 = arith.constant 0 : i32
    return %arg0, %c0_i32 : i32, i32
  }
  func.func @transform_5(%arg0: i32, %arg1: i32) -> (i32, i32) {
    %c0_i32 = arith.constant 0 : i32
    %c0_i32_0 = arith.constant 0 : i32
    return %arg0, %c0_i32 : i32, i32
  }
}

module attributes {stable_mosaic.version = 11 : i64} {
  func.func @_conv_fused_kernel(%arg0: i32, %arg1: i32, %arg2: memref<32x16xbf16, #tpu.memory_space<vmem>>, %arg3: memref<16x128xbf16, #tpu.memory_space<vmem>>, %arg4: memref<1x128xf32, #tpu.memory_space<vmem>>, %arg5: memref<1x128xf32, #tpu.memory_space<vmem>>, %arg6: memref<32x128xbf16, #tpu.memory_space<vmem>>, %arg7: memref<32x128xf32, #tpu.memory_space<vmem>>) attributes {dimension_semantics = [#tpu.dimension_semantics<parallel>, #tpu.dimension_semantics<arbitrary>], iteration_bounds = array<i64: 1, 1>, scalar_prefetch = 0 : i64, scratch_operands = 1 : i64, tpu.core_type = #tpu.core_type<tc>, window_params = [{transform_indices = @transform_0, window_bounds = array<i64: 32, 16>}, {transform_indices = @transform_1, window_bounds = array<i64: 16, 128>}, {pipeline_mode = #tpu.pipeline_mode<synchronous>, transform_indices = @transform_2, window_bounds = array<i64: 1, 128>}, {pipeline_mode = #tpu.pipeline_mode<synchronous>, transform_indices = @transform_3, window_bounds = array<i64: 1, 128>}, {transform_indices = @transform_4, window_bounds = array<i64: 32, 128>}]} {
    %c0_i32 = arith.constant 0 : i32
    %0 = arith.cmpi eq, %arg1, %c0_i32 : i32
    %1 = arith.extui %0 : i1 to i32
    %c0_i32_0 = arith.constant 0 : i32
    %2 = arith.cmpi ne, %1, %c0_i32_0 : i32
    scf.if %2 {
      %cst_10 = arith.constant 0.000000e+00 : f32
      %12 = vector.broadcast %cst_10 : f32 to vector<32x128xf32>
      %c0_11 = arith.constant 0 : index
      %c0_12 = arith.constant 0 : index
      %13 = vector.load %arg7[%c0_11, %c0_12] : memref<32x128xf32, #tpu.memory_space<vmem>>, vector<32x128xf32>
      tpu.vector_store %arg7[%c0_11, %c0_12], %12 {strides = array<i32>} : memref<32x128xf32, #tpu.memory_space<vmem>>, vector<32x128xf32>,
    } else {
    }
    %c0 = arith.constant 0 : index
    %c0_1 = arith.constant 0 : index
    %3 = vector.load %arg7[%c0, %c0_1] : memref<32x128xf32, #tpu.memory_space<vmem>>, vector<32x128xf32>
    %c0_2 = arith.constant 0 : index
    %c0_3 = arith.constant 0 : index
    %4 = vector.load %arg2[%c0_2, %c0_3] : memref<32x16xbf16, #tpu.memory_space<vmem>>, vector<32x16xbf16>
    %c0_4 = arith.constant 0 : index
    %c0_5 = arith.constant 0 : index
    %5 = vector.load %arg3[%c0_4, %c0_5] : memref<16x128xbf16, #tpu.memory_space<vmem>>, vector<16x128xbf16>
    %cst = arith.constant dense<0.000000e+00> : vector<32x128xf32>
    %6 = tpu.matmul %4, %5, %cst {dimension_numbers = #tpu.dot_dimension_numbers<[1], [0], [0], [1], [0, 0, 1, 1], [], []>} : vector<32x16xbf16>, vector<16x128xbf16>, vector<32x128xf32> -> vector<32x128xf32>
    %7 = arith.addf %3, %6 : vector<32x128xf32>
    %c0_6 = arith.constant 0 : index
    %c0_7 = arith.constant 0 : index
    %8 = vector.load %arg7[%c0_6, %c0_7] : memref<32x128xf32, #tpu.memory_space<vmem>>, vector<32x128xf32>
    tpu.vector_store %arg7[%c0_6, %c0_7], %7 {strides = array<i32>} : memref<32x128xf32, #tpu.memory_space<vmem>>, vector<32x128xf32>,
    %c0_i32_8 = arith.constant 0 : i32
    %9 = arith.cmpi eq, %arg1, %c0_i32_8 : i32
    %10 = arith.extui %9 : i1 to i32
    %c0_i32_9 = arith.constant 0 : i32
    %11 = arith.cmpi ne, %10, %c0_i32_9 : i32
    scf.if %11 {
      %c0_10 = arith.constant 0 : index
      %c0_11 = arith.constant 0 : index
      %12 = vector.load %arg7[%c0_10, %c0_11] : memref<32x128xf32, #tpu.memory_space<vmem>>, vector<32x128xf32>
      %c0_12 = arith.constant 0 : index
      %c0_13 = arith.constant 0 : index
      %13 = vector.load %arg4[%c0_12, %c0_13] : memref<1x128xf32, #tpu.memory_space<vmem>>, vector<1x128xf32>
      %14 = vector.broadcast %13 : vector<1x128xf32> to vector<32x128xf32>
      %15 = arith.mulf %12, %14 : vector<32x128xf32>
      %c0_14 = arith.constant 0 : index
      %c0_15 = arith.constant 0 : index
      %16 = vector.load %arg5[%c0_14, %c0_15] : memref<1x128xf32, #tpu.memory_space<vmem>>, vector<1x128xf32>
      %17 = vector.broadcast %16 : vector<1x128xf32> to vector<32x128xf32>
      %18 = arith.addf %15, %17 : vector<32x128xf32>
      %19 = arith.truncf %18 : vector<32x128xf32> to vector<32x128xbf16>
      %c0_16 = arith.constant 0 : index
      %c0_17 = arith.constant 0 : index
      %20 = vector.load %arg6[%c0_16, %c0_17] : memref<32x128xbf16, #tpu.memory_space<vmem>>, vector<32x128xbf16>
      tpu.vector_store %arg6[%c0_16, %c0_17], %19 {strides = array<i32>} : memref<32x128xbf16, #tpu.memory_space<vmem>>, vector<32x128xbf16>,
    } else {
    }
    return
  }
  func.func @transform_0(%arg0: i32, %arg1: i32) -> (i32, i32) {
    %c0_i32 = arith.constant 0 : i32
    return %arg0, %arg1 : i32, i32
  }
  func.func @transform_1(%arg0: i32, %arg1: i32) -> (i32, i32) {
    %c0_i32 = arith.constant 0 : i32
    %c0_i32_0 = arith.constant 0 : i32
    return %arg1, %c0_i32 : i32, i32
  }
  func.func @transform_2(%arg0: i32, %arg1: i32) -> (i32, i32) {
    %c0_i32 = arith.constant 0 : i32
    %c0_i32_0 = arith.constant 0 : i32
    %c0_i32_1 = arith.constant 0 : i32
    return %c0_i32, %c0_i32_0 : i32, i32
  }
  func.func @transform_3(%arg0: i32, %arg1: i32) -> (i32, i32) {
    %c0_i32 = arith.constant 0 : i32
    %c0_i32_0 = arith.constant 0 : i32
    %c0_i32_1 = arith.constant 0 : i32
    return %c0_i32, %c0_i32_0 : i32, i32
  }
  func.func @transform_4(%arg0: i32, %arg1: i32) -> (i32, i32) {
    %c0_i32 = arith.constant 0 : i32
    %c0_i32_0 = arith.constant 0 : i32
    return %arg0, %c0_i32 : i32, i32
  }
}

module attributes {stable_mosaic.version = 11 : i64} {
  func.func @_conv_fused_kernel(%arg0: i32, %arg1: i32, %arg2: memref<32x288xbf16, #tpu.memory_space<vmem>>, %arg3: memref<288x128xbf16, #tpu.memory_space<vmem>>, %arg4: memref<1x128xf32, #tpu.memory_space<vmem>>, %arg5: memref<1x128xf32, #tpu.memory_space<vmem>>, %arg6: memref<32x128xbf16, #tpu.memory_space<vmem>>, %arg7: memref<32x128xf32, #tpu.memory_space<vmem>>) attributes {dimension_semantics = [#tpu.dimension_semantics<parallel>, #tpu.dimension_semantics<arbitrary>], iteration_bounds = array<i64: 1, 1>, scalar_prefetch = 0 : i64, scratch_operands = 1 : i64, tpu.core_type = #tpu.core_type<tc>, window_params = [{transform_indices = @transform_0, window_bounds = array<i64: 32, 288>}, {transform_indices = @transform_1, window_bounds = array<i64: 288, 128>}, {pipeline_mode = #tpu.pipeline_mode<synchronous>, transform_indices = @transform_2, window_bounds = array<i64: 1, 128>}, {pipeline_mode = #tpu.pipeline_mode<synchronous>, transform_indices = @transform_3, window_bounds = array<i64: 1, 128>}, {transform_indices = @transform_4, window_bounds = array<i64: 32, 128>}]} {
    %c0_i32 = arith.constant 0 : i32
    %0 = arith.cmpi eq, %arg1, %c0_i32 : i32
    %1 = arith.extui %0 : i1 to i32
    %c0_i32_0 = arith.constant 0 : i32
    %2 = arith.cmpi ne, %1, %c0_i32_0 : i32
    scf.if %2 {
      %cst_10 = arith.constant 0.000000e+00 : f32
      %12 = vector.broadcast %cst_10 : f32 to vector<32x128xf32>
      %c0_11 = arith.constant 0 : index
      %c0_12 = arith.constant 0 : index
      %13 = vector.load %arg7[%c0_11, %c0_12] : memref<32x128xf32, #tpu.memory_space<vmem>>, vector<32x128xf32>
      tpu.vector_store %arg7[%c0_11, %c0_12], %12 {strides = array<i32>} : memref<32x128xf32, #tpu.memory_space<vmem>>, vector<32x128xf32>,
    } else {
    }
    %c0 = arith.constant 0 : index
    %c0_1 = arith.constant 0 : index
    %3 = vector.load %arg7[%c0, %c0_1] : memref<32x128xf32, #tpu.memory_space<vmem>>, vector<32x128xf32>
    %c0_2 = arith.constant 0 : index
    %c0_3 = arith.constant 0 : index
    %4 = vector.load %arg2[%c0_2, %c0_3] : memref<32x288xbf16, #tpu.memory_space<vmem>>, vector<32x288xbf16>
    %c0_4 = arith.constant 0 : index
    %c0_5 = arith.constant 0 : index
    %5 = vector.load %arg3[%c0_4, %c0_5] : memref<288x128xbf16, #tpu.memory_space<vmem>>, vector<288x128xbf16>
    %cst = arith.constant dense<0.000000e+00> : vector<32x128xf32>
    %6 = tpu.matmul %4, %5, %cst {dimension_numbers = #tpu.dot_dimension_numbers<[1], [0], [0], [1], [0, 0, 1, 1], [], []>} : vector<32x288xbf16>, vector<288x128xbf16>, vector<32x128xf32> -> vector<32x128xf32>
    %7 = arith.addf %3, %6 : vector<32x128xf32>
    %c0_6 = arith.constant 0 : index
    %c0_7 = arith.constant 0 : index
    %8 = vector.load %arg7[%c0_6, %c0_7] : memref<32x128xf32, #tpu.memory_space<vmem>>, vector<32x128xf32>
    tpu.vector_store %arg7[%c0_6, %c0_7], %7 {strides = array<i32>} : memref<32x128xf32, #tpu.memory_space<vmem>>, vector<32x128xf32>,
    %c0_i32_8 = arith.constant 0 : i32
    %9 = arith.cmpi eq, %arg1, %c0_i32_8 : i32
    %10 = arith.extui %9 : i1 to i32
    %c0_i32_9 = arith.constant 0 : i32
    %11 = arith.cmpi ne, %10, %c0_i32_9 : i32
    scf.if %11 {
      %c0_10 = arith.constant 0 : index
      %c0_11 = arith.constant 0 : index
      %12 = vector.load %arg7[%c0_10, %c0_11] : memref<32x128xf32, #tpu.memory_space<vmem>>, vector<32x128xf32>
      %c0_12 = arith.constant 0 : index
      %c0_13 = arith.constant 0 : index
      %13 = vector.load %arg4[%c0_12, %c0_13] : memref<1x128xf32, #tpu.memory_space<vmem>>, vector<1x128xf32>
      %14 = vector.broadcast %13 : vector<1x128xf32> to vector<32x128xf32>
      %15 = arith.mulf %12, %14 : vector<32x128xf32>
      %c0_14 = arith.constant 0 : index
      %c0_15 = arith.constant 0 : index
      %16 = vector.load %arg5[%c0_14, %c0_15] : memref<1x128xf32, #tpu.memory_space<vmem>>, vector<1x128xf32>
      %17 = vector.broadcast %16 : vector<1x128xf32> to vector<32x128xf32>
      %18 = arith.addf %15, %17 : vector<32x128xf32>
      %cst_16 = arith.constant 0.000000e+00 : f32
      %19 = vector.broadcast %cst_16 : f32 to vector<32x128xf32>
      %20 = arith.maximumf %18, %19 : vector<32x128xf32>
      %21 = arith.truncf %20 : vector<32x128xf32> to vector<32x128xbf16>
      %c0_17 = arith.constant 0 : index
      %c0_18 = arith.constant 0 : index
      %22 = vector.load %arg6[%c0_17, %c0_18] : memref<32x128xbf16, #tpu.memory_space<vmem>>, vector<32x128xbf16>
      tpu.vector_store %arg6[%c0_17, %c0_18], %21 {strides = array<i32>} : memref<32x128xbf16, #tpu.memory_space<vmem>>, vector<32x128xbf16>,
    } else {
    }
    return
  }
  func.func @transform_0(%arg0: i32, %arg1: i32) -> (i32, i32) {
    %c0_i32 = arith.constant 0 : i32
    return %arg0, %arg1 : i32, i32
  }
  func.func @transform_1(%arg0: i32, %arg1: i32) -> (i32, i32) {
    %c0_i32 = arith.constant 0 : i32
    %c0_i32_0 = arith.constant 0 : i32
    return %arg1, %c0_i32 : i32, i32
  }
  func.func @transform_2(%arg0: i32, %arg1: i32) -> (i32, i32) {
    %c0_i32 = arith.constant 0 : i32
    %c0_i32_0 = arith.constant 0 : i32
    %c0_i32_1 = arith.constant 0 : i32
    return %c0_i32, %c0_i32_0 : i32, i32
  }
  func.func @transform_3(%arg0: i32, %arg1: i32) -> (i32, i32) {
    %c0_i32 = arith.constant 0 : i32
    %c0_i32_0 = arith.constant 0 : i32
    %c0_i32_1 = arith.constant 0 : i32
    return %c0_i32, %c0_i32_0 : i32, i32
  }
  func.func @transform_4(%arg0: i32, %arg1: i32) -> (i32, i32) {
    %c0_i32 = arith.constant 0 : i32
    %c0_i32_0 = arith.constant 0 : i32
    return %arg0, %c0_i32 : i32, i32
  }
}

module attributes {stable_mosaic.version = 11 : i64} {
  func.func @_conv_fused_kernel(%arg0: i32, %arg1: i32, %arg2: memref<8x288xbf16, #tpu.memory_space<vmem>>, %arg3: memref<288x128xbf16, #tpu.memory_space<vmem>>, %arg4: memref<1x128xf32, #tpu.memory_space<vmem>>, %arg5: memref<1x128xf32, #tpu.memory_space<vmem>>, %arg6: memref<8x128xbf16, #tpu.memory_space<vmem>>, %arg7: memref<8x128xf32, #tpu.memory_space<vmem>>) attributes {dimension_semantics = [#tpu.dimension_semantics<parallel>, #tpu.dimension_semantics<arbitrary>], iteration_bounds = array<i64: 1, 1>, scalar_prefetch = 0 : i64, scratch_operands = 1 : i64, tpu.core_type = #tpu.core_type<tc>, window_params = [{transform_indices = @transform_0, window_bounds = array<i64: 8, 288>}, {transform_indices = @transform_1, window_bounds = array<i64: 288, 128>}, {pipeline_mode = #tpu.pipeline_mode<synchronous>, transform_indices = @transform_2, window_bounds = array<i64: 1, 128>}, {pipeline_mode = #tpu.pipeline_mode<synchronous>, transform_indices = @transform_3, window_bounds = array<i64: 1, 128>}, {transform_indices = @transform_4, window_bounds = array<i64: 8, 128>}]} {
    %c0_i32 = arith.constant 0 : i32
    %0 = arith.cmpi eq, %arg1, %c0_i32 : i32
    %1 = arith.extui %0 : i1 to i32
    %c0_i32_0 = arith.constant 0 : i32
    %2 = arith.cmpi ne, %1, %c0_i32_0 : i32
    scf.if %2 {
      %cst_10 = arith.constant 0.000000e+00 : f32
      %12 = vector.broadcast %cst_10 : f32 to vector<8x128xf32>
      %c0_11 = arith.constant 0 : index
      %c0_12 = arith.constant 0 : index
      %13 = vector.load %arg7[%c0_11, %c0_12] : memref<8x128xf32, #tpu.memory_space<vmem>>, vector<8x128xf32>
      tpu.vector_store %arg7[%c0_11, %c0_12], %12 {strides = array<i32>} : memref<8x128xf32, #tpu.memory_space<vmem>>, vector<8x128xf32>,
    } else {
    }
    %c0 = arith.constant 0 : index
    %c0_1 = arith.constant 0 : index
    %3 = vector.load %arg7[%c0, %c0_1] : memref<8x128xf32, #tpu.memory_space<vmem>>, vector<8x128xf32>
    %c0_2 = arith.constant 0 : index
    %c0_3 = arith.constant 0 : index
    %4 = vector.load %arg2[%c0_2, %c0_3] : memref<8x288xbf16, #tpu.memory_space<vmem>>, vector<8x288xbf16>
    %c0_4 = arith.constant 0 : index
    %c0_5 = arith.constant 0 : index
    %5 = vector.load %arg3[%c0_4, %c0_5] : memref<288x128xbf16, #tpu.memory_space<vmem>>, vector<288x128xbf16>
    %cst = arith.constant dense<0.000000e+00> : vector<8x128xf32>
    %6 = tpu.matmul %4, %5, %cst {dimension_numbers = #tpu.dot_dimension_numbers<[1], [0], [0], [1], [0, 0, 1, 1], [], []>} : vector<8x288xbf16>, vector<288x128xbf16>, vector<8x128xf32> -> vector<8x128xf32>
    %7 = arith.addf %3, %6 : vector<8x128xf32>
    %c0_6 = arith.constant 0 : index
    %c0_7 = arith.constant 0 : index
    %8 = vector.load %arg7[%c0_6, %c0_7] : memref<8x128xf32, #tpu.memory_space<vmem>>, vector<8x128xf32>
    tpu.vector_store %arg7[%c0_6, %c0_7], %7 {strides = array<i32>} : memref<8x128xf32, #tpu.memory_space<vmem>>, vector<8x128xf32>,
    %c0_i32_8 = arith.constant 0 : i32
    %9 = arith.cmpi eq, %arg1, %c0_i32_8 : i32
    %10 = arith.extui %9 : i1 to i32
    %c0_i32_9 = arith.constant 0 : i32
    %11 = arith.cmpi ne, %10, %c0_i32_9 : i32
    scf.if %11 {
      %c0_10 = arith.constant 0 : index
      %c0_11 = arith.constant 0 : index
      %12 = vector.load %arg7[%c0_10, %c0_11] : memref<8x128xf32, #tpu.memory_space<vmem>>, vector<8x128xf32>
      %c0_12 = arith.constant 0 : index
      %c0_13 = arith.constant 0 : index
      %13 = vector.load %arg4[%c0_12, %c0_13] : memref<1x128xf32, #tpu.memory_space<vmem>>, vector<1x128xf32>
      %14 = vector.broadcast %13 : vector<1x128xf32> to vector<8x128xf32>
      %15 = arith.mulf %12, %14 : vector<8x128xf32>
      %c0_14 = arith.constant 0 : index
      %c0_15 = arith.constant 0 : index
      %16 = vector.load %arg5[%c0_14, %c0_15] : memref<1x128xf32, #tpu.memory_space<vmem>>, vector<1x128xf32>
      %17 = vector.broadcast %16 : vector<1x128xf32> to vector<8x128xf32>
      %18 = arith.addf %15, %17 : vector<8x128xf32>
      %cst_16 = arith.constant 0.000000e+00 : f32
      %19 = vector.broadcast %cst_16 : f32 to vector<8x128xf32>
      %20 = arith.maximumf %18, %19 : vector<8x128xf32>
      %21 = arith.truncf %20 : vector<8x128xf32> to vector<8x128xbf16>
      %c0_17 = arith.constant 0 : index
      %c0_18 = arith.constant 0 : index
      %22 = vector.load %arg6[%c0_17, %c0_18] : memref<8x128xbf16, #tpu.memory_space<vmem>>, vector<8x128xbf16>
      tpu.vector_store %arg6[%c0_17, %c0_18], %21 {strides = array<i32>} : memref<8x128xbf16, #tpu.memory_space<vmem>>, vector<8x128xbf16>,
    } else {
    }
    return
  }
  func.func @transform_0(%arg0: i32, %arg1: i32) -> (i32, i32) {
    %c0_i32 = arith.constant 0 : i32
    return %arg0, %arg1 : i32, i32
  }
  func.func @transform_1(%arg0: i32, %arg1: i32) -> (i32, i32) {
    %c0_i32 = arith.constant 0 : i32
    %c0_i32_0 = arith.constant 0 : i32
    return %arg1, %c0_i32 : i32, i32
  }
  func.func @transform_2(%arg0: i32, %arg1: i32) -> (i32, i32) {
    %c0_i32 = arith.constant 0 : i32
    %c0_i32_0 = arith.constant 0 : i32
    %c0_i32_1 = arith.constant 0 : i32
    return %c0_i32, %c0_i32_0 : i32, i32
  }
  func.func @transform_3(%arg0: i32, %arg1: i32) -> (i32, i32) {
    %c0_i32 = arith.constant 0 : i32
    %c0_i32_0 = arith.constant 0 : i32
    %c0_i32_1 = arith.constant 0 : i32
    return %c0_i32, %c0_i32_0 : i32, i32
  }
  func.func @transform_4(%arg0: i32, %arg1: i32) -> (i32, i32) {
    %c0_i32 = arith.constant 0 : i32
    %c0_i32_0 = arith.constant 0 : i32
    return %arg0, %c0_i32 : i32, i32
  }
}

module attributes {stable_mosaic.version = 11 : i64} {
  func.func @_conv_fused_kernel(%arg0: i32, %arg1: i32, %arg2: memref<8x32xbf16, #tpu.memory_space<vmem>>, %arg3: memref<32x128xbf16, #tpu.memory_space<vmem>>, %arg4: memref<1x128xf32, #tpu.memory_space<vmem>>, %arg5: memref<1x128xf32, #tpu.memory_space<vmem>>, %arg6: memref<8x128xbf16, #tpu.memory_space<vmem>>, %arg7: memref<8x128xf32, #tpu.memory_space<vmem>>) attributes {dimension_semantics = [#tpu.dimension_semantics<parallel>, #tpu.dimension_semantics<arbitrary>], iteration_bounds = array<i64: 1, 1>, scalar_prefetch = 0 : i64, scratch_operands = 1 : i64, tpu.core_type = #tpu.core_type<tc>, window_params = [{transform_indices = @transform_0, window_bounds = array<i64: 8, 32>}, {transform_indices = @transform_1, window_bounds = array<i64: 32, 128>}, {pipeline_mode = #tpu.pipeline_mode<synchronous>, transform_indices = @transform_2, window_bounds = array<i64: 1, 128>}, {pipeline_mode = #tpu.pipeline_mode<synchronous>, transform_indices = @transform_3, window_bounds = array<i64: 1, 128>}, {transform_indices = @transform_4, window_bounds = array<i64: 8, 128>}]} {
    %c0_i32 = arith.constant 0 : i32
    %0 = arith.cmpi eq, %arg1, %c0_i32 : i32
    %1 = arith.extui %0 : i1 to i32
    %c0_i32_0 = arith.constant 0 : i32
    %2 = arith.cmpi ne, %1, %c0_i32_0 : i32
    scf.if %2 {
      %cst_10 = arith.constant 0.000000e+00 : f32
      %12 = vector.broadcast %cst_10 : f32 to vector<8x128xf32>
      %c0_11 = arith.constant 0 : index
      %c0_12 = arith.constant 0 : index
      %13 = vector.load %arg7[%c0_11, %c0_12] : memref<8x128xf32, #tpu.memory_space<vmem>>, vector<8x128xf32>
      tpu.vector_store %arg7[%c0_11, %c0_12], %12 {strides = array<i32>} : memref<8x128xf32, #tpu.memory_space<vmem>>, vector<8x128xf32>,
    } else {
    }
    %c0 = arith.constant 0 : index
    %c0_1 = arith.constant 0 : index
    %3 = vector.load %arg7[%c0, %c0_1] : memref<8x128xf32, #tpu.memory_space<vmem>>, vector<8x128xf32>
    %c0_2 = arith.constant 0 : index
    %c0_3 = arith.constant 0 : index
    %4 = vector.load %arg2[%c0_2, %c0_3] : memref<8x32xbf16, #tpu.memory_space<vmem>>, vector<8x32xbf16>
    %c0_4 = arith.constant 0 : index
    %c0_5 = arith.constant 0 : index
    %5 = vector.load %arg3[%c0_4, %c0_5] : memref<32x128xbf16, #tpu.memory_space<vmem>>, vector<32x128xbf16>
    %cst = arith.constant dense<0.000000e+00> : vector<8x128xf32>
    %6 = tpu.matmul %4, %5, %cst {dimension_numbers = #tpu.dot_dimension_numbers<[1], [0], [0], [1], [0, 0, 1, 1], [], []>} : vector<8x32xbf16>, vector<32x128xbf16>, vector<8x128xf32> -> vector<8x128xf32>
    %7 = arith.addf %3, %6 : vector<8x128xf32>
    %c0_6 = arith.constant 0 : index
    %c0_7 = arith.constant 0 : index
    %8 = vector.load %arg7[%c0_6, %c0_7] : memref<8x128xf32, #tpu.memory_space<vmem>>, vector<8x128xf32>
    tpu.vector_store %arg7[%c0_6, %c0_7], %7 {strides = array<i32>} : memref<8x128xf32, #tpu.memory_space<vmem>>, vector<8x128xf32>,
    %c0_i32_8 = arith.constant 0 : i32
    %9 = arith.cmpi eq, %arg1, %c0_i32_8 : i32
    %10 = arith.extui %9 : i1 to i32
    %c0_i32_9 = arith.constant 0 : i32
    %11 = arith.cmpi ne, %10, %c0_i32_9 : i32
    scf.if %11 {
      %c0_10 = arith.constant 0 : index
      %c0_11 = arith.constant 0 : index
      %12 = vector.load %arg7[%c0_10, %c0_11] : memref<8x128xf32, #tpu.memory_space<vmem>>, vector<8x128xf32>
      %c0_12 = arith.constant 0 : index
      %c0_13 = arith.constant 0 : index
      %13 = vector.load %arg4[%c0_12, %c0_13] : memref<1x128xf32, #tpu.memory_space<vmem>>, vector<1x128xf32>
      %14 = vector.broadcast %13 : vector<1x128xf32> to vector<8x128xf32>
      %15 = arith.mulf %12, %14 : vector<8x128xf32>
      %c0_14 = arith.constant 0 : index
      %c0_15 = arith.constant 0 : index
      %16 = vector.load %arg5[%c0_14, %c0_15] : memref<1x128xf32, #tpu.memory_space<vmem>>, vector<1x128xf32>
      %17 = vector.broadcast %16 : vector<1x128xf32> to vector<8x128xf32>
      %18 = arith.addf %15, %17 : vector<8x128xf32>
      %19 = arith.truncf %18 : vector<8x128xf32> to vector<8x128xbf16>
      %c0_16 = arith.constant 0 : index
      %c0_17 = arith.constant 0 : index
      %20 = vector.load %arg6[%c0_16, %c0_17] : memref<8x128xbf16, #tpu.memory_space<vmem>>, vector<8x128xbf16>
      tpu.vector_store %arg6[%c0_16, %c0_17], %19 {strides = array<i32>} : memref<8x128xbf16, #tpu.memory_space<vmem>>, vector<8x128xbf16>,
    } else {
    }
    return
  }
  func.func @transform_0(%arg0: i32, %arg1: i32) -> (i32, i32) {
    %c0_i32 = arith.constant 0 : i32
    return %arg0, %arg1 : i32, i32
  }
  func.func @transform_1(%arg0: i32, %arg1: i32) -> (i32, i32) {
    %c0_i32 = arith.constant 0 : i32
    %c0_i32_0 = arith.constant 0 : i32
    return %arg1, %c0_i32 : i32, i32
  }
  func.func @transform_2(%arg0: i32, %arg1: i32) -> (i32, i32) {
    %c0_i32 = arith.constant 0 : i32
    %c0_i32_0 = arith.constant 0 : i32
    %c0_i32_1 = arith.constant 0 : i32
    return %c0_i32, %c0_i32_0 : i32, i32
  }
  func.func @transform_3(%arg0: i32, %arg1: i32) -> (i32, i32) {
    %c0_i32 = arith.constant 0 : i32
    %c0_i32_0 = arith.constant 0 : i32
    %c0_i32_1 = arith.constant 0 : i32
    return %c0_i32, %c0_i32_0 : i32, i32
  }
  func.func @transform_4(%arg0: i32, %arg1: i32) -> (i32, i32) {
    %c0_i32 = arith.constant 0 : i32
    %c0_i32_0 = arith.constant 0 : i32
    return %arg0, %c0_i32 : i32, i32
  }
}

module attributes {stable_mosaic.version = 11 : i64} {
  func.func @_conv_fused_kernel(%arg0: i32, %arg1: i32, %arg2: memref<8x576xbf16, #tpu.memory_space<vmem>>, %arg3: memref<576x128xbf16, #tpu.memory_space<vmem>>, %arg4: memref<1x128xf32, #tpu.memory_space<vmem>>, %arg5: memref<1x128xf32, #tpu.memory_space<vmem>>, %arg6: memref<8x128xbf16, #tpu.memory_space<vmem>>, %arg7: memref<8x128xf32, #tpu.memory_space<vmem>>) attributes {dimension_semantics = [#tpu.dimension_semantics<parallel>, #tpu.dimension_semantics<arbitrary>], iteration_bounds = array<i64: 1, 1>, scalar_prefetch = 0 : i64, scratch_operands = 1 : i64, tpu.core_type = #tpu.core_type<tc>, window_params = [{transform_indices = @transform_0, window_bounds = array<i64: 8, 576>}, {transform_indices = @transform_1, window_bounds = array<i64: 576, 128>}, {pipeline_mode = #tpu.pipeline_mode<synchronous>, transform_indices = @transform_2, window_bounds = array<i64: 1, 128>}, {pipeline_mode = #tpu.pipeline_mode<synchronous>, transform_indices = @transform_3, window_bounds = array<i64: 1, 128>}, {transform_indices = @transform_4, window_bounds = array<i64: 8, 128>}]} {
    %c0_i32 = arith.constant 0 : i32
    %0 = arith.cmpi eq, %arg1, %c0_i32 : i32
    %1 = arith.extui %0 : i1 to i32
    %c0_i32_0 = arith.constant 0 : i32
    %2 = arith.cmpi ne, %1, %c0_i32_0 : i32
    scf.if %2 {
      %cst_10 = arith.constant 0.000000e+00 : f32
      %12 = vector.broadcast %cst_10 : f32 to vector<8x128xf32>
      %c0_11 = arith.constant 0 : index
      %c0_12 = arith.constant 0 : index
      %13 = vector.load %arg7[%c0_11, %c0_12] : memref<8x128xf32, #tpu.memory_space<vmem>>, vector<8x128xf32>
      tpu.vector_store %arg7[%c0_11, %c0_12], %12 {strides = array<i32>} : memref<8x128xf32, #tpu.memory_space<vmem>>, vector<8x128xf32>,
    } else {
    }
    %c0 = arith.constant 0 : index
    %c0_1 = arith.constant 0 : index
    %3 = vector.load %arg7[%c0, %c0_1] : memref<8x128xf32, #tpu.memory_space<vmem>>, vector<8x128xf32>
    %c0_2 = arith.constant 0 : index
    %c0_3 = arith.constant 0 : index
    %4 = vector.load %arg2[%c0_2, %c0_3] : memref<8x576xbf16, #tpu.memory_space<vmem>>, vector<8x576xbf16>
    %c0_4 = arith.constant 0 : index
    %c0_5 = arith.constant 0 : index
    %5 = vector.load %arg3[%c0_4, %c0_5] : memref<576x128xbf16, #tpu.memory_space<vmem>>, vector<576x128xbf16>
    %cst = arith.constant dense<0.000000e+00> : vector<8x128xf32>
    %6 = tpu.matmul %4, %5, %cst {dimension_numbers = #tpu.dot_dimension_numbers<[1], [0], [0], [1], [0, 0, 1, 1], [], []>} : vector<8x576xbf16>, vector<576x128xbf16>, vector<8x128xf32> -> vector<8x128xf32>
    %7 = arith.addf %3, %6 : vector<8x128xf32>
    %c0_6 = arith.constant 0 : index
    %c0_7 = arith.constant 0 : index
    %8 = vector.load %arg7[%c0_6, %c0_7] : memref<8x128xf32, #tpu.memory_space<vmem>>, vector<8x128xf32>
    tpu.vector_store %arg7[%c0_6, %c0_7], %7 {strides = array<i32>} : memref<8x128xf32, #tpu.memory_space<vmem>>, vector<8x128xf32>,
    %c0_i32_8 = arith.constant 0 : i32
    %9 = arith.cmpi eq, %arg1, %c0_i32_8 : i32
    %10 = arith.extui %9 : i1 to i32
    %c0_i32_9 = arith.constant 0 : i32
    %11 = arith.cmpi ne, %10, %c0_i32_9 : i32
    scf.if %11 {
      %c0_10 = arith.constant 0 : index
      %c0_11 = arith.constant 0 : index
      %12 = vector.load %arg7[%c0_10, %c0_11] : memref<8x128xf32, #tpu.memory_space<vmem>>, vector<8x128xf32>
      %c0_12 = arith.constant 0 : index
      %c0_13 = arith.constant 0 : index
      %13 = vector.load %arg4[%c0_12, %c0_13] : memref<1x128xf32, #tpu.memory_space<vmem>>, vector<1x128xf32>
      %14 = vector.broadcast %13 : vector<1x128xf32> to vector<8x128xf32>
      %15 = arith.mulf %12, %14 : vector<8x128xf32>
      %c0_14 = arith.constant 0 : index
      %c0_15 = arith.constant 0 : index
      %16 = vector.load %arg5[%c0_14, %c0_15] : memref<1x128xf32, #tpu.memory_space<vmem>>, vector<1x128xf32>
      %17 = vector.broadcast %16 : vector<1x128xf32> to vector<8x128xf32>
      %18 = arith.addf %15, %17 : vector<8x128xf32>
      %cst_16 = arith.constant 0.000000e+00 : f32
      %19 = vector.broadcast %cst_16 : f32 to vector<8x128xf32>
      %20 = arith.maximumf %18, %19 : vector<8x128xf32>
      %21 = arith.truncf %20 : vector<8x128xf32> to vector<8x128xbf16>
      %c0_17 = arith.constant 0 : index
      %c0_18 = arith.constant 0 : index
      %22 = vector.load %arg6[%c0_17, %c0_18] : memref<8x128xbf16, #tpu.memory_space<vmem>>, vector<8x128xbf16>
      tpu.vector_store %arg6[%c0_17, %c0_18], %21 {strides = array<i32>} : memref<8x128xbf16, #tpu.memory_space<vmem>>, vector<8x128xbf16>,
    } else {
    }
    return
  }
  func.func @transform_0(%arg0: i32, %arg1: i32) -> (i32, i32) {
    %c0_i32 = arith.constant 0 : i32
    return %arg0, %arg1 : i32, i32
  }
  func.func @transform_1(%arg0: i32, %arg1: i32) -> (i32, i32) {
    %c0_i32 = arith.constant 0 : i32
    %c0_i32_0 = arith.constant 0 : i32
    return %arg1, %c0_i32 : i32, i32
  }
  func.func @transform_2(%arg0: i32, %arg1: i32) -> (i32, i32) {
    %c0_i32 = arith.constant 0 : i32
    %c0_i32_0 = arith.constant 0 : i32
    %c0_i32_1 = arith.constant 0 : i32
    return %c0_i32, %c0_i32_0 : i32, i32
  }
  func.func @transform_3(%arg0: i32, %arg1: i32) -> (i32, i32) {
    %c0_i32 = arith.constant 0 : i32
    %c0_i32_0 = arith.constant 0 : i32
    %c0_i32_1 = arith.constant 0 : i32
    return %c0_i32, %c0_i32_0 : i32, i32
  }
  func.func @transform_4(%arg0: i32, %arg1: i32) -> (i32, i32) {
    %c0_i32 = arith.constant 0 : i32
    %c0_i32_0 = arith.constant 0 : i32
    return %arg0, %c0_i32 : i32, i32
  }
}

module attributes {stable_mosaic.version = 11 : i64} {
  func.func @_conv_fused_kernel(%arg0: i32, %arg1: i32, %arg2: memref<8x576xbf16, #tpu.memory_space<vmem>>, %arg3: memref<576x128xbf16, #tpu.memory_space<vmem>>, %arg4: memref<1x128xf32, #tpu.memory_space<vmem>>, %arg5: memref<1x128xf32, #tpu.memory_space<vmem>>, %arg6: memref<8x128xbf16, #tpu.memory_space<vmem>>, %arg7: memref<8x128xbf16, #tpu.memory_space<vmem>>, %arg8: memref<8x128xf32, #tpu.memory_space<vmem>>) attributes {dimension_semantics = [#tpu.dimension_semantics<parallel>, #tpu.dimension_semantics<arbitrary>], iteration_bounds = array<i64: 1, 1>, scalar_prefetch = 0 : i64, scratch_operands = 1 : i64, tpu.core_type = #tpu.core_type<tc>, window_params = [{transform_indices = @transform_0, window_bounds = array<i64: 8, 576>}, {transform_indices = @transform_1, window_bounds = array<i64: 576, 128>}, {pipeline_mode = #tpu.pipeline_mode<synchronous>, transform_indices = @transform_2, window_bounds = array<i64: 1, 128>}, {pipeline_mode = #tpu.pipeline_mode<synchronous>, transform_indices = @transform_3, window_bounds = array<i64: 1, 128>}, {transform_indices = @transform_4, window_bounds = array<i64: 8, 128>}, {transform_indices = @transform_5, window_bounds = array<i64: 8, 128>}]} {
    %c0_i32 = arith.constant 0 : i32
    %0 = arith.cmpi eq, %arg1, %c0_i32 : i32
    %1 = arith.extui %0 : i1 to i32
    %c0_i32_0 = arith.constant 0 : i32
    %2 = arith.cmpi ne, %1, %c0_i32_0 : i32
    scf.if %2 {
      %cst_10 = arith.constant 0.000000e+00 : f32
      %12 = vector.broadcast %cst_10 : f32 to vector<8x128xf32>
      %c0_11 = arith.constant 0 : index
      %c0_12 = arith.constant 0 : index
      %13 = vector.load %arg8[%c0_11, %c0_12] : memref<8x128xf32, #tpu.memory_space<vmem>>, vector<8x128xf32>
      tpu.vector_store %arg8[%c0_11, %c0_12], %12 {strides = array<i32>} : memref<8x128xf32, #tpu.memory_space<vmem>>, vector<8x128xf32>,
    } else {
    }
    %c0 = arith.constant 0 : index
    %c0_1 = arith.constant 0 : index
    %3 = vector.load %arg8[%c0, %c0_1] : memref<8x128xf32, #tpu.memory_space<vmem>>, vector<8x128xf32>
    %c0_2 = arith.constant 0 : index
    %c0_3 = arith.constant 0 : index
    %4 = vector.load %arg2[%c0_2, %c0_3] : memref<8x576xbf16, #tpu.memory_space<vmem>>, vector<8x576xbf16>
    %c0_4 = arith.constant 0 : index
    %c0_5 = arith.constant 0 : index
    %5 = vector.load %arg3[%c0_4, %c0_5] : memref<576x128xbf16, #tpu.memory_space<vmem>>, vector<576x128xbf16>
    %cst = arith.constant dense<0.000000e+00> : vector<8x128xf32>
    %6 = tpu.matmul %4, %5, %cst {dimension_numbers = #tpu.dot_dimension_numbers<[1], [0], [0], [1], [0, 0, 1, 1], [], []>} : vector<8x576xbf16>, vector<576x128xbf16>, vector<8x128xf32> -> vector<8x128xf32>
    %7 = arith.addf %3, %6 : vector<8x128xf32>
    %c0_6 = arith.constant 0 : index
    %c0_7 = arith.constant 0 : index
    %8 = vector.load %arg8[%c0_6, %c0_7] : memref<8x128xf32, #tpu.memory_space<vmem>>, vector<8x128xf32>
    tpu.vector_store %arg8[%c0_6, %c0_7], %7 {strides = array<i32>} : memref<8x128xf32, #tpu.memory_space<vmem>>, vector<8x128xf32>,
    %c0_i32_8 = arith.constant 0 : i32
    %9 = arith.cmpi eq, %arg1, %c0_i32_8 : i32
    %10 = arith.extui %9 : i1 to i32
    %c0_i32_9 = arith.constant 0 : i32
    %11 = arith.cmpi ne, %10, %c0_i32_9 : i32
    scf.if %11 {
      %c0_10 = arith.constant 0 : index
      %c0_11 = arith.constant 0 : index
      %12 = vector.load %arg8[%c0_10, %c0_11] : memref<8x128xf32, #tpu.memory_space<vmem>>, vector<8x128xf32>
      %c0_12 = arith.constant 0 : index
      %c0_13 = arith.constant 0 : index
      %13 = vector.load %arg4[%c0_12, %c0_13] : memref<1x128xf32, #tpu.memory_space<vmem>>, vector<1x128xf32>
      %14 = vector.broadcast %13 : vector<1x128xf32> to vector<8x128xf32>
      %15 = arith.mulf %12, %14 : vector<8x128xf32>
      %c0_14 = arith.constant 0 : index
      %c0_15 = arith.constant 0 : index
      %16 = vector.load %arg5[%c0_14, %c0_15] : memref<1x128xf32, #tpu.memory_space<vmem>>, vector<1x128xf32>
      %17 = vector.broadcast %16 : vector<1x128xf32> to vector<8x128xf32>
      %18 = arith.addf %15, %17 : vector<8x128xf32>
      %c0_16 = arith.constant 0 : index
      %c0_17 = arith.constant 0 : index
      %19 = vector.load %arg6[%c0_16, %c0_17] : memref<8x128xbf16, #tpu.memory_space<vmem>>, vector<8x128xbf16>
      %20 = arith.extf %19 : vector<8x128xbf16> to vector<8x128xf32>
      %21 = arith.addf %18, %20 : vector<8x128xf32>
      %cst_18 = arith.constant 0.000000e+00 : f32
      %22 = vector.broadcast %cst_18 : f32 to vector<8x128xf32>
      %23 = arith.maximumf %21, %22 : vector<8x128xf32>
      %24 = arith.truncf %23 : vector<8x128xf32> to vector<8x128xbf16>
      %c0_19 = arith.constant 0 : index
      %c0_20 = arith.constant 0 : index
      %25 = vector.load %arg7[%c0_19, %c0_20] : memref<8x128xbf16, #tpu.memory_space<vmem>>, vector<8x128xbf16>
      tpu.vector_store %arg7[%c0_19, %c0_20], %24 {strides = array<i32>} : memref<8x128xbf16, #tpu.memory_space<vmem>>, vector<8x128xbf16>,
    } else {
    }
    return
  }
  func.func @transform_0(%arg0: i32, %arg1: i32) -> (i32, i32) {
    %c0_i32 = arith.constant 0 : i32
    return %arg0, %arg1 : i32, i32
  }
  func.func @transform_1(%arg0: i32, %arg1: i32) -> (i32, i32) {
    %c0_i32 = arith.constant 0 : i32
    %c0_i32_0 = arith.constant 0 : i32
    return %arg1, %c0_i32 : i32, i32
  }
  func.func @transform_2(%arg0: i32, %arg1: i32) -> (i32, i32) {
    %c0_i32 = arith.constant 0 : i32
    %c0_i32_0 = arith.constant 0 : i32
    %c0_i32_1 = arith.constant 0 : i32
    return %c0_i32, %c0_i32_0 : i32, i32
  }
  func.func @transform_3(%arg0: i32, %arg1: i32) -> (i32, i32) {
    %c0_i32 = arith.constant 0 : i32
    %c0_i32_0 = arith.constant 0 : i32
    %c0_i32_1 = arith.constant 0 : i32
    return %c0_i32, %c0_i32_0 : i32, i32
  }
  func.func @transform_4(%arg0: i32, %arg1: i32) -> (i32, i32) {
    %c0_i32 = arith.constant 0 : i32
    %c0_i32_0 = arith.constant 0 : i32
    return %arg0, %c0_i32 : i32, i32
  }
  func.func @transform_5(%arg0: i32, %arg1: i32) -> (i32, i32) {
    %c0_i32 = arith.constant 0 : i32
    %c0_i32_0 = arith.constant 0 : i32
    return %arg0, %c0_i32 : i32, i32
  }
}

module attributes {stable_mosaic.version = 11 : i64} {
  func.func @_conv_fused_kernel(%arg0: i32, %arg1: i32, %arg2: memref<2x576xbf16, #tpu.memory_space<vmem>>, %arg3: memref<576x128xbf16, #tpu.memory_space<vmem>>, %arg4: memref<1x128xf32, #tpu.memory_space<vmem>>, %arg5: memref<1x128xf32, #tpu.memory_space<vmem>>, %arg6: memref<2x128xbf16, #tpu.memory_space<vmem>>, %arg7: memref<2x128xf32, #tpu.memory_space<vmem>>) attributes {dimension_semantics = [#tpu.dimension_semantics<parallel>, #tpu.dimension_semantics<arbitrary>], iteration_bounds = array<i64: 1, 1>, scalar_prefetch = 0 : i64, scratch_operands = 1 : i64, tpu.core_type = #tpu.core_type<tc>, window_params = [{transform_indices = @transform_0, window_bounds = array<i64: 2, 576>}, {transform_indices = @transform_1, window_bounds = array<i64: 576, 128>}, {pipeline_mode = #tpu.pipeline_mode<synchronous>, transform_indices = @transform_2, window_bounds = array<i64: 1, 128>}, {pipeline_mode = #tpu.pipeline_mode<synchronous>, transform_indices = @transform_3, window_bounds = array<i64: 1, 128>}, {transform_indices = @transform_4, window_bounds = array<i64: 2, 128>}]} {
    %c0_i32 = arith.constant 0 : i32
    %0 = arith.cmpi eq, %arg1, %c0_i32 : i32
    %1 = arith.extui %0 : i1 to i32
    %c0_i32_0 = arith.constant 0 : i32
    %2 = arith.cmpi ne, %1, %c0_i32_0 : i32
    scf.if %2 {
      %cst_10 = arith.constant 0.000000e+00 : f32
      %12 = vector.broadcast %cst_10 : f32 to vector<2x128xf32>
      %c0_11 = arith.constant 0 : index
      %c0_12 = arith.constant 0 : index
      %13 = vector.load %arg7[%c0_11, %c0_12] : memref<2x128xf32, #tpu.memory_space<vmem>>, vector<2x128xf32>
      tpu.vector_store %arg7[%c0_11, %c0_12], %12 {strides = array<i32>} : memref<2x128xf32, #tpu.memory_space<vmem>>, vector<2x128xf32>,
    } else {
    }
    %c0 = arith.constant 0 : index
    %c0_1 = arith.constant 0 : index
    %3 = vector.load %arg7[%c0, %c0_1] : memref<2x128xf32, #tpu.memory_space<vmem>>, vector<2x128xf32>
    %c0_2 = arith.constant 0 : index
    %c0_3 = arith.constant 0 : index
    %4 = vector.load %arg2[%c0_2, %c0_3] : memref<2x576xbf16, #tpu.memory_space<vmem>>, vector<2x576xbf16>
    %c0_4 = arith.constant 0 : index
    %c0_5 = arith.constant 0 : index
    %5 = vector.load %arg3[%c0_4, %c0_5] : memref<576x128xbf16, #tpu.memory_space<vmem>>, vector<576x128xbf16>
    %cst = arith.constant dense<0.000000e+00> : vector<2x128xf32>
    %6 = tpu.matmul %4, %5, %cst {dimension_numbers = #tpu.dot_dimension_numbers<[1], [0], [0], [1], [0, 0, 1, 1], [], []>} : vector<2x576xbf16>, vector<576x128xbf16>, vector<2x128xf32> -> vector<2x128xf32>
    %7 = arith.addf %3, %6 : vector<2x128xf32>
    %c0_6 = arith.constant 0 : index
    %c0_7 = arith.constant 0 : index
    %8 = vector.load %arg7[%c0_6, %c0_7] : memref<2x128xf32, #tpu.memory_space<vmem>>, vector<2x128xf32>
    tpu.vector_store %arg7[%c0_6, %c0_7], %7 {strides = array<i32>} : memref<2x128xf32, #tpu.memory_space<vmem>>, vector<2x128xf32>,
    %c0_i32_8 = arith.constant 0 : i32
    %9 = arith.cmpi eq, %arg1, %c0_i32_8 : i32
    %10 = arith.extui %9 : i1 to i32
    %c0_i32_9 = arith.constant 0 : i32
    %11 = arith.cmpi ne, %10, %c0_i32_9 : i32
    scf.if %11 {
      %c0_10 = arith.constant 0 : index
      %c0_11 = arith.constant 0 : index
      %12 = vector.load %arg7[%c0_10, %c0_11] : memref<2x128xf32, #tpu.memory_space<vmem>>, vector<2x128xf32>
      %c0_12 = arith.constant 0 : index
      %c0_13 = arith.constant 0 : index
      %13 = vector.load %arg4[%c0_12, %c0_13] : memref<1x128xf32, #tpu.memory_space<vmem>>, vector<1x128xf32>
      %14 = vector.broadcast %13 : vector<1x128xf32> to vector<2x128xf32>
      %15 = arith.mulf %12, %14 : vector<2x128xf32>
      %c0_14 = arith.constant 0 : index
      %c0_15 = arith.constant 0 : index
      %16 = vector.load %arg5[%c0_14, %c0_15] : memref<1x128xf32, #tpu.memory_space<vmem>>, vector<1x128xf32>
      %17 = vector.broadcast %16 : vector<1x128xf32> to vector<2x128xf32>
      %18 = arith.addf %15, %17 : vector<2x128xf32>
      %cst_16 = arith.constant 0.000000e+00 : f32
      %19 = vector.broadcast %cst_16 : f32 to vector<2x128xf32>
      %20 = arith.maximumf %18, %19 : vector<2x128xf32>
      %21 = arith.truncf %20 : vector<2x128xf32> to vector<2x128xbf16>
      %c0_17 = arith.constant 0 : index
      %c0_18 = arith.constant 0 : index
      %22 = vector.load %arg6[%c0_17, %c0_18] : memref<2x128xbf16, #tpu.memory_space<vmem>>, vector<2x128xbf16>
      tpu.vector_store %arg6[%c0_17, %c0_18], %21 {strides = array<i32>} : memref<2x128xbf16, #tpu.memory_space<vmem>>, vector<2x128xbf16>,
    } else {
    }
    return
  }
  func.func @transform_0(%arg0: i32, %arg1: i32) -> (i32, i32) {
    %c0_i32 = arith.constant 0 : i32
    return %arg0, %arg1 : i32, i32
  }
  func.func @transform_1(%arg0: i32, %arg1: i32) -> (i32, i32) {
    %c0_i32 = arith.constant 0 : i32
    %c0_i32_0 = arith.constant 0 : i32
    return %arg1, %c0_i32 : i32, i32
  }
  func.func @transform_2(%arg0: i32, %arg1: i32) -> (i32, i32) {
    %c0_i32 = arith.constant 0 : i32
    %c0_i32_0 = arith.constant 0 : i32
    %c0_i32_1 = arith.constant 0 : i32
    return %c0_i32, %c0_i32_0 : i32, i32
  }
  func.func @transform_3(%arg0: i32, %arg1: i32) -> (i32, i32) {
    %c0_i32 = arith.constant 0 : i32
    %c0_i32_0 = arith.constant 0 : i32
    %c0_i32_1 = arith.constant 0 : i32
    return %c0_i32, %c0_i32_0 : i32, i32
  }
  func.func @transform_4(%arg0: i32, %arg1: i32) -> (i32, i32) {
    %c0_i32 = arith.constant 0 : i32
    %c0_i32_0 = arith.constant 0 : i32
    return %arg0, %c0_i32 : i32, i32
  }
}

module attributes {stable_mosaic.version = 11 : i64} {
  func.func @_conv_fused_kernel(%arg0: i32, %arg1: i32, %arg2: memref<2x64xbf16, #tpu.memory_space<vmem>>, %arg3: memref<64x128xbf16, #tpu.memory_space<vmem>>, %arg4: memref<1x128xf32, #tpu.memory_space<vmem>>, %arg5: memref<1x128xf32, #tpu.memory_space<vmem>>, %arg6: memref<2x128xbf16, #tpu.memory_space<vmem>>, %arg7: memref<2x128xf32, #tpu.memory_space<vmem>>) attributes {dimension_semantics = [#tpu.dimension_semantics<parallel>, #tpu.dimension_semantics<arbitrary>], iteration_bounds = array<i64: 1, 1>, scalar_prefetch = 0 : i64, scratch_operands = 1 : i64, tpu.core_type = #tpu.core_type<tc>, window_params = [{transform_indices = @transform_0, window_bounds = array<i64: 2, 64>}, {transform_indices = @transform_1, window_bounds = array<i64: 64, 128>}, {pipeline_mode = #tpu.pipeline_mode<synchronous>, transform_indices = @transform_2, window_bounds = array<i64: 1, 128>}, {pipeline_mode = #tpu.pipeline_mode<synchronous>, transform_indices = @transform_3, window_bounds = array<i64: 1, 128>}, {transform_indices = @transform_4, window_bounds = array<i64: 2, 128>}]} {
    %c0_i32 = arith.constant 0 : i32
    %0 = arith.cmpi eq, %arg1, %c0_i32 : i32
    %1 = arith.extui %0 : i1 to i32
    %c0_i32_0 = arith.constant 0 : i32
    %2 = arith.cmpi ne, %1, %c0_i32_0 : i32
    scf.if %2 {
      %cst_10 = arith.constant 0.000000e+00 : f32
      %12 = vector.broadcast %cst_10 : f32 to vector<2x128xf32>
      %c0_11 = arith.constant 0 : index
      %c0_12 = arith.constant 0 : index
      %13 = vector.load %arg7[%c0_11, %c0_12] : memref<2x128xf32, #tpu.memory_space<vmem>>, vector<2x128xf32>
      tpu.vector_store %arg7[%c0_11, %c0_12], %12 {strides = array<i32>} : memref<2x128xf32, #tpu.memory_space<vmem>>, vector<2x128xf32>,
    } else {
    }
    %c0 = arith.constant 0 : index
    %c0_1 = arith.constant 0 : index
    %3 = vector.load %arg7[%c0, %c0_1] : memref<2x128xf32, #tpu.memory_space<vmem>>, vector<2x128xf32>
    %c0_2 = arith.constant 0 : index
    %c0_3 = arith.constant 0 : index
    %4 = vector.load %arg2[%c0_2, %c0_3] : memref<2x64xbf16, #tpu.memory_space<vmem>>, vector<2x64xbf16>
    %c0_4 = arith.constant 0 : index
    %c0_5 = arith.constant 0 : index
    %5 = vector.load %arg3[%c0_4, %c0_5] : memref<64x128xbf16, #tpu.memory_space<vmem>>, vector<64x128xbf16>
    %cst = arith.constant dense<0.000000e+00> : vector<2x128xf32>
    %6 = tpu.matmul %4, %5, %cst {dimension_numbers = #tpu.dot_dimension_numbers<[1], [0], [0], [1], [0, 0, 1, 1], [], []>} : vector<2x64xbf16>, vector<64x128xbf16>, vector<2x128xf32> -> vector<2x128xf32>
    %7 = arith.addf %3, %6 : vector<2x128xf32>
    %c0_6 = arith.constant 0 : index
    %c0_7 = arith.constant 0 : index
    %8 = vector.load %arg7[%c0_6, %c0_7] : memref<2x128xf32, #tpu.memory_space<vmem>>, vector<2x128xf32>
    tpu.vector_store %arg7[%c0_6, %c0_7], %7 {strides = array<i32>} : memref<2x128xf32, #tpu.memory_space<vmem>>, vector<2x128xf32>,
    %c0_i32_8 = arith.constant 0 : i32
    %9 = arith.cmpi eq, %arg1, %c0_i32_8 : i32
    %10 = arith.extui %9 : i1 to i32
    %c0_i32_9 = arith.constant 0 : i32
    %11 = arith.cmpi ne, %10, %c0_i32_9 : i32
    scf.if %11 {
      %c0_10 = arith.constant 0 : index
      %c0_11 = arith.constant 0 : index
      %12 = vector.load %arg7[%c0_10, %c0_11] : memref<2x128xf32, #tpu.memory_space<vmem>>, vector<2x128xf32>
      %c0_12 = arith.constant 0 : index
      %c0_13 = arith.constant 0 : index
      %13 = vector.load %arg4[%c0_12, %c0_13] : memref<1x128xf32, #tpu.memory_space<vmem>>, vector<1x128xf32>
      %14 = vector.broadcast %13 : vector<1x128xf32> to vector<2x128xf32>
      %15 = arith.mulf %12, %14 : vector<2x128xf32>
      %c0_14 = arith.constant 0 : index
      %c0_15 = arith.constant 0 : index
      %16 = vector.load %arg5[%c0_14, %c0_15] : memref<1x128xf32, #tpu.memory_space<vmem>>, vector<1x128xf32>
      %17 = vector.broadcast %16 : vector<1x128xf32> to vector<2x128xf32>
      %18 = arith.addf %15, %17 : vector<2x128xf32>
      %19 = arith.truncf %18 : vector<2x128xf32> to vector<2x128xbf16>
      %c0_16 = arith.constant 0 : index
      %c0_17 = arith.constant 0 : index
      %20 = vector.load %arg6[%c0_16, %c0_17] : memref<2x128xbf16, #tpu.memory_space<vmem>>, vector<2x128xbf16>
      tpu.vector_store %arg6[%c0_16, %c0_17], %19 {strides = array<i32>} : memref<2x128xbf16, #tpu.memory_space<vmem>>, vector<2x128xbf16>,
    } else {
    }
    return
  }
  func.func @transform_0(%arg0: i32, %arg1: i32) -> (i32, i32) {
    %c0_i32 = arith.constant 0 : i32
    return %arg0, %arg1 : i32, i32
  }
  func.func @transform_1(%arg0: i32, %arg1: i32) -> (i32, i32) {
    %c0_i32 = arith.constant 0 : i32
    %c0_i32_0 = arith.constant 0 : i32
    return %arg1, %c0_i32 : i32, i32
  }
  func.func @transform_2(%arg0: i32, %arg1: i32) -> (i32, i32) {
    %c0_i32 = arith.constant 0 : i32
    %c0_i32_0 = arith.constant 0 : i32
    %c0_i32_1 = arith.constant 0 : i32
    return %c0_i32, %c0_i32_0 : i32, i32
  }
  func.func @transform_3(%arg0: i32, %arg1: i32) -> (i32, i32) {
    %c0_i32 = arith.constant 0 : i32
    %c0_i32_0 = arith.constant 0 : i32
    %c0_i32_1 = arith.constant 0 : i32
    return %c0_i32, %c0_i32_0 : i32, i32
  }
  func.func @transform_4(%arg0: i32, %arg1: i32) -> (i32, i32) {
    %c0_i32 = arith.constant 0 : i32
    %c0_i32_0 = arith.constant 0 : i32
    return %arg0, %c0_i32 : i32, i32
  }
}

module attributes {stable_mosaic.version = 11 : i64} {
  func.func @_conv_fused_kernel(%arg0: i32, %arg1: i32, %arg2: memref<2x384xbf16, #tpu.memory_space<vmem>>, %arg3: memref<384x128xbf16, #tpu.memory_space<vmem>>, %arg4: memref<1x128xf32, #tpu.memory_space<vmem>>, %arg5: memref<1x128xf32, #tpu.memory_space<vmem>>, %arg6: memref<2x128xbf16, #tpu.memory_space<vmem>>, %arg7: memref<2x128xbf16, #tpu.memory_space<vmem>>, %arg8: memref<2x128xf32, #tpu.memory_space<vmem>>) attributes {dimension_semantics = [#tpu.dimension_semantics<parallel>, #tpu.dimension_semantics<arbitrary>], iteration_bounds = array<i64: 1, 3>, scalar_prefetch = 0 : i64, scratch_operands = 1 : i64, tpu.core_type = #tpu.core_type<tc>, window_params = [{transform_indices = @transform_0, window_bounds = array<i64: 2, 384>}, {transform_indices = @transform_1, window_bounds = array<i64: 384, 128>}, {pipeline_mode = #tpu.pipeline_mode<synchronous>, transform_indices = @transform_2, window_bounds = array<i64: 1, 128>}, {pipeline_mode = #tpu.pipeline_mode<synchronous>, transform_indices = @transform_3, window_bounds = array<i64: 1, 128>}, {transform_indices = @transform_4, window_bounds = array<i64: 2, 128>}, {transform_indices = @transform_5, window_bounds = array<i64: 2, 128>}]} {
    %c0_i32 = arith.constant 0 : i32
    %0 = arith.cmpi eq, %arg1, %c0_i32 : i32
    %1 = arith.extui %0 : i1 to i32
    %c0_i32_0 = arith.constant 0 : i32
    %2 = arith.cmpi ne, %1, %c0_i32_0 : i32
    scf.if %2 {
      %cst_9 = arith.constant 0.000000e+00 : f32
      %12 = vector.broadcast %cst_9 : f32 to vector<2x128xf32>
      %c0_10 = arith.constant 0 : index
      %c0_11 = arith.constant 0 : index
      %13 = vector.load %arg8[%c0_10, %c0_11] : memref<2x128xf32, #tpu.memory_space<vmem>>, vector<2x128xf32>
      tpu.vector_store %arg8[%c0_10, %c0_11], %12 {strides = array<i32>} : memref<2x128xf32, #tpu.memory_space<vmem>>, vector<2x128xf32>,
    } else {
    }
    %c0 = arith.constant 0 : index
    %c0_1 = arith.constant 0 : index
    %3 = vector.load %arg8[%c0, %c0_1] : memref<2x128xf32, #tpu.memory_space<vmem>>, vector<2x128xf32>
    %c0_2 = arith.constant 0 : index
    %c0_3 = arith.constant 0 : index
    %4 = vector.load %arg2[%c0_2, %c0_3] : memref<2x384xbf16, #tpu.memory_space<vmem>>, vector<2x384xbf16>
    %c0_4 = arith.constant 0 : index
    %c0_5 = arith.constant 0 : index
    %5 = vector.load %arg3[%c0_4, %c0_5] : memref<384x128xbf16, #tpu.memory_space<vmem>>, vector<384x128xbf16>
    %cst = arith.constant dense<0.000000e+00> : vector<2x128xf32>
    %6 = tpu.matmul %4, %5, %cst {dimension_numbers = #tpu.dot_dimension_numbers<[1], [0], [0], [1], [0, 0, 1, 1], [], []>} : vector<2x384xbf16>, vector<384x128xbf16>, vector<2x128xf32> -> vector<2x128xf32>
    %7 = arith.addf %3, %6 : vector<2x128xf32>
    %c0_6 = arith.constant 0 : index
    %c0_7 = arith.constant 0 : index
    %8 = vector.load %arg8[%c0_6, %c0_7] : memref<2x128xf32, #tpu.memory_space<vmem>>, vector<2x128xf32>
    tpu.vector_store %arg8[%c0_6, %c0_7], %7 {strides = array<i32>} : memref<2x128xf32, #tpu.memory_space<vmem>>, vector<2x128xf32>,
    %c2_i32 = arith.constant 2 : i32
    %9 = arith.cmpi eq, %arg1, %c2_i32 : i32
    %10 = arith.extui %9 : i1 to i32
    %c0_i32_8 = arith.constant 0 : i32
    %11 = arith.cmpi ne, %10, %c0_i32_8 : i32
    scf.if %11 {
      %c0_9 = arith.constant 0 : index
      %c0_10 = arith.constant 0 : index
      %12 = vector.load %arg8[%c0_9, %c0_10] : memref<2x128xf32, #tpu.memory_space<vmem>>, vector<2x128xf32>
      %c0_11 = arith.constant 0 : index
      %c0_12 = arith.constant 0 : index
      %13 = vector.load %arg4[%c0_11, %c0_12] : memref<1x128xf32, #tpu.memory_space<vmem>>, vector<1x128xf32>
      %14 = vector.broadcast %13 : vector<1x128xf32> to vector<2x128xf32>
      %15 = arith.mulf %12, %14 : vector<2x128xf32>
      %c0_13 = arith.constant 0 : index
      %c0_14 = arith.constant 0 : index
      %16 = vector.load %arg5[%c0_13, %c0_14] : memref<1x128xf32, #tpu.memory_space<vmem>>, vector<1x128xf32>
      %17 = vector.broadcast %16 : vector<1x128xf32> to vector<2x128xf32>
      %18 = arith.addf %15, %17 : vector<2x128xf32>
      %c0_15 = arith.constant 0 : index
      %c0_16 = arith.constant 0 : index
      %19 = vector.load %arg6[%c0_15, %c0_16] : memref<2x128xbf16, #tpu.memory_space<vmem>>, vector<2x128xbf16>
      %20 = arith.extf %19 : vector<2x128xbf16> to vector<2x128xf32>
      %21 = arith.addf %18, %20 : vector<2x128xf32>
      %cst_17 = arith.constant 0.000000e+00 : f32
      %22 = vector.broadcast %cst_17 : f32 to vector<2x128xf32>
      %23 = arith.maximumf %21, %22 : vector<2x128xf32>
      %24 = arith.truncf %23 : vector<2x128xf32> to vector<2x128xbf16>
      %c0_18 = arith.constant 0 : index
      %c0_19 = arith.constant 0 : index
      %25 = vector.load %arg7[%c0_18, %c0_19] : memref<2x128xbf16, #tpu.memory_space<vmem>>, vector<2x128xbf16>
      tpu.vector_store %arg7[%c0_18, %c0_19], %24 {strides = array<i32>} : memref<2x128xbf16, #tpu.memory_space<vmem>>, vector<2x128xbf16>,
    } else {
    }
    return
  }
  func.func @transform_0(%arg0: i32, %arg1: i32) -> (i32, i32) {
    %c0_i32 = arith.constant 0 : i32
    return %arg0, %arg1 : i32, i32
  }
  func.func @transform_1(%arg0: i32, %arg1: i32) -> (i32, i32) {
    %c0_i32 = arith.constant 0 : i32
    %c0_i32_0 = arith.constant 0 : i32
    return %arg1, %c0_i32 : i32, i32
  }
  func.func @transform_2(%arg0: i32, %arg1: i32) -> (i32, i32) {
    %c0_i32 = arith.constant 0 : i32
    %c0_i32_0 = arith.constant 0 : i32
    %c0_i32_1 = arith.constant 0 : i32
    return %c0_i32, %c0_i32_0 : i32, i32
  }
  func.func @transform_3(%arg0: i32, %arg1: i32) -> (i32, i32) {
    %c0_i32 = arith.constant 0 : i32
    %c0_i32_0 = arith.constant 0 : i32
    %c0_i32_1 = arith.constant 0 : i32
    return %c0_i32, %c0_i32_0 : i32, i32
  }
  func.func @transform_4(%arg0: i32, %arg1: i32) -> (i32, i32) {
    %c0_i32 = arith.constant 0 : i32
    %c0_i32_0 = arith.constant 0 : i32
    return %arg0, %c0_i32 : i32, i32
  }
  func.func @transform_5(%arg0: i32, %arg1: i32) -> (i32, i32) {
    %c0_i32 = arith.constant 0 : i32
    %c0_i32_0 = arith.constant 0 : i32
    return %arg0, %c0_i32 : i32, i32
  }
}

module attributes {stable_mosaic.version = 11 : i64} {
  func.func @_conv_fused_kernel(%arg0: i32, %arg1: i32, %arg2: memref<2x384xbf16, #tpu.memory_space<vmem>>, %arg3: memref<384x128xbf16, #tpu.memory_space<vmem>>, %arg4: memref<1x128xf32, #tpu.memory_space<vmem>>, %arg5: memref<1x128xf32, #tpu.memory_space<vmem>>, %arg6: memref<2x128xbf16, #tpu.memory_space<vmem>>, %arg7: memref<2x128xf32, #tpu.memory_space<vmem>>) attributes {dimension_semantics = [#tpu.dimension_semantics<parallel>, #tpu.dimension_semantics<arbitrary>], iteration_bounds = array<i64: 1, 3>, scalar_prefetch = 0 : i64, scratch_operands = 1 : i64, tpu.core_type = #tpu.core_type<tc>, window_params = [{transform_indices = @transform_0, window_bounds = array<i64: 2, 384>}, {transform_indices = @transform_1, window_bounds = array<i64: 384, 128>}, {pipeline_mode = #tpu.pipeline_mode<synchronous>, transform_indices = @transform_2, window_bounds = array<i64: 1, 128>}, {pipeline_mode = #tpu.pipeline_mode<synchronous>, transform_indices = @transform_3, window_bounds = array<i64: 1, 128>}, {transform_indices = @transform_4, window_bounds = array<i64: 2, 128>}]} {
    %c0_i32 = arith.constant 0 : i32
    %0 = arith.cmpi eq, %arg1, %c0_i32 : i32
    %1 = arith.extui %0 : i1 to i32
    %c0_i32_0 = arith.constant 0 : i32
    %2 = arith.cmpi ne, %1, %c0_i32_0 : i32
    scf.if %2 {
      %cst_9 = arith.constant 0.000000e+00 : f32
      %12 = vector.broadcast %cst_9 : f32 to vector<2x128xf32>
      %c0_10 = arith.constant 0 : index
      %c0_11 = arith.constant 0 : index
      %13 = vector.load %arg7[%c0_10, %c0_11] : memref<2x128xf32, #tpu.memory_space<vmem>>, vector<2x128xf32>
      tpu.vector_store %arg7[%c0_10, %c0_11], %12 {strides = array<i32>} : memref<2x128xf32, #tpu.memory_space<vmem>>, vector<2x128xf32>,
    } else {
    }
    %c0 = arith.constant 0 : index
    %c0_1 = arith.constant 0 : index
    %3 = vector.load %arg7[%c0, %c0_1] : memref<2x128xf32, #tpu.memory_space<vmem>>, vector<2x128xf32>
    %c0_2 = arith.constant 0 : index
    %c0_3 = arith.constant 0 : index
    %4 = vector.load %arg2[%c0_2, %c0_3] : memref<2x384xbf16, #tpu.memory_space<vmem>>, vector<2x384xbf16>
    %c0_4 = arith.constant 0 : index
    %c0_5 = arith.constant 0 : index
    %5 = vector.load %arg3[%c0_4, %c0_5] : memref<384x128xbf16, #tpu.memory_space<vmem>>, vector<384x128xbf16>
    %cst = arith.constant dense<0.000000e+00> : vector<2x128xf32>
    %6 = tpu.matmul %4, %5, %cst {dimension_numbers = #tpu.dot_dimension_numbers<[1], [0], [0], [1], [0, 0, 1, 1], [], []>} : vector<2x384xbf16>, vector<384x128xbf16>, vector<2x128xf32> -> vector<2x128xf32>
    %7 = arith.addf %3, %6 : vector<2x128xf32>
    %c0_6 = arith.constant 0 : index
    %c0_7 = arith.constant 0 : index
    %8 = vector.load %arg7[%c0_6, %c0_7] : memref<2x128xf32, #tpu.memory_space<vmem>>, vector<2x128xf32>
    tpu.vector_store %arg7[%c0_6, %c0_7], %7 {strides = array<i32>} : memref<2x128xf32, #tpu.memory_space<vmem>>, vector<2x128xf32>,
    %c2_i32 = arith.constant 2 : i32
    %9 = arith.cmpi eq, %arg1, %c2_i32 : i32
    %10 = arith.extui %9 : i1 to i32
    %c0_i32_8 = arith.constant 0 : i32
    %11 = arith.cmpi ne, %10, %c0_i32_8 : i32
    scf.if %11 {
      %c0_9 = arith.constant 0 : index
      %c0_10 = arith.constant 0 : index
      %12 = vector.load %arg7[%c0_9, %c0_10] : memref<2x128xf32, #tpu.memory_space<vmem>>, vector<2x128xf32>
      %c0_11 = arith.constant 0 : index
      %c0_12 = arith.constant 0 : index
      %13 = vector.load %arg4[%c0_11, %c0_12] : memref<1x128xf32, #tpu.memory_space<vmem>>, vector<1x128xf32>
      %14 = vector.broadcast %13 : vector<1x128xf32> to vector<2x128xf32>
      %15 = arith.mulf %12, %14 : vector<2x128xf32>
      %c0_13 = arith.constant 0 : index
      %c0_14 = arith.constant 0 : index
      %16 = vector.load %arg5[%c0_13, %c0_14] : memref<1x128xf32, #tpu.memory_space<vmem>>, vector<1x128xf32>
      %17 = vector.broadcast %16 : vector<1x128xf32> to vector<2x128xf32>
      %18 = arith.addf %15, %17 : vector<2x128xf32>
      %cst_15 = arith.constant 0.000000e+00 : f32
      %19 = vector.broadcast %cst_15 : f32 to vector<2x128xf32>
      %20 = arith.maximumf %18, %19 : vector<2x128xf32>
      %21 = arith.truncf %20 : vector<2x128xf32> to vector<2x128xbf16>
      %c0_16 = arith.constant 0 : index
      %c0_17 = arith.constant 0 : index
      %22 = vector.load %arg6[%c0_16, %c0_17] : memref<2x128xbf16, #tpu.memory_space<vmem>>, vector<2x128xbf16>
      tpu.vector_store %arg6[%c0_16, %c0_17], %21 {strides = array<i32>} : memref<2x128xbf16, #tpu.memory_space<vmem>>, vector<2x128xbf16>,
    } else {
    }
    return
  }
  func.func @transform_0(%arg0: i32, %arg1: i32) -> (i32, i32) {
    %c0_i32 = arith.constant 0 : i32
    return %arg0, %arg1 : i32, i32
  }
  func.func @transform_1(%arg0: i32, %arg1: i32) -> (i32, i32) {
    %c0_i32 = arith.constant 0 : i32
    %c0_i32_0 = arith.constant 0 : i32
    return %arg1, %c0_i32 : i32, i32
  }
  func.func @transform_2(%arg0: i32, %arg1: i32) -> (i32, i32) {
    %c0_i32 = arith.constant 0 : i32
    %c0_i32_0 = arith.constant 0 : i32
    %c0_i32_1 = arith.constant 0 : i32
    return %c0_i32, %c0_i32_0 : i32, i32
  }
  func.func @transform_3(%arg0: i32, %arg1: i32) -> (i32, i32) {
    %c0_i32 = arith.constant 0 : i32
    %c0_i32_0 = arith.constant 0 : i32
    %c0_i32_1 = arith.constant 0 : i32
    return %c0_i32, %c0_i32_0 : i32, i32
  }
  func.func @transform_4(%arg0: i32, %arg1: i32) -> (i32, i32) {
    %c0_i32 = arith.constant 0 : i32
    %c0_i32_0 = arith.constant 0 : i32
    return %arg0, %c0_i32 : i32, i32
  }
}

module attributes {stable_mosaic.version = 11 : i64} {
  func.func @_head_kernel(%arg0: memref<2x1x128xbf16, #tpu.memory_space<vmem>>, %arg1: memref<128x10xbf16, #tpu.memory_space<vmem>>, %arg2: memref<1x10xf32, #tpu.memory_space<vmem>>, %arg3: memref<2x128xf32, #tpu.memory_space<vmem>>, %arg4: memref<2x10xf32, #tpu.memory_space<vmem>>) attributes {dimension_semantics = [], scalar_prefetch = 0 : i64, scratch_operands = 0 : i64, tpu.core_type = #tpu.core_type<tc>} {
    %c0 = arith.constant 0 : index
    %c0_0 = arith.constant 0 : index
    %c0_1 = arith.constant 0 : index
    %0 = vector.load %arg0[%c0, %c0_0, %c0_1] : memref<2x1x128xbf16, #tpu.memory_space<vmem>>, vector<2x1x128xbf16>
    %1 = arith.extf %0 : vector<2x1x128xbf16> to vector<2x1x128xf32>
    %cst = arith.constant dense<0.000000e+00> : vector<2x128xf32>
    %2 = vector.multi_reduction <add>, %1, %cst [1] : vector<2x1x128xf32> to vector<2x128xf32>
    %cst_2 = arith.constant 1.000000e+00 : f32
    %3 = vector.broadcast %cst_2 : f32 to vector<2x128xf32>
    %4 = arith.divf %2, %3 : vector<2x128xf32>
    %c0_3 = arith.constant 0 : index
    %c0_4 = arith.constant 0 : index
    %5 = vector.load %arg3[%c0_3, %c0_4] : memref<2x128xf32, #tpu.memory_space<vmem>>, vector<2x128xf32>
    tpu.vector_store %arg3[%c0_3, %c0_4], %4 {strides = array<i32>} : memref<2x128xf32, #tpu.memory_space<vmem>>, vector<2x128xf32>,
    %6 = arith.truncf %4 : vector<2x128xf32> to vector<2x128xbf16>
    %c0_5 = arith.constant 0 : index
    %c0_6 = arith.constant 0 : index
    %7 = vector.load %arg1[%c0_5, %c0_6] : memref<128x10xbf16, #tpu.memory_space<vmem>>, vector<128x10xbf16>
    %cst_7 = arith.constant dense<0.000000e+00> : vector<2x10xf32>
    %8 = tpu.matmul %6, %7, %cst_7 {dimension_numbers = #tpu.dot_dimension_numbers<[1], [0], [0], [1], [0, 0, 1, 1], [], []>} : vector<2x128xbf16>, vector<128x10xbf16>, vector<2x10xf32> -> vector<2x10xf32>
    %c0_8 = arith.constant 0 : index
    %c0_9 = arith.constant 0 : index
    %9 = vector.load %arg2[%c0_8, %c0_9] : memref<1x10xf32, #tpu.memory_space<vmem>>, vector<1x10xf32>
    %10 = vector.broadcast %9 : vector<1x10xf32> to vector<2x10xf32>
    %11 = arith.addf %8, %10 : vector<2x10xf32>
    %c0_10 = arith.constant 0 : index
    %c0_11 = arith.constant 0 : index
    %12 = vector.load %arg4[%c0_10, %c0_11] : memref<2x10xf32, #tpu.memory_space<vmem>>, vector<2x10xf32>
    tpu.vector_store %arg4[%c0_10, %c0_11], %11 {strides = array<i32>} : memref<2x10xf32, #tpu.memory_space<vmem>>, vector<2x10xf32>,
    return
  }
}

</mosaic_0001>

<llo_original>
// kernel: _lambda_.23
$region0: #{_lambda_.23}
  #allocation0 [shape = 'u32[]', space=smem, size = 0x4, offset = 0x4, fixed_abs, tag = 'smem constant byte address 0x4 - core index']
  #allocation1 [shape = 'u32[144,128]{1,0:T(1,128)}', space=vmem, size = 0x12000, scoped, tag = 'internal scratch']
  %s0 = inlined_call_operand.vmem [shape: bf16[2,9,9,128], index: 0, kind: input, shape index: {}]
  %s1 = inlined_call_operand.vmem [shape: bf16[2,9,9,128], index: 1, kind: input, shape index: {}]
  %s2 = inlined_call_operand.vmem [shape: bf16[2,9,9,128], index: 2, kind: input, shape index: {}]
  %s3 = inlined_call_operand.vmem [shape: bf16[2,9,9,128], index: 3, kind: input, shape index: {}]
  %s4 = inlined_call_operand.vmem [shape: bf16[2,8,8,128], index: 4, kind: output, shape index: {}]
  %s5 = sld [smem:[#allocation0]]
  $region49: #{_lambda_.23} parent=0
    _
  %s7 = ssub.s32 1, %s5
  %s8 = scalar_select 0, %s7, %s5
  loop: start=0, step=1, limit=4
  $region2: #{_lambda_.23} parent=0 // loop_pre_header
    _
  $region3: #{_lambda_.23} parent=0 // loop_header
    %s10 = sphi 0, %s14
    %p11 = scmp.ge.s32.totalorder %s10, 4
    %s20 = sphi 0, %s22
    %s23 = sphi 0, %s20
    %s24 = sphi 0, %s23
    %s40 = sphi 0, %s24
    %s46 = sphi 0, %s48
    %s49 = sphi 0, %s46
    %s50 = sphi 0, %s49
    %s66 = sphi 0, %s50
    %s72 = sphi 0, %s74
    %s75 = sphi 0, %s72
    %s76 = sphi 0, %s75
    %s92 = sphi 0, %s76
    %s98 = sphi 0, %s100
    %s101 = sphi 0, %s98
    %s102 = sphi 0, %s101
    %s118 = sphi 0, %s102
    %s124 = sphi 0, %s126
    %s127 = sphi 0, %s124
    %s128 = sphi 0, %s127
    %s144 = sphi 0, %s128
  $region4: #{_lambda_.23} parent=0 // loop_header_branch
    %13 = sbr.rel (%p11) target = $region8
  $region5: #{_lambda_.23} parent=0 // loop_body
    %s15 = ssub.s32 %s10, 1
    %s16 = ssub.s32 %s10, 2
    %s17 = sadd.s32 %s10, 1
    %s18 = ssub.s32 %s10, %s17
    %p19 = scmp.eq.s32.totalorder %s18, 0
    %s21 = sadd.s32 %s20, 1
    %s22 = scalar_select %p19, %s20, %s21
    %p25 = pneg %p19
    %p26 = scmp.eq.s32.totalorder %s10, 1
    %p27 = por %p25, %p26
    %p28 = scmp.ne.s32.totalorder %s20, %s23
    %p29 = scmp.eq.s32.totalorder %s10, 0
    %p30 = por %p28, %p29
    %p31 = scmp.ne.s32.totalorder %s20, %s23
    %p32 = scmp.eq.s32.totalorder %s15, 1
    %p33 = por %p31, %p32
    %p34 = scmp.ne.s32.totalorder %s23, %s24
    %p35 = scmp.eq.s32.totalorder %s15, 0
    %p36 = por %p34, %p35
    %p37 = scmp.ne.s32.totalorder %s23, %s24
    %p38 = scmp.eq.s32.totalorder %s16, 1
    %p39 = por %p37, %p38
    %p41 = scmp.ne.s32.totalorder %s24, %s40
    %p42 = scmp.eq.s32.totalorder %s16, 0
    %p43 = por %p41, %p42
    %s44 = ssub.s32 %s10, %s17
    %p45 = scmp.eq.s32.totalorder %s44, 0
    %s47 = sadd.s32 %s46, 1
    %s48 = scalar_select %p45, %s46, %s47
    %p51 = pneg %p45
    %p52 = scmp.eq.s32.totalorder %s10, 1
    %p53 = por %p51, %p52
    %p54 = scmp.ne.s32.totalorder %s46, %s49
    %p55 = scmp.eq.s32.totalorder %s10, 0
    %p56 = por %p54, %p55
    %p57 = scmp.ne.s32.totalorder %s46, %s49
    %p58 = scmp.eq.s32.totalorder %s15, 1
    %p59 = por %p57, %p58
    %p60 = scmp.ne.s32.totalorder %s49, %s50
    %p61 = scmp.eq.s32.totalorder %s15, 0
    %p62 = por %p60, %p61
    %p63 = scmp.ne.s32.totalorder %s49, %s50
    %p64 = scmp.eq.s32.totalorder %s16, 1
    %p65 = por %p63, %p64
    %p67 = scmp.ne.s32.totalorder %s50, %s66
    %p68 = scmp.eq.s32.totalorder %s16, 0
    %p69 = por %p67, %p68
    %s70 = ssub.s32 %s10, %s17
    %p71 = scmp.eq.s32.totalorder %s70, 0
    %s73 = sadd.s32 %s72, 1
    %s74 = scalar_select %p71, %s72, %s73
    %p77 = pneg %p71
    %p78 = scmp.eq.s32.totalorder %s10, 1
    %p79 = por %p77, %p78
    %p80 = scmp.ne.s32.totalorder %s72, %s75
    %p81 = scmp.eq.s32.totalorder %s10, 0
    %p82 = por %p80, %p81
    %p83 = scmp.ne.s32.totalorder %s72, %s75
    %p84 = scmp.eq.s32.totalorder %s15, 1
    %p85 = por %p83, %p84
    %p86 = scmp.ne.s32.totalorder %s75, %s76
    %p87 = scmp.eq.s32.totalorder %s15, 0
    %p88 = por %p86, %p87
    %p89 = scmp.ne.s32.totalorder %s75, %s76
    %p90 = scmp.eq.s32.totalorder %s16, 1
    %p91 = por %p89, %p90
    %p93 = scmp.ne.s32.totalorder %s76, %s92
    %p94 = scmp.eq.s32.totalorder %s16, 0
    %p95 = por %p93, %p94
    %s96 = ssub.s32 %s10, %s17
    %p97 = scmp.eq.s32.totalorder %s96, 0
    %s99 = sadd.s32 %s98, 1
    %s100 = scalar_select %p97, %s98, %s99
    %p103 = pneg %p97
    %p104 = scmp.eq.s32.totalorder %s10, 1
    %p105 = por %p103, %p104
    %p106 = scmp.ne.s32.totalorder %s98, %s101
    %p107 = scmp.eq.s32.totalorder %s10, 0
    %p108 = por %p106, %p107
    %p109 = scmp.ne.s32.totalorder %s98, %s101
    %p110 = scmp.eq.s32.totalorder %s15, 1
    %p111 = por %p109, %p110
    %p112 = scmp.ne.s32.totalorder %s101, %s102
    %p113 = scmp.eq.s32.totalorder %s15, 0
    %p114 = por %p112, %p113
    %p115 = scmp.ne.s32.totalorder %s101, %s102
    %p116 = scmp.eq.s32.totalorder %s16, 1
    %p117 = por %p115, %p116
    %p119 = scmp.ne.s32.totalorder %s102, %s118
    %p120 = scmp.eq.s32.totalorder %s16, 0
    %p121 = por %p119, %p120
    %s122 = ssub.s32 %s10, %s17
    %p123 = scmp.eq.s32.totalorder %s122, 0
    %s125 = sadd.s32 %s124, 1
    %s126 = scalar_select %p123, %s124, %s125
    %p129 = pneg %p123
    %p130 = scmp.eq.s32.totalorder %s10, 1
    %p131 = por %p129, %p130
    %p132 = scmp.ne.s32.totalorder %s124, %s127
    %p133 = scmp.eq.s32.totalorder %s10, 0
    %p134 = por %p132, %p133
    %p135 = scmp.ne.s32.totalorder %s124, %s127
    %p136 = scmp.eq.s32.totalorder %s15, 1
    %p137 = por %p135, %p136
    %p138 = scmp.ne.s32.totalorder %s127, %s128
    %p139 = scmp.eq.s32.totalorder %s15, 0
    %p140 = por %p138, %p139
    %p141 = scmp.ne.s32.totalorder %s127, %s128
    %p142 = scmp.eq.s32.totalorder %s16, 1
    %p143 = por %p141, %p142
    %p145 = scmp.ne.s32.totalorder %s128, %s144
    %p146 = scmp.eq.s32.totalorder %s16, 0
    %p147 = por %p145, %p146
    %p148 = scmp.le.s32.totalorder 1, %s10
    %p149 = scmp.lt.s32.totalorder %s10, 3
    %p150 = pnand %p148, %p149
    %p151 = pneg %p150
    // Predicated region
    $region9: #{_lambda_.23} parent=5 // pred_check
      _
    $region10: #{_lambda_.23} parent=5 // pred_check_branch
      %153 = sbr.rel (%p150) target = $region12
    $region11: #{_lambda_.23} parent=5 // pred_region
      %s154 = ssub.s32 %s10, 1
    $region12: #{_lambda_.23} parent=5 // pred_fallthru
      _
    %p155 = scmp.lt.s32.totalorder %s10, 2
    // Predicated region
    $region13: #{_lambda_.23} parent=5 // pred_check
      %p156 = pneg %p155
    $region14: #{_lambda_.23} parent=5 // pred_check_branch
      %158 = sbr.rel (%p156) target = $region16
    $region15: #{_lambda_.23} parent=5 // pred_region
      // Predicated region
      $region17: #{_lambda_.23} parent=15 // pred_check
        %p159 = pneg %p30
      $region18: #{_lambda_.23} parent=15 // pred_check_branch
        %161 = sbr.rel (%p159) target = $region20
      $region19: #{_lambda_.23} parent=15 // pred_region
        %p162 = scmp.lt.s32.totalorder %s10, 1
        %s163 = scalar_select %p162, %s10, 1
        %s164 = smul.addr %s163, 18
        %s165 = smul.addr %s164, 4
        %s166 = scalar_lea.vmem %s0, %s165
      $region20: #{_lambda_.23} parent=15 // pred_fallthru
        _
      // Predicated region
      $region21: #{_lambda_.23} parent=15 // pred_check
        %p167 = pneg %p56
      $region22: #{_lambda_.23} parent=15 // pred_check_branch
        %169 = sbr.rel (%p167) target = $region24
      $region23: #{_lambda_.23} parent=15 // pred_region
        %p170 = scmp.lt.s32.totalorder %s10, 1
        %s171 = scalar_select %p170, %s10, 1
        %s172 = smul.addr %s171, 18
        %s173 = smul.addr %s172, 4
        %s174 = scalar_lea.vmem %s1, %s173
      $region24: #{_lambda_.23} parent=15 // pred_fallthru
        _
      // Predicated region
      $region25: #{_lambda_.23} parent=15 // pred_check
        %p175 = pneg %p82
      $region26: #{_lambda_.23} parent=15 // pred_check_branch
        %177 = sbr.rel (%p175) target = $region28
      $region27: #{_lambda_.23} parent=15 // pred_region
        %p178 = scmp.lt.s32.totalorder %s10, 1
        %s179 = scalar_select %p178, %s10, 1
        %s180 = smul.addr %s179, 18
        %s181 = smul.addr %s180, 4
        %s182 = scalar_lea.vmem %s2, %s181
      $region28: #{_lambda_.23} parent=15 // pred_fallthru
        _
      // Predicated region
      $region29: #{_lambda_.23} parent=15 // pred_check
        %p183 = pneg %p108
      $region30: #{_lambda_.23} parent=15 // pred_check_branch
        %185 = sbr.rel (%p183) target = $region32
      $region31: #{_lambda_.23} parent=15 // pred_region
        %p186 = scmp.lt.s32.totalorder %s10, 1
        %s187 = scalar_select %p186, %s10, 1
        %s188 = smul.addr %s187, 18
        %s189 = smul.addr %s188, 4
        %s190 = scalar_lea.vmem %s3, %s189
      $region32: #{_lambda_.23} parent=15 // pred_fallthru
        _
    $region16: #{_lambda_.23} parent=5 // pred_fallthru
      _
    %p191 = scmp.le.s32.totalorder 1, %s10
    %p192 = scmp.lt.s32.totalorder %s10, 3
    %p193 = pnand %p191, %p192
    %p194 = pneg %p193
    // Predicated region
    $region33: #{_lambda_.23} parent=5 // pred_check
      _
    $region34: #{_lambda_.23} parent=5 // pred_check_branch
      %196 = sbr.rel (%p193) target = $region36
    $region35: #{_lambda_.23} parent=5 // pred_region
      %s197 = ssub.s32 %s10, 1
      %p198 = scmp.lt.s32.totalorder %s15, 1
      %s199 = scalar_select %p198, %s15, 1
      %s200 = smul.addr %s199, 18
      %s201 = smul.addr %s200, 4
      %s202 = scalar_lea.vmem %s0, %s201
      %p203 = pneg %p36
      %p204 = pneg %p33
      %p205 = scmp.lt.s32.totalorder %s15, 1
      %s206 = scalar_select %p205, %s15, 1
      %s207 = smul.addr %s206, 18
      %s208 = smul.addr %s207, 4
      %s209 = scalar_lea.vmem %s1, %s208
      %p210 = pneg %p62
      %p211 = pneg %p59
      %p212 = scmp.lt.s32.totalorder %s15, 1
      %s213 = scalar_select %p212, %s15, 1
      %s214 = smul.addr %s213, 18
      %s215 = smul.addr %s214, 4
      %s216 = scalar_lea.vmem %s2, %s215
      %p217 = pneg %p88
      %p218 = pneg %p85
      %p219 = scmp.lt.s32.totalorder %s15, 1
      %s220 = scalar_select %p219, %s15, 1
      %s221 = smul.addr %s220, 18
      %s222 = smul.addr %s221, 4
      %s223 = scalar_lea.vmem %s3, %s222
      %p224 = pneg %p114
      %p225 = pneg %p111
      %p226 = pneg %p140
      %p227 = pneg %p137
      %p228 = scmp.lt.s32.totalorder %s15, 1
      %s229 = scalar_select %p228, %s15, 1
      %s230 = smul.addr %s229, 8
      %s231 = smul.addr %s230, 4
      %s232 = scalar_lea.vmem %s4, %s231
      %p233 = scmp.lt.s32.totalorder %s15, 1
      %s234 = scalar_select %p233, %s15, 1
      %s235 = smul.addr %s234, 18
      %s236 = smul.addr %s235, 4
      %s237 = scalar_lea.vmem %s0, %s236
      %p238 = scmp.lt.s32.totalorder %s15, 1
      %s239 = scalar_select %p238, %s15, 1
      %s240 = smul.addr %s239, 18
      %s241 = smul.addr %s240, 4
      %s242 = scalar_lea.vmem %s1, %s241
      %p243 = scmp.lt.s32.totalorder %s15, 1
      %s244 = scalar_select %p243, %s15, 1
      %s245 = smul.addr %s244, 18
      %s246 = smul.addr %s245, 4
      %s247 = scalar_lea.vmem %s2, %s246
      %p248 = scmp.lt.s32.totalorder %s15, 1
      %s249 = scalar_select %p248, %s15, 1
      %s250 = smul.addr %s249, 18
      %s251 = smul.addr %s250, 4
      %s252 = scalar_lea.vmem %s3, %s251
      %p253 = scmp.lt.s32.totalorder %s15, 1
      %s254 = scalar_select %p253, %s15, 1
      %s255 = smul.addr %s254, 8
      %s256 = smul.addr %s255, 4
      %s257 = scalar_lea.vmem %s4, %s256
      %v258 = vld [vmem:[%s237] sm:$0xf]
      %v259 = vld [vmem:[%s237 + $0x4] sm:$0x1]
      %v260 = vld [vmem:[%s237 + $0x8] sm:$0xf]
      %v261 = vld [vmem:[%s237 + $0xc] sm:$0x1]
      %v262 = vld [vmem:[%s237 + $0x10] sm:$0xf]
      %v263 = vld [vmem:[%s237 + $0x14] sm:$0x1]
      %v264 = vld [vmem:[%s237 + $0x18] sm:$0xf]
      %v265 = vld [vmem:[%s237 + $0x1c] sm:$0x1]
      %v266 = vld [vmem:[%s237 + $0x20] sm:$0xf]
      %v267 = vld [vmem:[%s237 + $0x24] sm:$0x1]
      %v268 = vld [vmem:[%s237 + $0x28] sm:$0xf]
      %v269 = vld [vmem:[%s237 + $0x2c] sm:$0x1]
      %v270 = vld [vmem:[%s237 + $0x30] sm:$0xf]
      %v271 = vld [vmem:[%s237 + $0x34] sm:$0x1]
      %v272 = vld [vmem:[%s237 + $0x38] sm:$0xf]
      %v273 = vld [vmem:[%s237 + $0x3c] sm:$0x1]
      %v274 = vld [vmem:[%s237 + $0x40] sm:$0xf]
      %v275 = vld [vmem:[%s237 + $0x44] sm:$0x1]
      %v276 = vld [vmem:[%s242] sm:$0xf]
      %v277 = vld [vmem:[%s242 + $0x8] sm:$0xf]
      %v278 = vld [vmem:[%s242 + $0x10] sm:$0xf]
      %v279 = vld [vmem:[%s242 + $0x18] sm:$0xf]
      %v280 = vld [vmem:[%s242 + $0x20] sm:$0xf]
      %v281 = vld [vmem:[%s242 + $0x28] sm:$0xf]
      %v282 = vld [vmem:[%s242 + $0x30] sm:$0xf]
      %v283 = vld [vmem:[%s242 + $0x38] sm:$0xf]
      %v284 = vld [vmem:[%s242 + $0x40] sm:$0xf]
      %v285 = vld [vmem:[%s247] sm:$0xf]
      %v286 = vld [vmem:[%s247 + $0x4] sm:$0x1]
      %v287 = vld [vmem:[%s247 + $0x8] sm:$0xf]
      %v288 = vld [vmem:[%s247 + $0xc] sm:$0x1]
      %v289 = vld [vmem:[%s247 + $0x10] sm:$0xf]
      %v290 = vld [vmem:[%s247 + $0x14] sm:$0x1]
      %v291 = vld [vmem:[%s247 + $0x18] sm:$0xf]
      %v292 = vld [vmem:[%s247 + $0x1c] sm:$0x1]
      %v293 = vld [vmem:[%s247 + $0x20] sm:$0xf]
      %v294 = vld [vmem:[%s247 + $0x24] sm:$0x1]
      %v295 = vld [vmem:[%s247 + $0x28] sm:$0xf]
      %v296 = vld [vmem:[%s247 + $0x2c] sm:$0x1]
      %v297 = vld [vmem:[%s247 + $0x30] sm:$0xf]
      %v298 = vld [vmem:[%s247 + $0x34] sm:$0x1]
      %v299 = vld [vmem:[%s247 + $0x38] sm:$0xf]
      %v300 = vld [vmem:[%s247 + $0x3c] sm:$0x1]
      %v301 = vld [vmem:[%s252] sm:$0xf]
      %v302 = vld [vmem:[%s252 + $0x8] sm:$0xf]
      %v303 = vld [vmem:[%s252 + $0x10] sm:$0xf]
      %v304 = vld [vmem:[%s252 + $0x18] sm:$0xf]
      %v305 = vld [vmem:[%s252 + $0x20] sm:$0xf]
      %v306 = vld [vmem:[%s252 + $0x28] sm:$0xf]
      %v307 = vld [vmem:[%s252 + $0x30] sm:$0xf]
      %v308 = vld [vmem:[%s252 + $0x38] sm:$0xf]
      %v309 = vmax.bf16 %v258, %v276
      %v310 = vmax.bf16 %v260, %v277
      %v311 = vmax.bf16 %v262, %v278
      %v312 = vmax.bf16 %v264, %v279
      %v313 = vmax.bf16 %v266, %v280
      %v314 = vmax.bf16 %v268, %v281
      %v315 = vmax.bf16 %v270, %v282
      %v316 = vmax.bf16 %v272, %v283
      %vm317 = vsmask.f32 3328
      %vm318 = vsmask.f32 7440
      %vm319 = vmor %vm317, %vm318
      %v321 = vshrl.u32 %v258, 16
      %v323 = vrot.slane %v321, 4
      %v324 = vshll.u32 %v258, 16
      %v326 = vrot.slane %v324, 5
      %v327 = vor.u32 %v323, %v326
      %v328 = vrot.slane %v327, 4
      %v330 = vshll.u32 %v259, 16
      %v332 = vrot.slane %v330, 5
      %v333 = vsel %vm319, %v328, %v332
      %v335 = vshrl.u32 %v260, 16
      %v337 = vrot.slane %v335, 4
      %v338 = vshll.u32 %v260, 16
      %v340 = vrot.slane %v338, 5
      %v341 = vor.u32 %v337, %v340
      %v342 = vrot.slane %v341, 4
      %v344 = vshll.u32 %v261, 16
      %v346 = vrot.slane %v344, 5
      %v347 = vsel %vm319, %v342, %v346
      %v349 = vshrl.u32 %v262, 16
      %v351 = vrot.slane %v349, 4
      %v352 = vshll.u32 %v262, 16
      %v354 = vrot.slane %v352, 5
      %v355 = vor.u32 %v351, %v354
      %v356 = vrot.slane %v355, 4
      %v358 = vshll.u32 %v263, 16
      %v360 = vrot.slane %v358, 5
      %v361 = vsel %vm319, %v356, %v360
      %v363 = vshrl.u32 %v264, 16
      %v365 = vrot.slane %v363, 4
      %v366 = vshll.u32 %v264, 16
      %v368 = vrot.slane %v366, 5
      %v369 = vor.u32 %v365, %v368
      %v370 = vrot.slane %v369, 4
      %v372 = vshll.u32 %v265, 16
      %v374 = vrot.slane %v372, 5
      %v375 = vsel %vm319, %v370, %v374
      %v377 = vshrl.u32 %v266, 16
      %v379 = vrot.slane %v377, 4
      %v380 = vshll.u32 %v266, 16
      %v382 = vrot.slane %v380, 5
      %v383 = vor.u32 %v379, %v382
      %v384 = vrot.slane %v383, 4
      %v386 = vshll.u32 %v267, 16
      %v388 = vrot.slane %v386, 5
      %v389 = vsel %vm319, %v384, %v388
      %v391 = vshrl.u32 %v268, 16
      %v393 = vrot.slane %v391, 4
      %v394 = vshll.u32 %v268, 16
      %v396 = vrot.slane %v394, 5
      %v397 = vor.u32 %v393, %v396
      %v398 = vrot.slane %v397, 4
      %v400 = vshll.u32 %v269, 16
      %v402 = vrot.slane %v400, 5
      %v403 = vsel %vm319, %v398, %v402
      %v405 = vshrl.u32 %v270, 16
      %v407 = vrot.slane %v405, 4
      %v408 = vshll.u32 %v270, 16
      %v410 = vrot.slane %v408, 5
      %v411 = vor.u32 %v407, %v410
      %v412 = vrot.slane %v411, 4
      %v414 = vshll.u32 %v271, 16
      %v416 = vrot.slane %v414, 5
      %v417 = vsel %vm319, %v412, %v416
      %v419 = vshrl.u32 %v272, 16
      %v421 = vrot.slane %v419, 4
      %v422 = vshll.u32 %v272, 16
      %v424 = vrot.slane %v422, 5
      %v425 = vor.u32 %v421, %v424
      %v426 = vrot.slane %v425, 4
      %v428 = vshll.u32 %v273, 16
      %v430 = vrot.slane %v428, 5
      %v431 = vsel %vm319, %v426, %v430
      %v440 = vmax.bf16 %v309, %v333
      %v441 = vmax.bf16 %v310, %v347
      %v442 = vmax.bf16 %v311, %v361
      %v443 = vmax.bf16 %v312, %v375
      %v444 = vmax.bf16 %v313, %v389
      %v445 = vmax.bf16 %v314, %v403
      %v446 = vmax.bf16 %v315, %v417
      %v447 = vmax.bf16 %v316, %v431
      %v448 = vmax.bf16 %v440, %v285
      %v449 = vmax.bf16 %v441, %v287
      %v450 = vmax.bf16 %v442, %v289
      %v451 = vmax.bf16 %v443, %v291
      %v452 = vmax.bf16 %v444, %v293
      %v453 = vmax.bf16 %v445, %v295
      %v454 = vmax.bf16 %v446, %v297
      %v455 = vmax.bf16 %v447, %v299
      %v456 = vmax.bf16 %v448, %v301
      %v457 = vmax.bf16 %v449, %v302
      %v458 = vmax.bf16 %v450, %v303
      %v459 = vmax.bf16 %v451, %v304
      %v460 = vmax.bf16 %v452, %v305
      %v461 = vmax.bf16 %v453, %v306
      %v462 = vmax.bf16 %v454, %v307
      %v463 = vmax.bf16 %v455, %v308
      %v465 = vshrl.u32 %v285, 16
      %v467 = vrot.slane %v465, 4
      %v468 = vshll.u32 %v285, 16
      %v470 = vrot.slane %v468, 5
      %v471 = vor.u32 %v467, %v470
      %v472 = vrot.slane %v471, 4
      %v474 = vshll.u32 %v286, 16
      %v476 = vrot.slane %v474, 5
      %v477 = vsel %vm319, %v472, %v476
      %v479 = vshrl.u32 %v287, 16
      %v481 = vrot.slane %v479, 4
      %v482 = vshll.u32 %v287, 16
      %v484 = vrot.slane %v482, 5
      %v485 = vor.u32 %v481, %v484
      %v486 = vrot.slane %v485, 4
      %v488 = vshll.u32 %v288, 16
      %v490 = vrot.slane %v488, 5
      %v491 = vsel %vm319, %v486, %v490
      %v493 = vshrl.u32 %v289, 16
      %v495 = vrot.slane %v493, 4
      %v496 = vshll.u32 %v289, 16
      %v498 = vrot.slane %v496, 5
      %v499 = vor.u32 %v495, %v498
      %v500 = vrot.slane %v499, 4
      %v502 = vshll.u32 %v290, 16
      %v504 = vrot.slane %v502, 5
      %v505 = vsel %vm319, %v500, %v504
      %v507 = vshrl.u32 %v291, 16
      %v509 = vrot.slane %v507, 4
      %v510 = vshll.u32 %v291, 16
      %v512 = vrot.slane %v510, 5
      %v513 = vor.u32 %v509, %v512
      %v514 = vrot.slane %v513, 4
      %v516 = vshll.u32 %v292, 16
      %v518 = vrot.slane %v516, 5
      %v519 = vsel %vm319, %v514, %v518
      %v521 = vshrl.u32 %v293, 16
      %v523 = vrot.slane %v521, 4
      %v524 = vshll.u32 %v293, 16
      %v526 = vrot.slane %v524, 5
      %v527 = vor.u32 %v523, %v526
      %v528 = vrot.slane %v527, 4
      %v530 = vshll.u32 %v294, 16
      %v532 = vrot.slane %v530, 5
      %v533 = vsel %vm319, %v528, %v532
      %v535 = vshrl.u32 %v295, 16
      %v537 = vrot.slane %v535, 4
      %v538 = vshll.u32 %v295, 16
      %v540 = vrot.slane %v538, 5
      %v541 = vor.u32 %v537, %v540
      %v542 = vrot.slane %v541, 4
      %v544 = vshll.u32 %v296, 16
      %v546 = vrot.slane %v544, 5
      %v547 = vsel %vm319, %v542, %v546
      %v549 = vshrl.u32 %v297, 16
      %v551 = vrot.slane %v549, 4
      %v552 = vshll.u32 %v297, 16
      %v554 = vrot.slane %v552, 5
      %v555 = vor.u32 %v551, %v554
      %v556 = vrot.slane %v555, 4
      %v558 = vshll.u32 %v298, 16
      %v560 = vrot.slane %v558, 5
      %v561 = vsel %vm319, %v556, %v560
      %v563 = vshrl.u32 %v299, 16
      %v565 = vrot.slane %v563, 4
      %v566 = vshll.u32 %v299, 16
      %v568 = vrot.slane %v566, 5
      %v569 = vor.u32 %v565, %v568
      %v570 = vrot.slane %v569, 4
      %v572 = vshll.u32 %v300, 16
      %v574 = vrot.slane %v572, 5
      %v575 = vsel %vm319, %v570, %v574
      %v584 = vmax.bf16 %v456, %v477
      %v585 = vmax.bf16 %v457, %v491
      %v586 = vmax.bf16 %v458, %v505
      %v587 = vmax.bf16 %v459, %v519
      %v588 = vmax.bf16 %v460, %v533
      %v589 = vmax.bf16 %v461, %v547
      %v590 = vmax.bf16 %v462, %v561
      %v591 = vmax.bf16 %v463, %v575
      %v592 = vmax.bf16 %v584, %v260
      %v593 = vmax.bf16 %v585, %v262
      %v594 = vmax.bf16 %v586, %v264
      %v595 = vmax.bf16 %v587, %v266
      %v596 = vmax.bf16 %v588, %v268
      %v597 = vmax.bf16 %v589, %v270
      %v598 = vmax.bf16 %v590, %v272
      %v599 = vmax.bf16 %v591, %v274
      %v600 = vmax.bf16 %v592, %v277
      %v601 = vmax.bf16 %v593, %v278
      %v602 = vmax.bf16 %v594, %v279
      %v603 = vmax.bf16 %v595, %v280
      %v604 = vmax.bf16 %v596, %v281
      %v605 = vmax.bf16 %v597, %v282
      %v606 = vmax.bf16 %v598, %v283
      %v607 = vmax.bf16 %v599, %v284
      %v609 = vshrl.u32 %v274, 16
      %v611 = vrot.slane %v609, 4
      %v612 = vshll.u32 %v274, 16
      %v614 = vrot.slane %v612, 5
      %v615 = vor.u32 %v611, %v614
      %v616 = vrot.slane %v615, 4
      %v618 = vshll.u32 %v275, 16
      %v620 = vrot.slane %v618, 5
      %v621 = vsel %vm319, %v616, %v620
      %v623 = vmax.bf16 %v600, %v347
      %v624 = vmax.bf16 %v601, %v361
      %v625 = vmax.bf16 %v602, %v375
      %v626 = vmax.bf16 %v603, %v389
      %v627 = vmax.bf16 %v604, %v403
      %v628 = vmax.bf16 %v605, %v417
      %v629 = vmax.bf16 %v606, %v431
      %v630 = vmax.bf16 %v607, %v621
      %631 = vst [vmem:[%s257] sm:$0xf] %v623
      %632 = vst [vmem:[%s257 + $0x4] sm:$0xf] %v624
      %633 = vst [vmem:[%s257 + $0x8] sm:$0xf] %v625
      %634 = vst [vmem:[%s257 + $0xc] sm:$0xf] %v626
      %635 = vst [vmem:[%s257 + $0x10] sm:$0xf] %v627
      %636 = vst [vmem:[%s257 + $0x14] sm:$0xf] %v628
      %637 = vst [vmem:[%s257 + $0x18] sm:$0xf] %v629
      %638 = vst [vmem:[%s257 + $0x1c] sm:$0xf] %v630
      %p639 = scmp.lt.s32.totalorder %s15, 1
      %s640 = scalar_select %p639, %s15, 1
      %s641 = smul.addr %s640, 8
      %s642 = smul.addr %s641, 4
      %s643 = scalar_lea.vmem %s4, %s642
      // Predicated region
      $region37: #{_lambda_.23} parent=35 // pred_check
        %p644 = pneg %p137
      $region38: #{_lambda_.23} parent=35 // pred_check_branch
        %646 = sbr.rel (%p644) target = $region40
      $region39: #{_lambda_.23} parent=35 // pred_region
        _
      $region40: #{_lambda_.23} parent=35 // pred_fallthru
        _
    $region36: #{_lambda_.23} parent=5 // pred_fallthru
      _
    %p647 = scmp.le.s32.totalorder 2, %s10
    // Predicated region
    $region41: #{_lambda_.23} parent=5 // pred_check
      %p648 = pneg %p647
    $region42: #{_lambda_.23} parent=5 // pred_check_branch
      %650 = sbr.rel (%p648) target = $region44
    $region43: #{_lambda_.23} parent=5 // pred_region
      %s651 = ssub.s32 %s10, 2
      // Predicated region
      $region45: #{_lambda_.23} parent=43 // pred_check
        %p652 = pneg %p143
      $region46: #{_lambda_.23} parent=43 // pred_check_branch
        %654 = sbr.rel (%p652) target = $region48
      $region47: #{_lambda_.23} parent=43 // pred_region
        %p655 = scmp.lt.s32.totalorder %s16, 1
        %s656 = scalar_select %p655, %s16, 1
        %s657 = smul.addr %s656, 8
        %s658 = smul.addr %s657, 4
        %s659 = scalar_lea.vmem %s4, %s658
      $region48: #{_lambda_.23} parent=43 // pred_fallthru
        _
    $region44: #{_lambda_.23} parent=5 // pred_fallthru
      _
  $region6: #{_lambda_.23} parent=0 // loop_footer
    %s14 = sadd.s32 1, %s10
  $region7: #{_lambda_.23} parent=0 // loop_footer_branch
    %9 = sbr.rel target = $region3
  $region8: #{_lambda_.23} parent=0 // loop_exit
    _

// kernel: _lambda_.24
$region0: #{_lambda_.24}
  #allocation0 [shape = 'u32[]', space=smem, size = 0x4, offset = 0x4, fixed_abs, tag = 'smem constant byte address 0x4 - core index']
  #allocation1 [shape = 'u32[144,128]{1,0:T(1,128)}', space=vmem, size = 0x12000, scoped, tag = 'internal scratch']
  #allocation2 [shape = 'f32[128,128]{1,0:T(8,128)}', space=vmem, size = 0x10000, scoped, tag = 'scratch operand']
  %s0 = inlined_call_operand.vmem [shape: bf16[128,144], index: 0, kind: input, shape index: {}]
  %s1 = inlined_call_operand.vmem [shape: bf16[144,128], index: 1, kind: input, shape index: {}]
  %s2 = inlined_call_operand.vmem [shape: f32[1,128], index: 2, kind: input, shape index: {}]
  %s3 = inlined_call_operand.vmem [shape: f32[1,128], index: 3, kind: input, shape index: {}]
  %s4 = inlined_call_operand.vmem [shape: bf16[128,128], index: 4, kind: output, shape index: {}]
  %s5 = sld [smem:[#allocation0]]
  $region34: #{_lambda_.24} parent=0
    _
  %s7 = ssub.s32 1, %s5
  %s8 = scalar_select 0, %s7, %s5
  // Predicated region
  $region2: #{_lambda_.24} parent=0 // pred_check
    _
  $region3: #{_lambda_.24} parent=0 // pred_check_branch
    %10 = sbr.rel (0) target = $region5
  $region4: #{_lambda_.24} parent=0 // pred_region
    _
  $region5: #{_lambda_.24} parent=0 // pred_fallthru
    _
  // Predicated region
  $region6: #{_lambda_.24} parent=0 // pred_check
    _
  $region7: #{_lambda_.24} parent=0 // pred_check_branch
    %12 = sbr.rel (0) target = $region9
  $region8: #{_lambda_.24} parent=0 // pred_region
    _
  $region9: #{_lambda_.24} parent=0 // pred_fallthru
    _
  // Predicated region
  $region10: #{_lambda_.24} parent=0 // pred_check
    _
  $region11: #{_lambda_.24} parent=0 // pred_check_branch
    %14 = sbr.rel (0) target = $region13
  $region12: #{_lambda_.24} parent=0 // pred_region
    _
  $region13: #{_lambda_.24} parent=0 // pred_fallthru
    _
  // Predicated region
  $region14: #{_lambda_.24} parent=0 // pred_check
    _
  $region15: #{_lambda_.24} parent=0 // pred_check_branch
    %16 = sbr.rel (0) target = $region17
  $region16: #{_lambda_.24} parent=0 // pred_region
    _
  $region17: #{_lambda_.24} parent=0 // pred_fallthru
    _
  %p18 = scmp.eq.s32.totalorder 0, 0
  // Predicated region
  $region18: #{_lambda_.24} parent=0 // pred_check
    %p19 = pneg %p18
  $region19: #{_lambda_.24} parent=0 // pred_check_branch
    %21 = sbr.rel (%p19) target = $region21
  $region20: #{_lambda_.24} parent=0 // pred_region
    %22 = vst [vmem:[#allocation2] sm:$0xff] 0.0
    %23 = vst [vmem:[#allocation2 + $0x8] sm:$0xff] 0.0
    %24 = vst [vmem:[#allocation2 + $0x10] sm:$0xff] 0.0
    %25 = vst [vmem:[#allocation2 + $0x18] sm:$0xff] 0.0
    %26 = vst [vmem:[#allocation2 + $0x20] sm:$0xff] 0.0
    %27 = vst [vmem:[#allocation2 + $0x28] sm:$0xff] 0.0
    %28 = vst [vmem:[#allocation2 + $0x30] sm:$0xff] 0.0
    %29 = vst [vmem:[#allocation2 + $0x38] sm:$0xff] 0.0
    %30 = vst [vmem:[#allocation2 + $0x40] sm:$0xff] 0.0
    %31 = vst [vmem:[#allocation2 + $0x48] sm:$0xff] 0.0
    %32 = vst [vmem:[#allocation2 + $0x50] sm:$0xff] 0.0
    %33 = vst [vmem:[#allocation2 + $0x58] sm:$0xff] 0.0
    %34 = vst [vmem:[#allocation2 + $0x60] sm:$0xff] 0.0
    %35 = vst [vmem:[#allocation2 + $0x68] sm:$0xff] 0.0
    %36 = vst [vmem:[#allocation2 + $0x70] sm:$0xff] 0.0
    %37 = vst [vmem:[#allocation2 + $0x78] sm:$0xff] 0.0
  $region21: #{_lambda_.24} parent=0 // pred_fallthru
    _
  %v38 = vld [vmem:[#allocation2] sm:$0xff]
  %v39 = vld [vmem:[#allocation2 + $0x8] sm:$0xff]
  %v40 = vld [vmem:[#allocation2 + $0x10] sm:$0xff]
  %v41 = vld [vmem:[#allocation2 + $0x18] sm:$0xff]
  %v42 = vld [vmem:[#allocation2 + $0x20] sm:$0xff]
  %v43 = vld [vmem:[#allocation2 + $0x28] sm:$0xff]
  %v44 = vld [vmem:[#allocation2 + $0x30] sm:$0xff]
  %v45 = vld [vmem:[#allocation2 + $0x38] sm:$0xff]
  %v46 = vld [vmem:[#allocation2 + $0x40] sm:$0xff]
  %v47 = vld [vmem:[#allocation2 + $0x48] sm:$0xff]
  %v48 = vld [vmem:[#allocation2 + $0x50] sm:$0xff]
  %v49 = vld [vmem:[#allocation2 + $0x58] sm:$0xff]
  %v50 = vld [vmem:[#allocation2 + $0x60] sm:$0xff]
  %v51 = vld [vmem:[#allocation2 + $0x68] sm:$0xff]
  %v52 = vld [vmem:[#allocation2 + $0x70] sm:$0xff]
  %v53 = vld [vmem:[#allocation2 + $0x78] sm:$0xff]
  %v54 = vld [vmem:[%s0] sm:$0xff]
  %v55 = vld [vmem:[%s0 + $0x8] sm:$0xff]
  %v56 = vld [vmem:[%s0 + $0x10] sm:$0xff]
  %v57 = vld [vmem:[%s0 + $0x18] sm:$0xff]
  %v58 = vld [vmem:[%s0 + $0x20] sm:$0xff]
  %v59 = vld [vmem:[%s0 + $0x28] sm:$0xff]
  %v60 = vld [vmem:[%s0 + $0x30] sm:$0xff]
  %v61 = vld [vmem:[%s0 + $0x38] sm:$0xff]
  %v62 = vld [vmem:[%s0 + $0x40] sm:$0xff]
  %v63 = vld [vmem:[%s0 + $0x48] sm:$0xff]
  %v64 = vld [vmem:[%s0 + $0x50] sm:$0xff]
  %v65 = vld [vmem:[%s0 + $0x58] sm:$0xff]
  %v66 = vld [vmem:[%s0 + $0x60] sm:$0xff]
  %v67 = vld [vmem:[%s0 + $0x68] sm:$0xff]
  %v68 = vld [vmem:[%s0 + $0x70] sm:$0xff]
  %v69 = vld [vmem:[%s0 + $0x78] sm:$0xff]
  %v70 = vld [vmem:[%s1] sm:$0xf]
  %v71 = vld [vmem:[%s1 + $0x4] sm:$0xf]
  %v72 = vld [vmem:[%s1 + $0x8] sm:$0xf]
  %v73 = vld [vmem:[%s1 + $0xc] sm:$0xf]
  %v74 = vld [vmem:[%s1 + $0x10] sm:$0xf]
  %v75 = vld [vmem:[%s1 + $0x14] sm:$0xf]
  %v76 = vld [vmem:[%s1 + $0x18] sm:$0xf]
  %v77 = vld [vmem:[%s1 + $0x1c] sm:$0xf]
  %v78 = vld [vmem:[%s1 + $0x20] sm:$0xf]
  %v79 = vld [vmem:[%s1 + $0x24] sm:$0xf]
  %v80 = vld [vmem:[%s1 + $0x28] sm:$0xf]
  %v81 = vld [vmem:[%s1 + $0x2c] sm:$0xf]
  %v82 = vld [vmem:[%s1 + $0x30] sm:$0xf]
  %v83 = vld [vmem:[%s1 + $0x34] sm:$0xf]
  %v84 = vld [vmem:[%s1 + $0x38] sm:$0xf]
  %v85 = vld [vmem:[%s1 + $0x3c] sm:$0xf]
  %v86 = vld [vmem:[%s1 + $0x40] sm:$0xf]
  %v87 = vld [vmem:[%s1 + $0x44] sm:$0xf]
  %v104 = vunpack.c.l.b16 %v54
  %v105 = vunpack.c.h.b16 %v54
  %v106 = vunpack.c.l.b16 %v55
  %v107 = vunpack.c.h.b16 %v55
  %v108 = vunpack.c.l.b16 %v56
  %v109 = vunpack.c.h.b16 %v56
  %v110 = vunpack.c.l.b16 %v57
  %v111 = vunpack.c.h.b16 %v57
  %v112 = vunpack.c.l.b16 %v58
  %v113 = vunpack.c.h.b16 %v58
  %v114 = vunpack.c.l.b16 %v59
  %v115 = vunpack.c.h.b16 %v59
  %v116 = vunpack.c.l.b16 %v60
  %v117 = vunpack.c.h.b16 %v60
  %v118 = vunpack.c.l.b16 %v61
  %v119 = vunpack.c.h.b16 %v61
  %v120 = vunpack.c.l.b16 %v62
  %v121 = vunpack.c.h.b16 %v62
  %v122 = vunpack.c.l.b16 %v63
  %v123 = vunpack.c.h.b16 %v63
  %v124 = vunpack.c.l.b16 %v64
  %v125 = vunpack.c.h.b16 %v64
  %v126 = vunpack.c.l.b16 %v65
  %v127 = vunpack.c.h.b16 %v65
  %v128 = vunpack.c.l.b16 %v66
  %v129 = vunpack.c.h.b16 %v66
  %v130 = vunpack.c.l.b16 %v67
  %v131 = vunpack.c.h.b16 %v67
  %v132 = vunpack.c.l.b16 %v68
  %v133 = vunpack.c.h.b16 %v68
  %v134 = vunpack.c.l.b16 %v69
  %v135 = vunpack.c.h.b16 %v69
  %v136 = vpack.c.b16 %v106, %v104
  %v137 = vpack.c.b16 %v107, %v105
  %v138 = vpack.c.b16 %v110, %v108
  %v139 = vpack.c.b16 %v111, %v109
  %v140 = vpack.c.b16 %v114, %v112
  %v141 = vpack.c.b16 %v115, %v113
  %v142 = vpack.c.b16 %v118, %v116
  %v143 = vpack.c.b16 %v119, %v117
  %v144 = vpack.c.b16 %v122, %v120
  %v145 = vpack.c.b16 %v123, %v121
  %v146 = vpack.c.b16 %v126, %v124
  %v147 = vpack.c.b16 %v127, %v125
  %v148 = vpack.c.b16 %v130, %v128
  %v149 = vpack.c.b16 %v131, %v129
  %v150 = vpack.c.b16 %v134, %v132
  %v151 = vpack.c.b16 %v135, %v133
  %v178 = vunpack.c.l.b16 %v70
  %v179 = vunpack.c.l.b16 %v71
  %v180 = vunpack.c.l.b16 %v72
  %v181 = vunpack.c.l.b16 %v73
  %v182 = vunpack.c.l.b16 %v74
  %v183 = vunpack.c.l.b16 %v75
  %v184 = vunpack.c.l.b16 %v76
  %v185 = vunpack.c.l.b16 %v77
  %v186 = vunpack.c.l.b16 %v78
  %v187 = vunpack.c.l.b16 %v79
  %v188 = vunpack.c.l.b16 %v80
  %v189 = vunpack.c.l.b16 %v81
  %v190 = vunpack.c.l.b16 %v82
  %v191 = vunpack.c.l.b16 %v83
  %v192 = vunpack.c.l.b16 %v84
  %v193 = vunpack.c.l.b16 %v85
  %v194 = vunpack.c.l.b16 %v86
  %v195 = vunpack.c.l.b16 %v87
  %v196 = vpack.c.b16 %v179, %v178
  %v197 = vpack.c.b16 %v181, %v180
  %v198 = vpack.c.b16 %v183, %v182
  %v199 = vpack.c.b16 %v185, %v184
  %v200 = vpack.c.b16 %v187, %v186
  %v201 = vpack.c.b16 %v189, %v188
  %v202 = vpack.c.b16 %v191, %v190
  %v203 = vpack.c.b16 %v193, %v192
  %v204 = vpack.c.b16 %v195, %v194
  %vm214 = vcmask 130048
  %v216 = vsel %vm214, %v137, 0
  %v219 = vsel %vm214, %v139, 0
  %v222 = vsel %vm214, %v141, 0
  %v225 = vsel %vm214, %v143, 0
  %v228 = vsel %vm214, %v145, 0
  %v231 = vsel %vm214, %v147, 0
  %v234 = vsel %vm214, %v149, 0
  %v237 = vsel %vm214, %v151, 0
  %239 = vmatprep.subr.bf16.mxu0 0
  %240 = vmatpush1.bf16.msra.mxu0 %v196
  %241 = vmatprep.subr.bf16.mxu0 0
  %242 = vmatpush1.bf16.msra.mxu0 %v197
  %243 = vmatprep.subr.bf16.mxu0 0
  %244 = vmatpush1.bf16.msra.mxu0 %v198
  %245 = vmatprep.subr.bf16.mxu0 0
  %246 = vmatpush1.bf16.msra.mxu0 %v199
  %247 = vmatprep.subr.bf16.mxu0 0
  %248 = vmatpush1.bf16.msra.mxu0 %v200
  %249 = vmatprep.subr.bf16.mxu0 0
  %250 = vmatpush1.bf16.msra.mxu0 %v201
  %251 = vmatprep.subr.bf16.mxu0 0
  %252 = vmatpush1.bf16.msra.mxu0 %v202
  %253 = vmatprep.subr.bf16.mxu0 0
  %254 = vmatpush1.bf16.msra.mxu0 %v203
  %255 = vmatprep.subr.bf16.mxu0 0
  %256 = vmatpush1.bf16.msra.mxu0 %v204
  %257 = vmatprep.subr.bf16.mxu0 0
  %258 = vmatpush1.bf16.msra.mxu0 0
  %259 = vmatprep.subr.bf16.mxu0 0
  %260 = vmatpush1.bf16.msra.mxu0 0
  %261 = vmatprep.subr.bf16.mxu0 0
  %262 = vmatpush1.bf16.msra.mxu0 0
  %263 = vmatprep.subr.bf16.mxu0 0
  %264 = vmatpush1.bf16.msra.mxu0 0
  %265 = vmatprep.subr.bf16.mxu0 0
  %266 = vmatpush1.bf16.msra.mxu0 0
  %267 = vmatprep.subr.bf16.mxu0 0
  %268 = vmatpush1.bf16.msra.mxu0 0
  %269 = vmatprep.subr.bf16.mxu0 0
  %270 = vmatpush1.bf16.msra.mxu0 0
  %271 = vmatprep.mubr.bf16.mxu0 %v216
  %272 = vmatmul.mubr.bf16.gmra.mrb[0].mxu0 %v136
  %v273 = vpop.f32.mrb[0].mxu0
  %v274 = vadd.f32 0.0, %v273
  %v275 = vpop.f32.mrb[0].mxu0
  %v276 = vpop.f32.mrb[0].mxu0
  %v277 = vadd.f32 0.0, %v276
  %v278 = vpop.f32.mrb[0].mxu0
  %279 = vmatprep.mubr.bf16.mxu0 %v219
  %280 = vmatmul.mubr.bf16.gmra.mrb[0].mxu0 %v138
  %v281 = vpop.f32.mrb[0].mxu0
  %v282 = vadd.f32 0.0, %v281
  %v283 = vpop.f32.mrb[0].mxu0
  %v284 = vpop.f32.mrb[0].mxu0
  %v285 = vadd.f32 0.0, %v284
  %v286 = vpop.f32.mrb[0].mxu0
  %287 = vmatprep.mubr.bf16.mxu0 %v222
  %288 = vmatmul.mubr.bf16.gmra.mrb[0].mxu0 %v140
  %v289 = vpop.f32.mrb[0].mxu0
  %v290 = vadd.f32 0.0, %v289
  %v291 = vpop.f32.mrb[0].mxu0
  %v292 = vpop.f32.mrb[0].mxu0
  %v293 = vadd.f32 0.0, %v292
  %v294 = vpop.f32.mrb[0].mxu0
  %295 = vmatprep.mubr.bf16.mxu0 %v225
  %296 = vmatmul.mubr.bf16.gmra.mrb[0].mxu0 %v142
  %v297 = vpop.f32.mrb[0].mxu0
  %v298 = vadd.f32 0.0, %v297
  %v299 = vpop.f32.mrb[0].mxu0
  %v300 = vpop.f32.mrb[0].mxu0
  %v301 = vadd.f32 0.0, %v300
  %v302 = vpop.f32.mrb[0].mxu0
  %303 = vmatprep.mubr.bf16.mxu0 %v228
  %304 = vmatmul.mubr.bf16.gmra.mrb[0].mxu0 %v144
  %v305 = vpop.f32.mrb[0].mxu0
  %v306 = vadd.f32 0.0, %v305
  %v307 = vpop.f32.mrb[0].mxu0
  %v308 = vpop.f32.mrb[0].mxu0
  %v309 = vadd.f32 0.0, %v308
  %v310 = vpop.f32.mrb[0].mxu0
  %311 = vmatprep.mubr.bf16.mxu0 %v231
  %312 = vmatmul.mubr.bf16.gmra.mrb[0].mxu0 %v146
  %v313 = vpop.f32.mrb[0].mxu0
  %v314 = vadd.f32 0.0, %v313
  %v315 = vpop.f32.mrb[0].mxu0
  %v316 = vpop.f32.mrb[0].mxu0
  %v317 = vadd.f32 0.0, %v316
  %v318 = vpop.f32.mrb[0].mxu0
  %319 = vmatprep.mubr.bf16.mxu0 %v234
  %320 = vmatmul.mubr.bf16.gmra.mrb[0].mxu0 %v148
  %v321 = vpop.f32.mrb[0].mxu0
  %v322 = vadd.f32 0.0, %v321
  %v323 = vpop.f32.mrb[0].mxu0
  %v324 = vpop.f32.mrb[0].mxu0
  %v325 = vadd.f32 0.0, %v324
  %v326 = vpop.f32.mrb[0].mxu0
  %327 = vmatprep.mubr.bf16.mxu0 %v237
  %328 = vmatmul.mubr.bf16.gmra.mrb[0].mxu0 %v150
  %v329 = vpop.f32.mrb[0].mxu0
  %v330 = vadd.f32 0.0, %v329
  %v331 = vpop.f32.mrb[0].mxu0
  %v332 = vpop.f32.mrb[0].mxu0
  %v333 = vadd.f32 0.0, %v332
  %v334 = vpop.f32.mrb[0].mxu0
  %335 = vdwg.mxu0
  %v336 = vadd.f32 %v38, %v274
  %v337 = vadd.f32 %v39, %v277
  %v338 = vadd.f32 %v40, %v282
  %v339 = vadd.f32 %v41, %v285
  %v340 = vadd.f32 %v42, %v290
  %v341 = vadd.f32 %v43, %v293
  %v342 = vadd.f32 %v44, %v298
  %v343 = vadd.f32 %v45, %v301
  %v344 = vadd.f32 %v46, %v306
  %v345 = vadd.f32 %v47, %v309
  %v346 = vadd.f32 %v48, %v314
  %v347 = vadd.f32 %v49, %v317
  %v348 = vadd.f32 %v50, %v322
  %v349 = vadd.f32 %v51, %v325
  %v350 = vadd.f32 %v52, %v330
  %v351 = vadd.f32 %v53, %v333
  %352 = vst [vmem:[#allocation2] sm:$0xff] %v336
  %353 = vst [vmem:[#allocation2 + $0x8] sm:$0xff] %v337
  %354 = vst [vmem:[#allocation2 + $0x10] sm:$0xff] %v338
  %355 = vst [vmem:[#allocation2 + $0x18] sm:$0xff] %v339
  %356 = vst [vmem:[#allocation2 + $0x20] sm:$0xff] %v340
  %357 = vst [vmem:[#allocation2 + $0x28] sm:$0xff] %v341
  %358 = vst [vmem:[#allocation2 + $0x30] sm:$0xff] %v342
  %359 = vst [vmem:[#allocation2 + $0x38] sm:$0xff] %v343
  %360 = vst [vmem:[#allocation2 + $0x40] sm:$0xff] %v344
  %361 = vst [vmem:[#allocation2 + $0x48] sm:$0xff] %v345
  %362 = vst [vmem:[#allocation2 + $0x50] sm:$0xff] %v346
  %363 = vst [vmem:[#allocation2 + $0x58] sm:$0xff] %v347
  %364 = vst [vmem:[#allocation2 + $0x60] sm:$0xff] %v348
  %365 = vst [vmem:[#allocation2 + $0x68] sm:$0xff] %v349
  %366 = vst [vmem:[#allocation2 + $0x70] sm:$0xff] %v350
  %367 = vst [vmem:[#allocation2 + $0x78] sm:$0xff] %v351
  // Predicated region
  $region22: #{_lambda_.24} parent=0 // pred_check
    %p368 = pneg %p18
  $region23: #{_lambda_.24} parent=0 // pred_check_branch
    %370 = sbr.rel (%p368) target = $region25
  $region24: #{_lambda_.24} parent=0 // pred_region
    %v371 = vld [vmem:[#allocation2] sm:$0xff]
    %v372 = vld [vmem:[#allocation2 + $0x8] sm:$0xff]
    %v373 = vld [vmem:[#allocation2 + $0x10] sm:$0xff]
    %v374 = vld [vmem:[#allocation2 + $0x18] sm:$0xff]
    %v375 = vld [vmem:[#allocation2 + $0x20] sm:$0xff]
    %v376 = vld [vmem:[#allocation2 + $0x28] sm:$0xff]
    %v377 = vld [vmem:[#allocation2 + $0x30] sm:$0xff]
    %v378 = vld [vmem:[#allocation2 + $0x38] sm:$0xff]
    %v379 = vld [vmem:[#allocation2 + $0x40] sm:$0xff]
    %v380 = vld [vmem:[#allocation2 + $0x48] sm:$0xff]
    %v381 = vld [vmem:[#allocation2 + $0x50] sm:$0xff]
    %v382 = vld [vmem:[#allocation2 + $0x58] sm:$0xff]
    %v383 = vld [vmem:[#allocation2 + $0x60] sm:$0xff]
    %v384 = vld [vmem:[#allocation2 + $0x68] sm:$0xff]
    %v385 = vld [vmem:[#allocation2 + $0x70] sm:$0xff]
    %v386 = vld [vmem:[#allocation2 + $0x78] sm:$0xff]
    %v387 = vld [vmem:[%s2] sm:$0x1]
    %v389 = vlaneseq
    %v390 = vshrl.u32 %v389, 7
    %v391 = vsub.s32 0, %v390
    %v392 = vrot.slane %v387, %v391
    %v394 = vmul.f32 %v371, %v392
    %v395 = vmul.f32 %v372, %v392
    %v396 = vmul.f32 %v373, %v392
    %v397 = vmul.f32 %v374, %v392
    %v398 = vmul.f32 %v375, %v392
    %v399 = vmul.f32 %v376, %v392
    %v400 = vmul.f32 %v377, %v392
    %v401 = vmul.f32 %v378, %v392
    %v402 = vmul.f32 %v379, %v392
    %v403 = vmul.f32 %v380, %v392
    %v404 = vmul.f32 %v381, %v392
    %v405 = vmul.f32 %v382, %v392
    %v406 = vmul.f32 %v383, %v392
    %v407 = vmul.f32 %v384, %v392
    %v408 = vmul.f32 %v385, %v392
    %v409 = vmul.f32 %v386, %v392
    %v410 = vld [vmem:[%s3] sm:$0x1]
    %v412 = vlaneseq
    %v413 = vshrl.u32 %v412, 7
    %v414 = vsub.s32 0, %v413
    %v415 = vrot.slane %v410, %v414
    %v417 = vadd.f32 %v394, %v415
    %v418 = vadd.f32 %v395, %v415
    %v419 = vadd.f32 %v396, %v415
    %v420 = vadd.f32 %v397, %v415
    %v421 = vadd.f32 %v398, %v415
    %v422 = vadd.f32 %v399, %v415
    %v423 = vadd.f32 %v400, %v415
    %v424 = vadd.f32 %v401, %v415
    %v425 = vadd.f32 %v402, %v415
    %v426 = vadd.f32 %v403, %v415
    %v427 = vadd.f32 %v404, %v415
    %v428 = vadd.f32 %v405, %v415
    %v429 = vadd.f32 %v406, %v415
    %v430 = vadd.f32 %v407, %v415
    %v431 = vadd.f32 %v408, %v415
    %v432 = vadd.f32 %v409, %v415
    %v433 = vmax.f32 %v417, 0.0
    %v434 = vmax.f32 %v418, 0.0
    %v435 = vmax.f32 %v419, 0.0
    %v436 = vmax.f32 %v420, 0.0
    %v437 = vmax.f32 %v421, 0.0
    %v438 = vmax.f32 %v422, 0.0
    %v439 = vmax.f32 %v423, 0.0
    %v440 = vmax.f32 %v424, 0.0
    %v441 = vmax.f32 %v425, 0.0
    %v442 = vmax.f32 %v426, 0.0
    %v443 = vmax.f32 %v427, 0.0
    %v444 = vmax.f32 %v428, 0.0
    %v445 = vmax.f32 %v429, 0.0
    %v446 = vmax.f32 %v430, 0.0
    %v447 = vmax.f32 %v431, 0.0
    %v448 = vmax.f32 %v432, 0.0
    %v449 = vpack.c.bf16 %v434, %v433
    %v450 = vpack.c.bf16 %v436, %v435
    %v451 = vpack.c.bf16 %v438, %v437
    %v452 = vpack.c.bf16 %v440, %v439
    %v453 = vpack.c.bf16 %v442, %v441
    %v454 = vpack.c.bf16 %v444, %v443
    %v455 = vpack.c.bf16 %v446, %v445
    %v456 = vpack.c.bf16 %v448, %v447
    %v465 = vunpack.c.l.b16 %v449
    %v466 = vunpack.c.h.b16 %v449
    %v467 = vunpack.c.l.b16 %v450
    %v468 = vunpack.c.h.b16 %v450
    %v469 = vunpack.c.l.b16 %v451
    %v470 = vunpack.c.h.b16 %v451
    %v471 = vunpack.c.l.b16 %v452
    %v472 = vunpack.c.h.b16 %v452
    %v473 = vunpack.c.l.b16 %v453
    %v474 = vunpack.c.h.b16 %v453
    %v475 = vunpack.c.l.b16 %v454
    %v476 = vunpack.c.h.b16 %v454
    %v477 = vunpack.c.l.b16 %v455
    %v478 = vunpack.c.h.b16 %v455
    %v479 = vunpack.c.l.b16 %v456
    %v480 = vunpack.c.h.b16 %v456
    %v481 = vpack.c.b16 %v465, %v465
    %v482 = vpack.c.b16 %v466, %v466
    %v483 = vpack.c.b16 %v467, %v467
    %v484 = vpack.c.b16 %v468, %v468
    %v485 = vpack.c.b16 %v469, %v469
    %v486 = vpack.c.b16 %v470, %v470
    %v487 = vpack.c.b16 %v471, %v471
    %v488 = vpack.c.b16 %v472, %v472
    %v489 = vpack.c.b16 %v473, %v473
    %v490 = vpack.c.b16 %v474, %v474
    %v491 = vpack.c.b16 %v475, %v475
    %v492 = vpack.c.b16 %v476, %v476
    %v493 = vpack.c.b16 %v477, %v477
    %v494 = vpack.c.b16 %v478, %v478
    %v495 = vpack.c.b16 %v479, %v479
    %v496 = vpack.c.b16 %v480, %v480
    %513 = vst [vmem:[%s4] sm:$0xf] %v481
    %514 = vst [vmem:[%s4 + $0x4] sm:$0xf] %v482
    %515 = vst [vmem:[%s4 + $0x8] sm:$0xf] %v483
    %516 = vst [vmem:[%s4 + $0xc] sm:$0xf] %v484
    %517 = vst [vmem:[%s4 + $0x10] sm:$0xf] %v485
    %518 = vst [vmem:[%s4 + $0x14] sm:$0xf] %v486
    %519 = vst [vmem:[%s4 + $0x18] sm:$0xf] %v487
    %520 = vst [vmem:[%s4 + $0x1c] sm:$0xf] %v488
    %521 = vst [vmem:[%s4 + $0x20] sm:$0xf] %v489
    %522 = vst [vmem:[%s4 + $0x24] sm:$0xf] %v490
    %523 = vst [vmem:[%s4 + $0x28] sm:$0xf] %v491
    %524 = vst [vmem:[%s4 + $0x2c] sm:$0xf] %v492
    %525 = vst [vmem:[%s4 + $0x30] sm:$0xf] %v493
    %526 = vst [vmem:[%s4 + $0x34] sm:$0xf] %v494
    %527 = vst [vmem:[%s4 + $0x38] sm:$0xf] %v495
    %528 = vst [vmem:[%s4 + $0x3c] sm:$0xf] %v496
  $region25: #{_lambda_.24} parent=0 // pred_fallthru
    _
  // Predicated region
  $region26: #{_lambda_.24} parent=0 // pred_check
    _
  $region27: #{_lambda_.24} parent=0 // pred_check_branch
    %530 = sbr.rel (0) target = $region29
  $region28: #{_lambda_.24} parent=0 // pred_region
    _
  $region29: #{_lambda_.24} parent=0 // pred_fallthru
    _
  // Predicated region
  $region30: #{_lambda_.24} parent=0 // pred_check
    _
  $region31: #{_lambda_.24} parent=0 // pred_check_branch
    %532 = sbr.rel (0) target = $region33
  $region32: #{_lambda_.24} parent=0 // pred_region
    _
  $region33: #{_lambda_.24} parent=0 // pred_fallthru
    _

// kernel: _lambda_.22
$region0: #{_lambda_.22}
  #allocation0 [shape = 'u32[]', space=smem, size = 0x4, offset = 0x4, fixed_abs, tag = 'smem constant byte address 0x4 - core index']
  #allocation1 [shape = 'u32[144,128]{1,0:T(1,128)}', space=vmem, size = 0x12000, scoped, tag = 'internal scratch']
  #allocation2 [shape = 'f32[256,128]{1,0:T(8,128)}', space=vmem, size = 0x20000, scoped, tag = 'scratch operand']
  %s0 = inlined_call_operand.vmem [shape: bf16[512,147], index: 0, kind: input, shape index: {}]
  %s1 = inlined_call_operand.vmem [shape: bf16[147,128], index: 1, kind: input, shape index: {}]
  %s2 = inlined_call_operand.vmem [shape: f32[1,128], index: 2, kind: input, shape index: {}]
  %s3 = inlined_call_operand.vmem [shape: f32[1,128], index: 3, kind: input, shape index: {}]
  %s4 = inlined_call_operand.vmem [shape: bf16[512,128], index: 4, kind: output, shape index: {}]
  %s5 = sld [smem:[#allocation0]]
  $region57: #{_lambda_.22} parent=0
    _
  %s7 = ssub.s32 1, %s5
  %s8 = scalar_select 0, %s7, %s5
  loop: start=0, step=1, limit=4
  $region2: #{_lambda_.22} parent=0 // loop_pre_header
    _
  $region3: #{_lambda_.22} parent=0 // loop_header
    %s10 = sphi 0, %s14
    %p11 = scmp.ge.s32.totalorder %s10, 4
    %s17 = sphi 0, %s29
    %s18 = sphi 0, %s25
    %s19 = sphi 0, %s17
    %s20 = sphi 0, %s18
    %s21 = sphi 0, %s19
    %s22 = sphi 0, %s20
    %s34 = sphi 0, %s36
    %s37 = sphi 0, %s34
    %s38 = sphi 0, %s37
    %s54 = sphi 0, %s38
    %s60 = sphi 0, %s62
    %s63 = sphi 0, %s60
    %s64 = sphi 0, %s63
    %s80 = sphi 0, %s64
    %s84 = sphi 0, %s84
    %s86 = sphi 0, %s84
    %s87 = sphi 0, %s86
    %s101 = sphi 0, %s87
    %s105 = sphi 0, %s105
    %s107 = sphi 0, %s105
    %s108 = sphi 0, %s107
    %s122 = sphi 0, %s108
    %s128 = sphi 0, %s130
    %s131 = sphi 0, %s128
    %s132 = sphi 0, %s131
    %s148 = sphi 0, %s132
  $region4: #{_lambda_.22} parent=0 // loop_header_branch
    %13 = sbr.rel (%p11) target = $region8
  $region5: #{_lambda_.22} parent=0 // loop_body
    %s15 = ssub.s32 %s10, 1
    %s16 = ssub.s32 %s10, 2
    %s23 = sadd.s32 1, %s18
    %p24 = scmp.ge.s32.totalorder %s23, 1
    %s25 = scalar_select %p24, 0, %s23
    %s26 = sadd.s32 1, %s17
    %s27 = scalar_select %p24, %s26, %s17
    %p28 = scmp.ge.s32.totalorder %s27, 2
    %s29 = scalar_select %p28, 0, %s27
    %s30 = ssub.s32 %s17, %s29
    %s31 = ssub.s32 %s18, %s25
    %s32 = sor.u32 %s30, %s31
    %p33 = scmp.eq.s32.totalorder %s32, 0
    %s35 = sadd.s32 %s34, 1
    %s36 = scalar_select %p33, %s34, %s35
    %p39 = pneg %p33
    %p40 = scmp.eq.s32.totalorder %s10, 1
    %p41 = por %p39, %p40
    %p42 = scmp.ne.s32.totalorder %s34, %s37
    %p43 = scmp.eq.s32.totalorder %s10, 0
    %p44 = por %p42, %p43
    %p45 = scmp.ne.s32.totalorder %s34, %s37
    %p46 = scmp.eq.s32.totalorder %s15, 1
    %p47 = por %p45, %p46
    %p48 = scmp.ne.s32.totalorder %s37, %s38
    %p49 = scmp.eq.s32.totalorder %s15, 0
    %p50 = por %p48, %p49
    %p51 = scmp.ne.s32.totalorder %s37, %s38
    %p52 = scmp.eq.s32.totalorder %s16, 1
    %p53 = por %p51, %p52
    %p55 = scmp.ne.s32.totalorder %s38, %s54
    %p56 = scmp.eq.s32.totalorder %s16, 0
    %p57 = por %p55, %p56
    %s58 = ssub.s32 %s18, %s25
    %p59 = scmp.eq.s32.totalorder %s58, 0
    %s61 = sadd.s32 %s60, 1
    %s62 = scalar_select %p59, %s60, %s61
    %p65 = pneg %p59
    %p66 = scmp.eq.s32.totalorder %s10, 1
    %p67 = por %p65, %p66
    %p68 = scmp.ne.s32.totalorder %s60, %s63
    %p69 = scmp.eq.s32.totalorder %s10, 0
    %p70 = por %p68, %p69
    %p71 = scmp.ne.s32.totalorder %s60, %s63
    %p72 = scmp.eq.s32.totalorder %s15, 1
    %p73 = por %p71, %p72
    %p74 = scmp.ne.s32.totalorder %s63, %s64
    %p75 = scmp.eq.s32.totalorder %s15, 0
    %p76 = por %p74, %p75
    %p77 = scmp.ne.s32.totalorder %s63, %s64
    %p78 = scmp.eq.s32.totalorder %s16, 1
    %p79 = por %p77, %p78
    %p81 = scmp.ne.s32.totalorder %s64, %s80
    %p82 = scmp.eq.s32.totalorder %s16, 0
    %p83 = por %p81, %p82
    %s85 = sadd.s32 %s84, 1
    %p88 = scmp.eq.s32.totalorder %s10, 1
    %p89 = scmp.ne.s32.totalorder %s84, %s86
    %p90 = scmp.eq.s32.totalorder %s10, 0
    %p91 = por %p89, %p90
    %p92 = scmp.ne.s32.totalorder %s84, %s86
    %p93 = scmp.eq.s32.totalorder %s15, 1
    %p94 = por %p92, %p93
    %p95 = scmp.ne.s32.totalorder %s86, %s87
    %p96 = scmp.eq.s32.totalorder %s15, 0
    %p97 = por %p95, %p96
    %p98 = scmp.ne.s32.totalorder %s86, %s87
    %p99 = scmp.eq.s32.totalorder %s16, 1
    %p100 = por %p98, %p99
    %p102 = scmp.ne.s32.totalorder %s87, %s101
    %p103 = scmp.eq.s32.totalorder %s16, 0
    %p104 = por %p102, %p103
    %s106 = sadd.s32 %s105, 1
    %p109 = scmp.eq.s32.totalorder %s10, 1
    %p110 = scmp.ne.s32.totalorder %s105, %s107
    %p111 = scmp.eq.s32.totalorder %s10, 0
    %p112 = por %p110, %p111
    %p113 = scmp.ne.s32.totalorder %s105, %s107
    %p114 = scmp.eq.s32.totalorder %s15, 1
    %p115 = por %p113, %p114
    %p116 = scmp.ne.s32.totalorder %s107, %s108
    %p117 = scmp.eq.s32.totalorder %s15, 0
    %p118 = por %p116, %p117
    %p119 = scmp.ne.s32.totalorder %s107, %s108
    %p120 = scmp.eq.s32.totalorder %s16, 1
    %p121 = por %p119, %p120
    %p123 = scmp.ne.s32.totalorder %s108, %s122
    %p124 = scmp.eq.s32.totalorder %s16, 0
    %p125 = por %p123, %p124
    %s126 = ssub.s32 %s17, %s29
    %p127 = scmp.eq.s32.totalorder %s126, 0
    %s129 = sadd.s32 %s128, 1
    %s130 = scalar_select %p127, %s128, %s129
    %p133 = pneg %p127
    %p134 = scmp.eq.s32.totalorder %s10, 1
    %p135 = por %p133, %p134
    %p136 = scmp.ne.s32.totalorder %s128, %s131
    %p137 = scmp.eq.s32.totalorder %s10, 0
    %p138 = por %p136, %p137
    %p139 = scmp.ne.s32.totalorder %s128, %s131
    %p140 = scmp.eq.s32.totalorder %s15, 1
    %p141 = por %p139, %p140
    %p142 = scmp.ne.s32.totalorder %s131, %s132
    %p143 = scmp.eq.s32.totalorder %s15, 0
    %p144 = por %p142, %p143
    %p145 = scmp.ne.s32.totalorder %s131, %s132
    %p146 = scmp.eq.s32.totalorder %s16, 1
    %p147 = por %p145, %p146
    %p149 = scmp.ne.s32.totalorder %s132, %s148
    %p150 = scmp.eq.s32.totalorder %s16, 0
    %p151 = por %p149, %p150
    %p152 = scmp.le.s32.totalorder 1, %s10
    %p153 = scmp.lt.s32.totalorder %s10, 3
    %p154 = pnand %p152, %p153
    %p155 = pneg %p154
    // Predicated region
    $region9: #{_lambda_.22} parent=5 // pred_check
      _
    $region10: #{_lambda_.22} parent=5 // pred_check_branch
      %157 = sbr.rel (%p154) target = $region12
    $region11: #{_lambda_.22} parent=5 // pred_region
      %s158 = ssub.s32 %s10, 1
      // Predicated region
      $region13: #{_lambda_.22} parent=11 // pred_check
        %p159 = pneg %p76
      $region14: #{_lambda_.22} parent=11 // pred_check_branch
        %161 = sbr.rel (%p159) target = $region16
      $region15: #{_lambda_.22} parent=11 // pred_region
        %s162 = smul.u32 19, %s20
        %p163 = scmp.lt.s32.totalorder %s162, 18
        %s164 = scalar_select %p163, %s162, 18
        %s165 = smul.addr %s164, 4
        %s166 = scalar_lea.vmem %s1, %s165
        %s167 = smul.u32 19, %s20
      $region16: #{_lambda_.22} parent=11 // pred_fallthru
        _
      // Predicated region
      $region17: #{_lambda_.22} parent=11 // pred_check
        %p168 = pneg %p97
      $region18: #{_lambda_.22} parent=11 // pred_check_branch
        %170 = sbr.rel (%p168) target = $region20
      $region19: #{_lambda_.22} parent=11 // pred_region
        _
      $region20: #{_lambda_.22} parent=11 // pred_fallthru
        _
      // Predicated region
      $region21: #{_lambda_.22} parent=11 // pred_check
        %p171 = pneg %p118
      $region22: #{_lambda_.22} parent=11 // pred_check_branch
        %173 = sbr.rel (%p171) target = $region24
      $region23: #{_lambda_.22} parent=11 // pred_region
        _
      $region24: #{_lambda_.22} parent=11 // pred_fallthru
        _
    $region12: #{_lambda_.22} parent=5 // pred_fallthru
      _
    %p174 = scmp.lt.s32.totalorder %s10, 2
    // Predicated region
    $region25: #{_lambda_.22} parent=5 // pred_check
      %p175 = pneg %p174
    $region26: #{_lambda_.22} parent=5 // pred_check_branch
      %177 = sbr.rel (%p175) target = $region28
    $region27: #{_lambda_.22} parent=5 // pred_region
      // Predicated region
      $region29: #{_lambda_.22} parent=27 // pred_check
        %p178 = pneg %p44
      $region30: #{_lambda_.22} parent=27 // pred_check_branch
        %180 = sbr.rel (%p178) target = $region32
      $region31: #{_lambda_.22} parent=27 // pred_region
        %s181 = smul.u32 32, %s17
        %s182 = smul.u32 2, %s18
        %p183 = scmp.lt.s32.totalorder %s181, 63
        %s184 = scalar_select %p183, %s181, 63
        %p185 = scmp.lt.s32.totalorder %s182, 1
        %s186 = scalar_select %p185, %s182, 1
        %s187 = smul.addr %s184, 2
        %s188 = sadd.s32 %s186, %s187
        %s189 = smul.addr %s188, 4
        %s190 = scalar_lea.vmem %s0, %s189
        %s191 = smul.u32 32, %s17
        %s192 = smul.u32 2, %s18
      $region32: #{_lambda_.22} parent=27 // pred_fallthru
        _
    $region28: #{_lambda_.22} parent=5 // pred_fallthru
      _
    %p193 = scmp.le.s32.totalorder 1, %s10
    %p194 = scmp.lt.s32.totalorder %s10, 3
    %p195 = pnand %p193, %p194
    %p196 = pneg %p195
    // Predicated region
    $region33: #{_lambda_.22} parent=5 // pred_check
      _
    $region34: #{_lambda_.22} parent=5 // pred_check_branch
      %198 = sbr.rel (%p195) target = $region36
    $region35: #{_lambda_.22} parent=5 // pred_region
      %s199 = ssub.s32 %s10, 1
      %s200 = smul.u32 32, %s19
      %s201 = smul.u32 2, %s20
      %p202 = scmp.lt.s32.totalorder %s200, 63
      %s203 = scalar_select %p202, %s200, 63
      %p204 = scmp.lt.s32.totalorder %s201, 1
      %s205 = scalar_select %p204, %s201, 1
      %s206 = smul.addr %s203, 2
      %s207 = sadd.s32 %s205, %s206
      %s208 = smul.addr %s207, 4
      %s209 = scalar_lea.vmem %s0, %s208
      %p210 = pneg %p50
      %p211 = pneg %p47
      %s212 = smul.u32 19, %s20
      %p213 = scmp.lt.s32.totalorder %s212, 18
      %s214 = scalar_select %p213, %s212, 18
      %s215 = smul.addr %s214, 4
      %s216 = scalar_lea.vmem %s1, %s215
      %p217 = pneg %p76
      %p218 = pneg %p73
      %p219 = pneg %p97
      %p220 = pneg %p94
      %p221 = pneg %p118
      %p222 = pneg %p115
      %p223 = pneg %p144
      %p224 = pneg %p141
      %s225 = smul.u32 32, %s19
      %p226 = scmp.lt.s32.totalorder %s225, 63
      %s227 = scalar_select %p226, %s225, 63
      %s228 = smul.addr %s227, 4
      %s229 = scalar_lea.vmem %s4, %s228
      %s230 = smul.u32 32, %s19
      %s231 = smul.u32 2, %s20
      %p232 = scmp.lt.s32.totalorder %s230, 63
      %s233 = scalar_select %p232, %s230, 63
      %p234 = scmp.lt.s32.totalorder %s231, 1
      %s235 = scalar_select %p234, %s231, 1
      %s236 = smul.addr %s233, 2
      %s237 = sadd.s32 %s235, %s236
      %s238 = smul.addr %s237, 4
      %s239 = scalar_lea.vmem %s0, %s238
      %s240 = smul.u32 32, %s19
      %s241 = smul.u32 2, %s20
      %s242 = smul.u32 19, %s20
      %p243 = scmp.lt.s32.totalorder %s242, 18
      %s244 = scalar_select %p243, %s242, 18
      %s245 = smul.addr %s244, 4
      %s246 = scalar_lea.vmem %s1, %s245
      %s247 = smul.u32 19, %s20
      %s248 = smul.u32 32, %s19
      %p249 = scmp.lt.s32.totalorder %s248, 63
      %s250 = scalar_select %p249, %s248, 63
      %s251 = smul.addr %s250, 4
      %s252 = scalar_lea.vmem %s4, %s251
      %s253 = smul.u32 32, %s19
      %p255 = scmp.eq.s32.totalorder %s20, 0
      // Predicated region
      $region37: #{_lambda_.22} parent=35 // pred_check
        %p256 = pneg %p255
      $region38: #{_lambda_.22} parent=35 // pred_check_branch
        %258 = sbr.rel (%p256) target = $region40
      $region39: #{_lambda_.22} parent=35 // pred_region
        %259 = vst [vmem:[#allocation2] sm:$0xff] 0.0
        %260 = vst [vmem:[#allocation2 + $0x8] sm:$0xff] 0.0
        %261 = vst [vmem:[#allocation2 + $0x10] sm:$0xff] 0.0
        %262 = vst [vmem:[#allocation2 + $0x18] sm:$0xff] 0.0
        %263 = vst [vmem:[#allocation2 + $0x20] sm:$0xff] 0.0
        %264 = vst [vmem:[#allocation2 + $0x28] sm:$0xff] 0.0
        %265 = vst [vmem:[#allocation2 + $0x30] sm:$0xff] 0.0
        %266 = vst [vmem:[#allocation2 + $0x38] sm:$0xff] 0.0
        %267 = vst [vmem:[#allocation2 + $0x40] sm:$0xff] 0.0
        %268 = vst [vmem:[#allocation2 + $0x48] sm:$0xff] 0.0
        %269 = vst [vmem:[#allocation2 + $0x50] sm:$0xff] 0.0
        %270 = vst [vmem:[#allocation2 + $0x58] sm:$0xff] 0.0
        %271 = vst [vmem:[#allocation2 + $0x60] sm:$0xff] 0.0
        %272 = vst [vmem:[#allocation2 + $0x68] sm:$0xff] 0.0
        %273 = vst [vmem:[#allocation2 + $0x70] sm:$0xff] 0.0
        %274 = vst [vmem:[#allocation2 + $0x78] sm:$0xff] 0.0
        %275 = vst [vmem:[#allocation2 + $0x80] sm:$0xff] 0.0
        %276 = vst [vmem:[#allocation2 + $0x88] sm:$0xff] 0.0
        %277 = vst [vmem:[#allocation2 + $0x90] sm:$0xff] 0.0
        %278 = vst [vmem:[#allocation2 + $0x98] sm:$0xff] 0.0
        %279 = vst [vmem:[#allocation2 + $0xa0] sm:$0xff] 0.0
        %280 = vst [vmem:[#allocation2 + $0xa8] sm:$0xff] 0.0
        %281 = vst [vmem:[#allocation2 + $0xb0] sm:$0xff] 0.0
        %282 = vst [vmem:[#allocation2 + $0xb8] sm:$0xff] 0.0
        %283 = vst [vmem:[#allocation2 + $0xc0] sm:$0xff] 0.0
        %284 = vst [vmem:[#allocation2 + $0xc8] sm:$0xff] 0.0
        %285 = vst [vmem:[#allocation2 + $0xd0] sm:$0xff] 0.0
        %286 = vst [vmem:[#allocation2 + $0xd8] sm:$0xff] 0.0
        %287 = vst [vmem:[#allocation2 + $0xe0] sm:$0xff] 0.0
        %288 = vst [vmem:[#allocation2 + $0xe8] sm:$0xff] 0.0
        %289 = vst [vmem:[#allocation2 + $0xf0] sm:$0xff] 0.0
        %290 = vst [vmem:[#allocation2 + $0xf8] sm:$0xff] 0.0
      $region40: #{_lambda_.22} parent=35 // pred_fallthru
        _
      %v291 = vld [vmem:[#allocation2] sm:$0xff]
      %v292 = vld [vmem:[#allocation2 + $0x8] sm:$0xff]
      %v293 = vld [vmem:[#allocation2 + $0x10] sm:$0xff]
      %v294 = vld [vmem:[#allocation2 + $0x18] sm:$0xff]
      %v295 = vld [vmem:[#allocation2 + $0x20] sm:$0xff]
      %v296 = vld [vmem:[#allocation2 + $0x28] sm:$0xff]
      %v297 = vld [vmem:[#allocation2 + $0x30] sm:$0xff]
      %v298 = vld [vmem:[#allocation2 + $0x38] sm:$0xff]
      %v299 = vld [vmem:[#allocation2 + $0x40] sm:$0xff]
      %v300 = vld [vmem:[#allocation2 + $0x48] sm:$0xff]
      %v301 = vld [vmem:[#allocation2 + $0x50] sm:$0xff]
      %v302 = vld [vmem:[#allocation2 + $0x58] sm:$0xff]
      %v303 = vld [vmem:[#allocation2 + $0x60] sm:$0xff]
      %v304 = vld [vmem:[#allocation2 + $0x68] sm:$0xff]
      %v305 = vld [vmem:[#allocation2 + $0x70] sm:$0xff]
      %v306 = vld [vmem:[#allocation2 + $0x78] sm:$0xff]
      %v307 = vld [vmem:[#allocation2 + $0x80] sm:$0xff]
      %v308 = vld [vmem:[#allocation2 + $0x88] sm:$0xff]
      %v309 = vld [vmem:[#allocation2 + $0x90] sm:$0xff]
      %v310 = vld [vmem:[#allocation2 + $0x98] sm:$0xff]
      %v311 = vld [vmem:[#allocation2 + $0xa0] sm:$0xff]
      %v312 = vld [vmem:[#allocation2 + $0xa8] sm:$0xff]
      %v313 = vld [vmem:[#allocation2 + $0xb0] sm:$0xff]
      %v314 = vld [vmem:[#allocation2 + $0xb8] sm:$0xff]
      %v315 = vld [vmem:[#allocation2 + $0xc0] sm:$0xff]
      %v316 = vld [vmem:[#allocation2 + $0xc8] sm:$0xff]
      %v317 = vld [vmem:[#allocation2 + $0xd0] sm:$0xff]
      %v318 = vld [vmem:[#allocation2 + $0xd8] sm:$0xff]
      %v319 = vld [vmem:[#allocation2 + $0xe0] sm:$0xff]
      %v320 = vld [vmem:[#allocation2 + $0xe8] sm:$0xff]
      %v321 = vld [vmem:[#allocation2 + $0xf0] sm:$0xff]
      %v322 = vld [vmem:[#allocation2 + $0xf8] sm:$0xff]
      %v323 = vld [vmem:[%s239] sm:$0xff]
      %v324 = vld [vmem:[%s239 + $0x8] sm:$0xff]
      %v325 = vld [vmem:[%s239 + $0x10] sm:$0xff]
      %v326 = vld [vmem:[%s239 + $0x18] sm:$0xff]
      %v327 = vld [vmem:[%s239 + $0x20] sm:$0xff]
      %v328 = vld [vmem:[%s239 + $0x28] sm:$0xff]
      %v329 = vld [vmem:[%s239 + $0x30] sm:$0xff]
      %v330 = vld [vmem:[%s239 + $0x38] sm:$0xff]
      %v331 = vld [vmem:[%s239 + $0x40] sm:$0xff]
      %v332 = vld [vmem:[%s239 + $0x48] sm:$0xff]
      %v333 = vld [vmem:[%s239 + $0x50] sm:$0xff]
      %v334 = vld [vmem:[%s239 + $0x58] sm:$0xff]
      %v335 = vld [vmem:[%s239 + $0x60] sm:$0xff]
      %v336 = vld [vmem:[%s239 + $0x68] sm:$0xff]
      %v337 = vld [vmem:[%s239 + $0x70] sm:$0xff]
      %v338 = vld [vmem:[%s239 + $0x78] sm:$0xff]
      %v339 = vld [vmem:[%s239 + $0x80] sm:$0xff]
      %v340 = vld [vmem:[%s239 + $0x88] sm:$0xff]
      %v341 = vld [vmem:[%s239 + $0x90] sm:$0xff]
      %v342 = vld [vmem:[%s239 + $0x98] sm:$0xff]
      %v343 = vld [vmem:[%s239 + $0xa0] sm:$0xff]
      %v344 = vld [vmem:[%s239 + $0xa8] sm:$0xff]
      %v345 = vld [vmem:[%s239 + $0xb0] sm:$0xff]
      %v346 = vld [vmem:[%s239 + $0xb8] sm:$0xff]
      %v347 = vld [vmem:[%s239 + $0xc0] sm:$0xff]
      %v348 = vld [vmem:[%s239 + $0xc8] sm:$0xff]
      %v349 = vld [vmem:[%s239 + $0xd0] sm:$0xff]
      %v350 = vld [vmem:[%s239 + $0xd8] sm:$0xff]
      %v351 = vld [vmem:[%s239 + $0xe0] sm:$0xff]
      %v352 = vld [vmem:[%s239 + $0xe8] sm:$0xff]
      %v353 = vld [vmem:[%s239 + $0xf0] sm:$0xff]
      %v354 = vld [vmem:[%s239 + $0xf8] sm:$0xff]
      %v355 = vld [vmem:[%s246] sm:$0xf]
      %v356 = vld [vmem:[%s246 + $0x4] sm:$0xf]
      %v357 = vld [vmem:[%s246 + $0x8] sm:$0xf]
      %v358 = vld [vmem:[%s246 + $0xc] sm:$0xf]
      %v359 = vld [vmem:[%s246 + $0x10] sm:$0xf]
      %v360 = vld [vmem:[%s246 + $0x14] sm:$0xf]
      %v361 = vld [vmem:[%s246 + $0x18] sm:$0xf]
      %v362 = vld [vmem:[%s246 + $0x1c] sm:$0xf]
      %v363 = vld [vmem:[%s246 + $0x20] sm:$0xf]
      %v364 = vld [vmem:[%s246 + $0x24] sm:$0xf]
      %v365 = vld [vmem:[%s246 + $0x28] sm:$0xf]
      %v366 = vld [vmem:[%s246 + $0x2c] sm:$0xf]
      %v367 = vld [vmem:[%s246 + $0x30] sm:$0xf]
      %v368 = vld [vmem:[%s246 + $0x34] sm:$0xf]
      %v369 = vld [vmem:[%s246 + $0x38] sm:$0xf]
      %v370 = vld [vmem:[%s246 + $0x3c] sm:$0xf]
      %v371 = vld [vmem:[%s246 + $0x40] sm:$0xf]
      %v372 = vld [vmem:[%s246 + $0x44] sm:$0xf]
      %v373 = vld [vmem:[%s246 + $0x48] sm:$0x3]
      %v406 = vunpack.c.l.b16 %v323
      %v407 = vunpack.c.h.b16 %v323
      %v408 = vunpack.c.l.b16 %v324
      %v409 = vunpack.c.h.b16 %v324
      %v410 = vunpack.c.l.b16 %v325
      %v411 = vunpack.c.h.b16 %v325
      %v412 = vunpack.c.l.b16 %v326
      %v413 = vunpack.c.h.b16 %v326
      %v414 = vunpack.c.l.b16 %v327
      %v415 = vunpack.c.h.b16 %v327
      %v416 = vunpack.c.l.b16 %v328
      %v417 = vunpack.c.h.b16 %v328
      %v418 = vunpack.c.l.b16 %v329
      %v419 = vunpack.c.h.b16 %v329
      %v420 = vunpack.c.l.b16 %v330
      %v421 = vunpack.c.h.b16 %v330
      %v422 = vunpack.c.l.b16 %v331
      %v423 = vunpack.c.h.b16 %v331
      %v424 = vunpack.c.l.b16 %v332
      %v425 = vunpack.c.h.b16 %v332
      %v426 = vunpack.c.l.b16 %v333
      %v427 = vunpack.c.h.b16 %v333
      %v428 = vunpack.c.l.b16 %v334
      %v429 = vunpack.c.h.b16 %v334
      %v430 = vunpack.c.l.b16 %v335
      %v431 = vunpack.c.h.b16 %v335
      %v432 = vunpack.c.l.b16 %v336
      %v433 = vunpack.c.h.b16 %v336
      %v434 = vunpack.c.l.b16 %v337
      %v435 = vunpack.c.h.b16 %v337
      %v436 = vunpack.c.l.b16 %v338
      %v437 = vunpack.c.h.b16 %v338
      %v438 = vunpack.c.l.b16 %v339
      %v439 = vunpack.c.h.b16 %v339
      %v440 = vunpack.c.l.b16 %v340
      %v441 = vunpack.c.h.b16 %v340
      %v442 = vunpack.c.l.b16 %v341
      %v443 = vunpack.c.h.b16 %v341
      %v444 = vunpack.c.l.b16 %v342
      %v445 = vunpack.c.h.b16 %v342
      %v446 = vunpack.c.l.b16 %v343
      %v447 = vunpack.c.h.b16 %v343
      %v448 = vunpack.c.l.b16 %v344
      %v449 = vunpack.c.h.b16 %v344
      %v450 = vunpack.c.l.b16 %v345
      %v451 = vunpack.c.h.b16 %v345
      %v452 = vunpack.c.l.b16 %v346
      %v453 = vunpack.c.h.b16 %v346
      %v454 = vunpack.c.l.b16 %v347
      %v455 = vunpack.c.h.b16 %v347
      %v456 = vunpack.c.l.b16 %v348
      %v457 = vunpack.c.h.b16 %v348
      %v458 = vunpack.c.l.b16 %v349
      %v459 = vunpack.c.h.b16 %v349
      %v460 = vunpack.c.l.b16 %v350
      %v461 = vunpack.c.h.b16 %v350
      %v462 = vunpack.c.l.b16 %v351
      %v463 = vunpack.c.h.b16 %v351
      %v464 = vunpack.c.l.b16 %v352
      %v465 = vunpack.c.h.b16 %v352
      %v466 = vunpack.c.l.b16 %v353
      %v467 = vunpack.c.h.b16 %v353
      %v468 = vunpack.c.l.b16 %v354
      %v469 = vunpack.c.h.b16 %v354
      %v470 = vpack.c.b16 %v408, %v406
      %v471 = vpack.c.b16 %v409, %v407
      %v472 = vpack.c.b16 %v412, %v410
      %v473 = vpack.c.b16 %v413, %v411
      %v474 = vpack.c.b16 %v416, %v414
      %v475 = vpack.c.b16 %v417, %v415
      %v476 = vpack.c.b16 %v420, %v418
      %v477 = vpack.c.b16 %v421, %v419
      %v478 = vpack.c.b16 %v424, %v422
      %v479 = vpack.c.b16 %v425, %v423
      %v480 = vpack.c.b16 %v428, %v426
      %v481 = vpack.c.b16 %v429, %v427
      %v482 = vpack.c.b16 %v432, %v430
      %v483 = vpack.c.b16 %v433, %v431
      %v484 = vpack.c.b16 %v436, %v434
      %v485 = vpack.c.b16 %v437, %v435
      %v486 = vpack.c.b16 %v440, %v438
      %v487 = vpack.c.b16 %v441, %v439
      %v488 = vpack.c.b16 %v444, %v442
      %v489 = vpack.c.b16 %v445, %v443
      %v490 = vpack.c.b16 %v448, %v446
      %v491 = vpack.c.b16 %v449, %v447
      %v492 = vpack.c.b16 %v452, %v450
      %v493 = vpack.c.b16 %v453, %v451
      %v494 = vpack.c.b16 %v456, %v454
      %v495 = vpack.c.b16 %v457, %v455
      %v496 = vpack.c.b16 %v460, %v458
      %v497 = vpack.c.b16 %v461, %v459
      %v498 = vpack.c.b16 %v464, %v462
      %v499 = vpack.c.b16 %v465, %v463
      %v500 = vpack.c.b16 %v468, %v466
      %v501 = vpack.c.b16 %v469, %v467
      %v537 = vunpack.c.l.b16 %v355
      %v538 = vunpack.c.l.b16 %v356
      %v539 = vunpack.c.l.b16 %v357
      %v540 = vunpack.c.l.b16 %v358
      %v541 = vunpack.c.l.b16 %v359
      %v542 = vunpack.c.l.b16 %v360
      %v543 = vunpack.c.l.b16 %v361
      %v544 = vunpack.c.l.b16 %v362
      %v545 = vunpack.c.l.b16 %v363
      %v546 = vunpack.c.l.b16 %v364
      %v547 = vunpack.c.l.b16 %v365
      %v548 = vunpack.c.l.b16 %v366
      %v549 = vunpack.c.l.b16 %v367
      %v550 = vunpack.c.l.b16 %v368
      %v551 = vunpack.c.l.b16 %v369
      %v552 = vunpack.c.l.b16 %v370
      %v553 = vunpack.c.l.b16 %v371
      %v554 = vunpack.c.l.b16 %v372
      %v555 = vunpack.c.l.b16 %v373
      %v556 = vpack.c.b16 %v538, %v537
      %v557 = vpack.c.b16 %v540, %v539
      %v558 = vpack.c.b16 %v542, %v541
      %v559 = vpack.c.b16 %v544, %v543
      %v560 = vpack.c.b16 %v546, %v545
      %v561 = vpack.c.b16 %v548, %v547
      %v562 = vpack.c.b16 %v550, %v549
      %v563 = vpack.c.b16 %v552, %v551
      %v564 = vpack.c.b16 %v554, %v553
      %v565 = vpack.c.b16 %v555, %v555
      %vm575 = vcmask 154624
      %v577 = vsel %vm575, %v471, 0
      %v580 = vsel %vm575, %v473, 0
      %v583 = vsel %vm575, %v475, 0
      %v586 = vsel %vm575, %v477, 0
      %v589 = vsel %vm575, %v479, 0
      %v592 = vsel %vm575, %v481, 0
      %v595 = vsel %vm575, %v483, 0
      %v598 = vsel %vm575, %v485, 0
      %v601 = vsel %vm575, %v487, 0
      %v604 = vsel %vm575, %v489, 0
      %v607 = vsel %vm575, %v491, 0
      %v610 = vsel %vm575, %v493, 0
      %v613 = vsel %vm575, %v495, 0
      %v616 = vsel %vm575, %v497, 0
      %v619 = vsel %vm575, %v499, 0
      %v622 = vsel %vm575, %v501, 0
      %vm624 = vcmask 1040384
      %vm625 = vcmask 1041408
      %v626 = vsel %vm624, 4294967295, 65535
      %v627 = vsel %vm625, %v626, 0
      %v629 = vand.u32 %v565, %v627
      %631 = vmatprep.subr.bf16.mxu0 0
      %632 = vmatpush1.bf16.msra.mxu0 %v556
      %633 = vmatprep.subr.bf16.mxu0 0
      %634 = vmatpush1.bf16.msra.mxu0 %v557
      %635 = vmatprep.subr.bf16.mxu0 0
      %636 = vmatpush1.bf16.msra.mxu0 %v558
      %637 = vmatprep.subr.bf16.mxu0 0
      %638 = vmatpush1.bf16.msra.mxu0 %v559
      %639 = vmatprep.subr.bf16.mxu0 0
      %640 = vmatpush1.bf16.msra.mxu0 %v560
      %641 = vmatprep.subr.bf16.mxu0 0
      %642 = vmatpush1.bf16.msra.mxu0 %v561
      %643 = vmatprep.subr.bf16.mxu0 0
      %644 = vmatpush1.bf16.msra.mxu0 %v562
      %645 = vmatprep.subr.bf16.mxu0 0
      %646 = vmatpush1.bf16.msra.mxu0 %v563
      %647 = vmatprep.subr.bf16.mxu0 0
      %648 = vmatpush1.bf16.msra.mxu0 %v564
      %649 = vmatprep.subr.bf16.mxu0 0
      %650 = vmatpush1.bf16.msra.mxu0 %v629
      %651 = vmatprep.subr.bf16.mxu0 0
      %652 = vmatpush1.bf16.msra.mxu0 0
      %653 = vmatprep.subr.bf16.mxu0 0
      %654 = vmatpush1.bf16.msra.mxu0 0
      %655 = vmatprep.subr.bf16.mxu0 0
      %656 = vmatpush1.bf16.msra.mxu0 0
      %657 = vmatprep.subr.bf16.mxu0 0
      %658 = vmatpush1.bf16.msra.mxu0 0
      %659 = vmatprep.subr.bf16.mxu0 0
      %660 = vmatpush1.bf16.msra.mxu0 0
      %661 = vmatprep.subr.bf16.mxu0 0
      %662 = vmatpush1.bf16.msra.mxu0 0
      %663 = vmatprep.mubr.bf16.mxu0 %v577
      %664 = vmatmul.mubr.bf16.gmra.mrb[0].mxu0 %v470
      %v665 = vpop.f32.mrb[0].mxu0
      %v666 = vadd.f32 0.0, %v665
      %v667 = vpop.f32.mrb[0].mxu0
      %v668 = vpop.f32.mrb[0].mxu0
      %v669 = vadd.f32 0.0, %v668
      %v670 = vpop.f32.mrb[0].mxu0
      %671 = vmatprep.mubr.bf16.mxu0 %v580
      %672 = vmatmul.mubr.bf16.gmra.mrb[0].mxu0 %v472
      %v673 = vpop.f32.mrb[0].mxu0
      %v674 = vadd.f32 0.0, %v673
      %v675 = vpop.f32.mrb[0].mxu0
      %v676 = vpop.f32.mrb[0].mxu0
      %v677 = vadd.f32 0.0, %v676
      %v678 = vpop.f32.mrb[0].mxu0
      %679 = vmatprep.mubr.bf16.mxu0 %v583
      %680 = vmatmul.mubr.bf16.gmra.mrb[0].mxu0 %v474
      %v681 = vpop.f32.mrb[0].mxu0
      %v682 = vadd.f32 0.0, %v681
      %v683 = vpop.f32.mrb[0].mxu0
      %v684 = vpop.f32.mrb[0].mxu0
      %v685 = vadd.f32 0.0, %v684
      %v686 = vpop.f32.mrb[0].mxu0
      %687 = vmatprep.mubr.bf16.mxu0 %v586
      %688 = vmatmul.mubr.bf16.gmra.mrb[0].mxu0 %v476
      %v689 = vpop.f32.mrb[0].mxu0
      %v690 = vadd.f32 0.0, %v689
      %v691 = vpop.f32.mrb[0].mxu0
      %v692 = vpop.f32.mrb[0].mxu0
      %v693 = vadd.f32 0.0, %v692
      %v694 = vpop.f32.mrb[0].mxu0
      %695 = vmatprep.mubr.bf16.mxu0 %v589
      %696 = vmatmul.mubr.bf16.gmra.mrb[0].mxu0 %v478
      %v697 = vpop.f32.mrb[0].mxu0
      %v698 = vadd.f32 0.0, %v697
      %v699 = vpop.f32.mrb[0].mxu0
      %v700 = vpop.f32.mrb[0].mxu0
      %v701 = vadd.f32 0.0, %v700
      %v702 = vpop.f32.mrb[0].mxu0
      %703 = vmatprep.mubr.bf16.mxu0 %v592
      %704 = vmatmul.mubr.bf16.gmra.mrb[0].mxu0 %v480
      %v705 = vpop.f32.mrb[0].mxu0
      %v706 = vadd.f32 0.0, %v705
      %v707 = vpop.f32.mrb[0].mxu0
      %v708 = vpop.f32.mrb[0].mxu0
      %v709 = vadd.f32 0.0, %v708
      %v710 = vpop.f32.mrb[0].mxu0
      %711 = vmatprep.mubr.bf16.mxu0 %v595
      %712 = vmatmul.mubr.bf16.gmra.mrb[0].mxu0 %v482
      %v713 = vpop.f32.mrb[0].mxu0
      %v714 = vadd.f32 0.0, %v713
      %v715 = vpop.f32.mrb[0].mxu0
      %v716 = vpop.f32.mrb[0].mxu0
      %v717 = vadd.f32 0.0, %v716
      %v718 = vpop.f32.mrb[0].mxu0
      %719 = vmatprep.mubr.bf16.mxu0 %v598
      %720 = vmatmul.mubr.bf16.gmra.mrb[0].mxu0 %v484
      %v721 = vpop.f32.mrb[0].mxu0
      %v722 = vadd.f32 0.0, %v721
      %v723 = vpop.f32.mrb[0].mxu0
      %v724 = vpop.f32.mrb[0].mxu0
      %v725 = vadd.f32 0.0, %v724
      %v726 = vpop.f32.mrb[0].mxu0
      %727 = vmatprep.mubr.bf16.mxu0 %v601
      %728 = vmatmul.mubr.bf16.gmra.mrb[0].mxu0 %v486
      %v729 = vpop.f32.mrb[0].mxu0
      %v730 = vadd.f32 0.0, %v729
      %v731 = vpop.f32.mrb[0].mxu0
      %v732 = vpop.f32.mrb[0].mxu0
      %v733 = vadd.f32 0.0, %v732
      %v734 = vpop.f32.mrb[0].mxu0
      %735 = vmatprep.mubr.bf16.mxu0 %v604
      %736 = vmatmul.mubr.bf16.gmra.mrb[0].mxu0 %v488
      %v737 = vpop.f32.mrb[0].mxu0
      %v738 = vadd.f32 0.0, %v737
      %v739 = vpop.f32.mrb[0].mxu0
      %v740 = vpop.f32.mrb[0].mxu0
      %v741 = vadd.f32 0.0, %v740
      %v742 = vpop.f32.mrb[0].mxu0
      %743 = vmatprep.mubr.bf16.mxu0 %v607
      %744 = vmatmul.mubr.bf16.gmra.mrb[0].mxu0 %v490
      %v745 = vpop.f32.mrb[0].mxu0
      %v746 = vadd.f32 0.0, %v745
      %v747 = vpop.f32.mrb[0].mxu0
      %v748 = vpop.f32.mrb[0].mxu0
      %v749 = vadd.f32 0.0, %v748
      %v750 = vpop.f32.mrb[0].mxu0
      %751 = vmatprep.mubr.bf16.mxu0 %v610
      %752 = vmatmul.mubr.bf16.gmra.mrb[0].mxu0 %v492
      %v753 = vpop.f32.mrb[0].mxu0
      %v754 = vadd.f32 0.0, %v753
      %v755 = vpop.f32.mrb[0].mxu0
      %v756 = vpop.f32.mrb[0].mxu0
      %v757 = vadd.f32 0.0, %v756
      %v758 = vpop.f32.mrb[0].mxu0
      %759 = vmatprep.mubr.bf16.mxu0 %v613
      %760 = vmatmul.mubr.bf16.gmra.mrb[0].mxu0 %v494
      %v761 = vpop.f32.mrb[0].mxu0
      %v762 = vadd.f32 0.0, %v761
      %v763 = vpop.f32.mrb[0].mxu0
      %v764 = vpop.f32.mrb[0].mxu0
      %v765 = vadd.f32 0.0, %v764
      %v766 = vpop.f32.mrb[0].mxu0
      %767 = vmatprep.mubr.bf16.mxu0 %v616
      %768 = vmatmul.mubr.bf16.gmra.mrb[0].mxu0 %v496
      %v769 = vpop.f32.mrb[0].mxu0
      %v770 = vadd.f32 0.0, %v769
      %v771 = vpop.f32.mrb[0].mxu0
      %v772 = vpop.f32.mrb[0].mxu0
      %v773 = vadd.f32 0.0, %v772
      %v774 = vpop.f32.mrb[0].mxu0
      %775 = vmatprep.mubr.bf16.mxu0 %v619
      %776 = vmatmul.mubr.bf16.gmra.mrb[0].mxu0 %v498
      %v777 = vpop.f32.mrb[0].mxu0
      %v778 = vadd.f32 0.0, %v777
      %v779 = vpop.f32.mrb[0].mxu0
      %v780 = vpop.f32.mrb[0].mxu0
      %v781 = vadd.f32 0.0, %v780
      %v782 = vpop.f32.mrb[0].mxu0
      %783 = vmatprep.mubr.bf16.mxu0 %v622
      %784 = vmatmul.mubr.bf16.gmra.mrb[0].mxu0 %v500
      %v785 = vpop.f32.mrb[0].mxu0
      %v786 = vadd.f32 0.0, %v785
      %v787 = vpop.f32.mrb[0].mxu0
      %v788 = vpop.f32.mrb[0].mxu0
      %v789 = vadd.f32 0.0, %v788
      %v790 = vpop.f32.mrb[0].mxu0
      %791 = vdwg.mxu0
      %v792 = vadd.f32 %v291, %v666
      %v793 = vadd.f32 %v292, %v669
      %v794 = vadd.f32 %v293, %v674
      %v795 = vadd.f32 %v294, %v677
      %v796 = vadd.f32 %v295, %v682
      %v797 = vadd.f32 %v296, %v685
      %v798 = vadd.f32 %v297, %v690
      %v799 = vadd.f32 %v298, %v693
      %v800 = vadd.f32 %v299, %v698
      %v801 = vadd.f32 %v300, %v701
      %v802 = vadd.f32 %v301, %v706
      %v803 = vadd.f32 %v302, %v709
      %v804 = vadd.f32 %v303, %v714
      %v805 = vadd.f32 %v304, %v717
      %v806 = vadd.f32 %v305, %v722
      %v807 = vadd.f32 %v306, %v725
      %v808 = vadd.f32 %v307, %v730
      %v809 = vadd.f32 %v308, %v733
      %v810 = vadd.f32 %v309, %v738
      %v811 = vadd.f32 %v310, %v741
      %v812 = vadd.f32 %v311, %v746
      %v813 = vadd.f32 %v312, %v749
      %v814 = vadd.f32 %v313, %v754
      %v815 = vadd.f32 %v314, %v757
      %v816 = vadd.f32 %v315, %v762
      %v817 = vadd.f32 %v316, %v765
      %v818 = vadd.f32 %v317, %v770
      %v819 = vadd.f32 %v318, %v773
      %v820 = vadd.f32 %v319, %v778
      %v821 = vadd.f32 %v320, %v781
      %v822 = vadd.f32 %v321, %v786
      %v823 = vadd.f32 %v322, %v789
      %824 = vst [vmem:[#allocation2] sm:$0xff] %v792
      %825 = vst [vmem:[#allocation2 + $0x8] sm:$0xff] %v793
      %826 = vst [vmem:[#allocation2 + $0x10] sm:$0xff] %v794
      %827 = vst [vmem:[#allocation2 + $0x18] sm:$0xff] %v795
      %828 = vst [vmem:[#allocation2 + $0x20] sm:$0xff] %v796
      %829 = vst [vmem:[#allocation2 + $0x28] sm:$0xff] %v797
      %830 = vst [vmem:[#allocation2 + $0x30] sm:$0xff] %v798
      %831 = vst [vmem:[#allocation2 + $0x38] sm:$0xff] %v799
      %832 = vst [vmem:[#allocation2 + $0x40] sm:$0xff] %v800
      %833 = vst [vmem:[#allocation2 + $0x48] sm:$0xff] %v801
      %834 = vst [vmem:[#allocation2 + $0x50] sm:$0xff] %v802
      %835 = vst [vmem:[#allocation2 + $0x58] sm:$0xff] %v803
      %836 = vst [vmem:[#allocation2 + $0x60] sm:$0xff] %v804
      %837 = vst [vmem:[#allocation2 + $0x68] sm:$0xff] %v805
      %838 = vst [vmem:[#allocation2 + $0x70] sm:$0xff] %v806
      %839 = vst [vmem:[#allocation2 + $0x78] sm:$0xff] %v807
      %840 = vst [vmem:[#allocation2 + $0x80] sm:$0xff] %v808
      %841 = vst [vmem:[#allocation2 + $0x88] sm:$0xff] %v809
      %842 = vst [vmem:[#allocation2 + $0x90] sm:$0xff] %v810
      %843 = vst [vmem:[#allocation2 + $0x98] sm:$0xff] %v811
      %844 = vst [vmem:[#allocation2 + $0xa0] sm:$0xff] %v812
      %845 = vst [vmem:[#allocation2 + $0xa8] sm:$0xff] %v813
      %846 = vst [vmem:[#allocation2 + $0xb0] sm:$0xff] %v814
      %847 = vst [vmem:[#allocation2 + $0xb8] sm:$0xff] %v815
      %848 = vst [vmem:[#allocation2 + $0xc0] sm:$0xff] %v816
      %849 = vst [vmem:[#allocation2 + $0xc8] sm:$0xff] %v817
      %850 = vst [vmem:[#allocation2 + $0xd0] sm:$0xff] %v818
      %851 = vst [vmem:[#allocation2 + $0xd8] sm:$0xff] %v819
      %852 = vst [vmem:[#allocation2 + $0xe0] sm:$0xff] %v820
      %853 = vst [vmem:[#allocation2 + $0xe8] sm:$0xff] %v821
      %854 = vst [vmem:[#allocation2 + $0xf0] sm:$0xff] %v822
      %855 = vst [vmem:[#allocation2 + $0xf8] sm:$0xff] %v823
      // Predicated region
      $region41: #{_lambda_.22} parent=35 // pred_check
        %p856 = pneg %p255
      $region42: #{_lambda_.22} parent=35 // pred_check_branch
        %858 = sbr.rel (%p856) target = $region44
      $region43: #{_lambda_.22} parent=35 // pred_region
        %v859 = vld [vmem:[#allocation2] sm:$0xff]
        %v860 = vld [vmem:[#allocation2 + $0x8] sm:$0xff]
        %v861 = vld [vmem:[#allocation2 + $0x10] sm:$0xff]
        %v862 = vld [vmem:[#allocation2 + $0x18] sm:$0xff]
        %v863 = vld [vmem:[#allocation2 + $0x20] sm:$0xff]
        %v864 = vld [vmem:[#allocation2 + $0x28] sm:$0xff]
        %v865 = vld [vmem:[#allocation2 + $0x30] sm:$0xff]
        %v866 = vld [vmem:[#allocation2 + $0x38] sm:$0xff]
        %v867 = vld [vmem:[#allocation2 + $0x40] sm:$0xff]
        %v868 = vld [vmem:[#allocation2 + $0x48] sm:$0xff]
        %v869 = vld [vmem:[#allocation2 + $0x50] sm:$0xff]
        %v870 = vld [vmem:[#allocation2 + $0x58] sm:$0xff]
        %v871 = vld [vmem:[#allocation2 + $0x60] sm:$0xff]
        %v872 = vld [vmem:[#allocation2 + $0x68] sm:$0xff]
        %v873 = vld [vmem:[#allocation2 + $0x70] sm:$0xff]
        %v874 = vld [vmem:[#allocation2 + $0x78] sm:$0xff]
        %v875 = vld [vmem:[#allocation2 + $0x80] sm:$0xff]
        %v876 = vld [vmem:[#allocation2 + $0x88] sm:$0xff]
        %v877 = vld [vmem:[#allocation2 + $0x90] sm:$0xff]
        %v878 = vld [vmem:[#allocation2 + $0x98] sm:$0xff]
        %v879 = vld [vmem:[#allocation2 + $0xa0] sm:$0xff]
        %v880 = vld [vmem:[#allocation2 + $0xa8] sm:$0xff]
        %v881 = vld [vmem:[#allocation2 + $0xb0] sm:$0xff]
        %v882 = vld [vmem:[#allocation2 + $0xb8] sm:$0xff]
        %v883 = vld [vmem:[#allocation2 + $0xc0] sm:$0xff]
        %v884 = vld [vmem:[#allocation2 + $0xc8] sm:$0xff]
        %v885 = vld [vmem:[#allocation2 + $0xd0] sm:$0xff]
        %v886 = vld [vmem:[#allocation2 + $0xd8] sm:$0xff]
        %v887 = vld [vmem:[#allocation2 + $0xe0] sm:$0xff]
        %v888 = vld [vmem:[#allocation2 + $0xe8] sm:$0xff]
        %v889 = vld [vmem:[#allocation2 + $0xf0] sm:$0xff]
        %v890 = vld [vmem:[#allocation2 + $0xf8] sm:$0xff]
        %v891 = vld [vmem:[%s2] sm:$0x1]
        %v893 = vlaneseq
        %v894 = vshrl.u32 %v893, 7
        %v895 = vsub.s32 0, %v894
        %v896 = vrot.slane %v891, %v895
        %v898 = vmul.f32 %v859, %v896
        %v899 = vmul.f32 %v860, %v896
        %v900 = vmul.f32 %v861, %v896
        %v901 = vmul.f32 %v862, %v896
        %v902 = vmul.f32 %v863, %v896
        %v903 = vmul.f32 %v864, %v896
        %v904 = vmul.f32 %v865, %v896
        %v905 = vmul.f32 %v866, %v896
        %v906 = vmul.f32 %v867, %v896
        %v907 = vmul.f32 %v868, %v896
        %v908 = vmul.f32 %v869, %v896
        %v909 = vmul.f32 %v870, %v896
        %v910 = vmul.f32 %v871, %v896
        %v911 = vmul.f32 %v872, %v896
        %v912 = vmul.f32 %v873, %v896
        %v913 = vmul.f32 %v874, %v896
        %v914 = vmul.f32 %v875, %v896
        %v915 = vmul.f32 %v876, %v896
        %v916 = vmul.f32 %v877, %v896
        %v917 = vmul.f32 %v878, %v896
        %v918 = vmul.f32 %v879, %v896
        %v919 = vmul.f32 %v880, %v896
        %v920 = vmul.f32 %v881, %v896
        %v921 = vmul.f32 %v882, %v896
        %v922 = vmul.f32 %v883, %v896
        %v923 = vmul.f32 %v884, %v896
        %v924 = vmul.f32 %v885, %v896
        %v925 = vmul.f32 %v886, %v896
        %v926 = vmul.f32 %v887, %v896
        %v927 = vmul.f32 %v888, %v896
        %v928 = vmul.f32 %v889, %v896
        %v929 = vmul.f32 %v890, %v896
        %v930 = vld [vmem:[%s3] sm:$0x1]
        %v932 = vlaneseq
        %v933 = vshrl.u32 %v932, 7
        %v934 = vsub.s32 0, %v933
        %v935 = vrot.slane %v930, %v934
        %v937 = vadd.f32 %v898, %v935
        %v938 = vadd.f32 %v899, %v935
        %v939 = vadd.f32 %v900, %v935
        %v940 = vadd.f32 %v901, %v935
        %v941 = vadd.f32 %v902, %v935
        %v942 = vadd.f32 %v903, %v935
        %v943 = vadd.f32 %v904, %v935
        %v944 = vadd.f32 %v905, %v935
        %v945 = vadd.f32 %v906, %v935
        %v946 = vadd.f32 %v907, %v935
        %v947 = vadd.f32 %v908, %v935
        %v948 = vadd.f32 %v909, %v935
        %v949 = vadd.f32 %v910, %v935
        %v950 = vadd.f32 %v911, %v935
        %v951 = vadd.f32 %v912, %v935
        %v952 = vadd.f32 %v913, %v935
        %v953 = vadd.f32 %v914, %v935
        %v954 = vadd.f32 %v915, %v935
        %v955 = vadd.f32 %v916, %v935
        %v956 = vadd.f32 %v917, %v935
        %v957 = vadd.f32 %v918, %v935
        %v958 = vadd.f32 %v919, %v935
        %v959 = vadd.f32 %v920, %v935
        %v960 = vadd.f32 %v921, %v935
        %v961 = vadd.f32 %v922, %v935
        %v962 = vadd.f32 %v923, %v935
        %v963 = vadd.f32 %v924, %v935
        %v964 = vadd.f32 %v925, %v935
        %v965 = vadd.f32 %v926, %v935
        %v966 = vadd.f32 %v927, %v935
        %v967 = vadd.f32 %v928, %v935
        %v968 = vadd.f32 %v929, %v935
        %v969 = vmax.f32 %v937, 0.0
        %v970 = vmax.f32 %v938, 0.0
        %v971 = vmax.f32 %v939, 0.0
        %v972 = vmax.f32 %v940, 0.0
        %v973 = vmax.f32 %v941, 0.0
        %v974 = vmax.f32 %v942, 0.0
        %v975 = vmax.f32 %v943, 0.0
        %v976 = vmax.f32 %v944, 0.0
        %v977 = vmax.f32 %v945, 0.0
        %v978 = vmax.f32 %v946, 0.0
        %v979 = vmax.f32 %v947, 0.0
        %v980 = vmax.f32 %v948, 0.0
        %v981 = vmax.f32 %v949, 0.0
        %v982 = vmax.f32 %v950, 0.0
        %v983 = vmax.f32 %v951, 0.0
        %v984 = vmax.f32 %v952, 0.0
        %v985 = vmax.f32 %v953, 0.0
        %v986 = vmax.f32 %v954, 0.0
        %v987 = vmax.f32 %v955, 0.0
        %v988 = vmax.f32 %v956, 0.0
        %v989 = vmax.f32 %v957, 0.0
        %v990 = vmax.f32 %v958, 0.0
        %v991 = vmax.f32 %v959, 0.0
        %v992 = vmax.f32 %v960, 0.0
        %v993 = vmax.f32 %v961, 0.0
        %v994 = vmax.f32 %v962, 0.0
        %v995 = vmax.f32 %v963, 0.0
        %v996 = vmax.f32 %v964, 0.0
        %v997 = vmax.f32 %v965, 0.0
        %v998 = vmax.f32 %v966, 0.0
        %v999 = vmax.f32 %v967, 0.0
        %v1000 = vmax.f32 %v968, 0.0
        %v1001 = vpack.c.bf16 %v970, %v969
        %v1002 = vpack.c.bf16 %v972, %v971
        %v1003 = vpack.c.bf16 %v974, %v973
        %v1004 = vpack.c.bf16 %v976, %v975
        %v1005 = vpack.c.bf16 %v978, %v977
        %v1006 = vpack.c.bf16 %v980, %v979
        %v1007 = vpack.c.bf16 %v982, %v981
        %v1008 = vpack.c.bf16 %v984, %v983
        %v1009 = vpack.c.bf16 %v986, %v985
        %v1010 = vpack.c.bf16 %v988, %v987
        %v1011 = vpack.c.bf16 %v990, %v989
        %v1012 = vpack.c.bf16 %v992, %v991
        %v1013 = vpack.c.bf16 %v994, %v993
        %v1014 = vpack.c.bf16 %v996, %v995
        %v1015 = vpack.c.bf16 %v998, %v997
        %v1016 = vpack.c.bf16 %v1000, %v999
        %v1033 = vunpack.c.l.b16 %v1001
        %v1034 = vunpack.c.h.b16 %v1001
        %v1035 = vunpack.c.l.b16 %v1002
        %v1036 = vunpack.c.h.b16 %v1002
        %v1037 = vunpack.c.l.b16 %v1003
        %v1038 = vunpack.c.h.b16 %v1003
        %v1039 = vunpack.c.l.b16 %v1004
        %v1040 = vunpack.c.h.b16 %v1004
        %v1041 = vunpack.c.l.b16 %v1005
        %v1042 = vunpack.c.h.b16 %v1005
        %v1043 = vunpack.c.l.b16 %v1006
        %v1044 = vunpack.c.h.b16 %v1006
        %v1045 = vunpack.c.l.b16 %v1007
        %v1046 = vunpack.c.h.b16 %v1007
        %v1047 = vunpack.c.l.b16 %v1008
        %v1048 = vunpack.c.h.b16 %v1008
        %v1049 = vunpack.c.l.b16 %v1009
        %v1050 = vunpack.c.h.b16 %v1009
        %v1051 = vunpack.c.l.b16 %v1010
        %v1052 = vunpack.c.h.b16 %v1010
        %v1053 = vunpack.c.l.b16 %v1011
        %v1054 = vunpack.c.h.b16 %v1011
        %v1055 = vunpack.c.l.b16 %v1012
        %v1056 = vunpack.c.h.b16 %v1012
        %v1057 = vunpack.c.l.b16 %v1013
        %v1058 = vunpack.c.h.b16 %v1013
        %v1059 = vunpack.c.l.b16 %v1014
        %v1060 = vunpack.c.h.b16 %v1014
        %v1061 = vunpack.c.l.b16 %v1015
        %v1062 = vunpack.c.h.b16 %v1015
        %v1063 = vunpack.c.l.b16 %v1016
        %v1064 = vunpack.c.h.b16 %v1016
        %v1065 = vpack.c.b16 %v1033, %v1033
        %v1066 = vpack.c.b16 %v1034, %v1034
        %v1067 = vpack.c.b16 %v1035, %v1035
        %v1068 = vpack.c.b16 %v1036, %v1036
        %v1069 = vpack.c.b16 %v1037, %v1037
        %v1070 = vpack.c.b16 %v1038, %v1038
        %v1071 = vpack.c.b16 %v1039, %v1039
        %v1072 = vpack.c.b16 %v1040, %v1040
        %v1073 = vpack.c.b16 %v1041, %v1041
        %v1074 = vpack.c.b16 %v1042, %v1042
        %v1075 = vpack.c.b16 %v1043, %v1043
        %v1076 = vpack.c.b16 %v1044, %v1044
        %v1077 = vpack.c.b16 %v1045, %v1045
        %v1078 = vpack.c.b16 %v1046, %v1046
        %v1079 = vpack.c.b16 %v1047, %v1047
        %v1080 = vpack.c.b16 %v1048, %v1048
        %v1081 = vpack.c.b16 %v1049, %v1049
        %v1082 = vpack.c.b16 %v1050, %v1050
        %v1083 = vpack.c.b16 %v1051, %v1051
        %v1084 = vpack.c.b16 %v1052, %v1052
        %v1085 = vpack.c.b16 %v1053, %v1053
        %v1086 = vpack.c.b16 %v1054, %v1054
        %v1087 = vpack.c.b16 %v1055, %v1055
        %v1088 = vpack.c.b16 %v1056, %v1056
        %v1089 = vpack.c.b16 %v1057, %v1057
        %v1090 = vpack.c.b16 %v1058, %v1058
        %v1091 = vpack.c.b16 %v1059, %v1059
        %v1092 = vpack.c.b16 %v1060, %v1060
        %v1093 = vpack.c.b16 %v1061, %v1061
        %v1094 = vpack.c.b16 %v1062, %v1062
        %v1095 = vpack.c.b16 %v1063, %v1063
        %v1096 = vpack.c.b16 %v1064, %v1064
        %1129 = vst [vmem:[%s252] sm:$0xf] %v1065
        %1130 = vst [vmem:[%s252 + $0x4] sm:$0xf] %v1066
        %1131 = vst [vmem:[%s252 + $0x8] sm:$0xf] %v1067
        %1132 = vst [vmem:[%s252 + $0xc] sm:$0xf] %v1068
        %1133 = vst [vmem:[%s252 + $0x10] sm:$0xf] %v1069
        %1134 = vst [vmem:[%s252 + $0x14] sm:$0xf] %v1070
        %1135 = vst [vmem:[%s252 + $0x18] sm:$0xf] %v1071
        %1136 = vst [vmem:[%s252 + $0x1c] sm:$0xf] %v1072
        %1137 = vst [vmem:[%s252 + $0x20] sm:$0xf] %v1073
        %1138 = vst [vmem:[%s252 + $0x24] sm:$0xf] %v1074
        %1139 = vst [vmem:[%s252 + $0x28] sm:$0xf] %v1075
        %1140 = vst [vmem:[%s252 + $0x2c] sm:$0xf] %v1076
        %1141 = vst [vmem:[%s252 + $0x30] sm:$0xf] %v1077
        %1142 = vst [vmem:[%s252 + $0x34] sm:$0xf] %v1078
        %1143 = vst [vmem:[%s252 + $0x38] sm:$0xf] %v1079
        %1144 = vst [vmem:[%s252 + $0x3c] sm:$0xf] %v1080
        %1145 = vst [vmem:[%s252 + $0x40] sm:$0xf] %v1081
        %1146 = vst [vmem:[%s252 + $0x44] sm:$0xf] %v1082
        %1147 = vst [vmem:[%s252 + $0x48] sm:$0xf] %v1083
        %1148 = vst [vmem:[%s252 + $0x4c] sm:$0xf] %v1084
        %1149 = vst [vmem:[%s252 + $0x50] sm:$0xf] %v1085
        %1150 = vst [vmem:[%s252 + $0x54] sm:$0xf] %v1086
        %1151 = vst [vmem:[%s252 + $0x58] sm:$0xf] %v1087
        %1152 = vst [vmem:[%s252 + $0x5c] sm:$0xf] %v1088
        %1153 = vst [vmem:[%s252 + $0x60] sm:$0xf] %v1089
        %1154 = vst [vmem:[%s252 + $0x64] sm:$0xf] %v1090
        %1155 = vst [vmem:[%s252 + $0x68] sm:$0xf] %v1091
        %1156 = vst [vmem:[%s252 + $0x6c] sm:$0xf] %v1092
        %1157 = vst [vmem:[%s252 + $0x70] sm:$0xf] %v1093
        %1158 = vst [vmem:[%s252 + $0x74] sm:$0xf] %v1094
        %1159 = vst [vmem:[%s252 + $0x78] sm:$0xf] %v1095
        %1160 = vst [vmem:[%s252 + $0x7c] sm:$0xf] %v1096
      $region44: #{_lambda_.22} parent=35 // pred_fallthru
        _
      %s1161 = smul.u32 32, %s19
      %p1162 = scmp.lt.s32.totalorder %s1161, 63
      %s1163 = scalar_select %p1162, %s1161, 63
      %s1164 = smul.addr %s1163, 4
      %s1165 = scalar_lea.vmem %s4, %s1164
      // Predicated region
      $region45: #{_lambda_.22} parent=35 // pred_check
        %p1166 = pneg %p141
      $region46: #{_lambda_.22} parent=35 // pred_check_branch
        %1168 = sbr.rel (%p1166) target = $region48
      $region47: #{_lambda_.22} parent=35 // pred_region
        %s1169 = smul.u32 32, %s19
      $region48: #{_lambda_.22} parent=35 // pred_fallthru
        _
    $region36: #{_lambda_.22} parent=5 // pred_fallthru
      _
    %p1170 = scmp.le.s32.totalorder 2, %s10
    // Predicated region
    $region49: #{_lambda_.22} parent=5 // pred_check
      %p1171 = pneg %p1170
    $region50: #{_lambda_.22} parent=5 // pred_check_branch
      %1173 = sbr.rel (%p1171) target = $region52
    $region51: #{_lambda_.22} parent=5 // pred_region
      %s1174 = ssub.s32 %s10, 2
      // Predicated region
      $region53: #{_lambda_.22} parent=51 // pred_check
        %p1175 = pneg %p147
      $region54: #{_lambda_.22} parent=51 // pred_check_branch
        %1177 = sbr.rel (%p1175) target = $region56
      $region55: #{_lambda_.22} parent=51 // pred_region
        %s1178 = smul.u32 32, %s21
        %p1179 = scmp.lt.s32.totalorder %s1178, 63
        %s1180 = scalar_select %p1179, %s1178, 63
        %s1181 = smul.addr %s1180, 4
        %s1182 = scalar_lea.vmem %s4, %s1181
      $region56: #{_lambda_.22} parent=51 // pred_fallthru
        _
    $region52: #{_lambda_.22} parent=5 // pred_fallthru
      _
  $region6: #{_lambda_.22} parent=0 // loop_footer
    %s14 = sadd.s32 1, %s10
  $region7: #{_lambda_.22} parent=0 // loop_footer_branch
    %9 = sbr.rel target = $region3
  $region8: #{_lambda_.22} parent=0 // loop_exit
    _

// kernel: _lambda_.25
$region0: #{_lambda_.25}
  #allocation0 [shape = 'u32[]', space=smem, size = 0x4, offset = 0x4, fixed_abs, tag = 'smem constant byte address 0x4 - core index']
  #allocation1 [shape = 'u32[144,128]{1,0:T(1,128)}', space=vmem, size = 0x12000, scoped, tag = 'internal scratch']
  #allocation2 [shape = 'f32[128,128]{1,0:T(8,128)}', space=vmem, size = 0x10000, scoped, tag = 'scratch operand']
  %s0 = inlined_call_operand.vmem [shape: bf16[128,144], index: 0, kind: input, shape index: {}]
  %s1 = inlined_call_operand.vmem [shape: bf16[144,128], index: 1, kind: input, shape index: {}]
  %s2 = inlined_call_operand.vmem [shape: f32[1,128], index: 2, kind: input, shape index: {}]
  %s3 = inlined_call_operand.vmem [shape: f32[1,128], index: 3, kind: input, shape index: {}]
  %s4 = inlined_call_operand.vmem [shape: bf16[128,128], index: 4, kind: input, shape index: {}]
  %s5 = inlined_call_operand.vmem [shape: bf16[128,128], index: 5, kind: output, shape index: {}]
  %s6 = sld [smem:[#allocation0]]
  $region38: #{_lambda_.25} parent=0
    _
  %s8 = ssub.s32 1, %s6
  %s9 = scalar_select 0, %s8, %s6
  // Predicated region
  $region2: #{_lambda_.25} parent=0 // pred_check
    _
  $region3: #{_lambda_.25} parent=0 // pred_check_branch
    %11 = sbr.rel (0) target = $region5
  $region4: #{_lambda_.25} parent=0 // pred_region
    _
  $region5: #{_lambda_.25} parent=0 // pred_fallthru
    _
  // Predicated region
  $region6: #{_lambda_.25} parent=0 // pred_check
    _
  $region7: #{_lambda_.25} parent=0 // pred_check_branch
    %13 = sbr.rel (0) target = $region9
  $region8: #{_lambda_.25} parent=0 // pred_region
    _
  $region9: #{_lambda_.25} parent=0 // pred_fallthru
    _
  // Predicated region
  $region10: #{_lambda_.25} parent=0 // pred_check
    _
  $region11: #{_lambda_.25} parent=0 // pred_check_branch
    %15 = sbr.rel (0) target = $region13
  $region12: #{_lambda_.25} parent=0 // pred_region
    _
  $region13: #{_lambda_.25} parent=0 // pred_fallthru
    _
  // Predicated region
  $region14: #{_lambda_.25} parent=0 // pred_check
    _
  $region15: #{_lambda_.25} parent=0 // pred_check_branch
    %17 = sbr.rel (0) target = $region17
  $region16: #{_lambda_.25} parent=0 // pred_region
    _
  $region17: #{_lambda_.25} parent=0 // pred_fallthru
    _
  // Predicated region
  $region18: #{_lambda_.25} parent=0 // pred_check
    _
  $region19: #{_lambda_.25} parent=0 // pred_check_branch
    %19 = sbr.rel (0) target = $region21
  $region20: #{_lambda_.25} parent=0 // pred_region
    _
  $region21: #{_lambda_.25} parent=0 // pred_fallthru
    _
  %p21 = scmp.eq.s32.totalorder 0, 0
  // Predicated region
  $region22: #{_lambda_.25} parent=0 // pred_check
    %p22 = pneg %p21
  $region23: #{_lambda_.25} parent=0 // pred_check_branch
    %24 = sbr.rel (%p22) target = $region25
  $region24: #{_lambda_.25} parent=0 // pred_region
    %25 = vst [vmem:[#allocation2] sm:$0xff] 0.0
    %26 = vst [vmem:[#allocation2 + $0x8] sm:$0xff] 0.0
    %27 = vst [vmem:[#allocation2 + $0x10] sm:$0xff] 0.0
    %28 = vst [vmem:[#allocation2 + $0x18] sm:$0xff] 0.0
    %29 = vst [vmem:[#allocation2 + $0x20] sm:$0xff] 0.0
    %30 = vst [vmem:[#allocation2 + $0x28] sm:$0xff] 0.0
    %31 = vst [vmem:[#allocation2 + $0x30] sm:$0xff] 0.0
    %32 = vst [vmem:[#allocation2 + $0x38] sm:$0xff] 0.0
    %33 = vst [vmem:[#allocation2 + $0x40] sm:$0xff] 0.0
    %34 = vst [vmem:[#allocation2 + $0x48] sm:$0xff] 0.0
    %35 = vst [vmem:[#allocation2 + $0x50] sm:$0xff] 0.0
    %36 = vst [vmem:[#allocation2 + $0x58] sm:$0xff] 0.0
    %37 = vst [vmem:[#allocation2 + $0x60] sm:$0xff] 0.0
    %38 = vst [vmem:[#allocation2 + $0x68] sm:$0xff] 0.0
    %39 = vst [vmem:[#allocation2 + $0x70] sm:$0xff] 0.0
    %40 = vst [vmem:[#allocation2 + $0x78] sm:$0xff] 0.0
  $region25: #{_lambda_.25} parent=0 // pred_fallthru
    _
  %v41 = vld [vmem:[#allocation2] sm:$0xff]
  %v42 = vld [vmem:[#allocation2 + $0x8] sm:$0xff]
  %v43 = vld [vmem:[#allocation2 + $0x10] sm:$0xff]
  %v44 = vld [vmem:[#allocation2 + $0x18] sm:$0xff]
  %v45 = vld [vmem:[#allocation2 + $0x20] sm:$0xff]
  %v46 = vld [vmem:[#allocation2 + $0x28] sm:$0xff]
  %v47 = vld [vmem:[#allocation2 + $0x30] sm:$0xff]
  %v48 = vld [vmem:[#allocation2 + $0x38] sm:$0xff]
  %v49 = vld [vmem:[#allocation2 + $0x40] sm:$0xff]
  %v50 = vld [vmem:[#allocation2 + $0x48] sm:$0xff]
  %v51 = vld [vmem:[#allocation2 + $0x50] sm:$0xff]
  %v52 = vld [vmem:[#allocation2 + $0x58] sm:$0xff]
  %v53 = vld [vmem:[#allocation2 + $0x60] sm:$0xff]
  %v54 = vld [vmem:[#allocation2 + $0x68] sm:$0xff]
  %v55 = vld [vmem:[#allocation2 + $0x70] sm:$0xff]
  %v56 = vld [vmem:[#allocation2 + $0x78] sm:$0xff]
  %v57 = vld [vmem:[%s0] sm:$0xff]
  %v58 = vld [vmem:[%s0 + $0x8] sm:$0xff]
  %v59 = vld [vmem:[%s0 + $0x10] sm:$0xff]
  %v60 = vld [vmem:[%s0 + $0x18] sm:$0xff]
  %v61 = vld [vmem:[%s0 + $0x20] sm:$0xff]
  %v62 = vld [vmem:[%s0 + $0x28] sm:$0xff]
  %v63 = vld [vmem:[%s0 + $0x30] sm:$0xff]
  %v64 = vld [vmem:[%s0 + $0x38] sm:$0xff]
  %v65 = vld [vmem:[%s0 + $0x40] sm:$0xff]
  %v66 = vld [vmem:[%s0 + $0x48] sm:$0xff]
  %v67 = vld [vmem:[%s0 + $0x50] sm:$0xff]
  %v68 = vld [vmem:[%s0 + $0x58] sm:$0xff]
  %v69 = vld [vmem:[%s0 + $0x60] sm:$0xff]
  %v70 = vld [vmem:[%s0 + $0x68] sm:$0xff]
  %v71 = vld [vmem:[%s0 + $0x70] sm:$0xff]
  %v72 = vld [vmem:[%s0 + $0x78] sm:$0xff]
  %v73 = vld [vmem:[%s1] sm:$0xf]
  %v74 = vld [vmem:[%s1 + $0x4] sm:$0xf]
  %v75 = vld [vmem:[%s1 + $0x8] sm:$0xf]
  %v76 = vld [vmem:[%s1 + $0xc] sm:$0xf]
  %v77 = vld [vmem:[%s1 + $0x10] sm:$0xf]
  %v78 = vld [vmem:[%s1 + $0x14] sm:$0xf]
  %v79 = vld [vmem:[%s1 + $0x18] sm:$0xf]
  %v80 = vld [vmem:[%s1 + $0x1c] sm:$0xf]
  %v81 = vld [vmem:[%s1 + $0x20] sm:$0xf]
  %v82 = vld [vmem:[%s1 + $0x24] sm:$0xf]
  %v83 = vld [vmem:[%s1 + $0x28] sm:$0xf]
  %v84 = vld [vmem:[%s1 + $0x2c] sm:$0xf]
  %v85 = vld [vmem:[%s1 + $0x30] sm:$0xf]
  %v86 = vld [vmem:[%s1 + $0x34] sm:$0xf]
  %v87 = vld [vmem:[%s1 + $0x38] sm:$0xf]
  %v88 = vld [vmem:[%s1 + $0x3c] sm:$0xf]
  %v89 = vld [vmem:[%s1 + $0x40] sm:$0xf]
  %v90 = vld [vmem:[%s1 + $0x44] sm:$0xf]
  %v107 = vunpack.c.l.b16 %v57
  %v108 = vunpack.c.h.b16 %v57
  %v109 = vunpack.c.l.b16 %v58
  %v110 = vunpack.c.h.b16 %v58
  %v111 = vunpack.c.l.b16 %v59
  %v112 = vunpack.c.h.b16 %v59
  %v113 = vunpack.c.l.b16 %v60
  %v114 = vunpack.c.h.b16 %v60
  %v115 = vunpack.c.l.b16 %v61
  %v116 = vunpack.c.h.b16 %v61
  %v117 = vunpack.c.l.b16 %v62
  %v118 = vunpack.c.h.b16 %v62
  %v119 = vunpack.c.l.b16 %v63
  %v120 = vunpack.c.h.b16 %v63
  %v121 = vunpack.c.l.b16 %v64
  %v122 = vunpack.c.h.b16 %v64
  %v123 = vunpack.c.l.b16 %v65
  %v124 = vunpack.c.h.b16 %v65
  %v125 = vunpack.c.l.b16 %v66
  %v126 = vunpack.c.h.b16 %v66
  %v127 = vunpack.c.l.b16 %v67
  %v128 = vunpack.c.h.b16 %v67
  %v129 = vunpack.c.l.b16 %v68
  %v130 = vunpack.c.h.b16 %v68
  %v131 = vunpack.c.l.b16 %v69
  %v132 = vunpack.c.h.b16 %v69
  %v133 = vunpack.c.l.b16 %v70
  %v134 = vunpack.c.h.b16 %v70
  %v135 = vunpack.c.l.b16 %v71
  %v136 = vunpack.c.h.b16 %v71
  %v137 = vunpack.c.l.b16 %v72
  %v138 = vunpack.c.h.b16 %v72
  %v139 = vpack.c.b16 %v109, %v107
  %v140 = vpack.c.b16 %v110, %v108
  %v141 = vpack.c.b16 %v113, %v111
  %v142 = vpack.c.b16 %v114, %v112
  %v143 = vpack.c.b16 %v117, %v115
  %v144 = vpack.c.b16 %v118, %v116
  %v145 = vpack.c.b16 %v121, %v119
  %v146 = vpack.c.b16 %v122, %v120
  %v147 = vpack.c.b16 %v125, %v123
  %v148 = vpack.c.b16 %v126, %v124
  %v149 = vpack.c.b16 %v129, %v127
  %v150 = vpack.c.b16 %v130, %v128
  %v151 = vpack.c.b16 %v133, %v131
  %v152 = vpack.c.b16 %v134, %v132
  %v153 = vpack.c.b16 %v137, %v135
  %v154 = vpack.c.b16 %v138, %v136
  %v181 = vunpack.c.l.b16 %v73
  %v182 = vunpack.c.l.b16 %v74
  %v183 = vunpack.c.l.b16 %v75
  %v184 = vunpack.c.l.b16 %v76
  %v185 = vunpack.c.l.b16 %v77
  %v186 = vunpack.c.l.b16 %v78
  %v187 = vunpack.c.l.b16 %v79
  %v188 = vunpack.c.l.b16 %v80
  %v189 = vunpack.c.l.b16 %v81
  %v190 = vunpack.c.l.b16 %v82
  %v191 = vunpack.c.l.b16 %v83
  %v192 = vunpack.c.l.b16 %v84
  %v193 = vunpack.c.l.b16 %v85
  %v194 = vunpack.c.l.b16 %v86
  %v195 = vunpack.c.l.b16 %v87
  %v196 = vunpack.c.l.b16 %v88
  %v197 = vunpack.c.l.b16 %v89
  %v198 = vunpack.c.l.b16 %v90
  %v199 = vpack.c.b16 %v182, %v181
  %v200 = vpack.c.b16 %v184, %v183
  %v201 = vpack.c.b16 %v186, %v185
  %v202 = vpack.c.b16 %v188, %v187
  %v203 = vpack.c.b16 %v190, %v189
  %v204 = vpack.c.b16 %v192, %v191
  %v205 = vpack.c.b16 %v194, %v193
  %v206 = vpack.c.b16 %v196, %v195
  %v207 = vpack.c.b16 %v198, %v197
  %vm217 = vcmask 130048
  %v219 = vsel %vm217, %v140, 0
  %v222 = vsel %vm217, %v142, 0
  %v225 = vsel %vm217, %v144, 0
  %v228 = vsel %vm217, %v146, 0
  %v231 = vsel %vm217, %v148, 0
  %v234 = vsel %vm217, %v150, 0
  %v237 = vsel %vm217, %v152, 0
  %v240 = vsel %vm217, %v154, 0
  %242 = vmatprep.subr.bf16.mxu0 0
  %243 = vmatpush1.bf16.msra.mxu0 %v199
  %244 = vmatprep.subr.bf16.mxu0 0
  %245 = vmatpush1.bf16.msra.mxu0 %v200
  %246 = vmatprep.subr.bf16.mxu0 0
  %247 = vmatpush1.bf16.msra.mxu0 %v201
  %248 = vmatprep.subr.bf16.mxu0 0
  %249 = vmatpush1.bf16.msra.mxu0 %v202
  %250 = vmatprep.subr.bf16.mxu0 0
  %251 = vmatpush1.bf16.msra.mxu0 %v203
  %252 = vmatprep.subr.bf16.mxu0 0
  %253 = vmatpush1.bf16.msra.mxu0 %v204
  %254 = vmatprep.subr.bf16.mxu0 0
  %255 = vmatpush1.bf16.msra.mxu0 %v205
  %256 = vmatprep.subr.bf16.mxu0 0
  %257 = vmatpush1.bf16.msra.mxu0 %v206
  %258 = vmatprep.subr.bf16.mxu0 0
  %259 = vmatpush1.bf16.msra.mxu0 %v207
  %260 = vmatprep.subr.bf16.mxu0 0
  %261 = vmatpush1.bf16.msra.mxu0 0
  %262 = vmatprep.subr.bf16.mxu0 0
  %263 = vmatpush1.bf16.msra.mxu0 0
  %264 = vmatprep.subr.bf16.mxu0 0
  %265 = vmatpush1.bf16.msra.mxu0 0
  %266 = vmatprep.subr.bf16.mxu0 0
  %267 = vmatpush1.bf16.msra.mxu0 0
  %268 = vmatprep.subr.bf16.mxu0 0
  %269 = vmatpush1.bf16.msra.mxu0 0
  %270 = vmatprep.subr.bf16.mxu0 0
  %271 = vmatpush1.bf16.msra.mxu0 0
  %272 = vmatprep.subr.bf16.mxu0 0
  %273 = vmatpush1.bf16.msra.mxu0 0
  %274 = vmatprep.mubr.bf16.mxu0 %v219
  %275 = vmatmul.mubr.bf16.gmra.mrb[0].mxu0 %v139
  %v276 = vpop.f32.mrb[0].mxu0
  %v277 = vadd.f32 0.0, %v276
  %v278 = vpop.f32.mrb[0].mxu0
  %v279 = vpop.f32.mrb[0].mxu0
  %v280 = vadd.f32 0.0, %v279
  %v281 = vpop.f32.mrb[0].mxu0
  %282 = vmatprep.mubr.bf16.mxu0 %v222
  %283 = vmatmul.mubr.bf16.gmra.mrb[0].mxu0 %v141
  %v284 = vpop.f32.mrb[0].mxu0
  %v285 = vadd.f32 0.0, %v284
  %v286 = vpop.f32.mrb[0].mxu0
  %v287 = vpop.f32.mrb[0].mxu0
  %v288 = vadd.f32 0.0, %v287
  %v289 = vpop.f32.mrb[0].mxu0
  %290 = vmatprep.mubr.bf16.mxu0 %v225
  %291 = vmatmul.mubr.bf16.gmra.mrb[0].mxu0 %v143
  %v292 = vpop.f32.mrb[0].mxu0
  %v293 = vadd.f32 0.0, %v292
  %v294 = vpop.f32.mrb[0].mxu0
  %v295 = vpop.f32.mrb[0].mxu0
  %v296 = vadd.f32 0.0, %v295
  %v297 = vpop.f32.mrb[0].mxu0
  %298 = vmatprep.mubr.bf16.mxu0 %v228
  %299 = vmatmul.mubr.bf16.gmra.mrb[0].mxu0 %v145
  %v300 = vpop.f32.mrb[0].mxu0
  %v301 = vadd.f32 0.0, %v300
  %v302 = vpop.f32.mrb[0].mxu0
  %v303 = vpop.f32.mrb[0].mxu0
  %v304 = vadd.f32 0.0, %v303
  %v305 = vpop.f32.mrb[0].mxu0
  %306 = vmatprep.mubr.bf16.mxu0 %v231
  %307 = vmatmul.mubr.bf16.gmra.mrb[0].mxu0 %v147
  %v308 = vpop.f32.mrb[0].mxu0
  %v309 = vadd.f32 0.0, %v308
  %v310 = vpop.f32.mrb[0].mxu0
  %v311 = vpop.f32.mrb[0].mxu0
  %v312 = vadd.f32 0.0, %v311
  %v313 = vpop.f32.mrb[0].mxu0
  %314 = vmatprep.mubr.bf16.mxu0 %v234
  %315 = vmatmul.mubr.bf16.gmra.mrb[0].mxu0 %v149
  %v316 = vpop.f32.mrb[0].mxu0
  %v317 = vadd.f32 0.0, %v316
  %v318 = vpop.f32.mrb[0].mxu0
  %v319 = vpop.f32.mrb[0].mxu0
  %v320 = vadd.f32 0.0, %v319
  %v321 = vpop.f32.mrb[0].mxu0
  %322 = vmatprep.mubr.bf16.mxu0 %v237
  %323 = vmatmul.mubr.bf16.gmra.mrb[0].mxu0 %v151
  %v324 = vpop.f32.mrb[0].mxu0
  %v325 = vadd.f32 0.0, %v324
  %v326 = vpop.f32.mrb[0].mxu0
  %v327 = vpop.f32.mrb[0].mxu0
  %v328 = vadd.f32 0.0, %v327
  %v329 = vpop.f32.mrb[0].mxu0
  %330 = vmatprep.mubr.bf16.mxu0 %v240
  %331 = vmatmul.mubr.bf16.gmra.mrb[0].mxu0 %v153
  %v332 = vpop.f32.mrb[0].mxu0
  %v333 = vadd.f32 0.0, %v332
  %v334 = vpop.f32.mrb[0].mxu0
  %v335 = vpop.f32.mrb[0].mxu0
  %v336 = vadd.f32 0.0, %v335
  %v337 = vpop.f32.mrb[0].mxu0
  %338 = vdwg.mxu0
  %v339 = vadd.f32 %v41, %v277
  %v340 = vadd.f32 %v42, %v280
  %v341 = vadd.f32 %v43, %v285
  %v342 = vadd.f32 %v44, %v288
  %v343 = vadd.f32 %v45, %v293
  %v344 = vadd.f32 %v46, %v296
  %v345 = vadd.f32 %v47, %v301
  %v346 = vadd.f32 %v48, %v304
  %v347 = vadd.f32 %v49, %v309
  %v348 = vadd.f32 %v50, %v312
  %v349 = vadd.f32 %v51, %v317
  %v350 = vadd.f32 %v52, %v320
  %v351 = vadd.f32 %v53, %v325
  %v352 = vadd.f32 %v54, %v328
  %v353 = vadd.f32 %v55, %v333
  %v354 = vadd.f32 %v56, %v336
  %355 = vst [vmem:[#allocation2] sm:$0xff] %v339
  %356 = vst [vmem:[#allocation2 + $0x8] sm:$0xff] %v340
  %357 = vst [vmem:[#allocation2 + $0x10] sm:$0xff] %v341
  %358 = vst [vmem:[#allocation2 + $0x18] sm:$0xff] %v342
  %359 = vst [vmem:[#allocation2 + $0x20] sm:$0xff] %v343
  %360 = vst [vmem:[#allocation2 + $0x28] sm:$0xff] %v344
  %361 = vst [vmem:[#allocation2 + $0x30] sm:$0xff] %v345
  %362 = vst [vmem:[#allocation2 + $0x38] sm:$0xff] %v346
  %363 = vst [vmem:[#allocation2 + $0x40] sm:$0xff] %v347
  %364 = vst [vmem:[#allocation2 + $0x48] sm:$0xff] %v348
  %365 = vst [vmem:[#allocation2 + $0x50] sm:$0xff] %v349
  %366 = vst [vmem:[#allocation2 + $0x58] sm:$0xff] %v350
  %367 = vst [vmem:[#allocation2 + $0x60] sm:$0xff] %v351
  %368 = vst [vmem:[#allocation2 + $0x68] sm:$0xff] %v352
  %369 = vst [vmem:[#allocation2 + $0x70] sm:$0xff] %v353
  %370 = vst [vmem:[#allocation2 + $0x78] sm:$0xff] %v354
  // Predicated region
  $region26: #{_lambda_.25} parent=0 // pred_check
    %p371 = pneg %p21
  $region27: #{_lambda_.25} parent=0 // pred_check_branch
    %373 = sbr.rel (%p371) target = $region29
  $region28: #{_lambda_.25} parent=0 // pred_region
    %v374 = vld [vmem:[#allocation2] sm:$0xff]
    %v375 = vld [vmem:[#allocation2 + $0x8] sm:$0xff]
    %v376 = vld [vmem:[#allocation2 + $0x10] sm:$0xff]
    %v377 = vld [vmem:[#allocation2 + $0x18] sm:$0xff]
    %v378 = vld [vmem:[#allocation2 + $0x20] sm:$0xff]
    %v379 = vld [vmem:[#allocation2 + $0x28] sm:$0xff]
    %v380 = vld [vmem:[#allocation2 + $0x30] sm:$0xff]
    %v381 = vld [vmem:[#allocation2 + $0x38] sm:$0xff]
    %v382 = vld [vmem:[#allocation2 + $0x40] sm:$0xff]
    %v383 = vld [vmem:[#allocation2 + $0x48] sm:$0xff]
    %v384 = vld [vmem:[#allocation2 + $0x50] sm:$0xff]
    %v385 = vld [vmem:[#allocation2 + $0x58] sm:$0xff]
    %v386 = vld [vmem:[#allocation2 + $0x60] sm:$0xff]
    %v387 = vld [vmem:[#allocation2 + $0x68] sm:$0xff]
    %v388 = vld [vmem:[#allocation2 + $0x70] sm:$0xff]
    %v389 = vld [vmem:[#allocation2 + $0x78] sm:$0xff]
    %v390 = vld [vmem:[%s2] sm:$0x1]
    %v392 = vlaneseq
    %v393 = vshrl.u32 %v392, 7
    %v394 = vsub.s32 0, %v393
    %v395 = vrot.slane %v390, %v394
    %v397 = vmul.f32 %v374, %v395
    %v398 = vmul.f32 %v375, %v395
    %v399 = vmul.f32 %v376, %v395
    %v400 = vmul.f32 %v377, %v395
    %v401 = vmul.f32 %v378, %v395
    %v402 = vmul.f32 %v379, %v395
    %v403 = vmul.f32 %v380, %v395
    %v404 = vmul.f32 %v381, %v395
    %v405 = vmul.f32 %v382, %v395
    %v406 = vmul.f32 %v383, %v395
    %v407 = vmul.f32 %v384, %v395
    %v408 = vmul.f32 %v385, %v395
    %v409 = vmul.f32 %v386, %v395
    %v410 = vmul.f32 %v387, %v395
    %v411 = vmul.f32 %v388, %v395
    %v412 = vmul.f32 %v389, %v395
    %v413 = vld [vmem:[%s3] sm:$0x1]
    %v415 = vlaneseq
    %v416 = vshrl.u32 %v415, 7
    %v417 = vsub.s32 0, %v416
    %v418 = vrot.slane %v413, %v417
    %v420 = vadd.f32 %v397, %v418
    %v421 = vadd.f32 %v398, %v418
    %v422 = vadd.f32 %v399, %v418
    %v423 = vadd.f32 %v400, %v418
    %v424 = vadd.f32 %v401, %v418
    %v425 = vadd.f32 %v402, %v418
    %v426 = vadd.f32 %v403, %v418
    %v427 = vadd.f32 %v404, %v418
    %v428 = vadd.f32 %v405, %v418
    %v429 = vadd.f32 %v406, %v418
    %v430 = vadd.f32 %v407, %v418
    %v431 = vadd.f32 %v408, %v418
    %v432 = vadd.f32 %v409, %v418
    %v433 = vadd.f32 %v410, %v418
    %v434 = vadd.f32 %v411, %v418
    %v435 = vadd.f32 %v412, %v418
    %v436 = vld [vmem:[%s4] sm:$0xf]
    %v437 = vld [vmem:[%s4 + $0x4] sm:$0xf]
    %v438 = vld [vmem:[%s4 + $0x8] sm:$0xf]
    %v439 = vld [vmem:[%s4 + $0xc] sm:$0xf]
    %v440 = vld [vmem:[%s4 + $0x10] sm:$0xf]
    %v441 = vld [vmem:[%s4 + $0x14] sm:$0xf]
    %v442 = vld [vmem:[%s4 + $0x18] sm:$0xf]
    %v443 = vld [vmem:[%s4 + $0x1c] sm:$0xf]
    %v444 = vld [vmem:[%s4 + $0x20] sm:$0xf]
    %v445 = vld [vmem:[%s4 + $0x24] sm:$0xf]
    %v446 = vld [vmem:[%s4 + $0x28] sm:$0xf]
    %v447 = vld [vmem:[%s4 + $0x2c] sm:$0xf]
    %v448 = vld [vmem:[%s4 + $0x30] sm:$0xf]
    %v449 = vld [vmem:[%s4 + $0x34] sm:$0xf]
    %v450 = vld [vmem:[%s4 + $0x38] sm:$0xf]
    %v451 = vld [vmem:[%s4 + $0x3c] sm:$0xf]
    %v452 = vunpack.c.l.bf16 %v436
    %v453 = vunpack.c.l.bf16 %v437
    %v454 = vunpack.c.l.bf16 %v438
    %v455 = vunpack.c.l.bf16 %v439
    %v456 = vunpack.c.l.bf16 %v440
    %v457 = vunpack.c.l.bf16 %v441
    %v458 = vunpack.c.l.bf16 %v442
    %v459 = vunpack.c.l.bf16 %v443
    %v460 = vunpack.c.l.bf16 %v444
    %v461 = vunpack.c.l.bf16 %v445
    %v462 = vunpack.c.l.bf16 %v446
    %v463 = vunpack.c.l.bf16 %v447
    %v464 = vunpack.c.l.bf16 %v448
    %v465 = vunpack.c.l.bf16 %v449
    %v466 = vunpack.c.l.bf16 %v450
    %v467 = vunpack.c.l.bf16 %v451
    %v468 = vadd.f32 %v420, %v452
    %v469 = vadd.f32 %v421, %v453
    %v470 = vadd.f32 %v422, %v454
    %v471 = vadd.f32 %v423, %v455
    %v472 = vadd.f32 %v424, %v456
    %v473 = vadd.f32 %v425, %v457
    %v474 = vadd.f32 %v426, %v458
    %v475 = vadd.f32 %v427, %v459
    %v476 = vadd.f32 %v428, %v460
    %v477 = vadd.f32 %v429, %v461
    %v478 = vadd.f32 %v430, %v462
    %v479 = vadd.f32 %v431, %v463
    %v480 = vadd.f32 %v432, %v464
    %v481 = vadd.f32 %v433, %v465
    %v482 = vadd.f32 %v434, %v466
    %v483 = vadd.f32 %v435, %v467
    %v484 = vmax.f32 %v468, 0.0
    %v485 = vmax.f32 %v469, 0.0
    %v486 = vmax.f32 %v470, 0.0
    %v487 = vmax.f32 %v471, 0.0
    %v488 = vmax.f32 %v472, 0.0
    %v489 = vmax.f32 %v473, 0.0
    %v490 = vmax.f32 %v474, 0.0
    %v491 = vmax.f32 %v475, 0.0
    %v492 = vmax.f32 %v476, 0.0
    %v493 = vmax.f32 %v477, 0.0
    %v494 = vmax.f32 %v478, 0.0
    %v495 = vmax.f32 %v479, 0.0
    %v496 = vmax.f32 %v480, 0.0
    %v497 = vmax.f32 %v481, 0.0
    %v498 = vmax.f32 %v482, 0.0
    %v499 = vmax.f32 %v483, 0.0
    %v500 = vpack.c.bf16 %v485, %v484
    %v501 = vpack.c.bf16 %v487, %v486
    %v502 = vpack.c.bf16 %v489, %v488
    %v503 = vpack.c.bf16 %v491, %v490
    %v504 = vpack.c.bf16 %v493, %v492
    %v505 = vpack.c.bf16 %v495, %v494
    %v506 = vpack.c.bf16 %v497, %v496
    %v507 = vpack.c.bf16 %v499, %v498
    %v516 = vunpack.c.l.b16 %v500
    %v517 = vunpack.c.h.b16 %v500
    %v518 = vunpack.c.l.b16 %v501
    %v519 = vunpack.c.h.b16 %v501
    %v520 = vunpack.c.l.b16 %v502
    %v521 = vunpack.c.h.b16 %v502
    %v522 = vunpack.c.l.b16 %v503
    %v523 = vunpack.c.h.b16 %v503
    %v524 = vunpack.c.l.b16 %v504
    %v525 = vunpack.c.h.b16 %v504
    %v526 = vunpack.c.l.b16 %v505
    %v527 = vunpack.c.h.b16 %v505
    %v528 = vunpack.c.l.b16 %v506
    %v529 = vunpack.c.h.b16 %v506
    %v530 = vunpack.c.l.b16 %v507
    %v531 = vunpack.c.h.b16 %v507
    %v532 = vpack.c.b16 %v516, %v516
    %v533 = vpack.c.b16 %v517, %v517
    %v534 = vpack.c.b16 %v518, %v518
    %v535 = vpack.c.b16 %v519, %v519
    %v536 = vpack.c.b16 %v520, %v520
    %v537 = vpack.c.b16 %v521, %v521
    %v538 = vpack.c.b16 %v522, %v522
    %v539 = vpack.c.b16 %v523, %v523
    %v540 = vpack.c.b16 %v524, %v524
    %v541 = vpack.c.b16 %v525, %v525
    %v542 = vpack.c.b16 %v526, %v526
    %v543 = vpack.c.b16 %v527, %v527
    %v544 = vpack.c.b16 %v528, %v528
    %v545 = vpack.c.b16 %v529, %v529
    %v546 = vpack.c.b16 %v530, %v530
    %v547 = vpack.c.b16 %v531, %v531
    %564 = vst [vmem:[%s5] sm:$0xf] %v532
    %565 = vst [vmem:[%s5 + $0x4] sm:$0xf] %v533
    %566 = vst [vmem:[%s5 + $0x8] sm:$0xf] %v534
    %567 = vst [vmem:[%s5 + $0xc] sm:$0xf] %v535
    %568 = vst [vmem:[%s5 + $0x10] sm:$0xf] %v536
    %569 = vst [vmem:[%s5 + $0x14] sm:$0xf] %v537
    %570 = vst [vmem:[%s5 + $0x18] sm:$0xf] %v538
    %571 = vst [vmem:[%s5 + $0x1c] sm:$0xf] %v539
    %572 = vst [vmem:[%s5 + $0x20] sm:$0xf] %v540
    %573 = vst [vmem:[%s5 + $0x24] sm:$0xf] %v541
    %574 = vst [vmem:[%s5 + $0x28] sm:$0xf] %v542
    %575 = vst [vmem:[%s5 + $0x2c] sm:$0xf] %v543
    %576 = vst [vmem:[%s5 + $0x30] sm:$0xf] %v544
    %577 = vst [vmem:[%s5 + $0x34] sm:$0xf] %v545
    %578 = vst [vmem:[%s5 + $0x38] sm:$0xf] %v546
    %579 = vst [vmem:[%s5 + $0x3c] sm:$0xf] %v547
  $region29: #{_lambda_.25} parent=0 // pred_fallthru
    _
  // Predicated region
  $region30: #{_lambda_.25} parent=0 // pred_check
    _
  $region31: #{_lambda_.25} parent=0 // pred_check_branch
    %581 = sbr.rel (0) target = $region33
  $region32: #{_lambda_.25} parent=0 // pred_region
    _
  $region33: #{_lambda_.25} parent=0 // pred_fallthru
    _
  // Predicated region
  $region34: #{_lambda_.25} parent=0 // pred_check
    _
  $region35: #{_lambda_.25} parent=0 // pred_check_branch
    %583 = sbr.rel (0) target = $region37
  $region36: #{_lambda_.25} parent=0 // pred_region
    _
  $region37: #{_lambda_.25} parent=0 // pred_fallthru
    _

// kernel: _lambda_.29
$region0: #{_lambda_.29}
  #allocation0 [shape = 'u32[]', space=smem, size = 0x4, offset = 0x4, fixed_abs, tag = 'smem constant byte address 0x4 - core index']
  #allocation1 [shape = 'u32[144,128]{1,0:T(1,128)}', space=vmem, size = 0x12000, scoped, tag = 'internal scratch']
  #allocation2 [shape = 'f32[32,128]{1,0:T(8,128)}', space=vmem, size = 0x4000, scoped, tag = 'scratch operand']
  %s0 = inlined_call_operand.vmem [shape: bf16[32,144], index: 0, kind: input, shape index: {}]
  %s1 = inlined_call_operand.vmem [shape: bf16[144,128], index: 1, kind: input, shape index: {}]
  %s2 = inlined_call_operand.vmem [shape: f32[1,128], index: 2, kind: input, shape index: {}]
  %s3 = inlined_call_operand.vmem [shape: f32[1,128], index: 3, kind: input, shape index: {}]
  %s4 = inlined_call_operand.vmem [shape: bf16[32,128], index: 4, kind: output, shape index: {}]
  %s5 = sld [smem:[#allocation0]]
  $region34: #{_lambda_.29} parent=0
    _
  %s7 = ssub.s32 1, %s5
  %s8 = scalar_select 0, %s7, %s5
  // Predicated region
  $region2: #{_lambda_.29} parent=0 // pred_check
    _
  $region3: #{_lambda_.29} parent=0 // pred_check_branch
    %10 = sbr.rel (0) target = $region5
  $region4: #{_lambda_.29} parent=0 // pred_region
    _
  $region5: #{_lambda_.29} parent=0 // pred_fallthru
    _
  // Predicated region
  $region6: #{_lambda_.29} parent=0 // pred_check
    _
  $region7: #{_lambda_.29} parent=0 // pred_check_branch
    %12 = sbr.rel (0) target = $region9
  $region8: #{_lambda_.29} parent=0 // pred_region
    _
  $region9: #{_lambda_.29} parent=0 // pred_fallthru
    _
  // Predicated region
  $region10: #{_lambda_.29} parent=0 // pred_check
    _
  $region11: #{_lambda_.29} parent=0 // pred_check_branch
    %14 = sbr.rel (0) target = $region13
  $region12: #{_lambda_.29} parent=0 // pred_region
    _
  $region13: #{_lambda_.29} parent=0 // pred_fallthru
    _
  // Predicated region
  $region14: #{_lambda_.29} parent=0 // pred_check
    _
  $region15: #{_lambda_.29} parent=0 // pred_check_branch
    %16 = sbr.rel (0) target = $region17
  $region16: #{_lambda_.29} parent=0 // pred_region
    _
  $region17: #{_lambda_.29} parent=0 // pred_fallthru
    _
  %p18 = scmp.eq.s32.totalorder 0, 0
  // Predicated region
  $region18: #{_lambda_.29} parent=0 // pred_check
    %p19 = pneg %p18
  $region19: #{_lambda_.29} parent=0 // pred_check_branch
    %21 = sbr.rel (%p19) target = $region21
  $region20: #{_lambda_.29} parent=0 // pred_region
    %22 = vst [vmem:[#allocation2] sm:$0xff] 0.0
    %23 = vst [vmem:[#allocation2 + $0x8] sm:$0xff] 0.0
    %24 = vst [vmem:[#allocation2 + $0x10] sm:$0xff] 0.0
    %25 = vst [vmem:[#allocation2 + $0x18] sm:$0xff] 0.0
  $region21: #{_lambda_.29} parent=0 // pred_fallthru
    _
  %v26 = vld [vmem:[#allocation2] sm:$0xff]
  %v27 = vld [vmem:[#allocation2 + $0x8] sm:$0xff]
  %v28 = vld [vmem:[#allocation2 + $0x10] sm:$0xff]
  %v29 = vld [vmem:[#allocation2 + $0x18] sm:$0xff]
  %v30 = vld [vmem:[%s0] sm:$0xff]
  %v31 = vld [vmem:[%s0 + $0x8] sm:$0xff]
  %v32 = vld [vmem:[%s0 + $0x10] sm:$0xff]
  %v33 = vld [vmem:[%s0 + $0x18] sm:$0xff]
  %v34 = vld [vmem:[%s1] sm:$0xf]
  %v35 = vld [vmem:[%s1 + $0x4] sm:$0xf]
  %v36 = vld [vmem:[%s1 + $0x8] sm:$0xf]
  %v37 = vld [vmem:[%s1 + $0xc] sm:$0xf]
  %v38 = vld [vmem:[%s1 + $0x10] sm:$0xf]
  %v39 = vld [vmem:[%s1 + $0x14] sm:$0xf]
  %v40 = vld [vmem:[%s1 + $0x18] sm:$0xf]
  %v41 = vld [vmem:[%s1 + $0x1c] sm:$0xf]
  %v42 = vld [vmem:[%s1 + $0x20] sm:$0xf]
  %v43 = vld [vmem:[%s1 + $0x24] sm:$0xf]
  %v44 = vld [vmem:[%s1 + $0x28] sm:$0xf]
  %v45 = vld [vmem:[%s1 + $0x2c] sm:$0xf]
  %v46 = vld [vmem:[%s1 + $0x30] sm:$0xf]
  %v47 = vld [vmem:[%s1 + $0x34] sm:$0xf]
  %v48 = vld [vmem:[%s1 + $0x38] sm:$0xf]
  %v49 = vld [vmem:[%s1 + $0x3c] sm:$0xf]
  %v50 = vld [vmem:[%s1 + $0x40] sm:$0xf]
  %v51 = vld [vmem:[%s1 + $0x44] sm:$0xf]
  %v56 = vunpack.c.l.b16 %v30
  %v57 = vunpack.c.h.b16 %v30
  %v58 = vunpack.c.l.b16 %v31
  %v59 = vunpack.c.h.b16 %v31
  %v60 = vunpack.c.l.b16 %v32
  %v61 = vunpack.c.h.b16 %v32
  %v62 = vunpack.c.l.b16 %v33
  %v63 = vunpack.c.h.b16 %v33
  %v64 = vpack.c.b16 %v58, %v56
  %v65 = vpack.c.b16 %v59, %v57
  %v66 = vpack.c.b16 %v62, %v60
  %v67 = vpack.c.b16 %v63, %v61
  %v88 = vunpack.c.l.b16 %v34
  %v89 = vunpack.c.l.b16 %v35
  %v90 = vunpack.c.l.b16 %v36
  %v91 = vunpack.c.l.b16 %v37
  %v92 = vunpack.c.l.b16 %v38
  %v93 = vunpack.c.l.b16 %v39
  %v94 = vunpack.c.l.b16 %v40
  %v95 = vunpack.c.l.b16 %v41
  %v96 = vunpack.c.l.b16 %v42
  %v97 = vunpack.c.l.b16 %v43
  %v98 = vunpack.c.l.b16 %v44
  %v99 = vunpack.c.l.b16 %v45
  %v100 = vunpack.c.l.b16 %v46
  %v101 = vunpack.c.l.b16 %v47
  %v102 = vunpack.c.l.b16 %v48
  %v103 = vunpack.c.l.b16 %v49
  %v104 = vunpack.c.l.b16 %v50
  %v105 = vunpack.c.l.b16 %v51
  %v106 = vpack.c.b16 %v89, %v88
  %v107 = vpack.c.b16 %v91, %v90
  %v108 = vpack.c.b16 %v93, %v92
  %v109 = vpack.c.b16 %v95, %v94
  %v110 = vpack.c.b16 %v97, %v96
  %v111 = vpack.c.b16 %v99, %v98
  %v112 = vpack.c.b16 %v101, %v100
  %v113 = vpack.c.b16 %v103, %v102
  %v114 = vpack.c.b16 %v105, %v104
  %vm124 = vcmask 130048
  %v126 = vsel %vm124, %v65, 0
  %v129 = vsel %vm124, %v67, 0
  %131 = vmatprep.subr.bf16.mxu0 0
  %132 = vmatpush1.bf16.msra.mxu0 %v106
  %133 = vmatprep.subr.bf16.mxu0 0
  %134 = vmatpush1.bf16.msra.mxu0 %v107
  %135 = vmatprep.subr.bf16.mxu0 0
  %136 = vmatpush1.bf16.msra.mxu0 %v108
  %137 = vmatprep.subr.bf16.mxu0 0
  %138 = vmatpush1.bf16.msra.mxu0 %v109
  %139 = vmatprep.subr.bf16.mxu0 0
  %140 = vmatpush1.bf16.msra.mxu0 %v110
  %141 = vmatprep.subr.bf16.mxu0 0
  %142 = vmatpush1.bf16.msra.mxu0 %v111
  %143 = vmatprep.subr.bf16.mxu0 0
  %144 = vmatpush1.bf16.msra.mxu0 %v112
  %145 = vmatprep.subr.bf16.mxu0 0
  %146 = vmatpush1.bf16.msra.mxu0 %v113
  %147 = vmatprep.subr.bf16.mxu0 0
  %148 = vmatpush1.bf16.msra.mxu0 %v114
  %149 = vmatprep.subr.bf16.mxu0 0
  %150 = vmatpush1.bf16.msra.mxu0 0
  %151 = vmatprep.subr.bf16.mxu0 0
  %152 = vmatpush1.bf16.msra.mxu0 0
  %153 = vmatprep.subr.bf16.mxu0 0
  %154 = vmatpush1.bf16.msra.mxu0 0
  %155 = vmatprep.subr.bf16.mxu0 0
  %156 = vmatpush1.bf16.msra.mxu0 0
  %157 = vmatprep.subr.bf16.mxu0 0
  %158 = vmatpush1.bf16.msra.mxu0 0
  %159 = vmatprep.subr.bf16.mxu0 0
  %160 = vmatpush1.bf16.msra.mxu0 0
  %161 = vmatprep.subr.bf16.mxu0 0
  %162 = vmatpush1.bf16.msra.mxu0 0
  %163 = vmatprep.mubr.bf16.mxu0 %v126
  %164 = vmatmul.mubr.bf16.gmra.mrb[0].mxu0 %v64
  %v165 = vpop.f32.mrb[0].mxu0
  %v166 = vadd.f32 0.0, %v165
  %v167 = vpop.f32.mrb[0].mxu0
  %v168 = vpop.f32.mrb[0].mxu0
  %v169 = vadd.f32 0.0, %v168
  %v170 = vpop.f32.mrb[0].mxu0
  %171 = vmatprep.mubr.bf16.mxu0 %v129
  %172 = vmatmul.mubr.bf16.gmra.mrb[0].mxu0 %v66
  %v173 = vpop.f32.mrb[0].mxu0
  %v174 = vadd.f32 0.0, %v173
  %v175 = vpop.f32.mrb[0].mxu0
  %v176 = vpop.f32.mrb[0].mxu0
  %v177 = vadd.f32 0.0, %v176
  %v178 = vpop.f32.mrb[0].mxu0
  %179 = vdwg.mxu0
  %v180 = vadd.f32 %v26, %v166
  %v181 = vadd.f32 %v27, %v169
  %v182 = vadd.f32 %v28, %v174
  %v183 = vadd.f32 %v29, %v177
  %184 = vst [vmem:[#allocation2] sm:$0xff] %v180
  %185 = vst [vmem:[#allocation2 + $0x8] sm:$0xff] %v181
  %186 = vst [vmem:[#allocation2 + $0x10] sm:$0xff] %v182
  %187 = vst [vmem:[#allocation2 + $0x18] sm:$0xff] %v183
  // Predicated region
  $region22: #{_lambda_.29} parent=0 // pred_check
    %p188 = pneg %p18
  $region23: #{_lambda_.29} parent=0 // pred_check_branch
    %190 = sbr.rel (%p188) target = $region25
  $region24: #{_lambda_.29} parent=0 // pred_region
    %v191 = vld [vmem:[#allocation2] sm:$0xff]
    %v192 = vld [vmem:[#allocation2 + $0x8] sm:$0xff]
    %v193 = vld [vmem:[#allocation2 + $0x10] sm:$0xff]
    %v194 = vld [vmem:[#allocation2 + $0x18] sm:$0xff]
    %v195 = vld [vmem:[%s2] sm:$0x1]
    %v197 = vlaneseq
    %v198 = vshrl.u32 %v197, 7
    %v199 = vsub.s32 0, %v198
    %v200 = vrot.slane %v195, %v199
    %v202 = vmul.f32 %v191, %v200
    %v203 = vmul.f32 %v192, %v200
    %v204 = vmul.f32 %v193, %v200
    %v205 = vmul.f32 %v194, %v200
    %v206 = vld [vmem:[%s3] sm:$0x1]
    %v208 = vlaneseq
    %v209 = vshrl.u32 %v208, 7
    %v210 = vsub.s32 0, %v209
    %v211 = vrot.slane %v206, %v210
    %v213 = vadd.f32 %v202, %v211
    %v214 = vadd.f32 %v203, %v211
    %v215 = vadd.f32 %v204, %v211
    %v216 = vadd.f32 %v205, %v211
    %v217 = vmax.f32 %v213, 0.0
    %v218 = vmax.f32 %v214, 0.0
    %v219 = vmax.f32 %v215, 0.0
    %v220 = vmax.f32 %v216, 0.0
    %v221 = vpack.c.bf16 %v218, %v217
    %v222 = vpack.c.bf16 %v220, %v219
    %v225 = vunpack.c.l.b16 %v221
    %v226 = vunpack.c.h.b16 %v221
    %v227 = vunpack.c.l.b16 %v222
    %v228 = vunpack.c.h.b16 %v222
    %v229 = vpack.c.b16 %v225, %v225
    %v230 = vpack.c.b16 %v226, %v226
    %v231 = vpack.c.b16 %v227, %v227
    %v232 = vpack.c.b16 %v228, %v228
    %237 = vst [vmem:[%s4] sm:$0xf] %v229
    %238 = vst [vmem:[%s4 + $0x4] sm:$0xf] %v230
    %239 = vst [vmem:[%s4 + $0x8] sm:$0xf] %v231
    %240 = vst [vmem:[%s4 + $0xc] sm:$0xf] %v232
  $region25: #{_lambda_.29} parent=0 // pred_fallthru
    _
  // Predicated region
  $region26: #{_lambda_.29} parent=0 // pred_check
    _
  $region27: #{_lambda_.29} parent=0 // pred_check_branch
    %242 = sbr.rel (0) target = $region29
  $region28: #{_lambda_.29} parent=0 // pred_region
    _
  $region29: #{_lambda_.29} parent=0 // pred_fallthru
    _
  // Predicated region
  $region30: #{_lambda_.29} parent=0 // pred_check
    _
  $region31: #{_lambda_.29} parent=0 // pred_check_branch
    %244 = sbr.rel (0) target = $region33
  $region32: #{_lambda_.29} parent=0 // pred_region
    _
  $region33: #{_lambda_.29} parent=0 // pred_fallthru
    _

// kernel: _lambda_.28
$region0: #{_lambda_.28}
  #allocation0 [shape = 'u32[]', space=smem, size = 0x4, offset = 0x4, fixed_abs, tag = 'smem constant byte address 0x4 - core index']
  #allocation1 [shape = 'u32[144,128]{1,0:T(1,128)}', space=vmem, size = 0x12000, scoped, tag = 'internal scratch']
  #allocation2 [shape = 'f32[32,128]{1,0:T(8,128)}', space=vmem, size = 0x4000, scoped, tag = 'scratch operand']
  %s0 = inlined_call_operand.vmem [shape: bf16[32,16], index: 0, kind: input, shape index: {}]
  %s1 = inlined_call_operand.vmem [shape: bf16[16,128], index: 1, kind: input, shape index: {}]
  %s2 = inlined_call_operand.vmem [shape: f32[1,128], index: 2, kind: input, shape index: {}]
  %s3 = inlined_call_operand.vmem [shape: f32[1,128], index: 3, kind: input, shape index: {}]
  %s4 = inlined_call_operand.vmem [shape: bf16[32,128], index: 4, kind: output, shape index: {}]
  %s5 = sld [smem:[#allocation0]]
  $region34: #{_lambda_.28} parent=0
    _
  %s7 = ssub.s32 1, %s5
  %s8 = scalar_select 0, %s7, %s5
  // Predicated region
  $region2: #{_lambda_.28} parent=0 // pred_check
    _
  $region3: #{_lambda_.28} parent=0 // pred_check_branch
    %10 = sbr.rel (0) target = $region5
  $region4: #{_lambda_.28} parent=0 // pred_region
    _
  $region5: #{_lambda_.28} parent=0 // pred_fallthru
    _
  // Predicated region
  $region6: #{_lambda_.28} parent=0 // pred_check
    _
  $region7: #{_lambda_.28} parent=0 // pred_check_branch
    %12 = sbr.rel (0) target = $region9
  $region8: #{_lambda_.28} parent=0 // pred_region
    _
  $region9: #{_lambda_.28} parent=0 // pred_fallthru
    _
  // Predicated region
  $region10: #{_lambda_.28} parent=0 // pred_check
    _
  $region11: #{_lambda_.28} parent=0 // pred_check_branch
    %14 = sbr.rel (0) target = $region13
  $region12: #{_lambda_.28} parent=0 // pred_region
    _
  $region13: #{_lambda_.28} parent=0 // pred_fallthru
    _
  // Predicated region
  $region14: #{_lambda_.28} parent=0 // pred_check
    _
  $region15: #{_lambda_.28} parent=0 // pred_check_branch
    %16 = sbr.rel (0) target = $region17
  $region16: #{_lambda_.28} parent=0 // pred_region
    _
  $region17: #{_lambda_.28} parent=0 // pred_fallthru
    _
  %p18 = scmp.eq.s32.totalorder 0, 0
  // Predicated region
  $region18: #{_lambda_.28} parent=0 // pred_check
    %p19 = pneg %p18
  $region19: #{_lambda_.28} parent=0 // pred_check_branch
    %21 = sbr.rel (%p19) target = $region21
  $region20: #{_lambda_.28} parent=0 // pred_region
    %22 = vst [vmem:[#allocation2] sm:$0xff] 0.0
    %23 = vst [vmem:[#allocation2 + $0x8] sm:$0xff] 0.0
    %24 = vst [vmem:[#allocation2 + $0x10] sm:$0xff] 0.0
    %25 = vst [vmem:[#allocation2 + $0x18] sm:$0xff] 0.0
  $region21: #{_lambda_.28} parent=0 // pred_fallthru
    _
  %v26 = vld [vmem:[#allocation2] sm:$0xff]
  %v27 = vld [vmem:[#allocation2 + $0x8] sm:$0xff]
  %v28 = vld [vmem:[#allocation2 + $0x10] sm:$0xff]
  %v29 = vld [vmem:[#allocation2 + $0x18] sm:$0xff]
  %v30 = vld [vmem:[%s0] sm:$0xf]
  %v31 = vld [vmem:[%s0 + $0x4] sm:$0xf]
  %v32 = vld [vmem:[%s0 + $0x8] sm:$0xf]
  %v33 = vld [vmem:[%s0 + $0xc] sm:$0xf]
  %v34 = vld [vmem:[%s1] sm:$0xf]
  %v35 = vld [vmem:[%s1 + $0x4] sm:$0xf]
  %v40 = vunpack.c.l.b16 %v30
  %v41 = vunpack.c.l.b16 %v31
  %v42 = vunpack.c.l.b16 %v32
  %v43 = vunpack.c.l.b16 %v33
  %v44 = vpack.c.b16 %v41, %v40
  %v45 = vpack.c.b16 %v43, %v42
  %v48 = vunpack.c.l.b16 %v34
  %v49 = vunpack.c.l.b16 %v35
  %v50 = vpack.c.b16 %v49, %v48
  %vm52 = vcmask 130048
  %v54 = vsel %vm52, %v44, 0
  %v57 = vsel %vm52, %v45, 0
  %59 = vmatprep.subr.bf16.mxu0 0
  %60 = vmatpush1.bf16.msra.mxu0 %v50
  %61 = vmatprep.subr.bf16.mxu0 0
  %62 = vmatpush1.bf16.msra.mxu0 0
  %63 = vmatprep.subr.bf16.mxu0 0
  %64 = vmatpush1.bf16.msra.mxu0 0
  %65 = vmatprep.subr.bf16.mxu0 0
  %66 = vmatpush1.bf16.msra.mxu0 0
  %67 = vmatprep.subr.bf16.mxu0 0
  %68 = vmatpush1.bf16.msra.mxu0 0
  %69 = vmatprep.subr.bf16.mxu0 0
  %70 = vmatpush1.bf16.msra.mxu0 0
  %71 = vmatprep.subr.bf16.mxu0 0
  %72 = vmatpush1.bf16.msra.mxu0 0
  %73 = vmatprep.subr.bf16.mxu0 0
  %74 = vmatpush1.bf16.msra.mxu0 0
  %75 = vmatprep.subr.bf16.mxu0 0
  %76 = vmatpush1.bf16.msra.mxu0 0
  %77 = vmatprep.subr.bf16.mxu0 0
  %78 = vmatpush1.bf16.msra.mxu0 0
  %79 = vmatprep.subr.bf16.mxu0 0
  %80 = vmatpush1.bf16.msra.mxu0 0
  %81 = vmatprep.subr.bf16.mxu0 0
  %82 = vmatpush1.bf16.msra.mxu0 0
  %83 = vmatprep.subr.bf16.mxu0 0
  %84 = vmatpush1.bf16.msra.mxu0 0
  %85 = vmatprep.subr.bf16.mxu0 0
  %86 = vmatpush1.bf16.msra.mxu0 0
  %87 = vmatprep.subr.bf16.mxu0 0
  %88 = vmatpush1.bf16.msra.mxu0 0
  %89 = vmatprep.subr.bf16.mxu0 0
  %90 = vmatpush1.bf16.msra.mxu0 0
  %91 = vmatprep.mubr.bf16.mxu0 0
  %92 = vmatmul.mubr.bf16.gmra.mrb[0].mxu0 %v54
  %v93 = vpop.f32.mrb[0].mxu0
  %v94 = vadd.f32 0.0, %v93
  %v95 = vpop.f32.mrb[0].mxu0
  %v96 = vpop.f32.mrb[0].mxu0
  %v97 = vadd.f32 0.0, %v96
  %v98 = vpop.f32.mrb[0].mxu0
  %99 = vmatprep.mubr.bf16.mxu0 0
  %100 = vmatmul.mubr.bf16.gmra.mrb[0].mxu0 %v57
  %v101 = vpop.f32.mrb[0].mxu0
  %v102 = vadd.f32 0.0, %v101
  %v103 = vpop.f32.mrb[0].mxu0
  %v104 = vpop.f32.mrb[0].mxu0
  %v105 = vadd.f32 0.0, %v104
  %v106 = vpop.f32.mrb[0].mxu0
  %107 = vdwg.mxu0
  %v108 = vadd.f32 %v26, %v94
  %v109 = vadd.f32 %v27, %v97
  %v110 = vadd.f32 %v28, %v102
  %v111 = vadd.f32 %v29, %v105
  %112 = vst [vmem:[#allocation2] sm:$0xff] %v108
  %113 = vst [vmem:[#allocation2 + $0x8] sm:$0xff] %v109
  %114 = vst [vmem:[#allocation2 + $0x10] sm:$0xff] %v110
  %115 = vst [vmem:[#allocation2 + $0x18] sm:$0xff] %v111
  // Predicated region
  $region22: #{_lambda_.28} parent=0 // pred_check
    %p116 = pneg %p18
  $region23: #{_lambda_.28} parent=0 // pred_check_branch
    %118 = sbr.rel (%p116) target = $region25
  $region24: #{_lambda_.28} parent=0 // pred_region
    %v119 = vld [vmem:[#allocation2] sm:$0xff]
    %v120 = vld [vmem:[#allocation2 + $0x8] sm:$0xff]
    %v121 = vld [vmem:[#allocation2 + $0x10] sm:$0xff]
    %v122 = vld [vmem:[#allocation2 + $0x18] sm:$0xff]
    %v123 = vld [vmem:[%s2] sm:$0x1]
    %v125 = vlaneseq
    %v126 = vshrl.u32 %v125, 7
    %v127 = vsub.s32 0, %v126
    %v128 = vrot.slane %v123, %v127
    %v130 = vmul.f32 %v119, %v128
    %v131 = vmul.f32 %v120, %v128
    %v132 = vmul.f32 %v121, %v128
    %v133 = vmul.f32 %v122, %v128
    %v134 = vld [vmem:[%s3] sm:$0x1]
    %v136 = vlaneseq
    %v137 = vshrl.u32 %v136, 7
    %v138 = vsub.s32 0, %v137
    %v139 = vrot.slane %v134, %v138
    %v141 = vadd.f32 %v130, %v139
    %v142 = vadd.f32 %v131, %v139
    %v143 = vadd.f32 %v132, %v139
    %v144 = vadd.f32 %v133, %v139
    %v145 = vpack.c.bf16 %v142, %v141
    %v146 = vpack.c.bf16 %v144, %v143
    %v149 = vunpack.c.l.b16 %v145
    %v150 = vunpack.c.h.b16 %v145
    %v151 = vunpack.c.l.b16 %v146
    %v152 = vunpack.c.h.b16 %v146
    %v153 = vpack.c.b16 %v149, %v149
    %v154 = vpack.c.b16 %v150, %v150
    %v155 = vpack.c.b16 %v151, %v151
    %v156 = vpack.c.b16 %v152, %v152
    %161 = vst [vmem:[%s4] sm:$0xf] %v153
    %162 = vst [vmem:[%s4 + $0x4] sm:$0xf] %v154
    %163 = vst [vmem:[%s4 + $0x8] sm:$0xf] %v155
    %164 = vst [vmem:[%s4 + $0xc] sm:$0xf] %v156
  $region25: #{_lambda_.28} parent=0 // pred_fallthru
    _
  // Predicated region
  $region26: #{_lambda_.28} parent=0 // pred_check
    _
  $region27: #{_lambda_.28} parent=0 // pred_check_branch
    %166 = sbr.rel (0) target = $region29
  $region28: #{_lambda_.28} parent=0 // pred_region
    _
  $region29: #{_lambda_.28} parent=0 // pred_fallthru
    _
  // Predicated region
  $region30: #{_lambda_.28} parent=0 // pred_check
    _
  $region31: #{_lambda_.28} parent=0 // pred_check_branch
    %168 = sbr.rel (0) target = $region33
  $region32: #{_lambda_.28} parent=0 // pred_region
    _
  $region33: #{_lambda_.28} parent=0 // pred_fallthru
    _

// kernel: _lambda_.31
$region0: #{_lambda_.31}
  #allocation0 [shape = 'u32[]', space=smem, size = 0x4, offset = 0x4, fixed_abs, tag = 'smem constant byte address 0x4 - core index']
  #allocation1 [shape = 'u32[144,128]{1,0:T(1,128)}', space=vmem, size = 0x12000, scoped, tag = 'internal scratch']
  #allocation2 [shape = 'f32[32,128]{1,0:T(8,128)}', space=vmem, size = 0x4000, scoped, tag = 'scratch operand']
  %s0 = inlined_call_operand.vmem [shape: bf16[32,288], index: 0, kind: input, shape index: {}]
  %s1 = inlined_call_operand.vmem [shape: bf16[288,128], index: 1, kind: input, shape index: {}]
  %s2 = inlined_call_operand.vmem [shape: f32[1,128], index: 2, kind: input, shape index: {}]
  %s3 = inlined_call_operand.vmem [shape: f32[1,128], index: 3, kind: input, shape index: {}]
  %s4 = inlined_call_operand.vmem [shape: bf16[32,128], index: 4, kind: output, shape index: {}]
  %s5 = sld [smem:[#allocation0]]
  $region34: #{_lambda_.31} parent=0
    _
  %s7 = ssub.s32 1, %s5
  %s8 = scalar_select 0, %s7, %s5
  // Predicated region
  $region2: #{_lambda_.31} parent=0 // pred_check
    _
  $region3: #{_lambda_.31} parent=0 // pred_check_branch
    %10 = sbr.rel (0) target = $region5
  $region4: #{_lambda_.31} parent=0 // pred_region
    _
  $region5: #{_lambda_.31} parent=0 // pred_fallthru
    _
  // Predicated region
  $region6: #{_lambda_.31} parent=0 // pred_check
    _
  $region7: #{_lambda_.31} parent=0 // pred_check_branch
    %12 = sbr.rel (0) target = $region9
  $region8: #{_lambda_.31} parent=0 // pred_region
    _
  $region9: #{_lambda_.31} parent=0 // pred_fallthru
    _
  // Predicated region
  $region10: #{_lambda_.31} parent=0 // pred_check
    _
  $region11: #{_lambda_.31} parent=0 // pred_check_branch
    %14 = sbr.rel (0) target = $region13
  $region12: #{_lambda_.31} parent=0 // pred_region
    _
  $region13: #{_lambda_.31} parent=0 // pred_fallthru
    _
  // Predicated region
  $region14: #{_lambda_.31} parent=0 // pred_check
    _
  $region15: #{_lambda_.31} parent=0 // pred_check_branch
    %16 = sbr.rel (0) target = $region17
  $region16: #{_lambda_.31} parent=0 // pred_region
    _
  $region17: #{_lambda_.31} parent=0 // pred_fallthru
    _
  %p18 = scmp.eq.s32.totalorder 0, 0
  // Predicated region
  $region18: #{_lambda_.31} parent=0 // pred_check
    %p19 = pneg %p18
  $region19: #{_lambda_.31} parent=0 // pred_check_branch
    %21 = sbr.rel (%p19) target = $region21
  $region20: #{_lambda_.31} parent=0 // pred_region
    %22 = vst [vmem:[#allocation2] sm:$0xff] 0.0
    %23 = vst [vmem:[#allocation2 + $0x8] sm:$0xff] 0.0
    %24 = vst [vmem:[#allocation2 + $0x10] sm:$0xff] 0.0
    %25 = vst [vmem:[#allocation2 + $0x18] sm:$0xff] 0.0
  $region21: #{_lambda_.31} parent=0 // pred_fallthru
    _
  %v26 = vld [vmem:[#allocation2] sm:$0xff]
  %v27 = vld [vmem:[#allocation2 + $0x8] sm:$0xff]
  %v28 = vld [vmem:[#allocation2 + $0x10] sm:$0xff]
  %v29 = vld [vmem:[#allocation2 + $0x18] sm:$0xff]
  %v30 = vld [vmem:[%s0] sm:$0xff]
  %v31 = vld [vmem:[%s0 + $0x8] sm:$0xf]
  %v32 = vld [vmem:[%s0 + $0xc] sm:$0xff]
  %v33 = vld [vmem:[%s0 + $0x14] sm:$0xf]
  %v34 = vld [vmem:[%s0 + $0x18] sm:$0xff]
  %v35 = vld [vmem:[%s0 + $0x20] sm:$0xf]
  %v36 = vld [vmem:[%s0 + $0x24] sm:$0xff]
  %v37 = vld [vmem:[%s0 + $0x2c] sm:$0xf]
  %v38 = vld [vmem:[%s1] sm:$0xf]
  %v39 = vld [vmem:[%s1 + $0x4] sm:$0xf]
  %v40 = vld [vmem:[%s1 + $0x8] sm:$0xf]
  %v41 = vld [vmem:[%s1 + $0xc] sm:$0xf]
  %v42 = vld [vmem:[%s1 + $0x10] sm:$0xf]
  %v43 = vld [vmem:[%s1 + $0x14] sm:$0xf]
  %v44 = vld [vmem:[%s1 + $0x18] sm:$0xf]
  %v45 = vld [vmem:[%s1 + $0x1c] sm:$0xf]
  %v46 = vld [vmem:[%s1 + $0x20] sm:$0xf]
  %v47 = vld [vmem:[%s1 + $0x24] sm:$0xf]
  %v48 = vld [vmem:[%s1 + $0x28] sm:$0xf]
  %v49 = vld [vmem:[%s1 + $0x2c] sm:$0xf]
  %v50 = vld [vmem:[%s1 + $0x30] sm:$0xf]
  %v51 = vld [vmem:[%s1 + $0x34] sm:$0xf]
  %v52 = vld [vmem:[%s1 + $0x38] sm:$0xf]
  %v53 = vld [vmem:[%s1 + $0x3c] sm:$0xf]
  %v54 = vld [vmem:[%s1 + $0x40] sm:$0xf]
  %v55 = vld [vmem:[%s1 + $0x44] sm:$0xf]
  %v56 = vld [vmem:[%s1 + $0x48] sm:$0xf]
  %v57 = vld [vmem:[%s1 + $0x4c] sm:$0xf]
  %v58 = vld [vmem:[%s1 + $0x50] sm:$0xf]
  %v59 = vld [vmem:[%s1 + $0x54] sm:$0xf]
  %v60 = vld [vmem:[%s1 + $0x58] sm:$0xf]
  %v61 = vld [vmem:[%s1 + $0x5c] sm:$0xf]
  %v62 = vld [vmem:[%s1 + $0x60] sm:$0xf]
  %v63 = vld [vmem:[%s1 + $0x64] sm:$0xf]
  %v64 = vld [vmem:[%s1 + $0x68] sm:$0xf]
  %v65 = vld [vmem:[%s1 + $0x6c] sm:$0xf]
  %v66 = vld [vmem:[%s1 + $0x70] sm:$0xf]
  %v67 = vld [vmem:[%s1 + $0x74] sm:$0xf]
  %v68 = vld [vmem:[%s1 + $0x78] sm:$0xf]
  %v69 = vld [vmem:[%s1 + $0x7c] sm:$0xf]
  %v70 = vld [vmem:[%s1 + $0x80] sm:$0xf]
  %v71 = vld [vmem:[%s1 + $0x84] sm:$0xf]
  %v72 = vld [vmem:[%s1 + $0x88] sm:$0xf]
  %v73 = vld [vmem:[%s1 + $0x8c] sm:$0xf]
  %v82 = vunpack.c.l.b16 %v30
  %v83 = vunpack.c.h.b16 %v30
  %v84 = vunpack.c.l.b16 %v31
  %v85 = vunpack.c.l.b16 %v32
  %v86 = vunpack.c.h.b16 %v32
  %v87 = vunpack.c.l.b16 %v33
  %v88 = vunpack.c.l.b16 %v34
  %v89 = vunpack.c.h.b16 %v34
  %v90 = vunpack.c.l.b16 %v35
  %v91 = vunpack.c.l.b16 %v36
  %v92 = vunpack.c.h.b16 %v36
  %v93 = vunpack.c.l.b16 %v37
  %v94 = vpack.c.b16 %v85, %v82
  %v95 = vpack.c.b16 %v86, %v83
  %v96 = vpack.c.b16 %v87, %v84
  %v97 = vpack.c.b16 %v91, %v88
  %v98 = vpack.c.b16 %v92, %v89
  %v99 = vpack.c.b16 %v93, %v90
  %v140 = vunpack.c.l.b16 %v38
  %v141 = vunpack.c.l.b16 %v39
  %v142 = vunpack.c.l.b16 %v40
  %v143 = vunpack.c.l.b16 %v41
  %v144 = vunpack.c.l.b16 %v42
  %v145 = vunpack.c.l.b16 %v43
  %v146 = vunpack.c.l.b16 %v44
  %v147 = vunpack.c.l.b16 %v45
  %v148 = vunpack.c.l.b16 %v46
  %v149 = vunpack.c.l.b16 %v47
  %v150 = vunpack.c.l.b16 %v48
  %v151 = vunpack.c.l.b16 %v49
  %v152 = vunpack.c.l.b16 %v50
  %v153 = vunpack.c.l.b16 %v51
  %v154 = vunpack.c.l.b16 %v52
  %v155 = vunpack.c.l.b16 %v53
  %v156 = vunpack.c.l.b16 %v54
  %v157 = vunpack.c.l.b16 %v55
  %v158 = vunpack.c.l.b16 %v56
  %v159 = vunpack.c.l.b16 %v57
  %v160 = vunpack.c.l.b16 %v58
  %v161 = vunpack.c.l.b16 %v59
  %v162 = vunpack.c.l.b16 %v60
  %v163 = vunpack.c.l.b16 %v61
  %v164 = vunpack.c.l.b16 %v62
  %v165 = vunpack.c.l.b16 %v63
  %v166 = vunpack.c.l.b16 %v64
  %v167 = vunpack.c.l.b16 %v65
  %v168 = vunpack.c.l.b16 %v66
  %v169 = vunpack.c.l.b16 %v67
  %v170 = vunpack.c.l.b16 %v68
  %v171 = vunpack.c.l.b16 %v69
  %v172 = vunpack.c.l.b16 %v70
  %v173 = vunpack.c.l.b16 %v71
  %v174 = vunpack.c.l.b16 %v72
  %v175 = vunpack.c.l.b16 %v73
  %v176 = vpack.c.b16 %v141, %v140
  %v177 = vpack.c.b16 %v143, %v142
  %v178 = vpack.c.b16 %v145, %v144
  %v179 = vpack.c.b16 %v147, %v146
  %v180 = vpack.c.b16 %v149, %v148
  %v181 = vpack.c.b16 %v151, %v150
  %v182 = vpack.c.b16 %v153, %v152
  %v183 = vpack.c.b16 %v155, %v154
  %v184 = vpack.c.b16 %v157, %v156
  %v185 = vpack.c.b16 %v159, %v158
  %v186 = vpack.c.b16 %v161, %v160
  %v187 = vpack.c.b16 %v163, %v162
  %v188 = vpack.c.b16 %v165, %v164
  %v189 = vpack.c.b16 %v167, %v166
  %v190 = vpack.c.b16 %v169, %v168
  %v191 = vpack.c.b16 %v171, %v170
  %v192 = vpack.c.b16 %v173, %v172
  %v193 = vpack.c.b16 %v175, %v174
  %vm212 = vcmask 261120
  %v214 = vsel %vm212, %v96, 0
  %v217 = vsel %vm212, %v99, 0
  %219 = vmatprep.subr.bf16.mxu0 0
  %220 = vmatpush1.bf16.msra.mxu0 %v176
  %221 = vmatprep.subr.bf16.mxu0 0
  %222 = vmatpush1.bf16.msra.mxu0 %v177
  %223 = vmatprep.subr.bf16.mxu0 0
  %224 = vmatpush1.bf16.msra.mxu0 %v178
  %225 = vmatprep.subr.bf16.mxu0 0
  %226 = vmatpush1.bf16.msra.mxu0 %v179
  %227 = vmatprep.subr.bf16.mxu0 0
  %228 = vmatpush1.bf16.msra.mxu0 %v180
  %229 = vmatprep.subr.bf16.mxu0 0
  %230 = vmatpush1.bf16.msra.mxu0 %v181
  %231 = vmatprep.subr.bf16.mxu0 0
  %232 = vmatpush1.bf16.msra.mxu0 %v182
  %233 = vmatprep.subr.bf16.mxu0 0
  %234 = vmatpush1.bf16.msra.mxu0 %v183
  %235 = vmatprep.subr.bf16.mxu0 0
  %236 = vmatpush1.bf16.msra.mxu0 %v184
  %237 = vmatprep.subr.bf16.mxu0 0
  %238 = vmatpush1.bf16.msra.mxu0 %v185
  %239 = vmatprep.subr.bf16.mxu0 0
  %240 = vmatpush1.bf16.msra.mxu0 %v186
  %241 = vmatprep.subr.bf16.mxu0 0
  %242 = vmatpush1.bf16.msra.mxu0 %v187
  %243 = vmatprep.subr.bf16.mxu0 0
  %244 = vmatpush1.bf16.msra.mxu0 %v188
  %245 = vmatprep.subr.bf16.mxu0 0
  %246 = vmatpush1.bf16.msra.mxu0 %v189
  %247 = vmatprep.subr.bf16.mxu0 0
  %248 = vmatpush1.bf16.msra.mxu0 %v190
  %249 = vmatprep.subr.bf16.mxu0 0
  %250 = vmatpush1.bf16.msra.mxu0 %v191
  %251 = vmatprep.mubr.bf16.mxu0 %v95
  %252 = vmatmul.mubr.bf16.gmra.mrb[0].mxu0 %v94
  %v253 = vpop.f32.mrb[0].mxu0
  %v254 = vadd.f32 0.0, %v253
  %v255 = vpop.f32.mrb[0].mxu0
  %v256 = vpop.f32.mrb[0].mxu0
  %v257 = vadd.f32 0.0, %v256
  %v258 = vpop.f32.mrb[0].mxu0
  %259 = vmatprep.mubr.bf16.mxu0 %v98
  %260 = vmatmul.mubr.bf16.gmra.mrb[0].mxu0 %v97
  %v261 = vpop.f32.mrb[0].mxu0
  %v262 = vadd.f32 0.0, %v261
  %v263 = vpop.f32.mrb[0].mxu0
  %v264 = vpop.f32.mrb[0].mxu0
  %v265 = vadd.f32 0.0, %v264
  %v266 = vpop.f32.mrb[0].mxu0
  %267 = vdwg.mxu0
  %268 = vmatprep.subr.bf16.mxu0 0
  %269 = vmatpush1.bf16.msra.mxu0 %v192
  %270 = vmatprep.subr.bf16.mxu0 0
  %271 = vmatpush1.bf16.msra.mxu0 %v193
  %272 = vmatprep.subr.bf16.mxu0 0
  %273 = vmatpush1.bf16.msra.mxu0 0
  %274 = vmatprep.subr.bf16.mxu0 0
  %275 = vmatpush1.bf16.msra.mxu0 0
  %276 = vmatprep.subr.bf16.mxu0 0
  %277 = vmatpush1.bf16.msra.mxu0 0
  %278 = vmatprep.subr.bf16.mxu0 0
  %279 = vmatpush1.bf16.msra.mxu0 0
  %280 = vmatprep.subr.bf16.mxu0 0
  %281 = vmatpush1.bf16.msra.mxu0 0
  %282 = vmatprep.subr.bf16.mxu0 0
  %283 = vmatpush1.bf16.msra.mxu0 0
  %284 = vmatprep.subr.bf16.mxu0 0
  %285 = vmatpush1.bf16.msra.mxu0 0
  %286 = vmatprep.subr.bf16.mxu0 0
  %287 = vmatpush1.bf16.msra.mxu0 0
  %288 = vmatprep.subr.bf16.mxu0 0
  %289 = vmatpush1.bf16.msra.mxu0 0
  %290 = vmatprep.subr.bf16.mxu0 0
  %291 = vmatpush1.bf16.msra.mxu0 0
  %292 = vmatprep.subr.bf16.mxu0 0
  %293 = vmatpush1.bf16.msra.mxu0 0
  %294 = vmatprep.subr.bf16.mxu0 0
  %295 = vmatpush1.bf16.msra.mxu0 0
  %296 = vmatprep.subr.bf16.mxu0 0
  %297 = vmatpush1.bf16.msra.mxu0 0
  %298 = vmatprep.subr.bf16.mxu0 0
  %299 = vmatpush1.bf16.msra.mxu0 0
  %300 = vmatprep.mubr.bf16.mxu0 0
  %301 = vmatmul.mubr.bf16.gmra.mrb[0].mxu0 %v214
  %v302 = vpop.f32.mrb[0].mxu0
  %v303 = vadd.f32 %v254, %v302
  %v304 = vpop.f32.mrb[0].mxu0
  %v305 = vpop.f32.mrb[0].mxu0
  %v306 = vadd.f32 %v257, %v305
  %v307 = vpop.f32.mrb[0].mxu0
  %308 = vmatprep.mubr.bf16.mxu0 0
  %309 = vmatmul.mubr.bf16.gmra.mrb[0].mxu0 %v217
  %v310 = vpop.f32.mrb[0].mxu0
  %v311 = vadd.f32 %v262, %v310
  %v312 = vpop.f32.mrb[0].mxu0
  %v313 = vpop.f32.mrb[0].mxu0
  %v314 = vadd.f32 %v265, %v313
  %v315 = vpop.f32.mrb[0].mxu0
  %316 = vdwg.mxu0
  %v317 = vadd.f32 %v26, %v303
  %v318 = vadd.f32 %v27, %v306
  %v319 = vadd.f32 %v28, %v311
  %v320 = vadd.f32 %v29, %v314
  %321 = vst [vmem:[#allocation2] sm:$0xff] %v317
  %322 = vst [vmem:[#allocation2 + $0x8] sm:$0xff] %v318
  %323 = vst [vmem:[#allocation2 + $0x10] sm:$0xff] %v319
  %324 = vst [vmem:[#allocation2 + $0x18] sm:$0xff] %v320
  // Predicated region
  $region22: #{_lambda_.31} parent=0 // pred_check
    %p325 = pneg %p18
  $region23: #{_lambda_.31} parent=0 // pred_check_branch
    %327 = sbr.rel (%p325) target = $region25
  $region24: #{_lambda_.31} parent=0 // pred_region
    %v328 = vld [vmem:[#allocation2] sm:$0xff]
    %v329 = vld [vmem:[#allocation2 + $0x8] sm:$0xff]
    %v330 = vld [vmem:[#allocation2 + $0x10] sm:$0xff]
    %v331 = vld [vmem:[#allocation2 + $0x18] sm:$0xff]
    %v332 = vld [vmem:[%s2] sm:$0x1]
    %v334 = vlaneseq
    %v335 = vshrl.u32 %v334, 7
    %v336 = vsub.s32 0, %v335
    %v337 = vrot.slane %v332, %v336
    %v339 = vmul.f32 %v328, %v337
    %v340 = vmul.f32 %v329, %v337
    %v341 = vmul.f32 %v330, %v337
    %v342 = vmul.f32 %v331, %v337
    %v343 = vld [vmem:[%s3] sm:$0x1]
    %v345 = vlaneseq
    %v346 = vshrl.u32 %v345, 7
    %v347 = vsub.s32 0, %v346
    %v348 = vrot.slane %v343, %v347
    %v350 = vadd.f32 %v339, %v348
    %v351 = vadd.f32 %v340, %v348
    %v352 = vadd.f32 %v341, %v348
    %v353 = vadd.f32 %v342, %v348
    %v354 = vmax.f32 %v350, 0.0
    %v355 = vmax.f32 %v351, 0.0
    %v356 = vmax.f32 %v352, 0.0
    %v357 = vmax.f32 %v353, 0.0
    %v358 = vpack.c.bf16 %v355, %v354
    %v359 = vpack.c.bf16 %v357, %v356
    %v362 = vunpack.c.l.b16 %v358
    %v363 = vunpack.c.h.b16 %v358
    %v364 = vunpack.c.l.b16 %v359
    %v365 = vunpack.c.h.b16 %v359
    %v366 = vpack.c.b16 %v362, %v362
    %v367 = vpack.c.b16 %v363, %v363
    %v368 = vpack.c.b16 %v364, %v364
    %v369 = vpack.c.b16 %v365, %v365
    %374 = vst [vmem:[%s4] sm:$0xf] %v366
    %375 = vst [vmem:[%s4 + $0x4] sm:$0xf] %v367
    %376 = vst [vmem:[%s4 + $0x8] sm:$0xf] %v368
    %377 = vst [vmem:[%s4 + $0xc] sm:$0xf] %v369
  $region25: #{_lambda_.31} parent=0 // pred_fallthru
    _
  // Predicated region
  $region26: #{_lambda_.31} parent=0 // pred_check
    _
  $region27: #{_lambda_.31} parent=0 // pred_check_branch
    %379 = sbr.rel (0) target = $region29
  $region28: #{_lambda_.31} parent=0 // pred_region
    _
  $region29: #{_lambda_.31} parent=0 // pred_fallthru
    _
  // Predicated region
  $region30: #{_lambda_.31} parent=0 // pred_check
    _
  $region31: #{_lambda_.31} parent=0 // pred_check_branch
    %381 = sbr.rel (0) target = $region33
  $region32: #{_lambda_.31} parent=0 // pred_region
    _
  $region33: #{_lambda_.31} parent=0 // pred_fallthru
    _

// kernel: _lambda_.30
$region0: #{_lambda_.30}
  #allocation0 [shape = 'u32[]', space=smem, size = 0x4, offset = 0x4, fixed_abs, tag = 'smem constant byte address 0x4 - core index']
  #allocation1 [shape = 'u32[144,128]{1,0:T(1,128)}', space=vmem, size = 0x12000, scoped, tag = 'internal scratch']
  #allocation2 [shape = 'f32[32,128]{1,0:T(8,128)}', space=vmem, size = 0x4000, scoped, tag = 'scratch operand']
  %s0 = inlined_call_operand.vmem [shape: bf16[32,288], index: 0, kind: input, shape index: {}]
  %s1 = inlined_call_operand.vmem [shape: bf16[288,128], index: 1, kind: input, shape index: {}]
  %s2 = inlined_call_operand.vmem [shape: f32[1,128], index: 2, kind: input, shape index: {}]
  %s3 = inlined_call_operand.vmem [shape: f32[1,128], index: 3, kind: input, shape index: {}]
  %s4 = inlined_call_operand.vmem [shape: bf16[32,128], index: 4, kind: input, shape index: {}]
  %s5 = inlined_call_operand.vmem [shape: bf16[32,128], index: 5, kind: output, shape index: {}]
  %s6 = sld [smem:[#allocation0]]
  $region38: #{_lambda_.30} parent=0
    _
  %s8 = ssub.s32 1, %s6
  %s9 = scalar_select 0, %s8, %s6
  // Predicated region
  $region2: #{_lambda_.30} parent=0 // pred_check
    _
  $region3: #{_lambda_.30} parent=0 // pred_check_branch
    %11 = sbr.rel (0) target = $region5
  $region4: #{_lambda_.30} parent=0 // pred_region
    _
  $region5: #{_lambda_.30} parent=0 // pred_fallthru
    _
  // Predicated region
  $region6: #{_lambda_.30} parent=0 // pred_check
    _
  $region7: #{_lambda_.30} parent=0 // pred_check_branch
    %13 = sbr.rel (0) target = $region9
  $region8: #{_lambda_.30} parent=0 // pred_region
    _
  $region9: #{_lambda_.30} parent=0 // pred_fallthru
    _
  // Predicated region
  $region10: #{_lambda_.30} parent=0 // pred_check
    _
  $region11: #{_lambda_.30} parent=0 // pred_check_branch
    %15 = sbr.rel (0) target = $region13
  $region12: #{_lambda_.30} parent=0 // pred_region
    _
  $region13: #{_lambda_.30} parent=0 // pred_fallthru
    _
  // Predicated region
  $region14: #{_lambda_.30} parent=0 // pred_check
    _
  $region15: #{_lambda_.30} parent=0 // pred_check_branch
    %17 = sbr.rel (0) target = $region17
  $region16: #{_lambda_.30} parent=0 // pred_region
    _
  $region17: #{_lambda_.30} parent=0 // pred_fallthru
    _
  // Predicated region
  $region18: #{_lambda_.30} parent=0 // pred_check
    _
  $region19: #{_lambda_.30} parent=0 // pred_check_branch
    %19 = sbr.rel (0) target = $region21
  $region20: #{_lambda_.30} parent=0 // pred_region
    _
  $region21: #{_lambda_.30} parent=0 // pred_fallthru
    _
  %p21 = scmp.eq.s32.totalorder 0, 0
  // Predicated region
  $region22: #{_lambda_.30} parent=0 // pred_check
    %p22 = pneg %p21
  $region23: #{_lambda_.30} parent=0 // pred_check_branch
    %24 = sbr.rel (%p22) target = $region25
  $region24: #{_lambda_.30} parent=0 // pred_region
    %25 = vst [vmem:[#allocation2] sm:$0xff] 0.0
    %26 = vst [vmem:[#allocation2 + $0x8] sm:$0xff] 0.0
    %27 = vst [vmem:[#allocation2 + $0x10] sm:$0xff] 0.0
    %28 = vst [vmem:[#allocation2 + $0x18] sm:$0xff] 0.0
  $region25: #{_lambda_.30} parent=0 // pred_fallthru
    _
  %v29 = vld [vmem:[#allocation2] sm:$0xff]
  %v30 = vld [vmem:[#allocation2 + $0x8] sm:$0xff]
  %v31 = vld [vmem:[#allocation2 + $0x10] sm:$0xff]
  %v32 = vld [vmem:[#allocation2 + $0x18] sm:$0xff]
  %v33 = vld [vmem:[%s0] sm:$0xff]
  %v34 = vld [vmem:[%s0 + $0x8] sm:$0xf]
  %v35 = vld [vmem:[%s0 + $0xc] sm:$0xff]
  %v36 = vld [vmem:[%s0 + $0x14] sm:$0xf]
  %v37 = vld [vmem:[%s0 + $0x18] sm:$0xff]
  %v38 = vld [vmem:[%s0 + $0x20] sm:$0xf]
  %v39 = vld [vmem:[%s0 + $0x24] sm:$0xff]
  %v40 = vld [vmem:[%s0 + $0x2c] sm:$0xf]
  %v41 = vld [vmem:[%s1] sm:$0xf]
  %v42 = vld [vmem:[%s1 + $0x4] sm:$0xf]
  %v43 = vld [vmem:[%s1 + $0x8] sm:$0xf]
  %v44 = vld [vmem:[%s1 + $0xc] sm:$0xf]
  %v45 = vld [vmem:[%s1 + $0x10] sm:$0xf]
  %v46 = vld [vmem:[%s1 + $0x14] sm:$0xf]
  %v47 = vld [vmem:[%s1 + $0x18] sm:$0xf]
  %v48 = vld [vmem:[%s1 + $0x1c] sm:$0xf]
  %v49 = vld [vmem:[%s1 + $0x20] sm:$0xf]
  %v50 = vld [vmem:[%s1 + $0x24] sm:$0xf]
  %v51 = vld [vmem:[%s1 + $0x28] sm:$0xf]
  %v52 = vld [vmem:[%s1 + $0x2c] sm:$0xf]
  %v53 = vld [vmem:[%s1 + $0x30] sm:$0xf]
  %v54 = vld [vmem:[%s1 + $0x34] sm:$0xf]
  %v55 = vld [vmem:[%s1 + $0x38] sm:$0xf]
  %v56 = vld [vmem:[%s1 + $0x3c] sm:$0xf]
  %v57 = vld [vmem:[%s1 + $0x40] sm:$0xf]
  %v58 = vld [vmem:[%s1 + $0x44] sm:$0xf]
  %v59 = vld [vmem:[%s1 + $0x48] sm:$0xf]
  %v60 = vld [vmem:[%s1 + $0x4c] sm:$0xf]
  %v61 = vld [vmem:[%s1 + $0x50] sm:$0xf]
  %v62 = vld [vmem:[%s1 + $0x54] sm:$0xf]
  %v63 = vld [vmem:[%s1 + $0x58] sm:$0xf]
  %v64 = vld [vmem:[%s1 + $0x5c] sm:$0xf]
  %v65 = vld [vmem:[%s1 + $0x60] sm:$0xf]
  %v66 = vld [vmem:[%s1 + $0x64] sm:$0xf]
  %v67 = vld [vmem:[%s1 + $0x68] sm:$0xf]
  %v68 = vld [vmem:[%s1 + $0x6c] sm:$0xf]
  %v69 = vld [vmem:[%s1 + $0x70] sm:$0xf]
  %v70 = vld [vmem:[%s1 + $0x74] sm:$0xf]
  %v71 = vld [vmem:[%s1 + $0x78] sm:$0xf]
  %v72 = vld [vmem:[%s1 + $0x7c] sm:$0xf]
  %v73 = vld [vmem:[%s1 + $0x80] sm:$0xf]
  %v74 = vld [vmem:[%s1 + $0x84] sm:$0xf]
  %v75 = vld [vmem:[%s1 + $0x88] sm:$0xf]
  %v76 = vld [vmem:[%s1 + $0x8c] sm:$0xf]
  %v85 = vunpack.c.l.b16 %v33
  %v86 = vunpack.c.h.b16 %v33
  %v87 = vunpack.c.l.b16 %v34
  %v88 = vunpack.c.l.b16 %v35
  %v89 = vunpack.c.h.b16 %v35
  %v90 = vunpack.c.l.b16 %v36
  %v91 = vunpack.c.l.b16 %v37
  %v92 = vunpack.c.h.b16 %v37
  %v93 = vunpack.c.l.b16 %v38
  %v94 = vunpack.c.l.b16 %v39
  %v95 = vunpack.c.h.b16 %v39
  %v96 = vunpack.c.l.b16 %v40
  %v97 = vpack.c.b16 %v88, %v85
  %v98 = vpack.c.b16 %v89, %v86
  %v99 = vpack.c.b16 %v90, %v87
  %v100 = vpack.c.b16 %v94, %v91
  %v101 = vpack.c.b16 %v95, %v92
  %v102 = vpack.c.b16 %v96, %v93
  %v143 = vunpack.c.l.b16 %v41
  %v144 = vunpack.c.l.b16 %v42
  %v145 = vunpack.c.l.b16 %v43
  %v146 = vunpack.c.l.b16 %v44
  %v147 = vunpack.c.l.b16 %v45
  %v148 = vunpack.c.l.b16 %v46
  %v149 = vunpack.c.l.b16 %v47
  %v150 = vunpack.c.l.b16 %v48
  %v151 = vunpack.c.l.b16 %v49
  %v152 = vunpack.c.l.b16 %v50
  %v153 = vunpack.c.l.b16 %v51
  %v154 = vunpack.c.l.b16 %v52
  %v155 = vunpack.c.l.b16 %v53
  %v156 = vunpack.c.l.b16 %v54
  %v157 = vunpack.c.l.b16 %v55
  %v158 = vunpack.c.l.b16 %v56
  %v159 = vunpack.c.l.b16 %v57
  %v160 = vunpack.c.l.b16 %v58
  %v161 = vunpack.c.l.b16 %v59
  %v162 = vunpack.c.l.b16 %v60
  %v163 = vunpack.c.l.b16 %v61
  %v164 = vunpack.c.l.b16 %v62
  %v165 = vunpack.c.l.b16 %v63
  %v166 = vunpack.c.l.b16 %v64
  %v167 = vunpack.c.l.b16 %v65
  %v168 = vunpack.c.l.b16 %v66
  %v169 = vunpack.c.l.b16 %v67
  %v170 = vunpack.c.l.b16 %v68
  %v171 = vunpack.c.l.b16 %v69
  %v172 = vunpack.c.l.b16 %v70
  %v173 = vunpack.c.l.b16 %v71
  %v174 = vunpack.c.l.b16 %v72
  %v175 = vunpack.c.l.b16 %v73
  %v176 = vunpack.c.l.b16 %v74
  %v177 = vunpack.c.l.b16 %v75
  %v178 = vunpack.c.l.b16 %v76
  %v179 = vpack.c.b16 %v144, %v143
  %v180 = vpack.c.b16 %v146, %v145
  %v181 = vpack.c.b16 %v148, %v147
  %v182 = vpack.c.b16 %v150, %v149
  %v183 = vpack.c.b16 %v152, %v151
  %v184 = vpack.c.b16 %v154, %v153
  %v185 = vpack.c.b16 %v156, %v155
  %v186 = vpack.c.b16 %v158, %v157
  %v187 = vpack.c.b16 %v160, %v159
  %v188 = vpack.c.b16 %v162, %v161
  %v189 = vpack.c.b16 %v164, %v163
  %v190 = vpack.c.b16 %v166, %v165
  %v191 = vpack.c.b16 %v168, %v167
  %v192 = vpack.c.b16 %v170, %v169
  %v193 = vpack.c.b16 %v172, %v171
  %v194 = vpack.c.b16 %v174, %v173
  %v195 = vpack.c.b16 %v176, %v175
  %v196 = vpack.c.b16 %v178, %v177
  %vm215 = vcmask 261120
  %v217 = vsel %vm215, %v99, 0
  %v220 = vsel %vm215, %v102, 0
  %222 = vmatprep.subr.bf16.mxu0 0
  %223 = vmatpush1.bf16.msra.mxu0 %v179
  %224 = vmatprep.subr.bf16.mxu0 0
  %225 = vmatpush1.bf16.msra.mxu0 %v180
  %226 = vmatprep.subr.bf16.mxu0 0
  %227 = vmatpush1.bf16.msra.mxu0 %v181
  %228 = vmatprep.subr.bf16.mxu0 0
  %229 = vmatpush1.bf16.msra.mxu0 %v182
  %230 = vmatprep.subr.bf16.mxu0 0
  %231 = vmatpush1.bf16.msra.mxu0 %v183
  %232 = vmatprep.subr.bf16.mxu0 0
  %233 = vmatpush1.bf16.msra.mxu0 %v184
  %234 = vmatprep.subr.bf16.mxu0 0
  %235 = vmatpush1.bf16.msra.mxu0 %v185
  %236 = vmatprep.subr.bf16.mxu0 0
  %237 = vmatpush1.bf16.msra.mxu0 %v186
  %238 = vmatprep.subr.bf16.mxu0 0
  %239 = vmatpush1.bf16.msra.mxu0 %v187
  %240 = vmatprep.subr.bf16.mxu0 0
  %241 = vmatpush1.bf16.msra.mxu0 %v188
  %242 = vmatprep.subr.bf16.mxu0 0
  %243 = vmatpush1.bf16.msra.mxu0 %v189
  %244 = vmatprep.subr.bf16.mxu0 0
  %245 = vmatpush1.bf16.msra.mxu0 %v190
  %246 = vmatprep.subr.bf16.mxu0 0
  %247 = vmatpush1.bf16.msra.mxu0 %v191
  %248 = vmatprep.subr.bf16.mxu0 0
  %249 = vmatpush1.bf16.msra.mxu0 %v192
  %250 = vmatprep.subr.bf16.mxu0 0
  %251 = vmatpush1.bf16.msra.mxu0 %v193
  %252 = vmatprep.subr.bf16.mxu0 0
  %253 = vmatpush1.bf16.msra.mxu0 %v194
  %254 = vmatprep.mubr.bf16.mxu0 %v98
  %255 = vmatmul.mubr.bf16.gmra.mrb[0].mxu0 %v97
  %v256 = vpop.f32.mrb[0].mxu0
  %v257 = vadd.f32 0.0, %v256
  %v258 = vpop.f32.mrb[0].mxu0
  %v259 = vpop.f32.mrb[0].mxu0
  %v260 = vadd.f32 0.0, %v259
  %v261 = vpop.f32.mrb[0].mxu0
  %262 = vmatprep.mubr.bf16.mxu0 %v101
  %263 = vmatmul.mubr.bf16.gmra.mrb[0].mxu0 %v100
  %v264 = vpop.f32.mrb[0].mxu0
  %v265 = vadd.f32 0.0, %v264
  %v266 = vpop.f32.mrb[0].mxu0
  %v267 = vpop.f32.mrb[0].mxu0
  %v268 = vadd.f32 0.0, %v267
  %v269 = vpop.f32.mrb[0].mxu0
  %270 = vdwg.mxu0
  %271 = vmatprep.subr.bf16.mxu0 0
  %272 = vmatpush1.bf16.msra.mxu0 %v195
  %273 = vmatprep.subr.bf16.mxu0 0
  %274 = vmatpush1.bf16.msra.mxu0 %v196
  %275 = vmatprep.subr.bf16.mxu0 0
  %276 = vmatpush1.bf16.msra.mxu0 0
  %277 = vmatprep.subr.bf16.mxu0 0
  %278 = vmatpush1.bf16.msra.mxu0 0
  %279 = vmatprep.subr.bf16.mxu0 0
  %280 = vmatpush1.bf16.msra.mxu0 0
  %281 = vmatprep.subr.bf16.mxu0 0
  %282 = vmatpush1.bf16.msra.mxu0 0
  %283 = vmatprep.subr.bf16.mxu0 0
  %284 = vmatpush1.bf16.msra.mxu0 0
  %285 = vmatprep.subr.bf16.mxu0 0
  %286 = vmatpush1.bf16.msra.mxu0 0
  %287 = vmatprep.subr.bf16.mxu0 0
  %288 = vmatpush1.bf16.msra.mxu0 0
  %289 = vmatprep.subr.bf16.mxu0 0
  %290 = vmatpush1.bf16.msra.mxu0 0
  %291 = vmatprep.subr.bf16.mxu0 0
  %292 = vmatpush1.bf16.msra.mxu0 0
  %293 = vmatprep.subr.bf16.mxu0 0
  %294 = vmatpush1.bf16.msra.mxu0 0
  %295 = vmatprep.subr.bf16.mxu0 0
  %296 = vmatpush1.bf16.msra.mxu0 0
  %297 = vmatprep.subr.bf16.mxu0 0
  %298 = vmatpush1.bf16.msra.mxu0 0
  %299 = vmatprep.subr.bf16.mxu0 0
  %300 = vmatpush1.bf16.msra.mxu0 0
  %301 = vmatprep.subr.bf16.mxu0 0
  %302 = vmatpush1.bf16.msra.mxu0 0
  %303 = vmatprep.mubr.bf16.mxu0 0
  %304 = vmatmul.mubr.bf16.gmra.mrb[0].mxu0 %v217
  %v305 = vpop.f32.mrb[0].mxu0
  %v306 = vadd.f32 %v257, %v305
  %v307 = vpop.f32.mrb[0].mxu0
  %v308 = vpop.f32.mrb[0].mxu0
  %v309 = vadd.f32 %v260, %v308
  %v310 = vpop.f32.mrb[0].mxu0
  %311 = vmatprep.mubr.bf16.mxu0 0
  %312 = vmatmul.mubr.bf16.gmra.mrb[0].mxu0 %v220
  %v313 = vpop.f32.mrb[0].mxu0
  %v314 = vadd.f32 %v265, %v313
  %v315 = vpop.f32.mrb[0].mxu0
  %v316 = vpop.f32.mrb[0].mxu0
  %v317 = vadd.f32 %v268, %v316
  %v318 = vpop.f32.mrb[0].mxu0
  %319 = vdwg.mxu0
  %v320 = vadd.f32 %v29, %v306
  %v321 = vadd.f32 %v30, %v309
  %v322 = vadd.f32 %v31, %v314
  %v323 = vadd.f32 %v32, %v317
  %324 = vst [vmem:[#allocation2] sm:$0xff] %v320
  %325 = vst [vmem:[#allocation2 + $0x8] sm:$0xff] %v321
  %326 = vst [vmem:[#allocation2 + $0x10] sm:$0xff] %v322
  %327 = vst [vmem:[#allocation2 + $0x18] sm:$0xff] %v323
  // Predicated region
  $region26: #{_lambda_.30} parent=0 // pred_check
    %p328 = pneg %p21
  $region27: #{_lambda_.30} parent=0 // pred_check_branch
    %330 = sbr.rel (%p328) target = $region29
  $region28: #{_lambda_.30} parent=0 // pred_region
    %v331 = vld [vmem:[#allocation2] sm:$0xff]
    %v332 = vld [vmem:[#allocation2 + $0x8] sm:$0xff]
    %v333 = vld [vmem:[#allocation2 + $0x10] sm:$0xff]
    %v334 = vld [vmem:[#allocation2 + $0x18] sm:$0xff]
    %v335 = vld [vmem:[%s2] sm:$0x1]
    %v337 = vlaneseq
    %v338 = vshrl.u32 %v337, 7
    %v339 = vsub.s32 0, %v338
    %v340 = vrot.slane %v335, %v339
    %v342 = vmul.f32 %v331, %v340
    %v343 = vmul.f32 %v332, %v340
    %v344 = vmul.f32 %v333, %v340
    %v345 = vmul.f32 %v334, %v340
    %v346 = vld [vmem:[%s3] sm:$0x1]
    %v348 = vlaneseq
    %v349 = vshrl.u32 %v348, 7
    %v350 = vsub.s32 0, %v349
    %v351 = vrot.slane %v346, %v350
    %v353 = vadd.f32 %v342, %v351
    %v354 = vadd.f32 %v343, %v351
    %v355 = vadd.f32 %v344, %v351
    %v356 = vadd.f32 %v345, %v351
    %v357 = vld [vmem:[%s4] sm:$0xf]
    %v358 = vld [vmem:[%s4 + $0x4] sm:$0xf]
    %v359 = vld [vmem:[%s4 + $0x8] sm:$0xf]
    %v360 = vld [vmem:[%s4 + $0xc] sm:$0xf]
    %v361 = vunpack.c.l.bf16 %v357
    %v362 = vunpack.c.l.bf16 %v358
    %v363 = vunpack.c.l.bf16 %v359
    %v364 = vunpack.c.l.bf16 %v360
    %v365 = vadd.f32 %v353, %v361
    %v366 = vadd.f32 %v354, %v362
    %v367 = vadd.f32 %v355, %v363
    %v368 = vadd.f32 %v356, %v364
    %v369 = vmax.f32 %v365, 0.0
    %v370 = vmax.f32 %v366, 0.0
    %v371 = vmax.f32 %v367, 0.0
    %v372 = vmax.f32 %v368, 0.0
    %v373 = vpack.c.bf16 %v370, %v369
    %v374 = vpack.c.bf16 %v372, %v371
    %v377 = vunpack.c.l.b16 %v373
    %v378 = vunpack.c.h.b16 %v373
    %v379 = vunpack.c.l.b16 %v374
    %v380 = vunpack.c.h.b16 %v374
    %v381 = vpack.c.b16 %v377, %v377
    %v382 = vpack.c.b16 %v378, %v378
    %v383 = vpack.c.b16 %v379, %v379
    %v384 = vpack.c.b16 %v380, %v380
    %389 = vst [vmem:[%s5] sm:$0xf] %v381
    %390 = vst [vmem:[%s5 + $0x4] sm:$0xf] %v382
    %391 = vst [vmem:[%s5 + $0x8] sm:$0xf] %v383
    %392 = vst [vmem:[%s5 + $0xc] sm:$0xf] %v384
  $region29: #{_lambda_.30} parent=0 // pred_fallthru
    _
  // Predicated region
  $region30: #{_lambda_.30} parent=0 // pred_check
    _
  $region31: #{_lambda_.30} parent=0 // pred_check_branch
    %394 = sbr.rel (0) target = $region33
  $region32: #{_lambda_.30} parent=0 // pred_region
    _
  $region33: #{_lambda_.30} parent=0 // pred_fallthru
    _
  // Predicated region
  $region34: #{_lambda_.30} parent=0 // pred_check
    _
  $region35: #{_lambda_.30} parent=0 // pred_check_branch
    %396 = sbr.rel (0) target = $region37
  $region36: #{_lambda_.30} parent=0 // pred_region
    _
  $region37: #{_lambda_.30} parent=0 // pred_fallthru
    _

// kernel: _lambda_.34
$region0: #{_lambda_.34}
  #allocation0 [shape = 'u32[]', space=smem, size = 0x4, offset = 0x4, fixed_abs, tag = 'smem constant byte address 0x4 - core index']
  #allocation1 [shape = 'u32[144,128]{1,0:T(1,128)}', space=vmem, size = 0x12000, scoped, tag = 'internal scratch']
  #allocation2 [shape = 'f32[8,128]{1,0:T(8,128)}', space=vmem, size = 0x1000, scoped, tag = 'scratch operand']
  %s0 = inlined_call_operand.vmem [shape: bf16[8,288], index: 0, kind: input, shape index: {}]
  %s1 = inlined_call_operand.vmem [shape: bf16[288,128], index: 1, kind: input, shape index: {}]
  %s2 = inlined_call_operand.vmem [shape: f32[1,128], index: 2, kind: input, shape index: {}]
  %s3 = inlined_call_operand.vmem [shape: f32[1,128], index: 3, kind: input, shape index: {}]
  %s4 = inlined_call_operand.vmem [shape: bf16[8,128], index: 4, kind: output, shape index: {}]
  %s5 = sld [smem:[#allocation0]]
  $region34: #{_lambda_.34} parent=0
    _
  %s7 = ssub.s32 1, %s5
  %s8 = scalar_select 0, %s7, %s5
  // Predicated region
  $region2: #{_lambda_.34} parent=0 // pred_check
    _
  $region3: #{_lambda_.34} parent=0 // pred_check_branch
    %10 = sbr.rel (0) target = $region5
  $region4: #{_lambda_.34} parent=0 // pred_region
    _
  $region5: #{_lambda_.34} parent=0 // pred_fallthru
    _
  // Predicated region
  $region6: #{_lambda_.34} parent=0 // pred_check
    _
  $region7: #{_lambda_.34} parent=0 // pred_check_branch
    %12 = sbr.rel (0) target = $region9
  $region8: #{_lambda_.34} parent=0 // pred_region
    _
  $region9: #{_lambda_.34} parent=0 // pred_fallthru
    _
  // Predicated region
  $region10: #{_lambda_.34} parent=0 // pred_check
    _
  $region11: #{_lambda_.34} parent=0 // pred_check_branch
    %14 = sbr.rel (0) target = $region13
  $region12: #{_lambda_.34} parent=0 // pred_region
    _
  $region13: #{_lambda_.34} parent=0 // pred_fallthru
    _
  // Predicated region
  $region14: #{_lambda_.34} parent=0 // pred_check
    _
  $region15: #{_lambda_.34} parent=0 // pred_check_branch
    %16 = sbr.rel (0) target = $region17
  $region16: #{_lambda_.34} parent=0 // pred_region
    _
  $region17: #{_lambda_.34} parent=0 // pred_fallthru
    _
  %p18 = scmp.eq.s32.totalorder 0, 0
  // Predicated region
  $region18: #{_lambda_.34} parent=0 // pred_check
    %p19 = pneg %p18
  $region19: #{_lambda_.34} parent=0 // pred_check_branch
    %21 = sbr.rel (%p19) target = $region21
  $region20: #{_lambda_.34} parent=0 // pred_region
    %22 = vst [vmem:[#allocation2] sm:$0xff] 0.0
  $region21: #{_lambda_.34} parent=0 // pred_fallthru
    _
  %v23 = vld [vmem:[#allocation2] sm:$0xff]
  %v24 = vld [vmem:[%s0] sm:$0xff]
  %v25 = vld [vmem:[%s0 + $0x8] sm:$0xf]
  %v26 = vld [vmem:[%s1] sm:$0xf]
  %v27 = vld [vmem:[%s1 + $0x4] sm:$0xf]
  %v28 = vld [vmem:[%s1 + $0x8] sm:$0xf]
  %v29 = vld [vmem:[%s1 + $0xc] sm:$0xf]
  %v30 = vld [vmem:[%s1 + $0x10] sm:$0xf]
  %v31 = vld [vmem:[%s1 + $0x14] sm:$0xf]
  %v32 = vld [vmem:[%s1 + $0x18] sm:$0xf]
  %v33 = vld [vmem:[%s1 + $0x1c] sm:$0xf]
  %v34 = vld [vmem:[%s1 + $0x20] sm:$0xf]
  %v35 = vld [vmem:[%s1 + $0x24] sm:$0xf]
  %v36 = vld [vmem:[%s1 + $0x28] sm:$0xf]
  %v37 = vld [vmem:[%s1 + $0x2c] sm:$0xf]
  %v38 = vld [vmem:[%s1 + $0x30] sm:$0xf]
  %v39 = vld [vmem:[%s1 + $0x34] sm:$0xf]
  %v40 = vld [vmem:[%s1 + $0x38] sm:$0xf]
  %v41 = vld [vmem:[%s1 + $0x3c] sm:$0xf]
  %v42 = vld [vmem:[%s1 + $0x40] sm:$0xf]
  %v43 = vld [vmem:[%s1 + $0x44] sm:$0xf]
  %v44 = vld [vmem:[%s1 + $0x48] sm:$0xf]
  %v45 = vld [vmem:[%s1 + $0x4c] sm:$0xf]
  %v46 = vld [vmem:[%s1 + $0x50] sm:$0xf]
  %v47 = vld [vmem:[%s1 + $0x54] sm:$0xf]
  %v48 = vld [vmem:[%s1 + $0x58] sm:$0xf]
  %v49 = vld [vmem:[%s1 + $0x5c] sm:$0xf]
  %v50 = vld [vmem:[%s1 + $0x60] sm:$0xf]
  %v51 = vld [vmem:[%s1 + $0x64] sm:$0xf]
  %v52 = vld [vmem:[%s1 + $0x68] sm:$0xf]
  %v53 = vld [vmem:[%s1 + $0x6c] sm:$0xf]
  %v54 = vld [vmem:[%s1 + $0x70] sm:$0xf]
  %v55 = vld [vmem:[%s1 + $0x74] sm:$0xf]
  %v56 = vld [vmem:[%s1 + $0x78] sm:$0xf]
  %v57 = vld [vmem:[%s1 + $0x7c] sm:$0xf]
  %v58 = vld [vmem:[%s1 + $0x80] sm:$0xf]
  %v59 = vld [vmem:[%s1 + $0x84] sm:$0xf]
  %v60 = vld [vmem:[%s1 + $0x88] sm:$0xf]
  %v61 = vld [vmem:[%s1 + $0x8c] sm:$0xf]
  %v64 = vunpack.c.l.b16 %v24
  %v65 = vunpack.c.h.b16 %v24
  %v66 = vunpack.c.l.b16 %v25
  %v67 = vpack.c.b16 %v64, %v64
  %v68 = vpack.c.b16 %v65, %v65
  %v69 = vpack.c.b16 %v66, %v66
  %v108 = vunpack.c.l.b16 %v26
  %v109 = vunpack.c.l.b16 %v27
  %v110 = vunpack.c.l.b16 %v28
  %v111 = vunpack.c.l.b16 %v29
  %v112 = vunpack.c.l.b16 %v30
  %v113 = vunpack.c.l.b16 %v31
  %v114 = vunpack.c.l.b16 %v32
  %v115 = vunpack.c.l.b16 %v33
  %v116 = vunpack.c.l.b16 %v34
  %v117 = vunpack.c.l.b16 %v35
  %v118 = vunpack.c.l.b16 %v36
  %v119 = vunpack.c.l.b16 %v37
  %v120 = vunpack.c.l.b16 %v38
  %v121 = vunpack.c.l.b16 %v39
  %v122 = vunpack.c.l.b16 %v40
  %v123 = vunpack.c.l.b16 %v41
  %v124 = vunpack.c.l.b16 %v42
  %v125 = vunpack.c.l.b16 %v43
  %v126 = vunpack.c.l.b16 %v44
  %v127 = vunpack.c.l.b16 %v45
  %v128 = vunpack.c.l.b16 %v46
  %v129 = vunpack.c.l.b16 %v47
  %v130 = vunpack.c.l.b16 %v48
  %v131 = vunpack.c.l.b16 %v49
  %v132 = vunpack.c.l.b16 %v50
  %v133 = vunpack.c.l.b16 %v51
  %v134 = vunpack.c.l.b16 %v52
  %v135 = vunpack.c.l.b16 %v53
  %v136 = vunpack.c.l.b16 %v54
  %v137 = vunpack.c.l.b16 %v55
  %v138 = vunpack.c.l.b16 %v56
  %v139 = vunpack.c.l.b16 %v57
  %v140 = vunpack.c.l.b16 %v58
  %v141 = vunpack.c.l.b16 %v59
  %v142 = vunpack.c.l.b16 %v60
  %v143 = vunpack.c.l.b16 %v61
  %v144 = vpack.c.b16 %v109, %v108
  %v145 = vpack.c.b16 %v111, %v110
  %v146 = vpack.c.b16 %v113, %v112
  %v147 = vpack.c.b16 %v115, %v114
  %v148 = vpack.c.b16 %v117, %v116
  %v149 = vpack.c.b16 %v119, %v118
  %v150 = vpack.c.b16 %v121, %v120
  %v151 = vpack.c.b16 %v123, %v122
  %v152 = vpack.c.b16 %v125, %v124
  %v153 = vpack.c.b16 %v127, %v126
  %v154 = vpack.c.b16 %v129, %v128
  %v155 = vpack.c.b16 %v131, %v130
  %v156 = vpack.c.b16 %v133, %v132
  %v157 = vpack.c.b16 %v135, %v134
  %v158 = vpack.c.b16 %v137, %v136
  %v159 = vpack.c.b16 %v139, %v138
  %v160 = vpack.c.b16 %v141, %v140
  %v161 = vpack.c.b16 %v143, %v142
  %vm180 = vcmask 261120
  %v182 = vsel %vm180, %v69, 0
  %184 = vmatprep.subr.bf16.mxu0 0
  %185 = vmatpush1.bf16.msra.mxu0 %v144
  %186 = vmatprep.subr.bf16.mxu0 0
  %187 = vmatpush1.bf16.msra.mxu0 %v145
  %188 = vmatprep.subr.bf16.mxu0 0
  %189 = vmatpush1.bf16.msra.mxu0 %v146
  %190 = vmatprep.subr.bf16.mxu0 0
  %191 = vmatpush1.bf16.msra.mxu0 %v147
  %192 = vmatprep.subr.bf16.mxu0 0
  %193 = vmatpush1.bf16.msra.mxu0 %v148
  %194 = vmatprep.subr.bf16.mxu0 0
  %195 = vmatpush1.bf16.msra.mxu0 %v149
  %196 = vmatprep.subr.bf16.mxu0 0
  %197 = vmatpush1.bf16.msra.mxu0 %v150
  %198 = vmatprep.subr.bf16.mxu0 0
  %199 = vmatpush1.bf16.msra.mxu0 %v151
  %200 = vmatprep.subr.bf16.mxu0 0
  %201 = vmatpush1.bf16.msra.mxu0 %v152
  %202 = vmatprep.subr.bf16.mxu0 0
  %203 = vmatpush1.bf16.msra.mxu0 %v153
  %204 = vmatprep.subr.bf16.mxu0 0
  %205 = vmatpush1.bf16.msra.mxu0 %v154
  %206 = vmatprep.subr.bf16.mxu0 0
  %207 = vmatpush1.bf16.msra.mxu0 %v155
  %208 = vmatprep.subr.bf16.mxu0 0
  %209 = vmatpush1.bf16.msra.mxu0 %v156
  %210 = vmatprep.subr.bf16.mxu0 0
  %211 = vmatpush1.bf16.msra.mxu0 %v157
  %212 = vmatprep.subr.bf16.mxu0 0
  %213 = vmatpush1.bf16.msra.mxu0 %v158
  %214 = vmatprep.subr.bf16.mxu0 0
  %215 = vmatpush1.bf16.msra.mxu0 %v159
  %216 = vmatprep.mubr.bf16.mxu0 %v68
  %217 = vmatmul.mubr.bf16.gmra.mrb[0].mxu0 %v67
  %v218 = vpop.f32.mrb[0].mxu0
  %v219 = vadd.f32 0.0, %v218
  %v220 = vpop.f32.mrb[0].mxu0
  %v221 = vpop.f32.mrb[0].mxu0
  %v222 = vpop.f32.mrb[0].mxu0
  %223 = vdwg.mxu0
  %224 = vmatprep.subr.bf16.mxu0 0
  %225 = vmatpush1.bf16.msra.mxu0 %v160
  %226 = vmatprep.subr.bf16.mxu0 0
  %227 = vmatpush1.bf16.msra.mxu0 %v161
  %228 = vmatprep.subr.bf16.mxu0 0
  %229 = vmatpush1.bf16.msra.mxu0 0
  %230 = vmatprep.subr.bf16.mxu0 0
  %231 = vmatpush1.bf16.msra.mxu0 0
  %232 = vmatprep.subr.bf16.mxu0 0
  %233 = vmatpush1.bf16.msra.mxu0 0
  %234 = vmatprep.subr.bf16.mxu0 0
  %235 = vmatpush1.bf16.msra.mxu0 0
  %236 = vmatprep.subr.bf16.mxu0 0
  %237 = vmatpush1.bf16.msra.mxu0 0
  %238 = vmatprep.subr.bf16.mxu0 0
  %239 = vmatpush1.bf16.msra.mxu0 0
  %240 = vmatprep.subr.bf16.mxu0 0
  %241 = vmatpush1.bf16.msra.mxu0 0
  %242 = vmatprep.subr.bf16.mxu0 0
  %243 = vmatpush1.bf16.msra.mxu0 0
  %244 = vmatprep.subr.bf16.mxu0 0
  %245 = vmatpush1.bf16.msra.mxu0 0
  %246 = vmatprep.subr.bf16.mxu0 0
  %247 = vmatpush1.bf16.msra.mxu0 0
  %248 = vmatprep.subr.bf16.mxu0 0
  %249 = vmatpush1.bf16.msra.mxu0 0
  %250 = vmatprep.subr.bf16.mxu0 0
  %251 = vmatpush1.bf16.msra.mxu0 0
  %252 = vmatprep.subr.bf16.mxu0 0
  %253 = vmatpush1.bf16.msra.mxu0 0
  %254 = vmatprep.subr.bf16.mxu0 0
  %255 = vmatpush1.bf16.msra.mxu0 0
  %256 = vmatprep.mubr.bf16.mxu0 0
  %257 = vmatmul.mubr.bf16.gmra.mrb[0].mxu0 %v182
  %v258 = vpop.f32.mrb[0].mxu0
  %v259 = vadd.f32 %v219, %v258
  %v260 = vpop.f32.mrb[0].mxu0
  %v261 = vpop.f32.mrb[0].mxu0
  %v262 = vpop.f32.mrb[0].mxu0
  %263 = vdwg.mxu0
  %v264 = vadd.f32 %v23, %v259
  %265 = vst [vmem:[#allocation2] sm:$0xff] %v264
  // Predicated region
  $region22: #{_lambda_.34} parent=0 // pred_check
    %p266 = pneg %p18
  $region23: #{_lambda_.34} parent=0 // pred_check_branch
    %268 = sbr.rel (%p266) target = $region25
  $region24: #{_lambda_.34} parent=0 // pred_region
    %v269 = vld [vmem:[#allocation2] sm:$0xff]
    %v270 = vld [vmem:[%s2] sm:$0x1]
    %v272 = vlaneseq
    %v273 = vshrl.u32 %v272, 7
    %v274 = vsub.s32 0, %v273
    %v275 = vrot.slane %v270, %v274
    %v277 = vmul.f32 %v269, %v275
    %v278 = vld [vmem:[%s3] sm:$0x1]
    %v280 = vlaneseq
    %v281 = vshrl.u32 %v280, 7
    %v282 = vsub.s32 0, %v281
    %v283 = vrot.slane %v278, %v282
    %v285 = vadd.f32 %v277, %v283
    %v286 = vmax.f32 %v285, 0.0
    %v287 = vpack.c.bf16 %v286, %v286
    %288 = vst [vmem:[%s4] sm:$0xf] %v287
  $region25: #{_lambda_.34} parent=0 // pred_fallthru
    _
  // Predicated region
  $region26: #{_lambda_.34} parent=0 // pred_check
    _
  $region27: #{_lambda_.34} parent=0 // pred_check_branch
    %290 = sbr.rel (0) target = $region29
  $region28: #{_lambda_.34} parent=0 // pred_region
    _
  $region29: #{_lambda_.34} parent=0 // pred_fallthru
    _
  // Predicated region
  $region30: #{_lambda_.34} parent=0 // pred_check
    _
  $region31: #{_lambda_.34} parent=0 // pred_check_branch
    %292 = sbr.rel (0) target = $region33
  $region32: #{_lambda_.34} parent=0 // pred_region
    _
  $region33: #{_lambda_.34} parent=0 // pred_fallthru
    _

// kernel: _lambda_.33
$region0: #{_lambda_.33}
  #allocation0 [shape = 'u32[]', space=smem, size = 0x4, offset = 0x4, fixed_abs, tag = 'smem constant byte address 0x4 - core index']
  #allocation1 [shape = 'u32[144,128]{1,0:T(1,128)}', space=vmem, size = 0x12000, scoped, tag = 'internal scratch']
  #allocation2 [shape = 'f32[8,128]{1,0:T(8,128)}', space=vmem, size = 0x1000, scoped, tag = 'scratch operand']
  %s0 = inlined_call_operand.vmem [shape: bf16[8,32], index: 0, kind: input, shape index: {}]
  %s1 = inlined_call_operand.vmem [shape: bf16[32,128], index: 1, kind: input, shape index: {}]
  %s2 = inlined_call_operand.vmem [shape: f32[1,128], index: 2, kind: input, shape index: {}]
  %s3 = inlined_call_operand.vmem [shape: f32[1,128], index: 3, kind: input, shape index: {}]
  %s4 = inlined_call_operand.vmem [shape: bf16[8,128], index: 4, kind: output, shape index: {}]
  %s5 = sld [smem:[#allocation0]]
  $region34: #{_lambda_.33} parent=0
    _
  %s7 = ssub.s32 1, %s5
  %s8 = scalar_select 0, %s7, %s5
  // Predicated region
  $region2: #{_lambda_.33} parent=0 // pred_check
    _
  $region3: #{_lambda_.33} parent=0 // pred_check_branch
    %10 = sbr.rel (0) target = $region5
  $region4: #{_lambda_.33} parent=0 // pred_region
    _
  $region5: #{_lambda_.33} parent=0 // pred_fallthru
    _
  // Predicated region
  $region6: #{_lambda_.33} parent=0 // pred_check
    _
  $region7: #{_lambda_.33} parent=0 // pred_check_branch
    %12 = sbr.rel (0) target = $region9
  $region8: #{_lambda_.33} parent=0 // pred_region
    _
  $region9: #{_lambda_.33} parent=0 // pred_fallthru
    _
  // Predicated region
  $region10: #{_lambda_.33} parent=0 // pred_check
    _
  $region11: #{_lambda_.33} parent=0 // pred_check_branch
    %14 = sbr.rel (0) target = $region13
  $region12: #{_lambda_.33} parent=0 // pred_region
    _
  $region13: #{_lambda_.33} parent=0 // pred_fallthru
    _
  // Predicated region
  $region14: #{_lambda_.33} parent=0 // pred_check
    _
  $region15: #{_lambda_.33} parent=0 // pred_check_branch
    %16 = sbr.rel (0) target = $region17
  $region16: #{_lambda_.33} parent=0 // pred_region
    _
  $region17: #{_lambda_.33} parent=0 // pred_fallthru
    _
  %p18 = scmp.eq.s32.totalorder 0, 0
  // Predicated region
  $region18: #{_lambda_.33} parent=0 // pred_check
    %p19 = pneg %p18
  $region19: #{_lambda_.33} parent=0 // pred_check_branch
    %21 = sbr.rel (%p19) target = $region21
  $region20: #{_lambda_.33} parent=0 // pred_region
    %22 = vst [vmem:[#allocation2] sm:$0xff] 0.0
  $region21: #{_lambda_.33} parent=0 // pred_fallthru
    _
  %v23 = vld [vmem:[#allocation2] sm:$0xff]
  %v24 = vld [vmem:[%s0] sm:$0xf]
  %v25 = vld [vmem:[%s1] sm:$0xf]
  %v26 = vld [vmem:[%s1 + $0x4] sm:$0xf]
  %v27 = vld [vmem:[%s1 + $0x8] sm:$0xf]
  %v28 = vld [vmem:[%s1 + $0xc] sm:$0xf]
  %v33 = vunpack.c.l.b16 %v25
  %v34 = vunpack.c.l.b16 %v26
  %v35 = vunpack.c.l.b16 %v27
  %v36 = vunpack.c.l.b16 %v28
  %v37 = vpack.c.b16 %v34, %v33
  %v38 = vpack.c.b16 %v36, %v35
  %vm41 = vcmask 261120
  %v43 = vsel %vm41, %v24, 0
  %45 = vmatprep.subr.bf16.mxu0 0
  %46 = vmatpush1.bf16.msra.mxu0 %v37
  %47 = vmatprep.subr.bf16.mxu0 0
  %48 = vmatpush1.bf16.msra.mxu0 %v38
  %49 = vmatprep.subr.bf16.mxu0 0
  %50 = vmatpush1.bf16.msra.mxu0 0
  %51 = vmatprep.subr.bf16.mxu0 0
  %52 = vmatpush1.bf16.msra.mxu0 0
  %53 = vmatprep.subr.bf16.mxu0 0
  %54 = vmatpush1.bf16.msra.mxu0 0
  %55 = vmatprep.subr.bf16.mxu0 0
  %56 = vmatpush1.bf16.msra.mxu0 0
  %57 = vmatprep.subr.bf16.mxu0 0
  %58 = vmatpush1.bf16.msra.mxu0 0
  %59 = vmatprep.subr.bf16.mxu0 0
  %60 = vmatpush1.bf16.msra.mxu0 0
  %61 = vmatprep.subr.bf16.mxu0 0
  %62 = vmatpush1.bf16.msra.mxu0 0
  %63 = vmatprep.subr.bf16.mxu0 0
  %64 = vmatpush1.bf16.msra.mxu0 0
  %65 = vmatprep.subr.bf16.mxu0 0
  %66 = vmatpush1.bf16.msra.mxu0 0
  %67 = vmatprep.subr.bf16.mxu0 0
  %68 = vmatpush1.bf16.msra.mxu0 0
  %69 = vmatprep.subr.bf16.mxu0 0
  %70 = vmatpush1.bf16.msra.mxu0 0
  %71 = vmatprep.subr.bf16.mxu0 0
  %72 = vmatpush1.bf16.msra.mxu0 0
  %73 = vmatprep.subr.bf16.mxu0 0
  %74 = vmatpush1.bf16.msra.mxu0 0
  %75 = vmatprep.subr.bf16.mxu0 0
  %76 = vmatpush1.bf16.msra.mxu0 0
  %77 = vmatprep.mubr.bf16.mxu0 0
  %78 = vmatmul.mubr.bf16.gmra.mrb[0].mxu0 %v43
  %v79 = vpop.f32.mrb[0].mxu0
  %v80 = vadd.f32 0.0, %v79
  %v81 = vpop.f32.mrb[0].mxu0
  %v82 = vpop.f32.mrb[0].mxu0
  %v83 = vpop.f32.mrb[0].mxu0
  %84 = vdwg.mxu0
  %v85 = vadd.f32 %v23, %v80
  %86 = vst [vmem:[#allocation2] sm:$0xff] %v85
  // Predicated region
  $region22: #{_lambda_.33} parent=0 // pred_check
    %p87 = pneg %p18
  $region23: #{_lambda_.33} parent=0 // pred_check_branch
    %89 = sbr.rel (%p87) target = $region25
  $region24: #{_lambda_.33} parent=0 // pred_region
    %v90 = vld [vmem:[#allocation2] sm:$0xff]
    %v91 = vld [vmem:[%s2] sm:$0x1]
    %v93 = vlaneseq
    %v94 = vshrl.u32 %v93, 7
    %v95 = vsub.s32 0, %v94
    %v96 = vrot.slane %v91, %v95
    %v98 = vmul.f32 %v90, %v96
    %v99 = vld [vmem:[%s3] sm:$0x1]
    %v101 = vlaneseq
    %v102 = vshrl.u32 %v101, 7
    %v103 = vsub.s32 0, %v102
    %v104 = vrot.slane %v99, %v103
    %v106 = vadd.f32 %v98, %v104
    %v107 = vpack.c.bf16 %v106, %v106
    %108 = vst [vmem:[%s4] sm:$0xf] %v107
  $region25: #{_lambda_.33} parent=0 // pred_fallthru
    _
  // Predicated region
  $region26: #{_lambda_.33} parent=0 // pred_check
    _
  $region27: #{_lambda_.33} parent=0 // pred_check_branch
    %110 = sbr.rel (0) target = $region29
  $region28: #{_lambda_.33} parent=0 // pred_region
    _
  $region29: #{_lambda_.33} parent=0 // pred_fallthru
    _
  // Predicated region
  $region30: #{_lambda_.33} parent=0 // pred_check
    _
  $region31: #{_lambda_.33} parent=0 // pred_check_branch
    %112 = sbr.rel (0) target = $region33
  $region32: #{_lambda_.33} parent=0 // pred_region
    _
  $region33: #{_lambda_.33} parent=0 // pred_fallthru
    _

// kernel: _lambda_.36
$region0: #{_lambda_.36}
  #allocation0 [shape = 'u32[]', space=smem, size = 0x4, offset = 0x4, fixed_abs, tag = 'smem constant byte address 0x4 - core index']
  #allocation1 [shape = 'u32[144,128]{1,0:T(1,128)}', space=vmem, size = 0x12000, scoped, tag = 'internal scratch']
  #allocation2 [shape = 'f32[8,128]{1,0:T(8,128)}', space=vmem, size = 0x1000, scoped, tag = 'scratch operand']
  %s0 = inlined_call_operand.vmem [shape: bf16[8,576], index: 0, kind: input, shape index: {}]
  %s1 = inlined_call_operand.vmem [shape: bf16[576,128], index: 1, kind: input, shape index: {}]
  %s2 = inlined_call_operand.vmem [shape: f32[1,128], index: 2, kind: input, shape index: {}]
  %s3 = inlined_call_operand.vmem [shape: f32[1,128], index: 3, kind: input, shape index: {}]
  %s4 = inlined_call_operand.vmem [shape: bf16[8,128], index: 4, kind: output, shape index: {}]
  %s5 = sld [smem:[#allocation0]]
  $region34: #{_lambda_.36} parent=0
    _
  %s7 = ssub.s32 1, %s5
  %s8 = scalar_select 0, %s7, %s5
  // Predicated region
  $region2: #{_lambda_.36} parent=0 // pred_check
    _
  $region3: #{_lambda_.36} parent=0 // pred_check_branch
    %10 = sbr.rel (0) target = $region5
  $region4: #{_lambda_.36} parent=0 // pred_region
    _
  $region5: #{_lambda_.36} parent=0 // pred_fallthru
    _
  // Predicated region
  $region6: #{_lambda_.36} parent=0 // pred_check
    _
  $region7: #{_lambda_.36} parent=0 // pred_check_branch
    %12 = sbr.rel (0) target = $region9
  $region8: #{_lambda_.36} parent=0 // pred_region
    _
  $region9: #{_lambda_.36} parent=0 // pred_fallthru
    _
  // Predicated region
  $region10: #{_lambda_.36} parent=0 // pred_check
    _
  $region11: #{_lambda_.36} parent=0 // pred_check_branch
    %14 = sbr.rel (0) target = $region13
  $region12: #{_lambda_.36} parent=0 // pred_region
    _
  $region13: #{_lambda_.36} parent=0 // pred_fallthru
    _
  // Predicated region
  $region14: #{_lambda_.36} parent=0 // pred_check
    _
  $region15: #{_lambda_.36} parent=0 // pred_check_branch
    %16 = sbr.rel (0) target = $region17
  $region16: #{_lambda_.36} parent=0 // pred_region
    _
  $region17: #{_lambda_.36} parent=0 // pred_fallthru
    _
  %p18 = scmp.eq.s32.totalorder 0, 0
  // Predicated region
  $region18: #{_lambda_.36} parent=0 // pred_check
    %p19 = pneg %p18
  $region19: #{_lambda_.36} parent=0 // pred_check_branch
    %21 = sbr.rel (%p19) target = $region21
  $region20: #{_lambda_.36} parent=0 // pred_region
    %22 = vst [vmem:[#allocation2] sm:$0xff] 0.0
  $region21: #{_lambda_.36} parent=0 // pred_fallthru
    _
  %v23 = vld [vmem:[#allocation2] sm:$0xff]
  %v24 = vld [vmem:[%s0] sm:$0xff]
  %v25 = vld [vmem:[%s0 + $0x8] sm:$0xff]
  %v26 = vld [vmem:[%s0 + $0x10] sm:$0xf]
  %v27 = vld [vmem:[%s1] sm:$0xf]
  %v28 = vld [vmem:[%s1 + $0x4] sm:$0xf]
  %v29 = vld [vmem:[%s1 + $0x8] sm:$0xf]
  %v30 = vld [vmem:[%s1 + $0xc] sm:$0xf]
  %v31 = vld [vmem:[%s1 + $0x10] sm:$0xf]
  %v32 = vld [vmem:[%s1 + $0x14] sm:$0xf]
  %v33 = vld [vmem:[%s1 + $0x18] sm:$0xf]
  %v34 = vld [vmem:[%s1 + $0x1c] sm:$0xf]
  %v35 = vld [vmem:[%s1 + $0x20] sm:$0xf]
  %v36 = vld [vmem:[%s1 + $0x24] sm:$0xf]
  %v37 = vld [vmem:[%s1 + $0x28] sm:$0xf]
  %v38 = vld [vmem:[%s1 + $0x2c] sm:$0xf]
  %v39 = vld [vmem:[%s1 + $0x30] sm:$0xf]
  %v40 = vld [vmem:[%s1 + $0x34] sm:$0xf]
  %v41 = vld [vmem:[%s1 + $0x38] sm:$0xf]
  %v42 = vld [vmem:[%s1 + $0x3c] sm:$0xf]
  %v43 = vld [vmem:[%s1 + $0x40] sm:$0xf]
  %v44 = vld [vmem:[%s1 + $0x44] sm:$0xf]
  %v45 = vld [vmem:[%s1 + $0x48] sm:$0xf]
  %v46 = vld [vmem:[%s1 + $0x4c] sm:$0xf]
  %v47 = vld [vmem:[%s1 + $0x50] sm:$0xf]
  %v48 = vld [vmem:[%s1 + $0x54] sm:$0xf]
  %v49 = vld [vmem:[%s1 + $0x58] sm:$0xf]
  %v50 = vld [vmem:[%s1 + $0x5c] sm:$0xf]
  %v51 = vld [vmem:[%s1 + $0x60] sm:$0xf]
  %v52 = vld [vmem:[%s1 + $0x64] sm:$0xf]
  %v53 = vld [vmem:[%s1 + $0x68] sm:$0xf]
  %v54 = vld [vmem:[%s1 + $0x6c] sm:$0xf]
  %v55 = vld [vmem:[%s1 + $0x70] sm:$0xf]
  %v56 = vld [vmem:[%s1 + $0x74] sm:$0xf]
  %v57 = vld [vmem:[%s1 + $0x78] sm:$0xf]
  %v58 = vld [vmem:[%s1 + $0x7c] sm:$0xf]
  %v59 = vld [vmem:[%s1 + $0x80] sm:$0xf]
  %v60 = vld [vmem:[%s1 + $0x84] sm:$0xf]
  %v61 = vld [vmem:[%s1 + $0x88] sm:$0xf]
  %v62 = vld [vmem:[%s1 + $0x8c] sm:$0xf]
  %v63 = vld [vmem:[%s1 + $0x90] sm:$0xf]
  %v64 = vld [vmem:[%s1 + $0x94] sm:$0xf]
  %v65 = vld [vmem:[%s1 + $0x98] sm:$0xf]
  %v66 = vld [vmem:[%s1 + $0x9c] sm:$0xf]
  %v67 = vld [vmem:[%s1 + $0xa0] sm:$0xf]
  %v68 = vld [vmem:[%s1 + $0xa4] sm:$0xf]
  %v69 = vld [vmem:[%s1 + $0xa8] sm:$0xf]
  %v70 = vld [vmem:[%s1 + $0xac] sm:$0xf]
  %v71 = vld [vmem:[%s1 + $0xb0] sm:$0xf]
  %v72 = vld [vmem:[%s1 + $0xb4] sm:$0xf]
  %v73 = vld [vmem:[%s1 + $0xb8] sm:$0xf]
  %v74 = vld [vmem:[%s1 + $0xbc] sm:$0xf]
  %v75 = vld [vmem:[%s1 + $0xc0] sm:$0xf]
  %v76 = vld [vmem:[%s1 + $0xc4] sm:$0xf]
  %v77 = vld [vmem:[%s1 + $0xc8] sm:$0xf]
  %v78 = vld [vmem:[%s1 + $0xcc] sm:$0xf]
  %v79 = vld [vmem:[%s1 + $0xd0] sm:$0xf]
  %v80 = vld [vmem:[%s1 + $0xd4] sm:$0xf]
  %v81 = vld [vmem:[%s1 + $0xd8] sm:$0xf]
  %v82 = vld [vmem:[%s1 + $0xdc] sm:$0xf]
  %v83 = vld [vmem:[%s1 + $0xe0] sm:$0xf]
  %v84 = vld [vmem:[%s1 + $0xe4] sm:$0xf]
  %v85 = vld [vmem:[%s1 + $0xe8] sm:$0xf]
  %v86 = vld [vmem:[%s1 + $0xec] sm:$0xf]
  %v87 = vld [vmem:[%s1 + $0xf0] sm:$0xf]
  %v88 = vld [vmem:[%s1 + $0xf4] sm:$0xf]
  %v89 = vld [vmem:[%s1 + $0xf8] sm:$0xf]
  %v90 = vld [vmem:[%s1 + $0xfc] sm:$0xf]
  %v91 = vld [vmem:[%s1 + $0x100] sm:$0xf]
  %v92 = vld [vmem:[%s1 + $0x104] sm:$0xf]
  %v93 = vld [vmem:[%s1 + $0x108] sm:$0xf]
  %v94 = vld [vmem:[%s1 + $0x10c] sm:$0xf]
  %v95 = vld [vmem:[%s1 + $0x110] sm:$0xf]
  %v96 = vld [vmem:[%s1 + $0x114] sm:$0xf]
  %v97 = vld [vmem:[%s1 + $0x118] sm:$0xf]
  %v98 = vld [vmem:[%s1 + $0x11c] sm:$0xf]
  %v102 = vunpack.c.l.b16 %v24
  %v103 = vunpack.c.h.b16 %v24
  %v104 = vunpack.c.l.b16 %v25
  %v105 = vunpack.c.h.b16 %v25
  %v106 = vunpack.c.l.b16 %v26
  %v107 = vpack.c.b16 %v102, %v102
  %v108 = vpack.c.b16 %v103, %v103
  %v109 = vpack.c.b16 %v104, %v104
  %v110 = vpack.c.b16 %v105, %v105
  %v111 = vpack.c.b16 %v106, %v106
  %v188 = vunpack.c.l.b16 %v27
  %v189 = vunpack.c.l.b16 %v28
  %v190 = vunpack.c.l.b16 %v29
  %v191 = vunpack.c.l.b16 %v30
  %v192 = vunpack.c.l.b16 %v31
  %v193 = vunpack.c.l.b16 %v32
  %v194 = vunpack.c.l.b16 %v33
  %v195 = vunpack.c.l.b16 %v34
  %v196 = vunpack.c.l.b16 %v35
  %v197 = vunpack.c.l.b16 %v36
  %v198 = vunpack.c.l.b16 %v37
  %v199 = vunpack.c.l.b16 %v38
  %v200 = vunpack.c.l.b16 %v39
  %v201 = vunpack.c.l.b16 %v40
  %v202 = vunpack.c.l.b16 %v41
  %v203 = vunpack.c.l.b16 %v42
  %v204 = vunpack.c.l.b16 %v43
  %v205 = vunpack.c.l.b16 %v44
  %v206 = vunpack.c.l.b16 %v45
  %v207 = vunpack.c.l.b16 %v46
  %v208 = vunpack.c.l.b16 %v47
  %v209 = vunpack.c.l.b16 %v48
  %v210 = vunpack.c.l.b16 %v49
  %v211 = vunpack.c.l.b16 %v50
  %v212 = vunpack.c.l.b16 %v51
  %v213 = vunpack.c.l.b16 %v52
  %v214 = vunpack.c.l.b16 %v53
  %v215 = vunpack.c.l.b16 %v54
  %v216 = vunpack.c.l.b16 %v55
  %v217 = vunpack.c.l.b16 %v56
  %v218 = vunpack.c.l.b16 %v57
  %v219 = vunpack.c.l.b16 %v58
  %v220 = vunpack.c.l.b16 %v59
  %v221 = vunpack.c.l.b16 %v60
  %v222 = vunpack.c.l.b16 %v61
  %v223 = vunpack.c.l.b16 %v62
  %v224 = vunpack.c.l.b16 %v63
  %v225 = vunpack.c.l.b16 %v64
  %v226 = vunpack.c.l.b16 %v65
  %v227 = vunpack.c.l.b16 %v66
  %v228 = vunpack.c.l.b16 %v67
  %v229 = vunpack.c.l.b16 %v68
  %v230 = vunpack.c.l.b16 %v69
  %v231 = vunpack.c.l.b16 %v70
  %v232 = vunpack.c.l.b16 %v71
  %v233 = vunpack.c.l.b16 %v72
  %v234 = vunpack.c.l.b16 %v73
  %v235 = vunpack.c.l.b16 %v74
  %v236 = vunpack.c.l.b16 %v75
  %v237 = vunpack.c.l.b16 %v76
  %v238 = vunpack.c.l.b16 %v77
  %v239 = vunpack.c.l.b16 %v78
  %v240 = vunpack.c.l.b16 %v79
  %v241 = vunpack.c.l.b16 %v80
  %v242 = vunpack.c.l.b16 %v81
  %v243 = vunpack.c.l.b16 %v82
  %v244 = vunpack.c.l.b16 %v83
  %v245 = vunpack.c.l.b16 %v84
  %v246 = vunpack.c.l.b16 %v85
  %v247 = vunpack.c.l.b16 %v86
  %v248 = vunpack.c.l.b16 %v87
  %v249 = vunpack.c.l.b16 %v88
  %v250 = vunpack.c.l.b16 %v89
  %v251 = vunpack.c.l.b16 %v90
  %v252 = vunpack.c.l.b16 %v91
  %v253 = vunpack.c.l.b16 %v92
  %v254 = vunpack.c.l.b16 %v93
  %v255 = vunpack.c.l.b16 %v94
  %v256 = vunpack.c.l.b16 %v95
  %v257 = vunpack.c.l.b16 %v96
  %v258 = vunpack.c.l.b16 %v97
  %v259 = vunpack.c.l.b16 %v98
  %v260 = vpack.c.b16 %v189, %v188
  %v261 = vpack.c.b16 %v191, %v190
  %v262 = vpack.c.b16 %v193, %v192
  %v263 = vpack.c.b16 %v195, %v194
  %v264 = vpack.c.b16 %v197, %v196
  %v265 = vpack.c.b16 %v199, %v198
  %v266 = vpack.c.b16 %v201, %v200
  %v267 = vpack.c.b16 %v203, %v202
  %v268 = vpack.c.b16 %v205, %v204
  %v269 = vpack.c.b16 %v207, %v206
  %v270 = vpack.c.b16 %v209, %v208
  %v271 = vpack.c.b16 %v211, %v210
  %v272 = vpack.c.b16 %v213, %v212
  %v273 = vpack.c.b16 %v215, %v214
  %v274 = vpack.c.b16 %v217, %v216
  %v275 = vpack.c.b16 %v219, %v218
  %v276 = vpack.c.b16 %v221, %v220
  %v277 = vpack.c.b16 %v223, %v222
  %v278 = vpack.c.b16 %v225, %v224
  %v279 = vpack.c.b16 %v227, %v226
  %v280 = vpack.c.b16 %v229, %v228
  %v281 = vpack.c.b16 %v231, %v230
  %v282 = vpack.c.b16 %v233, %v232
  %v283 = vpack.c.b16 %v235, %v234
  %v284 = vpack.c.b16 %v237, %v236
  %v285 = vpack.c.b16 %v239, %v238
  %v286 = vpack.c.b16 %v241, %v240
  %v287 = vpack.c.b16 %v243, %v242
  %v288 = vpack.c.b16 %v245, %v244
  %v289 = vpack.c.b16 %v247, %v246
  %v290 = vpack.c.b16 %v249, %v248
  %v291 = vpack.c.b16 %v251, %v250
  %v292 = vpack.c.b16 %v253, %v252
  %v293 = vpack.c.b16 %v255, %v254
  %v294 = vpack.c.b16 %v257, %v256
  %v295 = vpack.c.b16 %v259, %v258
  %vm332 = vcmask 523264
  %v334 = vsel %vm332, %v111, 0
  %336 = vmatprep.subr.bf16.mxu0 0
  %337 = vmatpush1.bf16.msra.mxu0 %v260
  %338 = vmatprep.subr.bf16.mxu0 0
  %339 = vmatpush1.bf16.msra.mxu0 %v261
  %340 = vmatprep.subr.bf16.mxu0 0
  %341 = vmatpush1.bf16.msra.mxu0 %v262
  %342 = vmatprep.subr.bf16.mxu0 0
  %343 = vmatpush1.bf16.msra.mxu0 %v263
  %344 = vmatprep.subr.bf16.mxu0 0
  %345 = vmatpush1.bf16.msra.mxu0 %v264
  %346 = vmatprep.subr.bf16.mxu0 0
  %347 = vmatpush1.bf16.msra.mxu0 %v265
  %348 = vmatprep.subr.bf16.mxu0 0
  %349 = vmatpush1.bf16.msra.mxu0 %v266
  %350 = vmatprep.subr.bf16.mxu0 0
  %351 = vmatpush1.bf16.msra.mxu0 %v267
  %352 = vmatprep.subr.bf16.mxu0 0
  %353 = vmatpush1.bf16.msra.mxu0 %v268
  %354 = vmatprep.subr.bf16.mxu0 0
  %355 = vmatpush1.bf16.msra.mxu0 %v269
  %356 = vmatprep.subr.bf16.mxu0 0
  %357 = vmatpush1.bf16.msra.mxu0 %v270
  %358 = vmatprep.subr.bf16.mxu0 0
  %359 = vmatpush1.bf16.msra.mxu0 %v271
  %360 = vmatprep.subr.bf16.mxu0 0
  %361 = vmatpush1.bf16.msra.mxu0 %v272
  %362 = vmatprep.subr.bf16.mxu0 0
  %363 = vmatpush1.bf16.msra.mxu0 %v273
  %364 = vmatprep.subr.bf16.mxu0 0
  %365 = vmatpush1.bf16.msra.mxu0 %v274
  %366 = vmatprep.subr.bf16.mxu0 0
  %367 = vmatpush1.bf16.msra.mxu0 %v275
  %368 = vmatprep.mubr.bf16.mxu0 %v108
  %369 = vmatmul.mubr.bf16.gmra.mrb[0].mxu0 %v107
  %v370 = vpop.f32.mrb[0].mxu0
  %v371 = vadd.f32 0.0, %v370
  %v372 = vpop.f32.mrb[0].mxu0
  %v373 = vpop.f32.mrb[0].mxu0
  %v374 = vpop.f32.mrb[0].mxu0
  %375 = vdwg.mxu0
  %376 = vmatprep.subr.bf16.mxu0 0
  %377 = vmatpush1.bf16.msra.mxu0 %v276
  %378 = vmatprep.subr.bf16.mxu0 0
  %379 = vmatpush1.bf16.msra.mxu0 %v277
  %380 = vmatprep.subr.bf16.mxu0 0
  %381 = vmatpush1.bf16.msra.mxu0 %v278
  %382 = vmatprep.subr.bf16.mxu0 0
  %383 = vmatpush1.bf16.msra.mxu0 %v279
  %384 = vmatprep.subr.bf16.mxu0 0
  %385 = vmatpush1.bf16.msra.mxu0 %v280
  %386 = vmatprep.subr.bf16.mxu0 0
  %387 = vmatpush1.bf16.msra.mxu0 %v281
  %388 = vmatprep.subr.bf16.mxu0 0
  %389 = vmatpush1.bf16.msra.mxu0 %v282
  %390 = vmatprep.subr.bf16.mxu0 0
  %391 = vmatpush1.bf16.msra.mxu0 %v283
  %392 = vmatprep.subr.bf16.mxu0 0
  %393 = vmatpush1.bf16.msra.mxu0 %v284
  %394 = vmatprep.subr.bf16.mxu0 0
  %395 = vmatpush1.bf16.msra.mxu0 %v285
  %396 = vmatprep.subr.bf16.mxu0 0
  %397 = vmatpush1.bf16.msra.mxu0 %v286
  %398 = vmatprep.subr.bf16.mxu0 0
  %399 = vmatpush1.bf16.msra.mxu0 %v287
  %400 = vmatprep.subr.bf16.mxu0 0
  %401 = vmatpush1.bf16.msra.mxu0 %v288
  %402 = vmatprep.subr.bf16.mxu0 0
  %403 = vmatpush1.bf16.msra.mxu0 %v289
  %404 = vmatprep.subr.bf16.mxu0 0
  %405 = vmatpush1.bf16.msra.mxu0 %v290
  %406 = vmatprep.subr.bf16.mxu0 0
  %407 = vmatpush1.bf16.msra.mxu0 %v291
  %408 = vmatprep.mubr.bf16.mxu0 %v110
  %409 = vmatmul.mubr.bf16.gmra.mrb[0].mxu0 %v109
  %v410 = vpop.f32.mrb[0].mxu0
  %v411 = vadd.f32 %v371, %v410
  %v412 = vpop.f32.mrb[0].mxu0
  %v413 = vpop.f32.mrb[0].mxu0
  %v414 = vpop.f32.mrb[0].mxu0
  %415 = vdwg.mxu0
  %416 = vmatprep.subr.bf16.mxu0 0
  %417 = vmatpush1.bf16.msra.mxu0 %v292
  %418 = vmatprep.subr.bf16.mxu0 0
  %419 = vmatpush1.bf16.msra.mxu0 %v293
  %420 = vmatprep.subr.bf16.mxu0 0
  %421 = vmatpush1.bf16.msra.mxu0 %v294
  %422 = vmatprep.subr.bf16.mxu0 0
  %423 = vmatpush1.bf16.msra.mxu0 %v295
  %424 = vmatprep.subr.bf16.mxu0 0
  %425 = vmatpush1.bf16.msra.mxu0 0
  %426 = vmatprep.subr.bf16.mxu0 0
  %427 = vmatpush1.bf16.msra.mxu0 0
  %428 = vmatprep.subr.bf16.mxu0 0
  %429 = vmatpush1.bf16.msra.mxu0 0
  %430 = vmatprep.subr.bf16.mxu0 0
  %431 = vmatpush1.bf16.msra.mxu0 0
  %432 = vmatprep.subr.bf16.mxu0 0
  %433 = vmatpush1.bf16.msra.mxu0 0
  %434 = vmatprep.subr.bf16.mxu0 0
  %435 = vmatpush1.bf16.msra.mxu0 0
  %436 = vmatprep.subr.bf16.mxu0 0
  %437 = vmatpush1.bf16.msra.mxu0 0
  %438 = vmatprep.subr.bf16.mxu0 0
  %439 = vmatpush1.bf16.msra.mxu0 0
  %440 = vmatprep.subr.bf16.mxu0 0
  %441 = vmatpush1.bf16.msra.mxu0 0
  %442 = vmatprep.subr.bf16.mxu0 0
  %443 = vmatpush1.bf16.msra.mxu0 0
  %444 = vmatprep.subr.bf16.mxu0 0
  %445 = vmatpush1.bf16.msra.mxu0 0
  %446 = vmatprep.subr.bf16.mxu0 0
  %447 = vmatpush1.bf16.msra.mxu0 0
  %448 = vmatprep.mubr.bf16.mxu0 0
  %449 = vmatmul.mubr.bf16.gmra.mrb[0].mxu0 %v334
  %v450 = vpop.f32.mrb[0].mxu0
  %v451 = vadd.f32 %v411, %v450
  %v452 = vpop.f32.mrb[0].mxu0
  %v453 = vpop.f32.mrb[0].mxu0
  %v454 = vpop.f32.mrb[0].mxu0
  %455 = vdwg.mxu0
  %v456 = vadd.f32 %v23, %v451
  %457 = vst [vmem:[#allocation2] sm:$0xff] %v456
  // Predicated region
  $region22: #{_lambda_.36} parent=0 // pred_check
    %p458 = pneg %p18
  $region23: #{_lambda_.36} parent=0 // pred_check_branch
    %460 = sbr.rel (%p458) target = $region25
  $region24: #{_lambda_.36} parent=0 // pred_region
    %v461 = vld [vmem:[#allocation2] sm:$0xff]
    %v462 = vld [vmem:[%s2] sm:$0x1]
    %v464 = vlaneseq
    %v465 = vshrl.u32 %v464, 7
    %v466 = vsub.s32 0, %v465
    %v467 = vrot.slane %v462, %v466
    %v469 = vmul.f32 %v461, %v467
    %v470 = vld [vmem:[%s3] sm:$0x1]
    %v472 = vlaneseq
    %v473 = vshrl.u32 %v472, 7
    %v474 = vsub.s32 0, %v473
    %v475 = vrot.slane %v470, %v474
    %v477 = vadd.f32 %v469, %v475
    %v478 = vmax.f32 %v477, 0.0
    %v479 = vpack.c.bf16 %v478, %v478
    %480 = vst [vmem:[%s4] sm:$0xf] %v479
  $region25: #{_lambda_.36} parent=0 // pred_fallthru
    _
  // Predicated region
  $region26: #{_lambda_.36} parent=0 // pred_check
    _
  $region27: #{_lambda_.36} parent=0 // pred_check_branch
    %482 = sbr.rel (0) target = $region29
  $region28: #{_lambda_.36} parent=0 // pred_region
    _
  $region29: #{_lambda_.36} parent=0 // pred_fallthru
    _
  // Predicated region
  $region30: #{_lambda_.36} parent=0 // pred_check
    _
  $region31: #{_lambda_.36} parent=0 // pred_check_branch
    %484 = sbr.rel (0) target = $region33
  $region32: #{_lambda_.36} parent=0 // pred_region
    _
  $region33: #{_lambda_.36} parent=0 // pred_fallthru
    _

// kernel: _lambda_.35
$region0: #{_lambda_.35}
  #allocation0 [shape = 'u32[]', space=smem, size = 0x4, offset = 0x4, fixed_abs, tag = 'smem constant byte address 0x4 - core index']
  #allocation1 [shape = 'u32[144,128]{1,0:T(1,128)}', space=vmem, size = 0x12000, scoped, tag = 'internal scratch']
  #allocation2 [shape = 'f32[8,128]{1,0:T(8,128)}', space=vmem, size = 0x1000, scoped, tag = 'scratch operand']
  %s0 = inlined_call_operand.vmem [shape: bf16[8,576], index: 0, kind: input, shape index: {}]
  %s1 = inlined_call_operand.vmem [shape: bf16[576,128], index: 1, kind: input, shape index: {}]
  %s2 = inlined_call_operand.vmem [shape: f32[1,128], index: 2, kind: input, shape index: {}]
  %s3 = inlined_call_operand.vmem [shape: f32[1,128], index: 3, kind: input, shape index: {}]
  %s4 = inlined_call_operand.vmem [shape: bf16[8,128], index: 4, kind: input, shape index: {}]
  %s5 = inlined_call_operand.vmem [shape: bf16[8,128], index: 5, kind: output, shape index: {}]
  %s6 = sld [smem:[#allocation0]]
  $region38: #{_lambda_.35} parent=0
    _
  %s8 = ssub.s32 1, %s6
  %s9 = scalar_select 0, %s8, %s6
  // Predicated region
  $region2: #{_lambda_.35} parent=0 // pred_check
    _
  $region3: #{_lambda_.35} parent=0 // pred_check_branch
    %11 = sbr.rel (0) target = $region5
  $region4: #{_lambda_.35} parent=0 // pred_region
    _
  $region5: #{_lambda_.35} parent=0 // pred_fallthru
    _
  // Predicated region
  $region6: #{_lambda_.35} parent=0 // pred_check
    _
  $region7: #{_lambda_.35} parent=0 // pred_check_branch
    %13 = sbr.rel (0) target = $region9
  $region8: #{_lambda_.35} parent=0 // pred_region
    _
  $region9: #{_lambda_.35} parent=0 // pred_fallthru
    _
  // Predicated region
  $region10: #{_lambda_.35} parent=0 // pred_check
    _
  $region11: #{_lambda_.35} parent=0 // pred_check_branch
    %15 = sbr.rel (0) target = $region13
  $region12: #{_lambda_.35} parent=0 // pred_region
    _
  $region13: #{_lambda_.35} parent=0 // pred_fallthru
    _
  // Predicated region
  $region14: #{_lambda_.35} parent=0 // pred_check
    _
  $region15: #{_lambda_.35} parent=0 // pred_check_branch
    %17 = sbr.rel (0) target = $region17
  $region16: #{_lambda_.35} parent=0 // pred_region
    _
  $region17: #{_lambda_.35} parent=0 // pred_fallthru
    _
  // Predicated region
  $region18: #{_lambda_.35} parent=0 // pred_check
    _
  $region19: #{_lambda_.35} parent=0 // pred_check_branch
    %19 = sbr.rel (0) target = $region21
  $region20: #{_lambda_.35} parent=0 // pred_region
    _
  $region21: #{_lambda_.35} parent=0 // pred_fallthru
    _
  %p21 = scmp.eq.s32.totalorder 0, 0
  // Predicated region
  $region22: #{_lambda_.35} parent=0 // pred_check
    %p22 = pneg %p21
  $region23: #{_lambda_.35} parent=0 // pred_check_branch
    %24 = sbr.rel (%p22) target = $region25
  $region24: #{_lambda_.35} parent=0 // pred_region
    %25 = vst [vmem:[#allocation2] sm:$0xff] 0.0
  $region25: #{_lambda_.35} parent=0 // pred_fallthru
    _
  %v26 = vld [vmem:[#allocation2] sm:$0xff]
  %v27 = vld [vmem:[%s0] sm:$0xff]
  %v28 = vld [vmem:[%s0 + $0x8] sm:$0xff]
  %v29 = vld [vmem:[%s0 + $0x10] sm:$0xf]
  %v30 = vld [vmem:[%s1] sm:$0xf]
  %v31 = vld [vmem:[%s1 + $0x4] sm:$0xf]
  %v32 = vld [vmem:[%s1 + $0x8] sm:$0xf]
  %v33 = vld [vmem:[%s1 + $0xc] sm:$0xf]
  %v34 = vld [vmem:[%s1 + $0x10] sm:$0xf]
  %v35 = vld [vmem:[%s1 + $0x14] sm:$0xf]
  %v36 = vld [vmem:[%s1 + $0x18] sm:$0xf]
  %v37 = vld [vmem:[%s1 + $0x1c] sm:$0xf]
  %v38 = vld [vmem:[%s1 + $0x20] sm:$0xf]
  %v39 = vld [vmem:[%s1 + $0x24] sm:$0xf]
  %v40 = vld [vmem:[%s1 + $0x28] sm:$0xf]
  %v41 = vld [vmem:[%s1 + $0x2c] sm:$0xf]
  %v42 = vld [vmem:[%s1 + $0x30] sm:$0xf]
  %v43 = vld [vmem:[%s1 + $0x34] sm:$0xf]
  %v44 = vld [vmem:[%s1 + $0x38] sm:$0xf]
  %v45 = vld [vmem:[%s1 + $0x3c] sm:$0xf]
  %v46 = vld [vmem:[%s1 + $0x40] sm:$0xf]
  %v47 = vld [vmem:[%s1 + $0x44] sm:$0xf]
  %v48 = vld [vmem:[%s1 + $0x48] sm:$0xf]
  %v49 = vld [vmem:[%s1 + $0x4c] sm:$0xf]
  %v50 = vld [vmem:[%s1 + $0x50] sm:$0xf]
  %v51 = vld [vmem:[%s1 + $0x54] sm:$0xf]
  %v52 = vld [vmem:[%s1 + $0x58] sm:$0xf]
  %v53 = vld [vmem:[%s1 + $0x5c] sm:$0xf]
  %v54 = vld [vmem:[%s1 + $0x60] sm:$0xf]
  %v55 = vld [vmem:[%s1 + $0x64] sm:$0xf]
  %v56 = vld [vmem:[%s1 + $0x68] sm:$0xf]
  %v57 = vld [vmem:[%s1 + $0x6c] sm:$0xf]
  %v58 = vld [vmem:[%s1 + $0x70] sm:$0xf]
  %v59 = vld [vmem:[%s1 + $0x74] sm:$0xf]
  %v60 = vld [vmem:[%s1 + $0x78] sm:$0xf]
  %v61 = vld [vmem:[%s1 + $0x7c] sm:$0xf]
  %v62 = vld [vmem:[%s1 + $0x80] sm:$0xf]
  %v63 = vld [vmem:[%s1 + $0x84] sm:$0xf]
  %v64 = vld [vmem:[%s1 + $0x88] sm:$0xf]
  %v65 = vld [vmem:[%s1 + $0x8c] sm:$0xf]
  %v66 = vld [vmem:[%s1 + $0x90] sm:$0xf]
  %v67 = vld [vmem:[%s1 + $0x94] sm:$0xf]
  %v68 = vld [vmem:[%s1 + $0x98] sm:$0xf]
  %v69 = vld [vmem:[%s1 + $0x9c] sm:$0xf]
  %v70 = vld [vmem:[%s1 + $0xa0] sm:$0xf]
  %v71 = vld [vmem:[%s1 + $0xa4] sm:$0xf]
  %v72 = vld [vmem:[%s1 + $0xa8] sm:$0xf]
  %v73 = vld [vmem:[%s1 + $0xac] sm:$0xf]
  %v74 = vld [vmem:[%s1 + $0xb0] sm:$0xf]
  %v75 = vld [vmem:[%s1 + $0xb4] sm:$0xf]
  %v76 = vld [vmem:[%s1 + $0xb8] sm:$0xf]
  %v77 = vld [vmem:[%s1 + $0xbc] sm:$0xf]
  %v78 = vld [vmem:[%s1 + $0xc0] sm:$0xf]
  %v79 = vld [vmem:[%s1 + $0xc4] sm:$0xf]
  %v80 = vld [vmem:[%s1 + $0xc8] sm:$0xf]
  %v81 = vld [vmem:[%s1 + $0xcc] sm:$0xf]
  %v82 = vld [vmem:[%s1 + $0xd0] sm:$0xf]
  %v83 = vld [vmem:[%s1 + $0xd4] sm:$0xf]
  %v84 = vld [vmem:[%s1 + $0xd8] sm:$0xf]
  %v85 = vld [vmem:[%s1 + $0xdc] sm:$0xf]
  %v86 = vld [vmem:[%s1 + $0xe0] sm:$0xf]
  %v87 = vld [vmem:[%s1 + $0xe4] sm:$0xf]
  %v88 = vld [vmem:[%s1 + $0xe8] sm:$0xf]
  %v89 = vld [vmem:[%s1 + $0xec] sm:$0xf]
  %v90 = vld [vmem:[%s1 + $0xf0] sm:$0xf]
  %v91 = vld [vmem:[%s1 + $0xf4] sm:$0xf]
  %v92 = vld [vmem:[%s1 + $0xf8] sm:$0xf]
  %v93 = vld [vmem:[%s1 + $0xfc] sm:$0xf]
  %v94 = vld [vmem:[%s1 + $0x100] sm:$0xf]
  %v95 = vld [vmem:[%s1 + $0x104] sm:$0xf]
  %v96 = vld [vmem:[%s1 + $0x108] sm:$0xf]
  %v97 = vld [vmem:[%s1 + $0x10c] sm:$0xf]
  %v98 = vld [vmem:[%s1 + $0x110] sm:$0xf]
  %v99 = vld [vmem:[%s1 + $0x114] sm:$0xf]
  %v100 = vld [vmem:[%s1 + $0x118] sm:$0xf]
  %v101 = vld [vmem:[%s1 + $0x11c] sm:$0xf]
  %v105 = vunpack.c.l.b16 %v27
  %v106 = vunpack.c.h.b16 %v27
  %v107 = vunpack.c.l.b16 %v28
  %v108 = vunpack.c.h.b16 %v28
  %v109 = vunpack.c.l.b16 %v29
  %v110 = vpack.c.b16 %v105, %v105
  %v111 = vpack.c.b16 %v106, %v106
  %v112 = vpack.c.b16 %v107, %v107
  %v113 = vpack.c.b16 %v108, %v108
  %v114 = vpack.c.b16 %v109, %v109
  %v191 = vunpack.c.l.b16 %v30
  %v192 = vunpack.c.l.b16 %v31
  %v193 = vunpack.c.l.b16 %v32
  %v194 = vunpack.c.l.b16 %v33
  %v195 = vunpack.c.l.b16 %v34
  %v196 = vunpack.c.l.b16 %v35
  %v197 = vunpack.c.l.b16 %v36
  %v198 = vunpack.c.l.b16 %v37
  %v199 = vunpack.c.l.b16 %v38
  %v200 = vunpack.c.l.b16 %v39
  %v201 = vunpack.c.l.b16 %v40
  %v202 = vunpack.c.l.b16 %v41
  %v203 = vunpack.c.l.b16 %v42
  %v204 = vunpack.c.l.b16 %v43
  %v205 = vunpack.c.l.b16 %v44
  %v206 = vunpack.c.l.b16 %v45
  %v207 = vunpack.c.l.b16 %v46
  %v208 = vunpack.c.l.b16 %v47
  %v209 = vunpack.c.l.b16 %v48
  %v210 = vunpack.c.l.b16 %v49
  %v211 = vunpack.c.l.b16 %v50
  %v212 = vunpack.c.l.b16 %v51
  %v213 = vunpack.c.l.b16 %v52
  %v214 = vunpack.c.l.b16 %v53
  %v215 = vunpack.c.l.b16 %v54
  %v216 = vunpack.c.l.b16 %v55
  %v217 = vunpack.c.l.b16 %v56
  %v218 = vunpack.c.l.b16 %v57
  %v219 = vunpack.c.l.b16 %v58
  %v220 = vunpack.c.l.b16 %v59
  %v221 = vunpack.c.l.b16 %v60
  %v222 = vunpack.c.l.b16 %v61
  %v223 = vunpack.c.l.b16 %v62
  %v224 = vunpack.c.l.b16 %v63
  %v225 = vunpack.c.l.b16 %v64
  %v226 = vunpack.c.l.b16 %v65
  %v227 = vunpack.c.l.b16 %v66
  %v228 = vunpack.c.l.b16 %v67
  %v229 = vunpack.c.l.b16 %v68
  %v230 = vunpack.c.l.b16 %v69
  %v231 = vunpack.c.l.b16 %v70
  %v232 = vunpack.c.l.b16 %v71
  %v233 = vunpack.c.l.b16 %v72
  %v234 = vunpack.c.l.b16 %v73
  %v235 = vunpack.c.l.b16 %v74
  %v236 = vunpack.c.l.b16 %v75
  %v237 = vunpack.c.l.b16 %v76
  %v238 = vunpack.c.l.b16 %v77
  %v239 = vunpack.c.l.b16 %v78
  %v240 = vunpack.c.l.b16 %v79
  %v241 = vunpack.c.l.b16 %v80
  %v242 = vunpack.c.l.b16 %v81
  %v243 = vunpack.c.l.b16 %v82
  %v244 = vunpack.c.l.b16 %v83
  %v245 = vunpack.c.l.b16 %v84
  %v246 = vunpack.c.l.b16 %v85
  %v247 = vunpack.c.l.b16 %v86
  %v248 = vunpack.c.l.b16 %v87
  %v249 = vunpack.c.l.b16 %v88
  %v250 = vunpack.c.l.b16 %v89
  %v251 = vunpack.c.l.b16 %v90
  %v252 = vunpack.c.l.b16 %v91
  %v253 = vunpack.c.l.b16 %v92
  %v254 = vunpack.c.l.b16 %v93
  %v255 = vunpack.c.l.b16 %v94
  %v256 = vunpack.c.l.b16 %v95
  %v257 = vunpack.c.l.b16 %v96
  %v258 = vunpack.c.l.b16 %v97
  %v259 = vunpack.c.l.b16 %v98
  %v260 = vunpack.c.l.b16 %v99
  %v261 = vunpack.c.l.b16 %v100
  %v262 = vunpack.c.l.b16 %v101
  %v263 = vpack.c.b16 %v192, %v191
  %v264 = vpack.c.b16 %v194, %v193
  %v265 = vpack.c.b16 %v196, %v195
  %v266 = vpack.c.b16 %v198, %v197
  %v267 = vpack.c.b16 %v200, %v199
  %v268 = vpack.c.b16 %v202, %v201
  %v269 = vpack.c.b16 %v204, %v203
  %v270 = vpack.c.b16 %v206, %v205
  %v271 = vpack.c.b16 %v208, %v207
  %v272 = vpack.c.b16 %v210, %v209
  %v273 = vpack.c.b16 %v212, %v211
  %v274 = vpack.c.b16 %v214, %v213
  %v275 = vpack.c.b16 %v216, %v215
  %v276 = vpack.c.b16 %v218, %v217
  %v277 = vpack.c.b16 %v220, %v219
  %v278 = vpack.c.b16 %v222, %v221
  %v279 = vpack.c.b16 %v224, %v223
  %v280 = vpack.c.b16 %v226, %v225
  %v281 = vpack.c.b16 %v228, %v227
  %v282 = vpack.c.b16 %v230, %v229
  %v283 = vpack.c.b16 %v232, %v231
  %v284 = vpack.c.b16 %v234, %v233
  %v285 = vpack.c.b16 %v236, %v235
  %v286 = vpack.c.b16 %v238, %v237
  %v287 = vpack.c.b16 %v240, %v239
  %v288 = vpack.c.b16 %v242, %v241
  %v289 = vpack.c.b16 %v244, %v243
  %v290 = vpack.c.b16 %v246, %v245
  %v291 = vpack.c.b16 %v248, %v247
  %v292 = vpack.c.b16 %v250, %v249
  %v293 = vpack.c.b16 %v252, %v251
  %v294 = vpack.c.b16 %v254, %v253
  %v295 = vpack.c.b16 %v256, %v255
  %v296 = vpack.c.b16 %v258, %v257
  %v297 = vpack.c.b16 %v260, %v259
  %v298 = vpack.c.b16 %v262, %v261
  %vm335 = vcmask 523264
  %v337 = vsel %vm335, %v114, 0
  %339 = vmatprep.subr.bf16.mxu0 0
  %340 = vmatpush1.bf16.msra.mxu0 %v263
  %341 = vmatprep.subr.bf16.mxu0 0
  %342 = vmatpush1.bf16.msra.mxu0 %v264
  %343 = vmatprep.subr.bf16.mxu0 0
  %344 = vmatpush1.bf16.msra.mxu0 %v265
  %345 = vmatprep.subr.bf16.mxu0 0
  %346 = vmatpush1.bf16.msra.mxu0 %v266
  %347 = vmatprep.subr.bf16.mxu0 0
  %348 = vmatpush1.bf16.msra.mxu0 %v267
  %349 = vmatprep.subr.bf16.mxu0 0
  %350 = vmatpush1.bf16.msra.mxu0 %v268
  %351 = vmatprep.subr.bf16.mxu0 0
  %352 = vmatpush1.bf16.msra.mxu0 %v269
  %353 = vmatprep.subr.bf16.mxu0 0
  %354 = vmatpush1.bf16.msra.mxu0 %v270
  %355 = vmatprep.subr.bf16.mxu0 0
  %356 = vmatpush1.bf16.msra.mxu0 %v271
  %357 = vmatprep.subr.bf16.mxu0 0
  %358 = vmatpush1.bf16.msra.mxu0 %v272
  %359 = vmatprep.subr.bf16.mxu0 0
  %360 = vmatpush1.bf16.msra.mxu0 %v273
  %361 = vmatprep.subr.bf16.mxu0 0
  %362 = vmatpush1.bf16.msra.mxu0 %v274
  %363 = vmatprep.subr.bf16.mxu0 0
  %364 = vmatpush1.bf16.msra.mxu0 %v275
  %365 = vmatprep.subr.bf16.mxu0 0
  %366 = vmatpush1.bf16.msra.mxu0 %v276
  %367 = vmatprep.subr.bf16.mxu0 0
  %368 = vmatpush1.bf16.msra.mxu0 %v277
  %369 = vmatprep.subr.bf16.mxu0 0
  %370 = vmatpush1.bf16.msra.mxu0 %v278
  %371 = vmatprep.mubr.bf16.mxu0 %v111
  %372 = vmatmul.mubr.bf16.gmra.mrb[0].mxu0 %v110
  %v373 = vpop.f32.mrb[0].mxu0
  %v374 = vadd.f32 0.0, %v373
  %v375 = vpop.f32.mrb[0].mxu0
  %v376 = vpop.f32.mrb[0].mxu0
  %v377 = vpop.f32.mrb[0].mxu0
  %378 = vdwg.mxu0
  %379 = vmatprep.subr.bf16.mxu0 0
  %380 = vmatpush1.bf16.msra.mxu0 %v279
  %381 = vmatprep.subr.bf16.mxu0 0
  %382 = vmatpush1.bf16.msra.mxu0 %v280
  %383 = vmatprep.subr.bf16.mxu0 0
  %384 = vmatpush1.bf16.msra.mxu0 %v281
  %385 = vmatprep.subr.bf16.mxu0 0
  %386 = vmatpush1.bf16.msra.mxu0 %v282
  %387 = vmatprep.subr.bf16.mxu0 0
  %388 = vmatpush1.bf16.msra.mxu0 %v283
  %389 = vmatprep.subr.bf16.mxu0 0
  %390 = vmatpush1.bf16.msra.mxu0 %v284
  %391 = vmatprep.subr.bf16.mxu0 0
  %392 = vmatpush1.bf16.msra.mxu0 %v285
  %393 = vmatprep.subr.bf16.mxu0 0
  %394 = vmatpush1.bf16.msra.mxu0 %v286
  %395 = vmatprep.subr.bf16.mxu0 0
  %396 = vmatpush1.bf16.msra.mxu0 %v287
  %397 = vmatprep.subr.bf16.mxu0 0
  %398 = vmatpush1.bf16.msra.mxu0 %v288
  %399 = vmatprep.subr.bf16.mxu0 0
  %400 = vmatpush1.bf16.msra.mxu0 %v289
  %401 = vmatprep.subr.bf16.mxu0 0
  %402 = vmatpush1.bf16.msra.mxu0 %v290
  %403 = vmatprep.subr.bf16.mxu0 0
  %404 = vmatpush1.bf16.msra.mxu0 %v291
  %405 = vmatprep.subr.bf16.mxu0 0
  %406 = vmatpush1.bf16.msra.mxu0 %v292
  %407 = vmatprep.subr.bf16.mxu0 0
  %408 = vmatpush1.bf16.msra.mxu0 %v293
  %409 = vmatprep.subr.bf16.mxu0 0
  %410 = vmatpush1.bf16.msra.mxu0 %v294
  %411 = vmatprep.mubr.bf16.mxu0 %v113
  %412 = vmatmul.mubr.bf16.gmra.mrb[0].mxu0 %v112
  %v413 = vpop.f32.mrb[0].mxu0
  %v414 = vadd.f32 %v374, %v413
  %v415 = vpop.f32.mrb[0].mxu0
  %v416 = vpop.f32.mrb[0].mxu0
  %v417 = vpop.f32.mrb[0].mxu0
  %418 = vdwg.mxu0
  %419 = vmatprep.subr.bf16.mxu0 0
  %420 = vmatpush1.bf16.msra.mxu0 %v295
  %421 = vmatprep.subr.bf16.mxu0 0
  %422 = vmatpush1.bf16.msra.mxu0 %v296
  %423 = vmatprep.subr.bf16.mxu0 0
  %424 = vmatpush1.bf16.msra.mxu0 %v297
  %425 = vmatprep.subr.bf16.mxu0 0
  %426 = vmatpush1.bf16.msra.mxu0 %v298
  %427 = vmatprep.subr.bf16.mxu0 0
  %428 = vmatpush1.bf16.msra.mxu0 0
  %429 = vmatprep.subr.bf16.mxu0 0
  %430 = vmatpush1.bf16.msra.mxu0 0
  %431 = vmatprep.subr.bf16.mxu0 0
  %432 = vmatpush1.bf16.msra.mxu0 0
  %433 = vmatprep.subr.bf16.mxu0 0
  %434 = vmatpush1.bf16.msra.mxu0 0
  %435 = vmatprep.subr.bf16.mxu0 0
  %436 = vmatpush1.bf16.msra.mxu0 0
  %437 = vmatprep.subr.bf16.mxu0 0
  %438 = vmatpush1.bf16.msra.mxu0 0
  %439 = vmatprep.subr.bf16.mxu0 0
  %440 = vmatpush1.bf16.msra.mxu0 0
  %441 = vmatprep.subr.bf16.mxu0 0
  %442 = vmatpush1.bf16.msra.mxu0 0
  %443 = vmatprep.subr.bf16.mxu0 0
  %444 = vmatpush1.bf16.msra.mxu0 0
  %445 = vmatprep.subr.bf16.mxu0 0
  %446 = vmatpush1.bf16.msra.mxu0 0
  %447 = vmatprep.subr.bf16.mxu0 0
  %448 = vmatpush1.bf16.msra.mxu0 0
  %449 = vmatprep.subr.bf16.mxu0 0
  %450 = vmatpush1.bf16.msra.mxu0 0
  %451 = vmatprep.mubr.bf16.mxu0 0
  %452 = vmatmul.mubr.bf16.gmra.mrb[0].mxu0 %v337
  %v453 = vpop.f32.mrb[0].mxu0
  %v454 = vadd.f32 %v414, %v453
  %v455 = vpop.f32.mrb[0].mxu0
  %v456 = vpop.f32.mrb[0].mxu0
  %v457 = vpop.f32.mrb[0].mxu0
  %458 = vdwg.mxu0
  %v459 = vadd.f32 %v26, %v454
  %460 = vst [vmem:[#allocation2] sm:$0xff] %v459
  // Predicated region
  $region26: #{_lambda_.35} parent=0 // pred_check
    %p461 = pneg %p21
  $region27: #{_lambda_.35} parent=0 // pred_check_branch
    %463 = sbr.rel (%p461) target = $region29
  $region28: #{_lambda_.35} parent=0 // pred_region
    %v464 = vld [vmem:[#allocation2] sm:$0xff]
    %v465 = vld [vmem:[%s2] sm:$0x1]
    %v467 = vlaneseq
    %v468 = vshrl.u32 %v467, 7
    %v469 = vsub.s32 0, %v468
    %v470 = vrot.slane %v465, %v469
    %v472 = vmul.f32 %v464, %v470
    %v473 = vld [vmem:[%s3] sm:$0x1]
    %v475 = vlaneseq
    %v476 = vshrl.u32 %v475, 7
    %v477 = vsub.s32 0, %v476
    %v478 = vrot.slane %v473, %v477
    %v480 = vadd.f32 %v472, %v478
    %v481 = vld [vmem:[%s4] sm:$0xf]
    %v482 = vunpack.c.l.bf16 %v481
    %v483 = vadd.f32 %v480, %v482
    %v484 = vmax.f32 %v483, 0.0
    %v485 = vpack.c.bf16 %v484, %v484
    %486 = vst [vmem:[%s5] sm:$0xf] %v485
  $region29: #{_lambda_.35} parent=0 // pred_fallthru
    _
  // Predicated region
  $region30: #{_lambda_.35} parent=0 // pred_check
    _
  $region31: #{_lambda_.35} parent=0 // pred_check_branch
    %488 = sbr.rel (0) target = $region33
  $region32: #{_lambda_.35} parent=0 // pred_region
    _
  $region33: #{_lambda_.35} parent=0 // pred_fallthru
    _
  // Predicated region
  $region34: #{_lambda_.35} parent=0 // pred_check
    _
  $region35: #{_lambda_.35} parent=0 // pred_check_branch
    %490 = sbr.rel (0) target = $region37
  $region36: #{_lambda_.35} parent=0 // pred_region
    _
  $region37: #{_lambda_.35} parent=0 // pred_fallthru
    _

// kernel: _lambda_.39
$region0: #{_lambda_.39}
  #allocation0 [shape = 'u32[]', space=smem, size = 0x4, offset = 0x4, fixed_abs, tag = 'smem constant byte address 0x4 - core index']
  #allocation1 [shape = 'u32[144,128]{1,0:T(1,128)}', space=vmem, size = 0x12000, scoped, tag = 'internal scratch']
  #allocation2 [shape = 'f32[2,128]{1,0:T(2,128)}', space=vmem, size = 0x400, scoped, tag = 'scratch operand']
  %s0 = inlined_call_operand.vmem [shape: bf16[2,576], index: 0, kind: input, shape index: {}]
  %s1 = inlined_call_operand.vmem [shape: bf16[576,128], index: 1, kind: input, shape index: {}]
  %s2 = inlined_call_operand.vmem [shape: f32[1,128], index: 2, kind: input, shape index: {}]
  %s3 = inlined_call_operand.vmem [shape: f32[1,128], index: 3, kind: input, shape index: {}]
  %s4 = inlined_call_operand.vmem [shape: bf16[2,128], index: 4, kind: output, shape index: {}]
  %s5 = sld [smem:[#allocation0]]
  $region34: #{_lambda_.39} parent=0
    _
  %s7 = ssub.s32 1, %s5
  %s8 = scalar_select 0, %s7, %s5
  // Predicated region
  $region2: #{_lambda_.39} parent=0 // pred_check
    _
  $region3: #{_lambda_.39} parent=0 // pred_check_branch
    %10 = sbr.rel (0) target = $region5
  $region4: #{_lambda_.39} parent=0 // pred_region
    _
  $region5: #{_lambda_.39} parent=0 // pred_fallthru
    _
  // Predicated region
  $region6: #{_lambda_.39} parent=0 // pred_check
    _
  $region7: #{_lambda_.39} parent=0 // pred_check_branch
    %12 = sbr.rel (0) target = $region9
  $region8: #{_lambda_.39} parent=0 // pred_region
    _
  $region9: #{_lambda_.39} parent=0 // pred_fallthru
    _
  // Predicated region
  $region10: #{_lambda_.39} parent=0 // pred_check
    _
  $region11: #{_lambda_.39} parent=0 // pred_check_branch
    %14 = sbr.rel (0) target = $region13
  $region12: #{_lambda_.39} parent=0 // pred_region
    _
  $region13: #{_lambda_.39} parent=0 // pred_fallthru
    _
  // Predicated region
  $region14: #{_lambda_.39} parent=0 // pred_check
    _
  $region15: #{_lambda_.39} parent=0 // pred_check_branch
    %16 = sbr.rel (0) target = $region17
  $region16: #{_lambda_.39} parent=0 // pred_region
    _
  $region17: #{_lambda_.39} parent=0 // pred_fallthru
    _
  %p18 = scmp.eq.s32.totalorder 0, 0
  // Predicated region
  $region18: #{_lambda_.39} parent=0 // pred_check
    %p19 = pneg %p18
  $region19: #{_lambda_.39} parent=0 // pred_check_branch
    %21 = sbr.rel (%p19) target = $region21
  $region20: #{_lambda_.39} parent=0 // pred_region
    %22 = vst [vmem:[#allocation2] sm:$0x3] 0.0
  $region21: #{_lambda_.39} parent=0 // pred_fallthru
    _
  %v23 = vld [vmem:[#allocation2] sm:$0x3]
  %v24 = vld [vmem:[%s0] sm:$0x1f]
  %v25 = vld [vmem:[%s1] sm:$0xf]
  %v26 = vld [vmem:[%s1 + $0x4] sm:$0xf]
  %v27 = vld [vmem:[%s1 + $0x8] sm:$0xf]
  %v28 = vld [vmem:[%s1 + $0xc] sm:$0xf]
  %v29 = vld [vmem:[%s1 + $0x10] sm:$0xf]
  %v30 = vld [vmem:[%s1 + $0x14] sm:$0xf]
  %v31 = vld [vmem:[%s1 + $0x18] sm:$0xf]
  %v32 = vld [vmem:[%s1 + $0x1c] sm:$0xf]
  %v33 = vld [vmem:[%s1 + $0x20] sm:$0xf]
  %v34 = vld [vmem:[%s1 + $0x24] sm:$0xf]
  %v35 = vld [vmem:[%s1 + $0x28] sm:$0xf]
  %v36 = vld [vmem:[%s1 + $0x2c] sm:$0xf]
  %v37 = vld [vmem:[%s1 + $0x30] sm:$0xf]
  %v38 = vld [vmem:[%s1 + $0x34] sm:$0xf]
  %v39 = vld [vmem:[%s1 + $0x38] sm:$0xf]
  %v40 = vld [vmem:[%s1 + $0x3c] sm:$0xf]
  %v41 = vld [vmem:[%s1 + $0x40] sm:$0xf]
  %v42 = vld [vmem:[%s1 + $0x44] sm:$0xf]
  %v43 = vld [vmem:[%s1 + $0x48] sm:$0xf]
  %v44 = vld [vmem:[%s1 + $0x4c] sm:$0xf]
  %v45 = vld [vmem:[%s1 + $0x50] sm:$0xf]
  %v46 = vld [vmem:[%s1 + $0x54] sm:$0xf]
  %v47 = vld [vmem:[%s1 + $0x58] sm:$0xf]
  %v48 = vld [vmem:[%s1 + $0x5c] sm:$0xf]
  %v49 = vld [vmem:[%s1 + $0x60] sm:$0xf]
  %v50 = vld [vmem:[%s1 + $0x64] sm:$0xf]
  %v51 = vld [vmem:[%s1 + $0x68] sm:$0xf]
  %v52 = vld [vmem:[%s1 + $0x6c] sm:$0xf]
  %v53 = vld [vmem:[%s1 + $0x70] sm:$0xf]
  %v54 = vld [vmem:[%s1 + $0x74] sm:$0xf]
  %v55 = vld [vmem:[%s1 + $0x78] sm:$0xf]
  %v56 = vld [vmem:[%s1 + $0x7c] sm:$0xf]
  %v57 = vld [vmem:[%s1 + $0x80] sm:$0xf]
  %v58 = vld [vmem:[%s1 + $0x84] sm:$0xf]
  %v59 = vld [vmem:[%s1 + $0x88] sm:$0xf]
  %v60 = vld [vmem:[%s1 + $0x8c] sm:$0xf]
  %v61 = vld [vmem:[%s1 + $0x90] sm:$0xf]
  %v62 = vld [vmem:[%s1 + $0x94] sm:$0xf]
  %v63 = vld [vmem:[%s1 + $0x98] sm:$0xf]
  %v64 = vld [vmem:[%s1 + $0x9c] sm:$0xf]
  %v65 = vld [vmem:[%s1 + $0xa0] sm:$0xf]
  %v66 = vld [vmem:[%s1 + $0xa4] sm:$0xf]
  %v67 = vld [vmem:[%s1 + $0xa8] sm:$0xf]
  %v68 = vld [vmem:[%s1 + $0xac] sm:$0xf]
  %v69 = vld [vmem:[%s1 + $0xb0] sm:$0xf]
  %v70 = vld [vmem:[%s1 + $0xb4] sm:$0xf]
  %v71 = vld [vmem:[%s1 + $0xb8] sm:$0xf]
  %v72 = vld [vmem:[%s1 + $0xbc] sm:$0xf]
  %v73 = vld [vmem:[%s1 + $0xc0] sm:$0xf]
  %v74 = vld [vmem:[%s1 + $0xc4] sm:$0xf]
  %v75 = vld [vmem:[%s1 + $0xc8] sm:$0xf]
  %v76 = vld [vmem:[%s1 + $0xcc] sm:$0xf]
  %v77 = vld [vmem:[%s1 + $0xd0] sm:$0xf]
  %v78 = vld [vmem:[%s1 + $0xd4] sm:$0xf]
  %v79 = vld [vmem:[%s1 + $0xd8] sm:$0xf]
  %v80 = vld [vmem:[%s1 + $0xdc] sm:$0xf]
  %v81 = vld [vmem:[%s1 + $0xe0] sm:$0xf]
  %v82 = vld [vmem:[%s1 + $0xe4] sm:$0xf]
  %v83 = vld [vmem:[%s1 + $0xe8] sm:$0xf]
  %v84 = vld [vmem:[%s1 + $0xec] sm:$0xf]
  %v85 = vld [vmem:[%s1 + $0xf0] sm:$0xf]
  %v86 = vld [vmem:[%s1 + $0xf4] sm:$0xf]
  %v87 = vld [vmem:[%s1 + $0xf8] sm:$0xf]
  %v88 = vld [vmem:[%s1 + $0xfc] sm:$0xf]
  %v89 = vld [vmem:[%s1 + $0x100] sm:$0xf]
  %v90 = vld [vmem:[%s1 + $0x104] sm:$0xf]
  %v91 = vld [vmem:[%s1 + $0x108] sm:$0xf]
  %v92 = vld [vmem:[%s1 + $0x10c] sm:$0xf]
  %v93 = vld [vmem:[%s1 + $0x110] sm:$0xf]
  %v94 = vld [vmem:[%s1 + $0x114] sm:$0xf]
  %v95 = vld [vmem:[%s1 + $0x118] sm:$0xf]
  %v96 = vld [vmem:[%s1 + $0x11c] sm:$0xf]
  %v98 = vcombine.high %v24, %v24
  %v100 = vunpack.c.l.s4 1966171168
  %v101 = vunpack.c.0.s8 %v100
  %v102 = vlaneseq
  %v103 = vshrl.u32 %v102, 7
  %v104 = vsub.s32 %v101, %v103
  %v105 = vrot.slane %v24, %v104
  %v107 = vunpack.c.l.s4 1966171168
  %v108 = vunpack.c.0.s8 %v107
  %v109 = vlaneseq
  %v110 = vshrl.u32 %v109, 7
  %v111 = vsub.s32 %v108, %v110
  %v112 = vrot.slane %v98, %v111
  %v113 = vcombine.high %v105, %v105
  %v115 = vunpack.c.l.s4 1966171168
  %v116 = vunpack.c.0.s8 %v115
  %v117 = vlaneseq
  %v118 = vshrl.u32 %v117, 7
  %v119 = vsub.s32 %v116, %v118
  %v120 = vrot.slane %v105, %v119
  %v122 = vunpack.c.l.s4 1966171168
  %v123 = vunpack.c.0.s8 %v122
  %v124 = vlaneseq
  %v125 = vshrl.u32 %v124, 7
  %v126 = vsub.s32 %v123, %v125
  %v127 = vrot.slane %v112, %v126
  %v129 = vunpack.c.l.s4 1966171168
  %v130 = vunpack.c.0.s8 %v129
  %v131 = vlaneseq
  %v132 = vshrl.u32 %v131, 7
  %v133 = vsub.s32 %v130, %v132
  %v134 = vrot.slane %v113, %v133
  %v135 = vcombine.high %v120, %v120
  %v136 = vcombine.high %v134, %v134
  %v213 = vunpack.c.l.b16 %v25
  %v214 = vunpack.c.l.b16 %v26
  %v215 = vunpack.c.l.b16 %v27
  %v216 = vunpack.c.l.b16 %v28
  %v217 = vunpack.c.l.b16 %v29
  %v218 = vunpack.c.l.b16 %v30
  %v219 = vunpack.c.l.b16 %v31
  %v220 = vunpack.c.l.b16 %v32
  %v221 = vunpack.c.l.b16 %v33
  %v222 = vunpack.c.l.b16 %v34
  %v223 = vunpack.c.l.b16 %v35
  %v224 = vunpack.c.l.b16 %v36
  %v225 = vunpack.c.l.b16 %v37
  %v226 = vunpack.c.l.b16 %v38
  %v227 = vunpack.c.l.b16 %v39
  %v228 = vunpack.c.l.b16 %v40
  %v229 = vunpack.c.l.b16 %v41
  %v230 = vunpack.c.l.b16 %v42
  %v231 = vunpack.c.l.b16 %v43
  %v232 = vunpack.c.l.b16 %v44
  %v233 = vunpack.c.l.b16 %v45
  %v234 = vunpack.c.l.b16 %v46
  %v235 = vunpack.c.l.b16 %v47
  %v236 = vunpack.c.l.b16 %v48
  %v237 = vunpack.c.l.b16 %v49
  %v238 = vunpack.c.l.b16 %v50
  %v239 = vunpack.c.l.b16 %v51
  %v240 = vunpack.c.l.b16 %v52
  %v241 = vunpack.c.l.b16 %v53
  %v242 = vunpack.c.l.b16 %v54
  %v243 = vunpack.c.l.b16 %v55
  %v244 = vunpack.c.l.b16 %v56
  %v245 = vunpack.c.l.b16 %v57
  %v246 = vunpack.c.l.b16 %v58
  %v247 = vunpack.c.l.b16 %v59
  %v248 = vunpack.c.l.b16 %v60
  %v249 = vunpack.c.l.b16 %v61
  %v250 = vunpack.c.l.b16 %v62
  %v251 = vunpack.c.l.b16 %v63
  %v252 = vunpack.c.l.b16 %v64
  %v253 = vunpack.c.l.b16 %v65
  %v254 = vunpack.c.l.b16 %v66
  %v255 = vunpack.c.l.b16 %v67
  %v256 = vunpack.c.l.b16 %v68
  %v257 = vunpack.c.l.b16 %v69
  %v258 = vunpack.c.l.b16 %v70
  %v259 = vunpack.c.l.b16 %v71
  %v260 = vunpack.c.l.b16 %v72
  %v261 = vunpack.c.l.b16 %v73
  %v262 = vunpack.c.l.b16 %v74
  %v263 = vunpack.c.l.b16 %v75
  %v264 = vunpack.c.l.b16 %v76
  %v265 = vunpack.c.l.b16 %v77
  %v266 = vunpack.c.l.b16 %v78
  %v267 = vunpack.c.l.b16 %v79
  %v268 = vunpack.c.l.b16 %v80
  %v269 = vunpack.c.l.b16 %v81
  %v270 = vunpack.c.l.b16 %v82
  %v271 = vunpack.c.l.b16 %v83
  %v272 = vunpack.c.l.b16 %v84
  %v273 = vunpack.c.l.b16 %v85
  %v274 = vunpack.c.l.b16 %v86
  %v275 = vunpack.c.l.b16 %v87
  %v276 = vunpack.c.l.b16 %v88
  %v277 = vunpack.c.l.b16 %v89
  %v278 = vunpack.c.l.b16 %v90
  %v279 = vunpack.c.l.b16 %v91
  %v280 = vunpack.c.l.b16 %v92
  %v281 = vunpack.c.l.b16 %v93
  %v282 = vunpack.c.l.b16 %v94
  %v283 = vunpack.c.l.b16 %v95
  %v284 = vunpack.c.l.b16 %v96
  %v285 = vpack.c.b16 %v214, %v213
  %v286 = vpack.c.b16 %v216, %v215
  %v287 = vpack.c.b16 %v218, %v217
  %v288 = vpack.c.b16 %v220, %v219
  %v289 = vpack.c.b16 %v222, %v221
  %v290 = vpack.c.b16 %v224, %v223
  %v291 = vpack.c.b16 %v226, %v225
  %v292 = vpack.c.b16 %v228, %v227
  %v293 = vpack.c.b16 %v230, %v229
  %v294 = vpack.c.b16 %v232, %v231
  %v295 = vpack.c.b16 %v234, %v233
  %v296 = vpack.c.b16 %v236, %v235
  %v297 = vpack.c.b16 %v238, %v237
  %v298 = vpack.c.b16 %v240, %v239
  %v299 = vpack.c.b16 %v242, %v241
  %v300 = vpack.c.b16 %v244, %v243
  %v301 = vpack.c.b16 %v246, %v245
  %v302 = vpack.c.b16 %v248, %v247
  %v303 = vpack.c.b16 %v250, %v249
  %v304 = vpack.c.b16 %v252, %v251
  %v305 = vpack.c.b16 %v254, %v253
  %v306 = vpack.c.b16 %v256, %v255
  %v307 = vpack.c.b16 %v258, %v257
  %v308 = vpack.c.b16 %v260, %v259
  %v309 = vpack.c.b16 %v262, %v261
  %v310 = vpack.c.b16 %v264, %v263
  %v311 = vpack.c.b16 %v266, %v265
  %v312 = vpack.c.b16 %v268, %v267
  %v313 = vpack.c.b16 %v270, %v269
  %v314 = vpack.c.b16 %v272, %v271
  %v315 = vpack.c.b16 %v274, %v273
  %v316 = vpack.c.b16 %v276, %v275
  %v317 = vpack.c.b16 %v278, %v277
  %v318 = vpack.c.b16 %v280, %v279
  %v319 = vpack.c.b16 %v282, %v281
  %v320 = vpack.c.b16 %v284, %v283
  %vm357 = vcmask 523264
  %v359 = vsel %vm357, %v127, 0
  %361 = vmatprep.subr.bf16.mxu0 0
  %362 = vmatpush1.bf16.msra.mxu0 %v285
  %363 = vmatprep.subr.bf16.mxu0 0
  %364 = vmatpush1.bf16.msra.mxu0 %v286
  %365 = vmatprep.subr.bf16.mxu0 0
  %366 = vmatpush1.bf16.msra.mxu0 %v287
  %367 = vmatprep.subr.bf16.mxu0 0
  %368 = vmatpush1.bf16.msra.mxu0 %v288
  %369 = vmatprep.subr.bf16.mxu0 0
  %370 = vmatpush1.bf16.msra.mxu0 %v289
  %371 = vmatprep.subr.bf16.mxu0 0
  %372 = vmatpush1.bf16.msra.mxu0 %v290
  %373 = vmatprep.subr.bf16.mxu0 0
  %374 = vmatpush1.bf16.msra.mxu0 %v291
  %375 = vmatprep.subr.bf16.mxu0 0
  %376 = vmatpush1.bf16.msra.mxu0 %v292
  %377 = vmatprep.subr.bf16.mxu0 0
  %378 = vmatpush1.bf16.msra.mxu0 %v293
  %379 = vmatprep.subr.bf16.mxu0 0
  %380 = vmatpush1.bf16.msra.mxu0 %v294
  %381 = vmatprep.subr.bf16.mxu0 0
  %382 = vmatpush1.bf16.msra.mxu0 %v295
  %383 = vmatprep.subr.bf16.mxu0 0
  %384 = vmatpush1.bf16.msra.mxu0 %v296
  %385 = vmatprep.subr.bf16.mxu0 0
  %386 = vmatpush1.bf16.msra.mxu0 %v297
  %387 = vmatprep.subr.bf16.mxu0 0
  %388 = vmatpush1.bf16.msra.mxu0 %v298
  %389 = vmatprep.subr.bf16.mxu0 0
  %390 = vmatpush1.bf16.msra.mxu0 %v299
  %391 = vmatprep.subr.bf16.mxu0 0
  %392 = vmatpush1.bf16.msra.mxu0 %v300
  %393 = vmatprep.mubr.bf16.mxu0 %v134
  %394 = vmatmul.mubr.bf16.gmra.mrb[0].mxu0 %v120
  %v395 = vpop.f32.mrb[0].mxu0
  %v396 = vadd.f32 0.0, %v395
  %v397 = vpop.f32.mrb[0].mxu0
  %v398 = vpop.f32.mrb[0].mxu0
  %v399 = vpop.f32.mrb[0].mxu0
  %400 = vdwg.mxu0
  %401 = vmatprep.subr.bf16.mxu0 0
  %402 = vmatpush1.bf16.msra.mxu0 %v301
  %403 = vmatprep.subr.bf16.mxu0 0
  %404 = vmatpush1.bf16.msra.mxu0 %v302
  %405 = vmatprep.subr.bf16.mxu0 0
  %406 = vmatpush1.bf16.msra.mxu0 %v303
  %407 = vmatprep.subr.bf16.mxu0 0
  %408 = vmatpush1.bf16.msra.mxu0 %v304
  %409 = vmatprep.subr.bf16.mxu0 0
  %410 = vmatpush1.bf16.msra.mxu0 %v305
  %411 = vmatprep.subr.bf16.mxu0 0
  %412 = vmatpush1.bf16.msra.mxu0 %v306
  %413 = vmatprep.subr.bf16.mxu0 0
  %414 = vmatpush1.bf16.msra.mxu0 %v307
  %415 = vmatprep.subr.bf16.mxu0 0
  %416 = vmatpush1.bf16.msra.mxu0 %v308
  %417 = vmatprep.subr.bf16.mxu0 0
  %418 = vmatpush1.bf16.msra.mxu0 %v309
  %419 = vmatprep.subr.bf16.mxu0 0
  %420 = vmatpush1.bf16.msra.mxu0 %v310
  %421 = vmatprep.subr.bf16.mxu0 0
  %422 = vmatpush1.bf16.msra.mxu0 %v311
  %423 = vmatprep.subr.bf16.mxu0 0
  %424 = vmatpush1.bf16.msra.mxu0 %v312
  %425 = vmatprep.subr.bf16.mxu0 0
  %426 = vmatpush1.bf16.msra.mxu0 %v313
  %427 = vmatprep.subr.bf16.mxu0 0
  %428 = vmatpush1.bf16.msra.mxu0 %v314
  %429 = vmatprep.subr.bf16.mxu0 0
  %430 = vmatpush1.bf16.msra.mxu0 %v315
  %431 = vmatprep.subr.bf16.mxu0 0
  %432 = vmatpush1.bf16.msra.mxu0 %v316
  %433 = vmatprep.mubr.bf16.mxu0 %v136
  %434 = vmatmul.mubr.bf16.gmra.mrb[0].mxu0 %v135
  %v435 = vpop.f32.mrb[0].mxu0
  %v436 = vadd.f32 %v396, %v435
  %v437 = vpop.f32.mrb[0].mxu0
  %v438 = vpop.f32.mrb[0].mxu0
  %v439 = vpop.f32.mrb[0].mxu0
  %440 = vdwg.mxu0
  %441 = vmatprep.subr.bf16.mxu0 0
  %442 = vmatpush1.bf16.msra.mxu0 %v317
  %443 = vmatprep.subr.bf16.mxu0 0
  %444 = vmatpush1.bf16.msra.mxu0 %v318
  %445 = vmatprep.subr.bf16.mxu0 0
  %446 = vmatpush1.bf16.msra.mxu0 %v319
  %447 = vmatprep.subr.bf16.mxu0 0
  %448 = vmatpush1.bf16.msra.mxu0 %v320
  %449 = vmatprep.subr.bf16.mxu0 0
  %450 = vmatpush1.bf16.msra.mxu0 0
  %451 = vmatprep.subr.bf16.mxu0 0
  %452 = vmatpush1.bf16.msra.mxu0 0
  %453 = vmatprep.subr.bf16.mxu0 0
  %454 = vmatpush1.bf16.msra.mxu0 0
  %455 = vmatprep.subr.bf16.mxu0 0
  %456 = vmatpush1.bf16.msra.mxu0 0
  %457 = vmatprep.subr.bf16.mxu0 0
  %458 = vmatpush1.bf16.msra.mxu0 0
  %459 = vmatprep.subr.bf16.mxu0 0
  %460 = vmatpush1.bf16.msra.mxu0 0
  %461 = vmatprep.subr.bf16.mxu0 0
  %462 = vmatpush1.bf16.msra.mxu0 0
  %463 = vmatprep.subr.bf16.mxu0 0
  %464 = vmatpush1.bf16.msra.mxu0 0
  %465 = vmatprep.subr.bf16.mxu0 0
  %466 = vmatpush1.bf16.msra.mxu0 0
  %467 = vmatprep.subr.bf16.mxu0 0
  %468 = vmatpush1.bf16.msra.mxu0 0
  %469 = vmatprep.subr.bf16.mxu0 0
  %470 = vmatpush1.bf16.msra.mxu0 0
  %471 = vmatprep.subr.bf16.mxu0 0
  %472 = vmatpush1.bf16.msra.mxu0 0
  %473 = vmatprep.mubr.bf16.mxu0 0
  %474 = vmatmul.mubr.bf16.gmra.mrb[0].mxu0 %v359
  %v475 = vpop.f32.mrb[0].mxu0
  %v476 = vadd.f32 %v436, %v475
  %v477 = vpop.f32.mrb[0].mxu0
  %v478 = vpop.f32.mrb[0].mxu0
  %v479 = vpop.f32.mrb[0].mxu0
  %480 = vdwg.mxu0
  %v481 = vadd.f32 %v23, %v476
  %482 = vst [vmem:[#allocation2] sm:$0x3] %v481
  // Predicated region
  $region22: #{_lambda_.39} parent=0 // pred_check
    %p483 = pneg %p18
  $region23: #{_lambda_.39} parent=0 // pred_check_branch
    %485 = sbr.rel (%p483) target = $region25
  $region24: #{_lambda_.39} parent=0 // pred_region
    %v486 = vld [vmem:[#allocation2] sm:$0x3]
    %v487 = vld [vmem:[%s2] sm:$0x1]
    %v489 = vlaneseq
    %v490 = vshrl.u32 %v489, 7
    %v491 = vsub.s32 0, %v490
    %v492 = vrot.slane %v487, %v491
    %v494 = vmul.f32 %v486, %v492
    %v495 = vld [vmem:[%s3] sm:$0x1]
    %v497 = vlaneseq
    %v498 = vshrl.u32 %v497, 7
    %v499 = vsub.s32 0, %v498
    %v500 = vrot.slane %v495, %v499
    %v502 = vadd.f32 %v494, %v500
    %v503 = vmax.f32 %v502, 0.0
    %v504 = vpack.c.bf16 %v503, %v503
    %505 = vst [vmem:[%s4] sm:$0x1] %v504
  $region25: #{_lambda_.39} parent=0 // pred_fallthru
    _
  // Predicated region
  $region26: #{_lambda_.39} parent=0 // pred_check
    _
  $region27: #{_lambda_.39} parent=0 // pred_check_branch
    %507 = sbr.rel (0) target = $region29
  $region28: #{_lambda_.39} parent=0 // pred_region
    _
  $region29: #{_lambda_.39} parent=0 // pred_fallthru
    _
  // Predicated region
  $region30: #{_lambda_.39} parent=0 // pred_check
    _
  $region31: #{_lambda_.39} parent=0 // pred_check_branch
    %509 = sbr.rel (0) target = $region33
  $region32: #{_lambda_.39} parent=0 // pred_region
    _
  $region33: #{_lambda_.39} parent=0 // pred_fallthru
    _

// kernel: _lambda_.38
$region0: #{_lambda_.38}
  #allocation0 [shape = 'u32[]', space=smem, size = 0x4, offset = 0x4, fixed_abs, tag = 'smem constant byte address 0x4 - core index']
  #allocation1 [shape = 'u32[144,128]{1,0:T(1,128)}', space=vmem, size = 0x12000, scoped, tag = 'internal scratch']
  #allocation2 [shape = 'f32[2,128]{1,0:T(2,128)}', space=vmem, size = 0x400, scoped, tag = 'scratch operand']
  %s0 = inlined_call_operand.vmem [shape: bf16[2,64], index: 0, kind: input, shape index: {}]
  %s1 = inlined_call_operand.vmem [shape: bf16[64,128], index: 1, kind: input, shape index: {}]
  %s2 = inlined_call_operand.vmem [shape: f32[1,128], index: 2, kind: input, shape index: {}]
  %s3 = inlined_call_operand.vmem [shape: f32[1,128], index: 3, kind: input, shape index: {}]
  %s4 = inlined_call_operand.vmem [shape: bf16[2,128], index: 4, kind: output, shape index: {}]
  %s5 = sld [smem:[#allocation0]]
  $region34: #{_lambda_.38} parent=0
    _
  %s7 = ssub.s32 1, %s5
  %s8 = scalar_select 0, %s7, %s5
  // Predicated region
  $region2: #{_lambda_.38} parent=0 // pred_check
    _
  $region3: #{_lambda_.38} parent=0 // pred_check_branch
    %10 = sbr.rel (0) target = $region5
  $region4: #{_lambda_.38} parent=0 // pred_region
    _
  $region5: #{_lambda_.38} parent=0 // pred_fallthru
    _
  // Predicated region
  $region6: #{_lambda_.38} parent=0 // pred_check
    _
  $region7: #{_lambda_.38} parent=0 // pred_check_branch
    %12 = sbr.rel (0) target = $region9
  $region8: #{_lambda_.38} parent=0 // pred_region
    _
  $region9: #{_lambda_.38} parent=0 // pred_fallthru
    _
  // Predicated region
  $region10: #{_lambda_.38} parent=0 // pred_check
    _
  $region11: #{_lambda_.38} parent=0 // pred_check_branch
    %14 = sbr.rel (0) target = $region13
  $region12: #{_lambda_.38} parent=0 // pred_region
    _
  $region13: #{_lambda_.38} parent=0 // pred_fallthru
    _
  // Predicated region
  $region14: #{_lambda_.38} parent=0 // pred_check
    _
  $region15: #{_lambda_.38} parent=0 // pred_check_branch
    %16 = sbr.rel (0) target = $region17
  $region16: #{_lambda_.38} parent=0 // pred_region
    _
  $region17: #{_lambda_.38} parent=0 // pred_fallthru
    _
  %p18 = scmp.eq.s32.totalorder 0, 0
  // Predicated region
  $region18: #{_lambda_.38} parent=0 // pred_check
    %p19 = pneg %p18
  $region19: #{_lambda_.38} parent=0 // pred_check_branch
    %21 = sbr.rel (%p19) target = $region21
  $region20: #{_lambda_.38} parent=0 // pred_region
    %22 = vst [vmem:[#allocation2] sm:$0x3] 0.0
  $region21: #{_lambda_.38} parent=0 // pred_fallthru
    _
  %v23 = vld [vmem:[#allocation2] sm:$0x3]
  %v24 = vld [vmem:[%s0] sm:$0x1]
  %v25 = vld [vmem:[%s1] sm:$0xf]
  %v26 = vld [vmem:[%s1 + $0x4] sm:$0xf]
  %v27 = vld [vmem:[%s1 + $0x8] sm:$0xf]
  %v28 = vld [vmem:[%s1 + $0xc] sm:$0xf]
  %v29 = vld [vmem:[%s1 + $0x10] sm:$0xf]
  %v30 = vld [vmem:[%s1 + $0x14] sm:$0xf]
  %v31 = vld [vmem:[%s1 + $0x18] sm:$0xf]
  %v32 = vld [vmem:[%s1 + $0x1c] sm:$0xf]
  %v41 = vunpack.c.l.b16 %v25
  %v42 = vunpack.c.l.b16 %v26
  %v43 = vunpack.c.l.b16 %v27
  %v44 = vunpack.c.l.b16 %v28
  %v45 = vunpack.c.l.b16 %v29
  %v46 = vunpack.c.l.b16 %v30
  %v47 = vunpack.c.l.b16 %v31
  %v48 = vunpack.c.l.b16 %v32
  %v49 = vpack.c.b16 %v42, %v41
  %v50 = vpack.c.b16 %v44, %v43
  %v51 = vpack.c.b16 %v46, %v45
  %v52 = vpack.c.b16 %v48, %v47
  %vm57 = vcmask 523264
  %v59 = vsel %vm57, %v24, 0
  %61 = vmatprep.subr.bf16.mxu0 0
  %62 = vmatpush1.bf16.msra.mxu0 %v49
  %63 = vmatprep.subr.bf16.mxu0 0
  %64 = vmatpush1.bf16.msra.mxu0 %v50
  %65 = vmatprep.subr.bf16.mxu0 0
  %66 = vmatpush1.bf16.msra.mxu0 %v51
  %67 = vmatprep.subr.bf16.mxu0 0
  %68 = vmatpush1.bf16.msra.mxu0 %v52
  %69 = vmatprep.subr.bf16.mxu0 0
  %70 = vmatpush1.bf16.msra.mxu0 0
  %71 = vmatprep.subr.bf16.mxu0 0
  %72 = vmatpush1.bf16.msra.mxu0 0
  %73 = vmatprep.subr.bf16.mxu0 0
  %74 = vmatpush1.bf16.msra.mxu0 0
  %75 = vmatprep.subr.bf16.mxu0 0
  %76 = vmatpush1.bf16.msra.mxu0 0
  %77 = vmatprep.subr.bf16.mxu0 0
  %78 = vmatpush1.bf16.msra.mxu0 0
  %79 = vmatprep.subr.bf16.mxu0 0
  %80 = vmatpush1.bf16.msra.mxu0 0
  %81 = vmatprep.subr.bf16.mxu0 0
  %82 = vmatpush1.bf16.msra.mxu0 0
  %83 = vmatprep.subr.bf16.mxu0 0
  %84 = vmatpush1.bf16.msra.mxu0 0
  %85 = vmatprep.subr.bf16.mxu0 0
  %86 = vmatpush1.bf16.msra.mxu0 0
  %87 = vmatprep.subr.bf16.mxu0 0
  %88 = vmatpush1.bf16.msra.mxu0 0
  %89 = vmatprep.subr.bf16.mxu0 0
  %90 = vmatpush1.bf16.msra.mxu0 0
  %91 = vmatprep.subr.bf16.mxu0 0
  %92 = vmatpush1.bf16.msra.mxu0 0
  %93 = vmatprep.mubr.bf16.mxu0 0
  %94 = vmatmul.mubr.bf16.gmra.mrb[0].mxu0 %v59
  %v95 = vpop.f32.mrb[0].mxu0
  %v96 = vadd.f32 0.0, %v95
  %v97 = vpop.f32.mrb[0].mxu0
  %v98 = vpop.f32.mrb[0].mxu0
  %v99 = vpop.f32.mrb[0].mxu0
  %100 = vdwg.mxu0
  %v101 = vadd.f32 %v23, %v96
  %102 = vst [vmem:[#allocation2] sm:$0x3] %v101
  // Predicated region
  $region22: #{_lambda_.38} parent=0 // pred_check
    %p103 = pneg %p18
  $region23: #{_lambda_.38} parent=0 // pred_check_branch
    %105 = sbr.rel (%p103) target = $region25
  $region24: #{_lambda_.38} parent=0 // pred_region
    %v106 = vld [vmem:[#allocation2] sm:$0x3]
    %v107 = vld [vmem:[%s2] sm:$0x1]
    %v109 = vlaneseq
    %v110 = vshrl.u32 %v109, 7
    %v111 = vsub.s32 0, %v110
    %v112 = vrot.slane %v107, %v111
    %v114 = vmul.f32 %v106, %v112
    %v115 = vld [vmem:[%s3] sm:$0x1]
    %v117 = vlaneseq
    %v118 = vshrl.u32 %v117, 7
    %v119 = vsub.s32 0, %v118
    %v120 = vrot.slane %v115, %v119
    %v122 = vadd.f32 %v114, %v120
    %v123 = vpack.c.bf16 %v122, %v122
    %124 = vst [vmem:[%s4] sm:$0x1] %v123
  $region25: #{_lambda_.38} parent=0 // pred_fallthru
    _
  // Predicated region
  $region26: #{_lambda_.38} parent=0 // pred_check
    _
  $region27: #{_lambda_.38} parent=0 // pred_check_branch
    %126 = sbr.rel (0) target = $region29
  $region28: #{_lambda_.38} parent=0 // pred_region
    _
  $region29: #{_lambda_.38} parent=0 // pred_fallthru
    _
  // Predicated region
  $region30: #{_lambda_.38} parent=0 // pred_check
    _
  $region31: #{_lambda_.38} parent=0 // pred_check_branch
    %128 = sbr.rel (0) target = $region33
  $region32: #{_lambda_.38} parent=0 // pred_region
    _
  $region33: #{_lambda_.38} parent=0 // pred_fallthru
    _

// kernel: _lambda_.40
$region0: #{_lambda_.40}
  #allocation0 [shape = 'u32[]', space=smem, size = 0x4, offset = 0x4, fixed_abs, tag = 'smem constant byte address 0x4 - core index']
  #allocation1 [shape = 'u32[144,128]{1,0:T(1,128)}', space=vmem, size = 0x12000, scoped, tag = 'internal scratch']
  #allocation2 [shape = 'f32[2,128]{1,0:T(2,128)}', space=vmem, size = 0x400, scoped, tag = 'scratch operand']
  %s0 = inlined_call_operand.vmem [shape: bf16[2,1152], index: 0, kind: input, shape index: {}]
  %s1 = inlined_call_operand.vmem [shape: bf16[1152,128], index: 1, kind: input, shape index: {}]
  %s2 = inlined_call_operand.vmem [shape: f32[1,128], index: 2, kind: input, shape index: {}]
  %s3 = inlined_call_operand.vmem [shape: f32[1,128], index: 3, kind: input, shape index: {}]
  %s4 = inlined_call_operand.vmem [shape: bf16[2,128], index: 4, kind: input, shape index: {}]
  %s5 = inlined_call_operand.vmem [shape: bf16[2,128], index: 5, kind: output, shape index: {}]
  %s6 = sld [smem:[#allocation0]]
  $region61: #{_lambda_.40} parent=0
    _
  %s8 = ssub.s32 1, %s6
  %s9 = scalar_select 0, %s8, %s6
  loop: start=0, step=1, limit=5
  $region2: #{_lambda_.40} parent=0 // loop_pre_header
    _
  $region3: #{_lambda_.40} parent=0 // loop_header
    %s11 = sphi 0, %s15
    %p12 = scmp.ge.s32.totalorder %s11, 5
    %s18 = sphi 0, %s30
    %s19 = sphi 0, %s26
    %s20 = sphi 0, %s18
    %s21 = sphi 0, %s19
    %s22 = sphi 0, %s20
    %s23 = sphi 0, %s21
    %s35 = sphi 0, %s37
    %s38 = sphi 0, %s35
    %s39 = sphi 0, %s38
    %s55 = sphi 0, %s39
    %s61 = sphi 0, %s63
    %s64 = sphi 0, %s61
    %s65 = sphi 0, %s64
    %s81 = sphi 0, %s65
    %s85 = sphi 0, %s85
    %s87 = sphi 0, %s85
    %s88 = sphi 0, %s87
    %s102 = sphi 0, %s88
    %s106 = sphi 0, %s106
    %s108 = sphi 0, %s106
    %s109 = sphi 0, %s108
    %s123 = sphi 0, %s109
    %s129 = sphi 0, %s131
    %s132 = sphi 0, %s129
    %s133 = sphi 0, %s132
    %s149 = sphi 0, %s133
    %s155 = sphi 0, %s157
    %s158 = sphi 0, %s155
    %s159 = sphi 0, %s158
    %s175 = sphi 0, %s159
  $region4: #{_lambda_.40} parent=0 // loop_header_branch
    %14 = sbr.rel (%p12) target = $region8
  $region5: #{_lambda_.40} parent=0 // loop_body
    %s16 = ssub.s32 %s11, 1
    %s17 = ssub.s32 %s11, 2
    %s24 = sadd.s32 1, %s19
    %p25 = scmp.ge.s32.totalorder %s24, 3
    %s26 = scalar_select %p25, 0, %s24
    %s27 = sadd.s32 1, %s18
    %s28 = scalar_select %p25, %s27, %s18
    %p29 = scmp.ge.s32.totalorder %s28, 1
    %s30 = scalar_select %p29, 0, %s28
    %s31 = ssub.s32 %s18, %s30
    %s32 = ssub.s32 %s19, %s26
    %s33 = sor.u32 %s31, %s32
    %p34 = scmp.eq.s32.totalorder %s33, 0
    %s36 = sadd.s32 %s35, 1
    %s37 = scalar_select %p34, %s35, %s36
    %p40 = pneg %p34
    %p41 = scmp.eq.s32.totalorder %s11, 2
    %p42 = por %p40, %p41
    %p43 = scmp.ne.s32.totalorder %s35, %s38
    %p44 = scmp.eq.s32.totalorder %s11, 0
    %p45 = por %p43, %p44
    %p46 = scmp.ne.s32.totalorder %s35, %s38
    %p47 = scmp.eq.s32.totalorder %s16, 2
    %p48 = por %p46, %p47
    %p49 = scmp.ne.s32.totalorder %s38, %s39
    %p50 = scmp.eq.s32.totalorder %s16, 0
    %p51 = por %p49, %p50
    %p52 = scmp.ne.s32.totalorder %s38, %s39
    %p53 = scmp.eq.s32.totalorder %s17, 2
    %p54 = por %p52, %p53
    %p56 = scmp.ne.s32.totalorder %s39, %s55
    %p57 = scmp.eq.s32.totalorder %s17, 0
    %p58 = por %p56, %p57
    %s59 = ssub.s32 %s19, %s26
    %p60 = scmp.eq.s32.totalorder %s59, 0
    %s62 = sadd.s32 %s61, 1
    %s63 = scalar_select %p60, %s61, %s62
    %p66 = pneg %p60
    %p67 = scmp.eq.s32.totalorder %s11, 2
    %p68 = por %p66, %p67
    %p69 = scmp.ne.s32.totalorder %s61, %s64
    %p70 = scmp.eq.s32.totalorder %s11, 0
    %p71 = por %p69, %p70
    %p72 = scmp.ne.s32.totalorder %s61, %s64
    %p73 = scmp.eq.s32.totalorder %s16, 2
    %p74 = por %p72, %p73
    %p75 = scmp.ne.s32.totalorder %s64, %s65
    %p76 = scmp.eq.s32.totalorder %s16, 0
    %p77 = por %p75, %p76
    %p78 = scmp.ne.s32.totalorder %s64, %s65
    %p79 = scmp.eq.s32.totalorder %s17, 2
    %p80 = por %p78, %p79
    %p82 = scmp.ne.s32.totalorder %s65, %s81
    %p83 = scmp.eq.s32.totalorder %s17, 0
    %p84 = por %p82, %p83
    %s86 = sadd.s32 %s85, 1
    %p89 = scmp.eq.s32.totalorder %s11, 2
    %p90 = scmp.ne.s32.totalorder %s85, %s87
    %p91 = scmp.eq.s32.totalorder %s11, 0
    %p92 = por %p90, %p91
    %p93 = scmp.ne.s32.totalorder %s85, %s87
    %p94 = scmp.eq.s32.totalorder %s16, 2
    %p95 = por %p93, %p94
    %p96 = scmp.ne.s32.totalorder %s87, %s88
    %p97 = scmp.eq.s32.totalorder %s16, 0
    %p98 = por %p96, %p97
    %p99 = scmp.ne.s32.totalorder %s87, %s88
    %p100 = scmp.eq.s32.totalorder %s17, 2
    %p101 = por %p99, %p100
    %p103 = scmp.ne.s32.totalorder %s88, %s102
    %p104 = scmp.eq.s32.totalorder %s17, 0
    %p105 = por %p103, %p104
    %s107 = sadd.s32 %s106, 1
    %p110 = scmp.eq.s32.totalorder %s11, 2
    %p111 = scmp.ne.s32.totalorder %s106, %s108
    %p112 = scmp.eq.s32.totalorder %s11, 0
    %p113 = por %p111, %p112
    %p114 = scmp.ne.s32.totalorder %s106, %s108
    %p115 = scmp.eq.s32.totalorder %s16, 2
    %p116 = por %p114, %p115
    %p117 = scmp.ne.s32.totalorder %s108, %s109
    %p118 = scmp.eq.s32.totalorder %s16, 0
    %p119 = por %p117, %p118
    %p120 = scmp.ne.s32.totalorder %s108, %s109
    %p121 = scmp.eq.s32.totalorder %s17, 2
    %p122 = por %p120, %p121
    %p124 = scmp.ne.s32.totalorder %s109, %s123
    %p125 = scmp.eq.s32.totalorder %s17, 0
    %p126 = por %p124, %p125
    %s127 = ssub.s32 %s18, %s30
    %p128 = scmp.eq.s32.totalorder %s127, 0
    %s130 = sadd.s32 %s129, 1
    %s131 = scalar_select %p128, %s129, %s130
    %p134 = pneg %p128
    %p135 = scmp.eq.s32.totalorder %s11, 2
    %p136 = por %p134, %p135
    %p137 = scmp.ne.s32.totalorder %s129, %s132
    %p138 = scmp.eq.s32.totalorder %s11, 0
    %p139 = por %p137, %p138
    %p140 = scmp.ne.s32.totalorder %s129, %s132
    %p141 = scmp.eq.s32.totalorder %s16, 2
    %p142 = por %p140, %p141
    %p143 = scmp.ne.s32.totalorder %s132, %s133
    %p144 = scmp.eq.s32.totalorder %s16, 0
    %p145 = por %p143, %p144
    %p146 = scmp.ne.s32.totalorder %s132, %s133
    %p147 = scmp.eq.s32.totalorder %s17, 2
    %p148 = por %p146, %p147
    %p150 = scmp.ne.s32.totalorder %s133, %s149
    %p151 = scmp.eq.s32.totalorder %s17, 0
    %p152 = por %p150, %p151
    %s153 = ssub.s32 %s18, %s30
    %p154 = scmp.eq.s32.totalorder %s153, 0
    %s156 = sadd.s32 %s155, 1
    %s157 = scalar_select %p154, %s155, %s156
    %p160 = pneg %p154
    %p161 = scmp.eq.s32.totalorder %s11, 2
    %p162 = por %p160, %p161
    %p163 = scmp.ne.s32.totalorder %s155, %s158
    %p164 = scmp.eq.s32.totalorder %s11, 0
    %p165 = por %p163, %p164
    %p166 = scmp.ne.s32.totalorder %s155, %s158
    %p167 = scmp.eq.s32.totalorder %s16, 2
    %p168 = por %p166, %p167
    %p169 = scmp.ne.s32.totalorder %s158, %s159
    %p170 = scmp.eq.s32.totalorder %s16, 0
    %p171 = por %p169, %p170
    %p172 = scmp.ne.s32.totalorder %s158, %s159
    %p173 = scmp.eq.s32.totalorder %s17, 2
    %p174 = por %p172, %p173
    %p176 = scmp.ne.s32.totalorder %s159, %s175
    %p177 = scmp.eq.s32.totalorder %s17, 0
    %p178 = por %p176, %p177
    %p179 = scmp.le.s32.totalorder 1, %s11
    %p180 = scmp.lt.s32.totalorder %s11, 4
    %p181 = pnand %p179, %p180
    %p182 = pneg %p181
    // Predicated region
    $region9: #{_lambda_.40} parent=5 // pred_check
      _
    $region10: #{_lambda_.40} parent=5 // pred_check_branch
      %184 = sbr.rel (%p181) target = $region12
    $region11: #{_lambda_.40} parent=5 // pred_region
      %s185 = ssub.s32 %s11, 1
      // Predicated region
      $region13: #{_lambda_.40} parent=11 // pred_check
        %p186 = pneg %p98
      $region14: #{_lambda_.40} parent=11 // pred_check_branch
        %188 = sbr.rel (%p186) target = $region16
      $region15: #{_lambda_.40} parent=11 // pred_region
        _
      $region16: #{_lambda_.40} parent=11 // pred_fallthru
        _
      // Predicated region
      $region17: #{_lambda_.40} parent=11 // pred_check
        %p189 = pneg %p119
      $region18: #{_lambda_.40} parent=11 // pred_check_branch
        %191 = sbr.rel (%p189) target = $region20
      $region19: #{_lambda_.40} parent=11 // pred_region
        _
      $region20: #{_lambda_.40} parent=11 // pred_fallthru
        _
      // Predicated region
      $region21: #{_lambda_.40} parent=11 // pred_check
        %p192 = pneg %p145
      $region22: #{_lambda_.40} parent=11 // pred_check_branch
        %194 = sbr.rel (%p192) target = $region24
      $region23: #{_lambda_.40} parent=11 // pred_region
        %p195 = scmp.lt.s32.totalorder %s20, 0
        %s196 = scalar_select %p195, %s20, 0
        %s197 = scalar_lea.vmem %s4, %s196
      $region24: #{_lambda_.40} parent=11 // pred_fallthru
        _
    $region12: #{_lambda_.40} parent=5 // pred_fallthru
      _
    %p198 = scmp.lt.s32.totalorder %s11, 3
    // Predicated region
    $region25: #{_lambda_.40} parent=5 // pred_check
      %p199 = pneg %p198
    $region26: #{_lambda_.40} parent=5 // pred_check_branch
      %201 = sbr.rel (%p199) target = $region28
    $region27: #{_lambda_.40} parent=5 // pred_region
      // Predicated region
      $region29: #{_lambda_.40} parent=27 // pred_check
        %p202 = pneg %p45
      $region30: #{_lambda_.40} parent=27 // pred_check_branch
        %204 = sbr.rel (%p202) target = $region32
      $region31: #{_lambda_.40} parent=27 // pred_region
        %s205 = smul.u32 3, %s19
        %p206 = scmp.lt.s32.totalorder %s18, 0
        %s207 = scalar_select %p206, %s18, 0
        %p208 = scmp.lt.s32.totalorder %s205, 8
        %s209 = scalar_select %p208, %s205, 8
        %s210 = smul.addr %s207, 9
        %s211 = sadd.s32 %s209, %s210
        %s212 = scalar_lea.vmem %s0, %s211
        %s213 = smul.u32 3, %s19
      $region32: #{_lambda_.40} parent=27 // pred_fallthru
        _
      // Predicated region
      $region33: #{_lambda_.40} parent=27 // pred_check
        %p214 = pneg %p71
      $region34: #{_lambda_.40} parent=27 // pred_check_branch
        %216 = sbr.rel (%p214) target = $region36
      $region35: #{_lambda_.40} parent=27 // pred_region
        %s217 = smul.u32 48, %s19
        %p218 = scmp.lt.s32.totalorder %s217, 143
        %s219 = scalar_select %p218, %s217, 143
        %s220 = smul.addr %s219, 4
        %s221 = scalar_lea.vmem %s1, %s220
        %s222 = smul.u32 48, %s19
      $region36: #{_lambda_.40} parent=27 // pred_fallthru
        _
    $region28: #{_lambda_.40} parent=5 // pred_fallthru
      _
    %p223 = scmp.le.s32.totalorder 1, %s11
    %p224 = scmp.lt.s32.totalorder %s11, 4
    %p225 = pnand %p223, %p224
    %p226 = pneg %p225
    // Predicated region
    $region37: #{_lambda_.40} parent=5 // pred_check
      _
    $region38: #{_lambda_.40} parent=5 // pred_check_branch
      %228 = sbr.rel (%p225) target = $region40
    $region39: #{_lambda_.40} parent=5 // pred_region
      %s229 = ssub.s32 %s11, 1
      %s230 = smul.u32 3, %s21
      %p231 = scmp.lt.s32.totalorder %s20, 0
      %s232 = scalar_select %p231, %s20, 0
      %p233 = scmp.lt.s32.totalorder %s230, 8
      %s234 = scalar_select %p233, %s230, 8
      %s235 = smul.addr %s232, 9
      %s236 = sadd.s32 %s234, %s235
      %s237 = scalar_lea.vmem %s0, %s236
      %p238 = pneg %p51
      %p239 = pneg %p48
      %s240 = smul.u32 48, %s21
      %p241 = scmp.lt.s32.totalorder %s240, 143
      %s242 = scalar_select %p241, %s240, 143
      %s243 = smul.addr %s242, 4
      %s244 = scalar_lea.vmem %s1, %s243
      %p245 = pneg %p77
      %p246 = pneg %p74
      %p247 = pneg %p98
      %p248 = pneg %p95
      %p249 = pneg %p119
      %p250 = pneg %p116
      %p251 = scmp.lt.s32.totalorder %s20, 0
      %s252 = scalar_select %p251, %s20, 0
      %s253 = scalar_lea.vmem %s4, %s252
      %p254 = pneg %p145
      %p255 = pneg %p142
      %p256 = pneg %p171
      %p257 = pneg %p168
      %p258 = scmp.lt.s32.totalorder %s20, 0
      %s259 = scalar_select %p258, %s20, 0
      %s260 = scalar_lea.vmem %s5, %s259
      %s261 = smul.u32 3, %s21
      %p262 = scmp.lt.s32.totalorder %s20, 0
      %s263 = scalar_select %p262, %s20, 0
      %p264 = scmp.lt.s32.totalorder %s261, 8
      %s265 = scalar_select %p264, %s261, 8
      %s266 = smul.addr %s263, 9
      %s267 = sadd.s32 %s265, %s266
      %s268 = scalar_lea.vmem %s0, %s267
      %s269 = smul.u32 3, %s21
      %s270 = smul.u32 48, %s21
      %p271 = scmp.lt.s32.totalorder %s270, 143
      %s272 = scalar_select %p271, %s270, 143
      %s273 = smul.addr %s272, 4
      %s274 = scalar_lea.vmem %s1, %s273
      %s275 = smul.u32 48, %s21
      %p276 = scmp.lt.s32.totalorder %s20, 0
      %s277 = scalar_select %p276, %s20, 0
      %s278 = scalar_lea.vmem %s4, %s277
      %p279 = scmp.lt.s32.totalorder %s20, 0
      %s280 = scalar_select %p279, %s20, 0
      %s281 = scalar_lea.vmem %s5, %s280
      %p283 = scmp.eq.s32.totalorder %s21, 0
      // Predicated region
      $region41: #{_lambda_.40} parent=39 // pred_check
        %p284 = pneg %p283
      $region42: #{_lambda_.40} parent=39 // pred_check_branch
        %286 = sbr.rel (%p284) target = $region44
      $region43: #{_lambda_.40} parent=39 // pred_region
        %287 = vst [vmem:[#allocation2] sm:$0x3] 0.0
      $region44: #{_lambda_.40} parent=39 // pred_fallthru
        _
      %v288 = vld [vmem:[#allocation2] sm:$0x3]
      %v289 = vld [vmem:[%s268] sm:$0x7]
      %v290 = vld [vmem:[%s274] sm:$0xf]
      %v291 = vld [vmem:[%s274 + $0x4] sm:$0xf]
      %v292 = vld [vmem:[%s274 + $0x8] sm:$0xf]
      %v293 = vld [vmem:[%s274 + $0xc] sm:$0xf]
      %v294 = vld [vmem:[%s274 + $0x10] sm:$0xf]
      %v295 = vld [vmem:[%s274 + $0x14] sm:$0xf]
      %v296 = vld [vmem:[%s274 + $0x18] sm:$0xf]
      %v297 = vld [vmem:[%s274 + $0x1c] sm:$0xf]
      %v298 = vld [vmem:[%s274 + $0x20] sm:$0xf]
      %v299 = vld [vmem:[%s274 + $0x24] sm:$0xf]
      %v300 = vld [vmem:[%s274 + $0x28] sm:$0xf]
      %v301 = vld [vmem:[%s274 + $0x2c] sm:$0xf]
      %v302 = vld [vmem:[%s274 + $0x30] sm:$0xf]
      %v303 = vld [vmem:[%s274 + $0x34] sm:$0xf]
      %v304 = vld [vmem:[%s274 + $0x38] sm:$0xf]
      %v305 = vld [vmem:[%s274 + $0x3c] sm:$0xf]
      %v306 = vld [vmem:[%s274 + $0x40] sm:$0xf]
      %v307 = vld [vmem:[%s274 + $0x44] sm:$0xf]
      %v308 = vld [vmem:[%s274 + $0x48] sm:$0xf]
      %v309 = vld [vmem:[%s274 + $0x4c] sm:$0xf]
      %v310 = vld [vmem:[%s274 + $0x50] sm:$0xf]
      %v311 = vld [vmem:[%s274 + $0x54] sm:$0xf]
      %v312 = vld [vmem:[%s274 + $0x58] sm:$0xf]
      %v313 = vld [vmem:[%s274 + $0x5c] sm:$0xf]
      %v314 = vld [vmem:[%s274 + $0x60] sm:$0xf]
      %v315 = vld [vmem:[%s274 + $0x64] sm:$0xf]
      %v316 = vld [vmem:[%s274 + $0x68] sm:$0xf]
      %v317 = vld [vmem:[%s274 + $0x6c] sm:$0xf]
      %v318 = vld [vmem:[%s274 + $0x70] sm:$0xf]
      %v319 = vld [vmem:[%s274 + $0x74] sm:$0xf]
      %v320 = vld [vmem:[%s274 + $0x78] sm:$0xf]
      %v321 = vld [vmem:[%s274 + $0x7c] sm:$0xf]
      %v322 = vld [vmem:[%s274 + $0x80] sm:$0xf]
      %v323 = vld [vmem:[%s274 + $0x84] sm:$0xf]
      %v324 = vld [vmem:[%s274 + $0x88] sm:$0xf]
      %v325 = vld [vmem:[%s274 + $0x8c] sm:$0xf]
      %v326 = vld [vmem:[%s274 + $0x90] sm:$0xf]
      %v327 = vld [vmem:[%s274 + $0x94] sm:$0xf]
      %v328 = vld [vmem:[%s274 + $0x98] sm:$0xf]
      %v329 = vld [vmem:[%s274 + $0x9c] sm:$0xf]
      %v330 = vld [vmem:[%s274 + $0xa0] sm:$0xf]
      %v331 = vld [vmem:[%s274 + $0xa4] sm:$0xf]
      %v332 = vld [vmem:[%s274 + $0xa8] sm:$0xf]
      %v333 = vld [vmem:[%s274 + $0xac] sm:$0xf]
      %v334 = vld [vmem:[%s274 + $0xb0] sm:$0xf]
      %v335 = vld [vmem:[%s274 + $0xb4] sm:$0xf]
      %v336 = vld [vmem:[%s274 + $0xb8] sm:$0xf]
      %v337 = vld [vmem:[%s274 + $0xbc] sm:$0xf]
      %v340 = vunpack.c.l.s4 1966171168
      %v341 = vunpack.c.0.s8 %v340
      %v342 = vlaneseq
      %v343 = vshrl.u32 %v342, 7
      %v344 = vsub.s32 %v341, %v343
      %v345 = vrot.slane %v289, %v344
      %v346 = vcombine.high %v345, %v345
      %v348 = vunpack.c.l.s4 1966171168
      %v349 = vunpack.c.0.s8 %v348
      %v350 = vlaneseq
      %v351 = vshrl.u32 %v350, 7
      %v352 = vsub.s32 %v349, %v351
      %v353 = vrot.slane %v345, %v352
      %v355 = vunpack.c.l.s4 1966171168
      %v356 = vunpack.c.0.s8 %v355
      %v357 = vlaneseq
      %v358 = vshrl.u32 %v357, 7
      %v359 = vsub.s32 %v356, %v358
      %v360 = vrot.slane %v346, %v359
      %v361 = vcombine.high %v353, %v353
      %v413 = vunpack.c.l.b16 %v290
      %v414 = vunpack.c.l.b16 %v291
      %v415 = vunpack.c.l.b16 %v292
      %v416 = vunpack.c.l.b16 %v293
      %v417 = vunpack.c.l.b16 %v294
      %v418 = vunpack.c.l.b16 %v295
      %v419 = vunpack.c.l.b16 %v296
      %v420 = vunpack.c.l.b16 %v297
      %v421 = vunpack.c.l.b16 %v298
      %v422 = vunpack.c.l.b16 %v299
      %v423 = vunpack.c.l.b16 %v300
      %v424 = vunpack.c.l.b16 %v301
      %v425 = vunpack.c.l.b16 %v302
      %v426 = vunpack.c.l.b16 %v303
      %v427 = vunpack.c.l.b16 %v304
      %v428 = vunpack.c.l.b16 %v305
      %v429 = vunpack.c.l.b16 %v306
      %v430 = vunpack.c.l.b16 %v307
      %v431 = vunpack.c.l.b16 %v308
      %v432 = vunpack.c.l.b16 %v309
      %v433 = vunpack.c.l.b16 %v310
      %v434 = vunpack.c.l.b16 %v311
      %v435 = vunpack.c.l.b16 %v312
      %v436 = vunpack.c.l.b16 %v313
      %v437 = vunpack.c.l.b16 %v314
      %v438 = vunpack.c.l.b16 %v315
      %v439 = vunpack.c.l.b16 %v316
      %v440 = vunpack.c.l.b16 %v317
      %v441 = vunpack.c.l.b16 %v318
      %v442 = vunpack.c.l.b16 %v319
      %v443 = vunpack.c.l.b16 %v320
      %v444 = vunpack.c.l.b16 %v321
      %v445 = vunpack.c.l.b16 %v322
      %v446 = vunpack.c.l.b16 %v323
      %v447 = vunpack.c.l.b16 %v324
      %v448 = vunpack.c.l.b16 %v325
      %v449 = vunpack.c.l.b16 %v326
      %v450 = vunpack.c.l.b16 %v327
      %v451 = vunpack.c.l.b16 %v328
      %v452 = vunpack.c.l.b16 %v329
      %v453 = vunpack.c.l.b16 %v330
      %v454 = vunpack.c.l.b16 %v331
      %v455 = vunpack.c.l.b16 %v332
      %v456 = vunpack.c.l.b16 %v333
      %v457 = vunpack.c.l.b16 %v334
      %v458 = vunpack.c.l.b16 %v335
      %v459 = vunpack.c.l.b16 %v336
      %v460 = vunpack.c.l.b16 %v337
      %v461 = vpack.c.b16 %v414, %v413
      %v462 = vpack.c.b16 %v416, %v415
      %v463 = vpack.c.b16 %v418, %v417
      %v464 = vpack.c.b16 %v420, %v419
      %v465 = vpack.c.b16 %v422, %v421
      %v466 = vpack.c.b16 %v424, %v423
      %v467 = vpack.c.b16 %v426, %v425
      %v468 = vpack.c.b16 %v428, %v427
      %v469 = vpack.c.b16 %v430, %v429
      %v470 = vpack.c.b16 %v432, %v431
      %v471 = vpack.c.b16 %v434, %v433
      %v472 = vpack.c.b16 %v436, %v435
      %v473 = vpack.c.b16 %v438, %v437
      %v474 = vpack.c.b16 %v440, %v439
      %v475 = vpack.c.b16 %v442, %v441
      %v476 = vpack.c.b16 %v444, %v443
      %v477 = vpack.c.b16 %v446, %v445
      %v478 = vpack.c.b16 %v448, %v447
      %v479 = vpack.c.b16 %v450, %v449
      %v480 = vpack.c.b16 %v452, %v451
      %v481 = vpack.c.b16 %v454, %v453
      %v482 = vpack.c.b16 %v456, %v455
      %v483 = vpack.c.b16 %v458, %v457
      %v484 = vpack.c.b16 %v460, %v459
      %509 = vmatprep.subr.bf16.mxu0 0
      %510 = vmatpush1.bf16.msra.mxu0 %v461
      %511 = vmatprep.subr.bf16.mxu0 0
      %512 = vmatpush1.bf16.msra.mxu0 %v462
      %513 = vmatprep.subr.bf16.mxu0 0
      %514 = vmatpush1.bf16.msra.mxu0 %v463
      %515 = vmatprep.subr.bf16.mxu0 0
      %516 = vmatpush1.bf16.msra.mxu0 %v464
      %517 = vmatprep.subr.bf16.mxu0 0
      %518 = vmatpush1.bf16.msra.mxu0 %v465
      %519 = vmatprep.subr.bf16.mxu0 0
      %520 = vmatpush1.bf16.msra.mxu0 %v466
      %521 = vmatprep.subr.bf16.mxu0 0
      %522 = vmatpush1.bf16.msra.mxu0 %v467
      %523 = vmatprep.subr.bf16.mxu0 0
      %524 = vmatpush1.bf16.msra.mxu0 %v468
      %525 = vmatprep.subr.bf16.mxu0 0
      %526 = vmatpush1.bf16.msra.mxu0 %v469
      %527 = vmatprep.subr.bf16.mxu0 0
      %528 = vmatpush1.bf16.msra.mxu0 %v470
      %529 = vmatprep.subr.bf16.mxu0 0
      %530 = vmatpush1.bf16.msra.mxu0 %v471
      %531 = vmatprep.subr.bf16.mxu0 0
      %532 = vmatpush1.bf16.msra.mxu0 %v472
      %533 = vmatprep.subr.bf16.mxu0 0
      %534 = vmatpush1.bf16.msra.mxu0 %v473
      %535 = vmatprep.subr.bf16.mxu0 0
      %536 = vmatpush1.bf16.msra.mxu0 %v474
      %537 = vmatprep.subr.bf16.mxu0 0
      %538 = vmatpush1.bf16.msra.mxu0 %v475
      %539 = vmatprep.subr.bf16.mxu0 0
      %540 = vmatpush1.bf16.msra.mxu0 %v476
      %541 = vmatprep.mubr.bf16.mxu0 %v360
      %542 = vmatmul.mubr.bf16.gmra.mrb[0].mxu0 %v353
      %v543 = vpop.f32.mrb[0].mxu0
      %v544 = vadd.f32 0.0, %v543
      %v545 = vpop.f32.mrb[0].mxu0
      %v546 = vpop.f32.mrb[0].mxu0
      %v547 = vpop.f32.mrb[0].mxu0
      %548 = vdwg.mxu0
      %549 = vmatprep.subr.bf16.mxu0 0
      %550 = vmatpush1.bf16.msra.mxu0 %v477
      %551 = vmatprep.subr.bf16.mxu0 0
      %552 = vmatpush1.bf16.msra.mxu0 %v478
      %553 = vmatprep.subr.bf16.mxu0 0
      %554 = vmatpush1.bf16.msra.mxu0 %v479
      %555 = vmatprep.subr.bf16.mxu0 0
      %556 = vmatpush1.bf16.msra.mxu0 %v480
      %557 = vmatprep.subr.bf16.mxu0 0
      %558 = vmatpush1.bf16.msra.mxu0 %v481
      %559 = vmatprep.subr.bf16.mxu0 0
      %560 = vmatpush1.bf16.msra.mxu0 %v482
      %561 = vmatprep.subr.bf16.mxu0 0
      %562 = vmatpush1.bf16.msra.mxu0 %v483
      %563 = vmatprep.subr.bf16.mxu0 0
      %564 = vmatpush1.bf16.msra.mxu0 %v484
      %565 = vmatprep.subr.bf16.mxu0 0
      %566 = vmatpush1.bf16.msra.mxu0 0
      %567 = vmatprep.subr.bf16.mxu0 0
      %568 = vmatpush1.bf16.msra.mxu0 0
      %569 = vmatprep.subr.bf16.mxu0 0
      %570 = vmatpush1.bf16.msra.mxu0 0
      %571 = vmatprep.subr.bf16.mxu0 0
      %572 = vmatpush1.bf16.msra.mxu0 0
      %573 = vmatprep.subr.bf16.mxu0 0
      %574 = vmatpush1.bf16.msra.mxu0 0
      %575 = vmatprep.subr.bf16.mxu0 0
      %576 = vmatpush1.bf16.msra.mxu0 0
      %577 = vmatprep.subr.bf16.mxu0 0
      %578 = vmatpush1.bf16.msra.mxu0 0
      %579 = vmatprep.subr.bf16.mxu0 0
      %580 = vmatpush1.bf16.msra.mxu0 0
      %581 = vmatprep.mubr.bf16.mxu0 0
      %582 = vmatmul.mubr.bf16.gmra.mrb[0].mxu0 %v361
      %v583 = vpop.f32.mrb[0].mxu0
      %v584 = vadd.f32 %v544, %v583
      %v585 = vpop.f32.mrb[0].mxu0
      %v586 = vpop.f32.mrb[0].mxu0
      %v587 = vpop.f32.mrb[0].mxu0
      %588 = vdwg.mxu0
      %v589 = vadd.f32 %v288, %v584
      %590 = vst [vmem:[#allocation2] sm:$0x3] %v589
      %p591 = scmp.eq.s32.totalorder %s21, 2
      // Predicated region
      $region45: #{_lambda_.40} parent=39 // pred_check
        %p592 = pneg %p591
      $region46: #{_lambda_.40} parent=39 // pred_check_branch
        %594 = sbr.rel (%p592) target = $region48
      $region47: #{_lambda_.40} parent=39 // pred_region
        %v595 = vld [vmem:[#allocation2] sm:$0x3]
        %v596 = vld [vmem:[%s2] sm:$0x1]
        %v598 = vlaneseq
        %v599 = vshrl.u32 %v598, 7
        %v600 = vsub.s32 0, %v599
        %v601 = vrot.slane %v596, %v600
        %v603 = vmul.f32 %v595, %v601
        %v604 = vld [vmem:[%s3] sm:$0x1]
        %v606 = vlaneseq
        %v607 = vshrl.u32 %v606, 7
        %v608 = vsub.s32 0, %v607
        %v609 = vrot.slane %v604, %v608
        %v611 = vadd.f32 %v603, %v609
        %v612 = vld [vmem:[%s278] sm:$0x1]
        %v613 = vunpack.c.l.bf16 %v612
        %v614 = vadd.f32 %v611, %v613
        %v615 = vmax.f32 %v614, 0.0
        %v616 = vpack.c.bf16 %v615, %v615
        %617 = vst [vmem:[%s281] sm:$0x1] %v616
      $region48: #{_lambda_.40} parent=39 // pred_fallthru
        _
      %p618 = scmp.lt.s32.totalorder %s20, 0
      %s619 = scalar_select %p618, %s20, 0
      %s620 = scalar_lea.vmem %s5, %s619
      // Predicated region
      $region49: #{_lambda_.40} parent=39 // pred_check
        %p621 = pneg %p168
      $region50: #{_lambda_.40} parent=39 // pred_check_branch
        %623 = sbr.rel (%p621) target = $region52
      $region51: #{_lambda_.40} parent=39 // pred_region
        _
      $region52: #{_lambda_.40} parent=39 // pred_fallthru
        _
      // Predicated region
      $region53: #{_lambda_.40} parent=39 // pred_check
        %p624 = pneg %p168
      $region54: #{_lambda_.40} parent=39 // pred_check_branch
        %626 = sbr.rel (%p624) target = $region56
      $region55: #{_lambda_.40} parent=39 // pred_region
        %p627 = scmp.lt.s32.totalorder %s20, 0
        %s628 = scalar_select %p627, %s20, 0
        %s629 = scalar_lea.vmem %s5, %s628
      $region56: #{_lambda_.40} parent=39 // pred_fallthru
        _
    $region40: #{_lambda_.40} parent=5 // pred_fallthru
      _
    %p630 = scmp.le.s32.totalorder 2, %s11
    // Predicated region
    $region57: #{_lambda_.40} parent=5 // pred_check
      %p631 = pneg %p630
    $region58: #{_lambda_.40} parent=5 // pred_check_branch
      %633 = sbr.rel (%p631) target = $region60
    $region59: #{_lambda_.40} parent=5 // pred_region
      %s634 = ssub.s32 %s11, 2
    $region60: #{_lambda_.40} parent=5 // pred_fallthru
      _
  $region6: #{_lambda_.40} parent=0 // loop_footer
    %s15 = sadd.s32 1, %s11
  $region7: #{_lambda_.40} parent=0 // loop_footer_branch
    %10 = sbr.rel target = $region3
  $region8: #{_lambda_.40} parent=0 // loop_exit
    _

// kernel: _lambda_.41
$region0: #{_lambda_.41}
  #allocation0 [shape = 'u32[]', space=smem, size = 0x4, offset = 0x4, fixed_abs, tag = 'smem constant byte address 0x4 - core index']
  #allocation1 [shape = 'u32[144,128]{1,0:T(1,128)}', space=vmem, size = 0x12000, scoped, tag = 'internal scratch']
  #allocation2 [shape = 'f32[2,128]{1,0:T(2,128)}', space=vmem, size = 0x400, scoped, tag = 'scratch operand']
  %s0 = inlined_call_operand.vmem [shape: bf16[2,1152], index: 0, kind: input, shape index: {}]
  %s1 = inlined_call_operand.vmem [shape: bf16[1152,128], index: 1, kind: input, shape index: {}]
  %s2 = inlined_call_operand.vmem [shape: f32[1,128], index: 2, kind: input, shape index: {}]
  %s3 = inlined_call_operand.vmem [shape: f32[1,128], index: 3, kind: input, shape index: {}]
  %s4 = inlined_call_operand.vmem [shape: bf16[2,128], index: 4, kind: output, shape index: {}]
  %s5 = sld [smem:[#allocation0]]
  $region57: #{_lambda_.41} parent=0
    _
  %s7 = ssub.s32 1, %s5
  %s8 = scalar_select 0, %s7, %s5
  loop: start=0, step=1, limit=5
  $region2: #{_lambda_.41} parent=0 // loop_pre_header
    _
  $region3: #{_lambda_.41} parent=0 // loop_header
    %s10 = sphi 0, %s14
    %p11 = scmp.ge.s32.totalorder %s10, 5
    %s17 = sphi 0, %s29
    %s18 = sphi 0, %s25
    %s19 = sphi 0, %s17
    %s20 = sphi 0, %s18
    %s21 = sphi 0, %s19
    %s22 = sphi 0, %s20
    %s34 = sphi 0, %s36
    %s37 = sphi 0, %s34
    %s38 = sphi 0, %s37
    %s54 = sphi 0, %s38
    %s60 = sphi 0, %s62
    %s63 = sphi 0, %s60
    %s64 = sphi 0, %s63
    %s80 = sphi 0, %s64
    %s84 = sphi 0, %s84
    %s86 = sphi 0, %s84
    %s87 = sphi 0, %s86
    %s101 = sphi 0, %s87
    %s105 = sphi 0, %s105
    %s107 = sphi 0, %s105
    %s108 = sphi 0, %s107
    %s122 = sphi 0, %s108
    %s128 = sphi 0, %s130
    %s131 = sphi 0, %s128
    %s132 = sphi 0, %s131
    %s148 = sphi 0, %s132
  $region4: #{_lambda_.41} parent=0 // loop_header_branch
    %13 = sbr.rel (%p11) target = $region8
  $region5: #{_lambda_.41} parent=0 // loop_body
    %s15 = ssub.s32 %s10, 1
    %s16 = ssub.s32 %s10, 2
    %s23 = sadd.s32 1, %s18
    %p24 = scmp.ge.s32.totalorder %s23, 3
    %s25 = scalar_select %p24, 0, %s23
    %s26 = sadd.s32 1, %s17
    %s27 = scalar_select %p24, %s26, %s17
    %p28 = scmp.ge.s32.totalorder %s27, 1
    %s29 = scalar_select %p28, 0, %s27
    %s30 = ssub.s32 %s17, %s29
    %s31 = ssub.s32 %s18, %s25
    %s32 = sor.u32 %s30, %s31
    %p33 = scmp.eq.s32.totalorder %s32, 0
    %s35 = sadd.s32 %s34, 1
    %s36 = scalar_select %p33, %s34, %s35
    %p39 = pneg %p33
    %p40 = scmp.eq.s32.totalorder %s10, 2
    %p41 = por %p39, %p40
    %p42 = scmp.ne.s32.totalorder %s34, %s37
    %p43 = scmp.eq.s32.totalorder %s10, 0
    %p44 = por %p42, %p43
    %p45 = scmp.ne.s32.totalorder %s34, %s37
    %p46 = scmp.eq.s32.totalorder %s15, 2
    %p47 = por %p45, %p46
    %p48 = scmp.ne.s32.totalorder %s37, %s38
    %p49 = scmp.eq.s32.totalorder %s15, 0
    %p50 = por %p48, %p49
    %p51 = scmp.ne.s32.totalorder %s37, %s38
    %p52 = scmp.eq.s32.totalorder %s16, 2
    %p53 = por %p51, %p52
    %p55 = scmp.ne.s32.totalorder %s38, %s54
    %p56 = scmp.eq.s32.totalorder %s16, 0
    %p57 = por %p55, %p56
    %s58 = ssub.s32 %s18, %s25
    %p59 = scmp.eq.s32.totalorder %s58, 0
    %s61 = sadd.s32 %s60, 1
    %s62 = scalar_select %p59, %s60, %s61
    %p65 = pneg %p59
    %p66 = scmp.eq.s32.totalorder %s10, 2
    %p67 = por %p65, %p66
    %p68 = scmp.ne.s32.totalorder %s60, %s63
    %p69 = scmp.eq.s32.totalorder %s10, 0
    %p70 = por %p68, %p69
    %p71 = scmp.ne.s32.totalorder %s60, %s63
    %p72 = scmp.eq.s32.totalorder %s15, 2
    %p73 = por %p71, %p72
    %p74 = scmp.ne.s32.totalorder %s63, %s64
    %p75 = scmp.eq.s32.totalorder %s15, 0
    %p76 = por %p74, %p75
    %p77 = scmp.ne.s32.totalorder %s63, %s64
    %p78 = scmp.eq.s32.totalorder %s16, 2
    %p79 = por %p77, %p78
    %p81 = scmp.ne.s32.totalorder %s64, %s80
    %p82 = scmp.eq.s32.totalorder %s16, 0
    %p83 = por %p81, %p82
    %s85 = sadd.s32 %s84, 1
    %p88 = scmp.eq.s32.totalorder %s10, 2
    %p89 = scmp.ne.s32.totalorder %s84, %s86
    %p90 = scmp.eq.s32.totalorder %s10, 0
    %p91 = por %p89, %p90
    %p92 = scmp.ne.s32.totalorder %s84, %s86
    %p93 = scmp.eq.s32.totalorder %s15, 2
    %p94 = por %p92, %p93
    %p95 = scmp.ne.s32.totalorder %s86, %s87
    %p96 = scmp.eq.s32.totalorder %s15, 0
    %p97 = por %p95, %p96
    %p98 = scmp.ne.s32.totalorder %s86, %s87
    %p99 = scmp.eq.s32.totalorder %s16, 2
    %p100 = por %p98, %p99
    %p102 = scmp.ne.s32.totalorder %s87, %s101
    %p103 = scmp.eq.s32.totalorder %s16, 0
    %p104 = por %p102, %p103
    %s106 = sadd.s32 %s105, 1
    %p109 = scmp.eq.s32.totalorder %s10, 2
    %p110 = scmp.ne.s32.totalorder %s105, %s107
    %p111 = scmp.eq.s32.totalorder %s10, 0
    %p112 = por %p110, %p111
    %p113 = scmp.ne.s32.totalorder %s105, %s107
    %p114 = scmp.eq.s32.totalorder %s15, 2
    %p115 = por %p113, %p114
    %p116 = scmp.ne.s32.totalorder %s107, %s108
    %p117 = scmp.eq.s32.totalorder %s15, 0
    %p118 = por %p116, %p117
    %p119 = scmp.ne.s32.totalorder %s107, %s108
    %p120 = scmp.eq.s32.totalorder %s16, 2
    %p121 = por %p119, %p120
    %p123 = scmp.ne.s32.totalorder %s108, %s122
    %p124 = scmp.eq.s32.totalorder %s16, 0
    %p125 = por %p123, %p124
    %s126 = ssub.s32 %s17, %s29
    %p127 = scmp.eq.s32.totalorder %s126, 0
    %s129 = sadd.s32 %s128, 1
    %s130 = scalar_select %p127, %s128, %s129
    %p133 = pneg %p127
    %p134 = scmp.eq.s32.totalorder %s10, 2
    %p135 = por %p133, %p134
    %p136 = scmp.ne.s32.totalorder %s128, %s131
    %p137 = scmp.eq.s32.totalorder %s10, 0
    %p138 = por %p136, %p137
    %p139 = scmp.ne.s32.totalorder %s128, %s131
    %p140 = scmp.eq.s32.totalorder %s15, 2
    %p141 = por %p139, %p140
    %p142 = scmp.ne.s32.totalorder %s131, %s132
    %p143 = scmp.eq.s32.totalorder %s15, 0
    %p144 = por %p142, %p143
    %p145 = scmp.ne.s32.totalorder %s131, %s132
    %p146 = scmp.eq.s32.totalorder %s16, 2
    %p147 = por %p145, %p146
    %p149 = scmp.ne.s32.totalorder %s132, %s148
    %p150 = scmp.eq.s32.totalorder %s16, 0
    %p151 = por %p149, %p150
    %p152 = scmp.le.s32.totalorder 1, %s10
    %p153 = scmp.lt.s32.totalorder %s10, 4
    %p154 = pnand %p152, %p153
    %p155 = pneg %p154
    // Predicated region
    $region9: #{_lambda_.41} parent=5 // pred_check
      _
    $region10: #{_lambda_.41} parent=5 // pred_check_branch
      %157 = sbr.rel (%p154) target = $region12
    $region11: #{_lambda_.41} parent=5 // pred_region
      %s158 = ssub.s32 %s10, 1
      // Predicated region
      $region13: #{_lambda_.41} parent=11 // pred_check
        %p159 = pneg %p97
      $region14: #{_lambda_.41} parent=11 // pred_check_branch
        %161 = sbr.rel (%p159) target = $region16
      $region15: #{_lambda_.41} parent=11 // pred_region
        _
      $region16: #{_lambda_.41} parent=11 // pred_fallthru
        _
      // Predicated region
      $region17: #{_lambda_.41} parent=11 // pred_check
        %p162 = pneg %p118
      $region18: #{_lambda_.41} parent=11 // pred_check_branch
        %164 = sbr.rel (%p162) target = $region20
      $region19: #{_lambda_.41} parent=11 // pred_region
        _
      $region20: #{_lambda_.41} parent=11 // pred_fallthru
        _
    $region12: #{_lambda_.41} parent=5 // pred_fallthru
      _
    %p165 = scmp.lt.s32.totalorder %s10, 3
    // Predicated region
    $region21: #{_lambda_.41} parent=5 // pred_check
      %p166 = pneg %p165
    $region22: #{_lambda_.41} parent=5 // pred_check_branch
      %168 = sbr.rel (%p166) target = $region24
    $region23: #{_lambda_.41} parent=5 // pred_region
      // Predicated region
      $region25: #{_lambda_.41} parent=23 // pred_check
        %p169 = pneg %p44
      $region26: #{_lambda_.41} parent=23 // pred_check_branch
        %171 = sbr.rel (%p169) target = $region28
      $region27: #{_lambda_.41} parent=23 // pred_region
        %s172 = smul.u32 3, %s18
        %p173 = scmp.lt.s32.totalorder %s17, 0
        %s174 = scalar_select %p173, %s17, 0
        %p175 = scmp.lt.s32.totalorder %s172, 8
        %s176 = scalar_select %p175, %s172, 8
        %s177 = smul.addr %s174, 9
        %s178 = sadd.s32 %s176, %s177
        %s179 = scalar_lea.vmem %s0, %s178
        %s180 = smul.u32 3, %s18
      $region28: #{_lambda_.41} parent=23 // pred_fallthru
        _
      // Predicated region
      $region29: #{_lambda_.41} parent=23 // pred_check
        %p181 = pneg %p70
      $region30: #{_lambda_.41} parent=23 // pred_check_branch
        %183 = sbr.rel (%p181) target = $region32
      $region31: #{_lambda_.41} parent=23 // pred_region
        %s184 = smul.u32 48, %s18
        %p185 = scmp.lt.s32.totalorder %s184, 143
        %s186 = scalar_select %p185, %s184, 143
        %s187 = smul.addr %s186, 4
        %s188 = scalar_lea.vmem %s1, %s187
        %s189 = smul.u32 48, %s18
      $region32: #{_lambda_.41} parent=23 // pred_fallthru
        _
    $region24: #{_lambda_.41} parent=5 // pred_fallthru
      _
    %p190 = scmp.le.s32.totalorder 1, %s10
    %p191 = scmp.lt.s32.totalorder %s10, 4
    %p192 = pnand %p190, %p191
    %p193 = pneg %p192
    // Predicated region
    $region33: #{_lambda_.41} parent=5 // pred_check
      _
    $region34: #{_lambda_.41} parent=5 // pred_check_branch
      %195 = sbr.rel (%p192) target = $region36
    $region35: #{_lambda_.41} parent=5 // pred_region
      %s196 = ssub.s32 %s10, 1
      %s197 = smul.u32 3, %s20
      %p198 = scmp.lt.s32.totalorder %s19, 0
      %s199 = scalar_select %p198, %s19, 0
      %p200 = scmp.lt.s32.totalorder %s197, 8
      %s201 = scalar_select %p200, %s197, 8
      %s202 = smul.addr %s199, 9
      %s203 = sadd.s32 %s201, %s202
      %s204 = scalar_lea.vmem %s0, %s203
      %p205 = pneg %p50
      %p206 = pneg %p47
      %s207 = smul.u32 48, %s20
      %p208 = scmp.lt.s32.totalorder %s207, 143
      %s209 = scalar_select %p208, %s207, 143
      %s210 = smul.addr %s209, 4
      %s211 = scalar_lea.vmem %s1, %s210
      %p212 = pneg %p76
      %p213 = pneg %p73
      %p214 = pneg %p97
      %p215 = pneg %p94
      %p216 = pneg %p118
      %p217 = pneg %p115
      %p218 = pneg %p144
      %p219 = pneg %p141
      %p220 = scmp.lt.s32.totalorder %s19, 0
      %s221 = scalar_select %p220, %s19, 0
      %s222 = scalar_lea.vmem %s4, %s221
      %s223 = smul.u32 3, %s20
      %p224 = scmp.lt.s32.totalorder %s19, 0
      %s225 = scalar_select %p224, %s19, 0
      %p226 = scmp.lt.s32.totalorder %s223, 8
      %s227 = scalar_select %p226, %s223, 8
      %s228 = smul.addr %s225, 9
      %s229 = sadd.s32 %s227, %s228
      %s230 = scalar_lea.vmem %s0, %s229
      %s231 = smul.u32 3, %s20
      %s232 = smul.u32 48, %s20
      %p233 = scmp.lt.s32.totalorder %s232, 143
      %s234 = scalar_select %p233, %s232, 143
      %s235 = smul.addr %s234, 4
      %s236 = scalar_lea.vmem %s1, %s235
      %s237 = smul.u32 48, %s20
      %p238 = scmp.lt.s32.totalorder %s19, 0
      %s239 = scalar_select %p238, %s19, 0
      %s240 = scalar_lea.vmem %s4, %s239
      %p242 = scmp.eq.s32.totalorder %s20, 0
      // Predicated region
      $region37: #{_lambda_.41} parent=35 // pred_check
        %p243 = pneg %p242
      $region38: #{_lambda_.41} parent=35 // pred_check_branch
        %245 = sbr.rel (%p243) target = $region40
      $region39: #{_lambda_.41} parent=35 // pred_region
        %246 = vst [vmem:[#allocation2] sm:$0x3] 0.0
      $region40: #{_lambda_.41} parent=35 // pred_fallthru
        _
      %v247 = vld [vmem:[#allocation2] sm:$0x3]
      %v248 = vld [vmem:[%s230] sm:$0x7]
      %v249 = vld [vmem:[%s236] sm:$0xf]
      %v250 = vld [vmem:[%s236 + $0x4] sm:$0xf]
      %v251 = vld [vmem:[%s236 + $0x8] sm:$0xf]
      %v252 = vld [vmem:[%s236 + $0xc] sm:$0xf]
      %v253 = vld [vmem:[%s236 + $0x10] sm:$0xf]
      %v254 = vld [vmem:[%s236 + $0x14] sm:$0xf]
      %v255 = vld [vmem:[%s236 + $0x18] sm:$0xf]
      %v256 = vld [vmem:[%s236 + $0x1c] sm:$0xf]
      %v257 = vld [vmem:[%s236 + $0x20] sm:$0xf]
      %v258 = vld [vmem:[%s236 + $0x24] sm:$0xf]
      %v259 = vld [vmem:[%s236 + $0x28] sm:$0xf]
      %v260 = vld [vmem:[%s236 + $0x2c] sm:$0xf]
      %v261 = vld [vmem:[%s236 + $0x30] sm:$0xf]
      %v262 = vld [vmem:[%s236 + $0x34] sm:$0xf]
      %v263 = vld [vmem:[%s236 + $0x38] sm:$0xf]
      %v264 = vld [vmem:[%s236 + $0x3c] sm:$0xf]
      %v265 = vld [vmem:[%s236 + $0x40] sm:$0xf]
      %v266 = vld [vmem:[%s236 + $0x44] sm:$0xf]
      %v267 = vld [vmem:[%s236 + $0x48] sm:$0xf]
      %v268 = vld [vmem:[%s236 + $0x4c] sm:$0xf]
      %v269 = vld [vmem:[%s236 + $0x50] sm:$0xf]
      %v270 = vld [vmem:[%s236 + $0x54] sm:$0xf]
      %v271 = vld [vmem:[%s236 + $0x58] sm:$0xf]
      %v272 = vld [vmem:[%s236 + $0x5c] sm:$0xf]
      %v273 = vld [vmem:[%s236 + $0x60] sm:$0xf]
      %v274 = vld [vmem:[%s236 + $0x64] sm:$0xf]
      %v275 = vld [vmem:[%s236 + $0x68] sm:$0xf]
      %v276 = vld [vmem:[%s236 + $0x6c] sm:$0xf]
      %v277 = vld [vmem:[%s236 + $0x70] sm:$0xf]
      %v278 = vld [vmem:[%s236 + $0x74] sm:$0xf]
      %v279 = vld [vmem:[%s236 + $0x78] sm:$0xf]
      %v280 = vld [vmem:[%s236 + $0x7c] sm:$0xf]
      %v281 = vld [vmem:[%s236 + $0x80] sm:$0xf]
      %v282 = vld [vmem:[%s236 + $0x84] sm:$0xf]
      %v283 = vld [vmem:[%s236 + $0x88] sm:$0xf]
      %v284 = vld [vmem:[%s236 + $0x8c] sm:$0xf]
      %v285 = vld [vmem:[%s236 + $0x90] sm:$0xf]
      %v286 = vld [vmem:[%s236 + $0x94] sm:$0xf]
      %v287 = vld [vmem:[%s236 + $0x98] sm:$0xf]
      %v288 = vld [vmem:[%s236 + $0x9c] sm:$0xf]
      %v289 = vld [vmem:[%s236 + $0xa0] sm:$0xf]
      %v290 = vld [vmem:[%s236 + $0xa4] sm:$0xf]
      %v291 = vld [vmem:[%s236 + $0xa8] sm:$0xf]
      %v292 = vld [vmem:[%s236 + $0xac] sm:$0xf]
      %v293 = vld [vmem:[%s236 + $0xb0] sm:$0xf]
      %v294 = vld [vmem:[%s236 + $0xb4] sm:$0xf]
      %v295 = vld [vmem:[%s236 + $0xb8] sm:$0xf]
      %v296 = vld [vmem:[%s236 + $0xbc] sm:$0xf]
      %v299 = vunpack.c.l.s4 1966171168
      %v300 = vunpack.c.0.s8 %v299
      %v301 = vlaneseq
      %v302 = vshrl.u32 %v301, 7
      %v303 = vsub.s32 %v300, %v302
      %v304 = vrot.slane %v248, %v303
      %v305 = vcombine.high %v304, %v304
      %v307 = vunpack.c.l.s4 1966171168
      %v308 = vunpack.c.0.s8 %v307
      %v309 = vlaneseq
      %v310 = vshrl.u32 %v309, 7
      %v311 = vsub.s32 %v308, %v310
      %v312 = vrot.slane %v304, %v311
      %v314 = vunpack.c.l.s4 1966171168
      %v315 = vunpack.c.0.s8 %v314
      %v316 = vlaneseq
      %v317 = vshrl.u32 %v316, 7
      %v318 = vsub.s32 %v315, %v317
      %v319 = vrot.slane %v305, %v318
      %v320 = vcombine.high %v312, %v312
      %v372 = vunpack.c.l.b16 %v249
      %v373 = vunpack.c.l.b16 %v250
      %v374 = vunpack.c.l.b16 %v251
      %v375 = vunpack.c.l.b16 %v252
      %v376 = vunpack.c.l.b16 %v253
      %v377 = vunpack.c.l.b16 %v254
      %v378 = vunpack.c.l.b16 %v255
      %v379 = vunpack.c.l.b16 %v256
      %v380 = vunpack.c.l.b16 %v257
      %v381 = vunpack.c.l.b16 %v258
      %v382 = vunpack.c.l.b16 %v259
      %v383 = vunpack.c.l.b16 %v260
      %v384 = vunpack.c.l.b16 %v261
      %v385 = vunpack.c.l.b16 %v262
      %v386 = vunpack.c.l.b16 %v263
      %v387 = vunpack.c.l.b16 %v264
      %v388 = vunpack.c.l.b16 %v265
      %v389 = vunpack.c.l.b16 %v266
      %v390 = vunpack.c.l.b16 %v267
      %v391 = vunpack.c.l.b16 %v268
      %v392 = vunpack.c.l.b16 %v269
      %v393 = vunpack.c.l.b16 %v270
      %v394 = vunpack.c.l.b16 %v271
      %v395 = vunpack.c.l.b16 %v272
      %v396 = vunpack.c.l.b16 %v273
      %v397 = vunpack.c.l.b16 %v274
      %v398 = vunpack.c.l.b16 %v275
      %v399 = vunpack.c.l.b16 %v276
      %v400 = vunpack.c.l.b16 %v277
      %v401 = vunpack.c.l.b16 %v278
      %v402 = vunpack.c.l.b16 %v279
      %v403 = vunpack.c.l.b16 %v280
      %v404 = vunpack.c.l.b16 %v281
      %v405 = vunpack.c.l.b16 %v282
      %v406 = vunpack.c.l.b16 %v283
      %v407 = vunpack.c.l.b16 %v284
      %v408 = vunpack.c.l.b16 %v285
      %v409 = vunpack.c.l.b16 %v286
      %v410 = vunpack.c.l.b16 %v287
      %v411 = vunpack.c.l.b16 %v288
      %v412 = vunpack.c.l.b16 %v289
      %v413 = vunpack.c.l.b16 %v290
      %v414 = vunpack.c.l.b16 %v291
      %v415 = vunpack.c.l.b16 %v292
      %v416 = vunpack.c.l.b16 %v293
      %v417 = vunpack.c.l.b16 %v294
      %v418 = vunpack.c.l.b16 %v295
      %v419 = vunpack.c.l.b16 %v296
      %v420 = vpack.c.b16 %v373, %v372
      %v421 = vpack.c.b16 %v375, %v374
      %v422 = vpack.c.b16 %v377, %v376
      %v423 = vpack.c.b16 %v379, %v378
      %v424 = vpack.c.b16 %v381, %v380
      %v425 = vpack.c.b16 %v383, %v382
      %v426 = vpack.c.b16 %v385, %v384
      %v427 = vpack.c.b16 %v387, %v386
      %v428 = vpack.c.b16 %v389, %v388
      %v429 = vpack.c.b16 %v391, %v390
      %v430 = vpack.c.b16 %v393, %v392
      %v431 = vpack.c.b16 %v395, %v394
      %v432 = vpack.c.b16 %v397, %v396
      %v433 = vpack.c.b16 %v399, %v398
      %v434 = vpack.c.b16 %v401, %v400
      %v435 = vpack.c.b16 %v403, %v402
      %v436 = vpack.c.b16 %v405, %v404
      %v437 = vpack.c.b16 %v407, %v406
      %v438 = vpack.c.b16 %v409, %v408
      %v439 = vpack.c.b16 %v411, %v410
      %v440 = vpack.c.b16 %v413, %v412
      %v441 = vpack.c.b16 %v415, %v414
      %v442 = vpack.c.b16 %v417, %v416
      %v443 = vpack.c.b16 %v419, %v418
      %468 = vmatprep.subr.bf16.mxu0 0
      %469 = vmatpush1.bf16.msra.mxu0 %v420
      %470 = vmatprep.subr.bf16.mxu0 0
      %471 = vmatpush1.bf16.msra.mxu0 %v421
      %472 = vmatprep.subr.bf16.mxu0 0
      %473 = vmatpush1.bf16.msra.mxu0 %v422
      %474 = vmatprep.subr.bf16.mxu0 0
      %475 = vmatpush1.bf16.msra.mxu0 %v423
      %476 = vmatprep.subr.bf16.mxu0 0
      %477 = vmatpush1.bf16.msra.mxu0 %v424
      %478 = vmatprep.subr.bf16.mxu0 0
      %479 = vmatpush1.bf16.msra.mxu0 %v425
      %480 = vmatprep.subr.bf16.mxu0 0
      %481 = vmatpush1.bf16.msra.mxu0 %v426
      %482 = vmatprep.subr.bf16.mxu0 0
      %483 = vmatpush1.bf16.msra.mxu0 %v427
      %484 = vmatprep.subr.bf16.mxu0 0
      %485 = vmatpush1.bf16.msra.mxu0 %v428
      %486 = vmatprep.subr.bf16.mxu0 0
      %487 = vmatpush1.bf16.msra.mxu0 %v429
      %488 = vmatprep.subr.bf16.mxu0 0
      %489 = vmatpush1.bf16.msra.mxu0 %v430
      %490 = vmatprep.subr.bf16.mxu0 0
      %491 = vmatpush1.bf16.msra.mxu0 %v431
      %492 = vmatprep.subr.bf16.mxu0 0
      %493 = vmatpush1.bf16.msra.mxu0 %v432
      %494 = vmatprep.subr.bf16.mxu0 0
      %495 = vmatpush1.bf16.msra.mxu0 %v433
      %496 = vmatprep.subr.bf16.mxu0 0
      %497 = vmatpush1.bf16.msra.mxu0 %v434
      %498 = vmatprep.subr.bf16.mxu0 0
      %499 = vmatpush1.bf16.msra.mxu0 %v435
      %500 = vmatprep.mubr.bf16.mxu0 %v319
      %501 = vmatmul.mubr.bf16.gmra.mrb[0].mxu0 %v312
      %v502 = vpop.f32.mrb[0].mxu0
      %v503 = vadd.f32 0.0, %v502
      %v504 = vpop.f32.mrb[0].mxu0
      %v505 = vpop.f32.mrb[0].mxu0
      %v506 = vpop.f32.mrb[0].mxu0
      %507 = vdwg.mxu0
      %508 = vmatprep.subr.bf16.mxu0 0
      %509 = vmatpush1.bf16.msra.mxu0 %v436
      %510 = vmatprep.subr.bf16.mxu0 0
      %511 = vmatpush1.bf16.msra.mxu0 %v437
      %512 = vmatprep.subr.bf16.mxu0 0
      %513 = vmatpush1.bf16.msra.mxu0 %v438
      %514 = vmatprep.subr.bf16.mxu0 0
      %515 = vmatpush1.bf16.msra.mxu0 %v439
      %516 = vmatprep.subr.bf16.mxu0 0
      %517 = vmatpush1.bf16.msra.mxu0 %v440
      %518 = vmatprep.subr.bf16.mxu0 0
      %519 = vmatpush1.bf16.msra.mxu0 %v441
      %520 = vmatprep.subr.bf16.mxu0 0
      %521 = vmatpush1.bf16.msra.mxu0 %v442
      %522 = vmatprep.subr.bf16.mxu0 0
      %523 = vmatpush1.bf16.msra.mxu0 %v443
      %524 = vmatprep.subr.bf16.mxu0 0
      %525 = vmatpush1.bf16.msra.mxu0 0
      %526 = vmatprep.subr.bf16.mxu0 0
      %527 = vmatpush1.bf16.msra.mxu0 0
      %528 = vmatprep.subr.bf16.mxu0 0
      %529 = vmatpush1.bf16.msra.mxu0 0
      %530 = vmatprep.subr.bf16.mxu0 0
      %531 = vmatpush1.bf16.msra.mxu0 0
      %532 = vmatprep.subr.bf16.mxu0 0
      %533 = vmatpush1.bf16.msra.mxu0 0
      %534 = vmatprep.subr.bf16.mxu0 0
      %535 = vmatpush1.bf16.msra.mxu0 0
      %536 = vmatprep.subr.bf16.mxu0 0
      %537 = vmatpush1.bf16.msra.mxu0 0
      %538 = vmatprep.subr.bf16.mxu0 0
      %539 = vmatpush1.bf16.msra.mxu0 0
      %540 = vmatprep.mubr.bf16.mxu0 0
      %541 = vmatmul.mubr.bf16.gmra.mrb[0].mxu0 %v320
      %v542 = vpop.f32.mrb[0].mxu0
      %v543 = vadd.f32 %v503, %v542
      %v544 = vpop.f32.mrb[0].mxu0
      %v545 = vpop.f32.mrb[0].mxu0
      %v546 = vpop.f32.mrb[0].mxu0
      %547 = vdwg.mxu0
      %v548 = vadd.f32 %v247, %v543
      %549 = vst [vmem:[#allocation2] sm:$0x3] %v548
      %p550 = scmp.eq.s32.totalorder %s20, 2
      // Predicated region
      $region41: #{_lambda_.41} parent=35 // pred_check
        %p551 = pneg %p550
      $region42: #{_lambda_.41} parent=35 // pred_check_branch
        %553 = sbr.rel (%p551) target = $region44
      $region43: #{_lambda_.41} parent=35 // pred_region
        %v554 = vld [vmem:[#allocation2] sm:$0x3]
        %v555 = vld [vmem:[%s2] sm:$0x1]
        %v557 = vlaneseq
        %v558 = vshrl.u32 %v557, 7
        %v559 = vsub.s32 0, %v558
        %v560 = vrot.slane %v555, %v559
        %v562 = vmul.f32 %v554, %v560
        %v563 = vld [vmem:[%s3] sm:$0x1]
        %v565 = vlaneseq
        %v566 = vshrl.u32 %v565, 7
        %v567 = vsub.s32 0, %v566
        %v568 = vrot.slane %v563, %v567
        %v570 = vadd.f32 %v562, %v568
        %v571 = vmax.f32 %v570, 0.0
        %v572 = vpack.c.bf16 %v571, %v571
        %573 = vst [vmem:[%s240] sm:$0x1] %v572
      $region44: #{_lambda_.41} parent=35 // pred_fallthru
        _
      %p574 = scmp.lt.s32.totalorder %s19, 0
      %s575 = scalar_select %p574, %s19, 0
      %s576 = scalar_lea.vmem %s4, %s575
      // Predicated region
      $region45: #{_lambda_.41} parent=35 // pred_check
        %p577 = pneg %p141
      $region46: #{_lambda_.41} parent=35 // pred_check_branch
        %579 = sbr.rel (%p577) target = $region48
      $region47: #{_lambda_.41} parent=35 // pred_region
        _
      $region48: #{_lambda_.41} parent=35 // pred_fallthru
        _
      // Predicated region
      $region49: #{_lambda_.41} parent=35 // pred_check
        %p580 = pneg %p141
      $region50: #{_lambda_.41} parent=35 // pred_check_branch
        %582 = sbr.rel (%p580) target = $region52
      $region51: #{_lambda_.41} parent=35 // pred_region
        %p583 = scmp.lt.s32.totalorder %s19, 0
        %s584 = scalar_select %p583, %s19, 0
        %s585 = scalar_lea.vmem %s4, %s584
      $region52: #{_lambda_.41} parent=35 // pred_fallthru
        _
    $region36: #{_lambda_.41} parent=5 // pred_fallthru
      _
    %p586 = scmp.le.s32.totalorder 2, %s10
    // Predicated region
    $region53: #{_lambda_.41} parent=5 // pred_check
      %p587 = pneg %p586
    $region54: #{_lambda_.41} parent=5 // pred_check_branch
      %589 = sbr.rel (%p587) target = $region56
    $region55: #{_lambda_.41} parent=5 // pred_region
      %s590 = ssub.s32 %s10, 2
    $region56: #{_lambda_.41} parent=5 // pred_fallthru
      _
  $region6: #{_lambda_.41} parent=0 // loop_footer
    %s14 = sadd.s32 1, %s10
  $region7: #{_lambda_.41} parent=0 // loop_footer_branch
    %9 = sbr.rel target = $region3
  $region8: #{_lambda_.41} parent=0 // loop_exit
    _

// kernel: _lambda_.43
$region0: #{_lambda_.43}
  #allocation0 [shape = 'u32[]', space=smem, size = 0x4, offset = 0x4, fixed_abs, tag = 'smem constant byte address 0x4 - core index']
  #allocation1 [shape = 'u32[144,128]{1,0:T(1,128)}', space=vmem, size = 0x12000, scoped, tag = 'internal scratch']
  %s0 = inlined_call_operand.vmem [shape: bf16[2,1,128], index: 0, kind: input, shape index: {}]
  %s1 = inlined_call_operand.vmem [shape: bf16[128,10], index: 1, kind: input, shape index: {}]
  %s2 = inlined_call_operand.vmem [shape: f32[1,10], index: 2, kind: input, shape index: {}]
  %s3 = inlined_call_operand.hbm [shape: f32[2,128], index: 3, kind: output, shape index: {0}]
  %s4 = inlined_call_operand.hbm [shape: f32[2,10], index: 4, kind: output, shape index: {1}]
  %5 = xla_tuple %s3, %s4
  %s6 = sld [smem:[#allocation0]]
  $region30: #{_lambda_.43} parent=0
    _
  %s8 = ssub.s32 1, %s6
  %s9 = scalar_select 0, %s8, %s6
  $region1: #{_lambda_.43} parent=0
    #allocation2 [shape = 'u8[1024]{0}', space=vmem, size = 0x400, scoped, tag = 'output window, operand 0, single buffered']
    #allocation3 [shape = 's32[1]{0}', space=sflag, size = 0x4, scoped, tag = 'scoped memory for _lambda_.43']
    #allocation4 [shape = 'u8[1024]{0}', space=vmem, size = 0x400, scoped, tag = 'output window, operand 1, single buffered']
    #allocation5 [shape = 's32[1]{0}', space=sflag, size = 0x4, scoped, tag = 'scoped memory for _lambda_.43']
    %10 = vsyncpa [#allocation3], 0
    %11 = vsyncpa [#allocation5], 0
    // Predicated region
    $region2: #{_lambda_.43} parent=1 // pred_check
      _
    $region3: #{_lambda_.43} parent=1 // pred_check_branch
      %13 = sbr.rel (0) target = $region5
    $region4: #{_lambda_.43} parent=1 // pred_region
      _
    $region5: #{_lambda_.43} parent=1 // pred_fallthru
      _
    // Predicated region
    $region6: #{_lambda_.43} parent=1 // pred_check
      _
    $region7: #{_lambda_.43} parent=1 // pred_check_branch
      %15 = sbr.rel (0) target = $region9
    $region8: #{_lambda_.43} parent=1 // pred_region
      _
    $region9: #{_lambda_.43} parent=1 // pred_fallthru
      _
    // Predicated region
    $region10: #{_lambda_.43} parent=1 // pred_check
      _
    $region11: #{_lambda_.43} parent=1 // pred_check_branch
      %17 = sbr.rel (0) target = $region13
    $region12: #{_lambda_.43} parent=1 // pred_region
      _
    $region13: #{_lambda_.43} parent=1 // pred_fallthru
      _
    %v19 = vld [vmem:[%s0] sm:$0x1]
    %v20 = vld [vmem:[%s0 + $0x1] sm:$0x1]
    %v21 = vunpack.c.l.bf16 %v19
    %v22 = vunpack.c.l.bf16 %v20
    %v23 = vadd.f32 %v21, 0.0
    %v24 = vadd.f32 %v22, 0.0
    %v27 = vlaneseq
    %v28 = vshrl.u32 %v27, 7
    %v29 = vsub.s32 0, %v28
    %v30 = vrot.slane %v23, %v29
    %v31 = vlaneseq
    %v32 = vshrl.u32 %v31, 7
    %v33 = vsub.s32 0, %v32
    %v34 = vrot.slane %v24, %v33
    %vm35 = vcmask 1041409
    %v36 = vsel %vm35, %v34, %v30
    %38 = vst [vmem:[#allocation2] sm:$0x3] %v36
    %v39 = vpack.c.bf16 %v23, %v23
    %v40 = vpack.c.bf16 %v24, %v24
    %v41 = vld [vmem:[%s1] sm:$0xf]
    %v42 = vld [vmem:[%s1 + $0x4] sm:$0xf]
    %v43 = vld [vmem:[%s1 + $0x8] sm:$0xf]
    %v44 = vld [vmem:[%s1 + $0xc] sm:$0xf]
    %v45 = vld [vmem:[%s1 + $0x10] sm:$0xf]
    %v46 = vld [vmem:[%s1 + $0x14] sm:$0xf]
    %v47 = vld [vmem:[%s1 + $0x18] sm:$0xf]
    %v48 = vld [vmem:[%s1 + $0x1c] sm:$0xf]
    %v49 = vld [vmem:[%s1 + $0x20] sm:$0xf]
    %v50 = vld [vmem:[%s1 + $0x24] sm:$0xf]
    %v51 = vld [vmem:[%s1 + $0x28] sm:$0xf]
    %v52 = vld [vmem:[%s1 + $0x2c] sm:$0xf]
    %v53 = vld [vmem:[%s1 + $0x30] sm:$0xf]
    %v54 = vld [vmem:[%s1 + $0x34] sm:$0xf]
    %v55 = vld [vmem:[%s1 + $0x38] sm:$0xf]
    %v56 = vld [vmem:[%s1 + $0x3c] sm:$0xf]
    %v57 = vld [vmem:[%s2] sm:$0x1]
    %v59 = vlaneseq
    %v60 = vshrl.u32 %v59, 7
    %v61 = vsub.s32 0, %v60
    %v62 = vrot.slane %v57, %v61
    %v66 = vunpack.c.l.b16 %v39
    %v67 = vunpack.c.l.b16 %v40
    %v68 = vrot.slane %v67, 7
    %v69 = vsel %vm35, %v68, %v66
    %v70 = vpack.c.b16 %v69, %v69
    %v88 = vunpack.c.l.b16 %v41
    %v89 = vunpack.c.l.b16 %v42
    %v90 = vunpack.c.l.b16 %v43
    %v91 = vunpack.c.l.b16 %v44
    %v92 = vunpack.c.l.b16 %v45
    %v93 = vunpack.c.l.b16 %v46
    %v94 = vunpack.c.l.b16 %v47
    %v95 = vunpack.c.l.b16 %v48
    %v96 = vunpack.c.l.b16 %v49
    %v97 = vunpack.c.l.b16 %v50
    %v98 = vunpack.c.l.b16 %v51
    %v99 = vunpack.c.l.b16 %v52
    %v100 = vunpack.c.l.b16 %v53
    %v101 = vunpack.c.l.b16 %v54
    %v102 = vunpack.c.l.b16 %v55
    %v103 = vunpack.c.l.b16 %v56
    %v104 = vpack.c.b16 %v89, %v88
    %v105 = vpack.c.b16 %v91, %v90
    %v106 = vpack.c.b16 %v93, %v92
    %v107 = vpack.c.b16 %v95, %v94
    %v108 = vpack.c.b16 %v97, %v96
    %v109 = vpack.c.b16 %v99, %v98
    %v110 = vpack.c.b16 %v101, %v100
    %v111 = vpack.c.b16 %v103, %v102
    %120 = vmatprep.subr.bf16.mxu0 0
    %121 = vmatpush1.bf16.msra.mxu0 %v104
    %122 = vmatprep.subr.bf16.mxu0 0
    %123 = vmatpush1.bf16.msra.mxu0 %v105
    %124 = vmatprep.subr.bf16.mxu0 0
    %125 = vmatpush1.bf16.msra.mxu0 %v106
    %126 = vmatprep.subr.bf16.mxu0 0
    %127 = vmatpush1.bf16.msra.mxu0 %v107
    %128 = vmatprep.subr.bf16.mxu0 0
    %129 = vmatpush1.bf16.msra.mxu0 %v108
    %130 = vmatprep.subr.bf16.mxu0 0
    %131 = vmatpush1.bf16.msra.mxu0 %v109
    %132 = vmatprep.subr.bf16.mxu0 0
    %133 = vmatpush1.bf16.msra.mxu0 %v110
    %134 = vmatprep.subr.bf16.mxu0 0
    %135 = vmatpush1.bf16.msra.mxu0 %v111
    %136 = vmatprep.subr.bf16.mxu0 0
    %137 = vmatpush1.bf16.msra.mxu0 0
    %138 = vmatprep.subr.bf16.mxu0 0
    %139 = vmatpush1.bf16.msra.mxu0 0
    %140 = vmatprep.subr.bf16.mxu0 0
    %141 = vmatpush1.bf16.msra.mxu0 0
    %142 = vmatprep.subr.bf16.mxu0 0
    %143 = vmatpush1.bf16.msra.mxu0 0
    %144 = vmatprep.subr.bf16.mxu0 0
    %145 = vmatpush1.bf16.msra.mxu0 0
    %146 = vmatprep.subr.bf16.mxu0 0
    %147 = vmatpush1.bf16.msra.mxu0 0
    %148 = vmatprep.subr.bf16.mxu0 0
    %149 = vmatpush1.bf16.msra.mxu0 0
    %150 = vmatprep.subr.bf16.mxu0 0
    %151 = vmatpush1.bf16.msra.mxu0 0
    %152 = vmatprep.mubr.bf16.mxu0 0
    %153 = vmatmul.mubr.bf16.gmra.mrb[0].mxu0 %v70
    %v154 = vpop.f32.mrb[0].mxu0
    %v155 = vadd.f32 %v62, %v154
    %v156 = vpop.f32.mrb[0].mxu0
    %v157 = vpop.f32.mrb[0].mxu0
    %v158 = vpop.f32.mrb[0].mxu0
    %159 = vdwg.mxu0
    %vm160 = vcmask 74752
    %161 = vst.msk [vmem:[#allocation4] sm:$0x3] %vm160, %v155
    // Predicated region
    $region14: #{_lambda_.43} parent=1 // pred_check
      _
    $region15: #{_lambda_.43} parent=1 // pred_check_branch
      %163 = sbr.rel (0) target = $region17
    $region16: #{_lambda_.43} parent=1 // pred_region
      %s165 = ssub.s32 32, 32
      %166 = vsyncadd [#allocation3], %s165
      %s168 = sshll.u32 [#allocation2], 4
      %s169 = int_to_ptr.vmem [resolvable:$true] %s168
      %171 = dma.vmem_to_hbm [thread:$0]  %s169, 32, %s3, [#allocation3]
    $region17: #{_lambda_.43} parent=1 // pred_fallthru
      _
    // Predicated region
    $region18: #{_lambda_.43} parent=1 // pred_check
      _
    $region19: #{_lambda_.43} parent=1 // pred_check_branch
      %173 = sbr.rel (0) target = $region21
    $region20: #{_lambda_.43} parent=1 // pred_region
      %s175 = ssub.s32 32, 32
      %176 = vsyncadd [#allocation5], %s175
      %s178 = sshll.u32 [#allocation4], 4
      %s179 = int_to_ptr.vmem [resolvable:$true] %s178
      %181 = dma.vmem_to_hbm [thread:$0]  %s179, 32, %s4, [#allocation5]
    $region21: #{_lambda_.43} parent=1 // pred_fallthru
      _
    // Predicated region
    $region22: #{_lambda_.43} parent=1 // pred_check
      _
    $region23: #{_lambda_.43} parent=1 // pred_check_branch
      %183 = sbr.rel (0) target = $region25
    $region24: #{_lambda_.43} parent=1 // pred_region
      %184 = dma.done [#allocation3], 32
    $region25: #{_lambda_.43} parent=1 // pred_fallthru
      _
    // Predicated region
    $region26: #{_lambda_.43} parent=1 // pred_check
      _
    $region27: #{_lambda_.43} parent=1 // pred_check_branch
      %186 = sbr.rel (0) target = $region29
    $region28: #{_lambda_.43} parent=1 // pred_region
      %187 = dma.done [#allocation5], 32
    $region29: #{_lambda_.43} parent=1 // pred_fallthru
      _
    %188 = vsyncpa [#allocation3], 1
    %189 = vsyncpa [#allocation5], 1

</llo_original>
